<compile_context>
chip_gen: v5e
topology: v5e:2x2
jax: 0.10.0
libtpu: 0.0.40
codegen_flags: <defaults>
</compile_context>

<pallas_src>
import functools

import jax
import jax.numpy as jnp
from jax.experimental import pallas as pl
from jax.experimental.pallas import tpu as pltpu


def _round_up(x, m):
    return (x + m - 1) // m * m


# -----------------------------------------------------------------------------
# Pallas kernel: fused gated conv (transposed, lane-dense) + LeakyReLU +
# sigmoid gate + per-tile BatchNorm partial statistics.
# -----------------------------------------------------------------------------
def _gated_conv_kernel(p_ref, w_ref, b_ref, y_ref, sum_ref, sumsq_ref, *,
                       cout, tile_p, p_real, padded_cols, use_act, use_gate):
    w = w_ref[...]                               # (2C, Kpad)   bf16
    patches = p_ref[...]                         # (Kpad, TILE_P) bf16

    # One MXU pass computes conv2d and mask_conv2d together; lane axis = TILE_P.
    y = jnp.dot(w, patches, preferred_element_type=jnp.float32)   # (2C, TILE_P)
    y = y + b_ref[...]                                            # (2C, 1) f32 bias

    x = y[:cout, :]                              # conv2d result     (C, TILE_P)
    m = y[cout:, :]                              # mask_conv2d result

    if use_act:
        x = jnp.where(x >= 0, x, 0.2 * x)        # LeakyReLU(0.2)  (VPU, lane-dense)
    if use_gate:
        gate = 0.5 * (jnp.tanh(0.5 * m) + 1.0)   # exact sigmoid, single EUP op
        x = x * gate

    y_ref[...] = x.astype(y_ref.dtype)           # unmasked lane-dense bf16 store

    # Partial BatchNorm statistics for this tile (lane-axis reduction -> XLU).
    sum_ref[...] = jnp.sum(x, axis=1, keepdims=True).reshape(1, cout, 1)
    sumsq_ref[...] = jnp.sum(x * x, axis=1, keepdims=True).reshape(1, cout, 1)

    if padded_cols:
        # Only the last tile contains padded columns; re-emit masked sums there.
        @pl.when(pl.program_id(0) == pl.num_programs(0) - 1)
        def _():
            col = (pl.program_id(0) * tile_p
                   + jax.lax.broadcasted_iota(jnp.int32, (cout, tile_p), 1))
            xm = jnp.where(col < p_real, x, 0.0)
            sum_ref[...] = jnp.sum(xm, axis=1, keepdims=True).reshape(1, cout, 1)
            sumsq_ref[...] = jnp.sum(xm * xm, axis=1,
                                     keepdims=True).reshape(1, cout, 1)


def gated_conv_pallas(patches_T, w_eff, b_eff, cout, *, use_act, use_gate,
                      tile_p=1024):
    """patches_T: (Kpad, P) bf16; w_eff: (2*Cout, Kpad) bf16; b_eff: (2*Cout,1) f32.

    Returns (y, sum, sumsq): gated conv output (Cout, P) bf16 (pre-BatchNorm)
    plus global per-channel batch statistics (f32) for the following BN.
    """
    Kp, P = patches_T.shape
    tile_p = min(tile_p, _round_up(P, 128))
    num_tiles = pl.cdiv(P, tile_p)
    P_pad = num_tiles * tile_p
    if P_pad != P:
        patches_T = jnp.pad(patches_T, ((0, 0), (0, P_pad - P)))

    kernel = functools.partial(
        _gated_conv_kernel, cout=cout, tile_p=tile_p, p_real=P,
        padded_cols=(P_pad != P), use_act=use_act, use_gate=use_gate)

    y, s, ss = pl.pallas_call(
        kernel,
        out_shape=(
            jax.ShapeDtypeStruct((cout, P_pad), jnp.bfloat16),
            jax.ShapeDtypeStruct((num_tiles, cout, 1), jnp.float32),
            jax.ShapeDtypeStruct((num_tiles, cout, 1), jnp.float32),
        ),
        grid=(num_tiles,),
        in_specs=[
            pl.BlockSpec((Kp, tile_p), lambda i: (0, i)),
            pl.BlockSpec((2 * cout, Kp), lambda i: (0, 0)),
            pl.BlockSpec((2 * cout, 1), lambda i: (0, 0)),
        ],
        out_specs=(
            pl.BlockSpec((cout, tile_p), lambda i: (0, i)),
            pl.BlockSpec((1, cout, 1), lambda i: (i, 0, 0)),
            pl.BlockSpec((1, cout, 1), lambda i: (i, 0, 0)),
        ),
        compiler_params=pltpu.CompilerParams(
            dimension_semantics=("parallel",)),
    )(patches_T, w_eff, b_eff)

    y = y[:, :P]
    return y, jnp.sum(s[:, :, 0], axis=0), jnp.sum(ss[:, :, 0], axis=0)


# -----------------------------------------------------------------------------
# Glue: channel-first im2col (mean padding, fused nearest-2x upsample),
# layer configuration, parameter init.
# -----------------------------------------------------------------------------
def im2col_cf(x, pad_val, ksize, stride, pad, dilation, upsample=1):
    """x: (C, N, H, W) -> patches_T (C*k*k, N*Ho*Wo), K ordered (c, kh, kw).

    Out-of-range taps are filled with the per-channel `pad_val` (the previous
    layer's batch mean), which makes the BatchNorm fold into the next conv's
    weights exact.  `upsample=2` folds nearest-neighbour 2x upsampling into the
    gather indices (no materialised upsampled activation).
    """
    C, N, H, W = x.shape
    He, We = H * upsample, W * upsample
    eff = dilation * (ksize - 1) + 1
    Ho = (He + 2 * pad - eff) // stride + 1
    Wo = (We + 2 * pad - eff) // stride + 1
    pv = pad_val.astype(x.dtype).reshape(C, 1, 1, 1)
    cols = []
    for kh in range(ksize):
        ih = jnp.arange(Ho) * stride + kh * dilation - pad
        vh = (ih >= 0) & (ih < He)
        sh = jnp.clip(ih, 0, He - 1) // upsample
        for kw in range(ksize):
            iw = jnp.arange(Wo) * stride + kw * dilation - pad
            vw = (iw >= 0) & (iw < We)
            sw = jnp.clip(iw, 0, We - 1) // upsample
            tap = jnp.take(jnp.take(x, sh, axis=2), sw, axis=3)  # (C,N,Ho,Wo)
            mask = (vh[:, None] & vw[None, :])[None, None]       # (1,1,Ho,Wo)
            cols.append(jnp.where(mask, tap, pv))
    patches = jnp.stack(cols, axis=1)                            # (C,KK,N,Ho,Wo)
    return patches.reshape(C * ksize * ksize, N * Ho * Wo), (N, Ho, Wo)


def build_config(in_ch, out_ch, cnum):
    c = cnum
    L = lambda cin, cout, k, s, p, d, act=True, gate=True, up=False: dict(
        cin=cin, cout=cout, k=k, s=s, p=p, d=d, act=act, gate=gate, up=up)
    return [
        L(in_ch, c, 5, 1, 2, 1),          # enc1
        L(c, 2 * c, 4, 2, 1, 1),          # enc2_1
        L(2 * c, 2 * c, 3, 1, 1, 1),      # enc2_2
        L(2 * c, 4 * c, 4, 2, 1, 1),      # enc3_1
        L(4 * c, 4 * c, 3, 1, 1, 1),      # enc3_2
        L(4 * c, 4 * c, 3, 1, 1, 1),      # enc3_3
        L(4 * c, 4 * c, 3, 1, 2, 2),      # enc4_1 (dil 2)
        L(4 * c, 4 * c, 3, 1, 4, 4),      # enc4_2 (dil 4)
        L(4 * c, 4 * c, 3, 1, 8, 8),      # enc4_3 (dil 8)
        L(4 * c, 4 * c, 3, 1, 16, 16),    # enc4_4 (dil 16)
        L(4 * c, 4 * c, 3, 1, 1, 1),      # enc4_5
        L(4 * c, 4 * c, 3, 1, 1, 1),      # enc4_6
        L(4 * c, 2 * c, 3, 1, 1, 1, up=True),   # dec1_1 (upsample x2 first)
        L(2 * c, 2 * c, 3, 1, 1, 1),            # dec1_2
        L(2 * c, c, 3, 1, 1, 1, up=True),       # dec2_1 (upsample x2 first)
        L(c, c // 2, 3, 1, 1, 1),               # dec2_2
        L(c // 2, out_ch, 3, 1, 1, 1, act=False, gate=True),     # final
    ]


def init_params(key, config):
    """Synthetic master weights, f32: W=[Wx;Wm] (2*Cout, Kpad), b (2*Cout, 1)."""
    params = []
    for li, cfg in enumerate(config):
        k, cin, cout = cfg["k"], cfg["cin"], cfg["cout"]
        K = k * k * cin
        Kpad = _round_up(K, 128)
        kk = jax.random.fold_in(key, li)
        k1, k2 = jax.random.split(kk, 2)
        scale = 0.05
        w = scale * jax.random.normal(k1, (2 * cout, K), jnp.float32)
        b = scale * jax.random.normal(k2, (2 * cout, 1), jnp.float32)
        w = jnp.pad(w, ((0, 0), (0, Kpad - K)))                  # lane-align K
        params.append((w, b))
    return params


# -----------------------------------------------------------------------------
# Full LGNet forward
# -----------------------------------------------------------------------------
def lgnet_forward(x_nchw, params, config, eps=1e-5):
    # Channel-first activation layout (C, N, H, W) so the kernel's (Cout, P)
    # output feeds the next layer's im2col without a transpose.
    x = jnp.transpose(x_nchw, (1, 0, 2, 3)).astype(jnp.bfloat16)
    bn_mean = jnp.zeros((x.shape[0],), jnp.float32)    # incoming BN = identity
    bn_scale = jnp.ones((x.shape[0],), jnp.float32)

    for cfg, (w_f32, b_f32) in zip(config, params):
        k, cout, cin = cfg["k"], cfg["cout"], cfg["cin"]
        K = k * k * cin
        Kpad = w_f32.shape[1]

        # Fold the previous layer's BatchNorm affine into this layer's weights
        # (f32, then cast to bf16).  Exact because im2col pads with the same
        # (bf16-rounded) batch mean.
        mean_b = bn_mean.astype(jnp.bfloat16)
        mean_f = mean_b.astype(jnp.float32)
        scale_cols = jnp.pad(jnp.repeat(bn_scale, k * k), (0, Kpad - K))
        mean_cols = jnp.pad(jnp.repeat(mean_f, k * k), (0, Kpad - K))
        w_eff = (w_f32 * scale_cols[None, :]).astype(jnp.bfloat16)
        b_eff = b_f32 - jnp.sum(w_f32 * (scale_cols * mean_cols)[None, :],
                                axis=1, keepdims=True)

        # im2col with mean padding; nearest-2x upsample folded into indexing.
        patches_T, (N, Ho, Wo) = im2col_cf(
            x, mean_b, k, cfg["s"], cfg["p"], cfg["d"],
            upsample=2 if cfg["up"] else 1)
        if Kpad != K:
            patches_T = jnp.pad(patches_T, ((0, Kpad - K), (0, 0)))

        y, s, ss = gated_conv_pallas(
            patches_T, w_eff, b_eff, cout,
            use_act=cfg["act"], use_gate=cfg["gate"])

        # Training-mode BatchNorm2d global batch statistics (biased variance).
        P = N * Ho * Wo
        mean = s / P
        var = jnp.maximum(ss / P - mean * mean, 0.0)
        bn_mean = mean
        bn_scale = jax.lax.rsqrt(var + eps)

        x = y.reshape(cout, N, Ho, Wo)

    # Final layer's BatchNorm has no following conv: apply directly, then clamp.
    out = (x.astype(jnp.float32) - bn_mean.reshape(-1, 1, 1, 1)) \
          * bn_scale.reshape(-1, 1, 1, 1)
    out = jnp.clip(out, 0.0, 1.0)
    return jnp.transpose(out, (1, 0, 2, 3))                      # -> NCHW


if __name__ == "__main__":
    N, in_ch, H, W = 2, 3, 32, 32
    out_ch = 1
    cnum = 8

    config = build_config(in_ch, out_ch, cnum)
    params = init_params(jax.random.PRNGKey(1), config)

    x = jax.random.normal(jax.random.PRNGKey(0), (N, in_ch, H, W), jnp.float32)

    fwd = jax.jit(lambda inp: lgnet_forward(inp, params, config))
    out = jax.block_until_ready(fwd(x))

    assert out.shape == (N, out_ch, H, W), out.shape
    assert bool(jnp.all(jnp.isfinite(out)))
    assert float(jnp.min(out)) >= 0.0 and float(jnp.max(out)) <= 1.0  # clamp check
    print("KERNEL_OK")
</pallas_src>

<mosaic_0001>
module attributes {stable_mosaic.version = 11 : i64} {
  func.func @_gated_conv_kernel(%arg0: i32, %arg1: memref<128x1024xbf16, #tpu.memory_space<vmem>>, %arg2: memref<16x128xbf16, #tpu.memory_space<vmem>>, %arg3: memref<16x1xf32, #tpu.memory_space<vmem>>, %arg4: memref<8x1024xbf16, #tpu.memory_space<vmem>>, %arg5: memref<1x8x1xf32, #tpu.memory_space<vmem>>, %arg6: memref<1x8x1xf32, #tpu.memory_space<vmem>>) attributes {dimension_semantics = [#tpu.dimension_semantics<parallel>], iteration_bounds = array<i64: 2>, scalar_prefetch = 0 : i64, scratch_operands = 0 : i64, tpu.core_type = #tpu.core_type<tc>, window_params = [{transform_indices = @transform_0, window_bounds = array<i64: 128, 1024>}, {pipeline_mode = #tpu.pipeline_mode<synchronous>, transform_indices = @transform_1, window_bounds = array<i64: 16, 128>}, {pipeline_mode = #tpu.pipeline_mode<synchronous>, transform_indices = @transform_2, window_bounds = array<i64: 16, 1>}, {transform_indices = @transform_3, window_bounds = array<i64: 8, 1024>}, {transform_indices = @transform_4, window_bounds = array<i64: 1, 8, 1>}, {transform_indices = @transform_5, window_bounds = array<i64: 1, 8, 1>}]} {
    %c0 = arith.constant 0 : index
    %c0_0 = arith.constant 0 : index
    %0 = vector.load %arg2[%c0, %c0_0] : memref<16x128xbf16, #tpu.memory_space<vmem>>, vector<16x128xbf16>
    %c0_1 = arith.constant 0 : index
    %c0_2 = arith.constant 0 : index
    %1 = vector.load %arg1[%c0_1, %c0_2] : memref<128x1024xbf16, #tpu.memory_space<vmem>>, vector<128x1024xbf16>
    %cst = arith.constant dense<0.000000e+00> : vector<16x1024xf32>
    %2 = tpu.matmul %0, %1, %cst {dimension_numbers = #tpu.dot_dimension_numbers<[1], [0], [0], [1], [0, 0, 1, 1], [], []>} : vector<16x128xbf16>, vector<128x1024xbf16>, vector<16x1024xf32> -> vector<16x1024xf32>
    %c0_3 = arith.constant 0 : index
    %c0_4 = arith.constant 0 : index
    %3 = vector.load %arg3[%c0_3, %c0_4] : memref<16x1xf32, #tpu.memory_space<vmem>>, vector<16x1xf32>
    %4 = vector.broadcast %3 : vector<16x1xf32> to vector<16x1024xf32>
    %5 = arith.addf %2, %4 : vector<16x1024xf32>
    %6 = vector.extract_strided_slice %5 {offsets = [0, 0], sizes = [8, 1024], strides = [1, 1]} : vector<16x1024xf32> to vector<8x1024xf32>
    %7 = vector.extract_strided_slice %5 {offsets = [8, 0], sizes = [8, 1024], strides = [1, 1]} : vector<16x1024xf32> to vector<8x1024xf32>
    %cst_5 = arith.constant 0.000000e+00 : f32
    %8 = vector.broadcast %cst_5 : f32 to vector<8x1024xf32>
    %9 = arith.cmpf oge, %6, %8 : vector<8x1024xf32>
    %cst_6 = arith.constant 2.000000e-01 : f32
    %10 = vector.broadcast %cst_6 : f32 to vector<8x1024xf32>
    %11 = arith.mulf %10, %6 : vector<8x1024xf32>
    %12 = arith.select %9, %6, %11 : vector<8x1024xi1>, vector<8x1024xf32>
    %cst_7 = arith.constant 5.000000e-01 : f32
    %13 = vector.broadcast %cst_7 : f32 to vector<8x1024xf32>
    %14 = arith.mulf %13, %7 : vector<8x1024xf32>
    %15 = math.tanh %14 : vector<8x1024xf32>
    %cst_8 = arith.constant 1.000000e+00 : f32
    %16 = vector.broadcast %cst_8 : f32 to vector<8x1024xf32>
    %17 = arith.addf %15, %16 : vector<8x1024xf32>
    %cst_9 = arith.constant 5.000000e-01 : f32
    %18 = vector.broadcast %cst_9 : f32 to vector<8x1024xf32>
    %19 = arith.mulf %18, %17 : vector<8x1024xf32>
    %20 = arith.mulf %12, %19 : vector<8x1024xf32>
    %21 = arith.truncf %20 : vector<8x1024xf32> to vector<8x1024xbf16>
    %c0_10 = arith.constant 0 : index
    %c0_11 = arith.constant 0 : index
    %22 = vector.load %arg4[%c0_10, %c0_11] : memref<8x1024xbf16, #tpu.memory_space<vmem>>, vector<8x1024xbf16>
    tpu.vector_store %arg4[%c0_10, %c0_11], %21 {strides = array<i32>} : memref<8x1024xbf16, #tpu.memory_space<vmem>>, vector<8x1024xbf16>,
    %cst_12 = arith.constant dense<0.000000e+00> : vector<8xf32>
    %23 = vector.multi_reduction <add>, %20, %cst_12 [1] : vector<8x1024xf32> to vector<8xf32>
    %24 = vector.shape_cast %23 : vector<8xf32> to vector<8x1xf32>
    %25 = vector.shape_cast %24 : vector<8x1xf32> to vector<1x8x1xf32>
    %c0_13 = arith.constant 0 : index
    %c0_14 = arith.constant 0 : index
    %c0_15 = arith.constant 0 : index
    %26 = vector.load %arg5[%c0_13, %c0_14, %c0_15] : memref<1x8x1xf32, #tpu.memory_space<vmem>>, vector<1x8x1xf32>
    tpu.vector_store %arg5[%c0_13, %c0_14, %c0_15], %25 {strides = array<i32>} : memref<1x8x1xf32, #tpu.memory_space<vmem>>, vector<1x8x1xf32>,
    %27 = arith.mulf %20, %20 : vector<8x1024xf32>
    %cst_16 = arith.constant dense<0.000000e+00> : vector<8xf32>
    %28 = vector.multi_reduction <add>, %27, %cst_16 [1] : vector<8x1024xf32> to vector<8xf32>
    %29 = vector.shape_cast %28 : vector<8xf32> to vector<8x1xf32>
    %30 = vector.shape_cast %29 : vector<8x1xf32> to vector<1x8x1xf32>
    %c0_17 = arith.constant 0 : index
    %c0_18 = arith.constant 0 : index
    %c0_19 = arith.constant 0 : index
    %31 = vector.load %arg6[%c0_17, %c0_18, %c0_19] : memref<1x8x1xf32, #tpu.memory_space<vmem>>, vector<1x8x1xf32>
    tpu.vector_store %arg6[%c0_17, %c0_18, %c0_19], %30 {strides = array<i32>} : memref<1x8x1xf32, #tpu.memory_space<vmem>>, vector<1x8x1xf32>,
    return
  }
  func.func @transform_0(%arg0: i32) -> (i32, i32) {
    %c0_i32 = arith.constant 0 : i32
    %c0_i32_0 = arith.constant 0 : i32
    return %c0_i32, %arg0 : i32, i32
  }
  func.func @transform_1(%arg0: i32) -> (i32, i32) {
    %c0_i32 = arith.constant 0 : i32
    %c0_i32_0 = arith.constant 0 : i32
    %c0_i32_1 = arith.constant 0 : i32
    return %c0_i32, %c0_i32_0 : i32, i32
  }
  func.func @transform_2(%arg0: i32) -> (i32, i32) {
    %c0_i32 = arith.constant 0 : i32
    %c0_i32_0 = arith.constant 0 : i32
    %c0_i32_1 = arith.constant 0 : i32
    return %c0_i32, %c0_i32_0 : i32, i32
  }
  func.func @transform_3(%arg0: i32) -> (i32, i32) {
    %c0_i32 = arith.constant 0 : i32
    %c0_i32_0 = arith.constant 0 : i32
    return %c0_i32, %arg0 : i32, i32
  }
  func.func @transform_4(%arg0: i32) -> (i32, i32, i32) {
    %c0_i32 = arith.constant 0 : i32
    %c0_i32_0 = arith.constant 0 : i32
    %c0_i32_1 = arith.constant 0 : i32
    return %arg0, %c0_i32, %c0_i32_0 : i32, i32, i32
  }
  func.func @transform_5(%arg0: i32) -> (i32, i32, i32) {
    %c0_i32 = arith.constant 0 : i32
    %c0_i32_0 = arith.constant 0 : i32
    %c0_i32_1 = arith.constant 0 : i32
    return %arg0, %c0_i32, %c0_i32_0 : i32, i32, i32
  }
}

module attributes {stable_mosaic.version = 11 : i64} {
  func.func @_gated_conv_kernel(%arg0: i32, %arg1: memref<128x512xbf16, #tpu.memory_space<vmem>>, %arg2: memref<32x128xbf16, #tpu.memory_space<vmem>>, %arg3: memref<32x1xf32, #tpu.memory_space<vmem>>, %arg4: memref<16x512xbf16, #tpu.memory_space<vmem>>, %arg5: memref<1x16x1xf32, #tpu.memory_space<vmem>>, %arg6: memref<1x16x1xf32, #tpu.memory_space<vmem>>) attributes {dimension_semantics = [#tpu.dimension_semantics<parallel>], iteration_bounds = array<i64: 1>, scalar_prefetch = 0 : i64, scratch_operands = 0 : i64, tpu.core_type = #tpu.core_type<tc>, window_params = [{transform_indices = @transform_0, window_bounds = array<i64: 128, 512>}, {pipeline_mode = #tpu.pipeline_mode<synchronous>, transform_indices = @transform_1, window_bounds = array<i64: 32, 128>}, {pipeline_mode = #tpu.pipeline_mode<synchronous>, transform_indices = @transform_2, window_bounds = array<i64: 32, 1>}, {transform_indices = @transform_3, window_bounds = array<i64: 16, 512>}, {transform_indices = @transform_4, window_bounds = array<i64: 1, 16, 1>}, {transform_indices = @transform_5, window_bounds = array<i64: 1, 16, 1>}]} {
    %c0 = arith.constant 0 : index
    %c0_0 = arith.constant 0 : index
    %0 = vector.load %arg2[%c0, %c0_0] : memref<32x128xbf16, #tpu.memory_space<vmem>>, vector<32x128xbf16>
    %c0_1 = arith.constant 0 : index
    %c0_2 = arith.constant 0 : index
    %1 = vector.load %arg1[%c0_1, %c0_2] : memref<128x512xbf16, #tpu.memory_space<vmem>>, vector<128x512xbf16>
    %cst = arith.constant dense<0.000000e+00> : vector<32x512xf32>
    %2 = tpu.matmul %0, %1, %cst {dimension_numbers = #tpu.dot_dimension_numbers<[1], [0], [0], [1], [0, 0, 1, 1], [], []>} : vector<32x128xbf16>, vector<128x512xbf16>, vector<32x512xf32> -> vector<32x512xf32>
    %c0_3 = arith.constant 0 : index
    %c0_4 = arith.constant 0 : index
    %3 = vector.load %arg3[%c0_3, %c0_4] : memref<32x1xf32, #tpu.memory_space<vmem>>, vector<32x1xf32>
    %4 = vector.broadcast %3 : vector<32x1xf32> to vector<32x512xf32>
    %5 = arith.addf %2, %4 : vector<32x512xf32>
    %6 = vector.extract_strided_slice %5 {offsets = [0, 0], sizes = [16, 512], strides = [1, 1]} : vector<32x512xf32> to vector<16x512xf32>
    %7 = vector.extract_strided_slice %5 {offsets = [16, 0], sizes = [16, 512], strides = [1, 1]} : vector<32x512xf32> to vector<16x512xf32>
    %cst_5 = arith.constant 0.000000e+00 : f32
    %8 = vector.broadcast %cst_5 : f32 to vector<16x512xf32>
    %9 = arith.cmpf oge, %6, %8 : vector<16x512xf32>
    %cst_6 = arith.constant 2.000000e-01 : f32
    %10 = vector.broadcast %cst_6 : f32 to vector<16x512xf32>
    %11 = arith.mulf %10, %6 : vector<16x512xf32>
    %12 = arith.select %9, %6, %11 : vector<16x512xi1>, vector<16x512xf32>
    %cst_7 = arith.constant 5.000000e-01 : f32
    %13 = vector.broadcast %cst_7 : f32 to vector<16x512xf32>
    %14 = arith.mulf %13, %7 : vector<16x512xf32>
    %15 = math.tanh %14 : vector<16x512xf32>
    %cst_8 = arith.constant 1.000000e+00 : f32
    %16 = vector.broadcast %cst_8 : f32 to vector<16x512xf32>
    %17 = arith.addf %15, %16 : vector<16x512xf32>
    %cst_9 = arith.constant 5.000000e-01 : f32
    %18 = vector.broadcast %cst_9 : f32 to vector<16x512xf32>
    %19 = arith.mulf %18, %17 : vector<16x512xf32>
    %20 = arith.mulf %12, %19 : vector<16x512xf32>
    %21 = arith.truncf %20 : vector<16x512xf32> to vector<16x512xbf16>
    %c0_10 = arith.constant 0 : index
    %c0_11 = arith.constant 0 : index
    %22 = vector.load %arg4[%c0_10, %c0_11] : memref<16x512xbf16, #tpu.memory_space<vmem>>, vector<16x512xbf16>
    tpu.vector_store %arg4[%c0_10, %c0_11], %21 {strides = array<i32>} : memref<16x512xbf16, #tpu.memory_space<vmem>>, vector<16x512xbf16>,
    %cst_12 = arith.constant dense<0.000000e+00> : vector<16xf32>
    %23 = vector.multi_reduction <add>, %20, %cst_12 [1] : vector<16x512xf32> to vector<16xf32>
    %24 = vector.shape_cast %23 : vector<16xf32> to vector<16x1xf32>
    %25 = vector.shape_cast %24 : vector<16x1xf32> to vector<1x16x1xf32>
    %c0_13 = arith.constant 0 : index
    %c0_14 = arith.constant 0 : index
    %c0_15 = arith.constant 0 : index
    %26 = vector.load %arg5[%c0_13, %c0_14, %c0_15] : memref<1x16x1xf32, #tpu.memory_space<vmem>>, vector<1x16x1xf32>
    tpu.vector_store %arg5[%c0_13, %c0_14, %c0_15], %25 {strides = array<i32>} : memref<1x16x1xf32, #tpu.memory_space<vmem>>, vector<1x16x1xf32>,
    %27 = arith.mulf %20, %20 : vector<16x512xf32>
    %cst_16 = arith.constant dense<0.000000e+00> : vector<16xf32>
    %28 = vector.multi_reduction <add>, %27, %cst_16 [1] : vector<16x512xf32> to vector<16xf32>
    %29 = vector.shape_cast %28 : vector<16xf32> to vector<16x1xf32>
    %30 = vector.shape_cast %29 : vector<16x1xf32> to vector<1x16x1xf32>
    %c0_17 = arith.constant 0 : index
    %c0_18 = arith.constant 0 : index
    %c0_19 = arith.constant 0 : index
    %31 = vector.load %arg6[%c0_17, %c0_18, %c0_19] : memref<1x16x1xf32, #tpu.memory_space<vmem>>, vector<1x16x1xf32>
    tpu.vector_store %arg6[%c0_17, %c0_18, %c0_19], %30 {strides = array<i32>} : memref<1x16x1xf32, #tpu.memory_space<vmem>>, vector<1x16x1xf32>,
    return
  }
  func.func @transform_0(%arg0: i32) -> (i32, i32) {
    %c0_i32 = arith.constant 0 : i32
    %c0_i32_0 = arith.constant 0 : i32
    return %c0_i32, %arg0 : i32, i32
  }
  func.func @transform_1(%arg0: i32) -> (i32, i32) {
    %c0_i32 = arith.constant 0 : i32
    %c0_i32_0 = arith.constant 0 : i32
    %c0_i32_1 = arith.constant 0 : i32
    return %c0_i32, %c0_i32_0 : i32, i32
  }
  func.func @transform_2(%arg0: i32) -> (i32, i32) {
    %c0_i32 = arith.constant 0 : i32
    %c0_i32_0 = arith.constant 0 : i32
    %c0_i32_1 = arith.constant 0 : i32
    return %c0_i32, %c0_i32_0 : i32, i32
  }
  func.func @transform_3(%arg0: i32) -> (i32, i32) {
    %c0_i32 = arith.constant 0 : i32
    %c0_i32_0 = arith.constant 0 : i32
    return %c0_i32, %arg0 : i32, i32
  }
  func.func @transform_4(%arg0: i32) -> (i32, i32, i32) {
    %c0_i32 = arith.constant 0 : i32
    %c0_i32_0 = arith.constant 0 : i32
    %c0_i32_1 = arith.constant 0 : i32
    return %arg0, %c0_i32, %c0_i32_0 : i32, i32, i32
  }
  func.func @transform_5(%arg0: i32) -> (i32, i32, i32) {
    %c0_i32 = arith.constant 0 : i32
    %c0_i32_0 = arith.constant 0 : i32
    %c0_i32_1 = arith.constant 0 : i32
    return %arg0, %c0_i32, %c0_i32_0 : i32, i32, i32
  }
}

module attributes {stable_mosaic.version = 11 : i64} {
  func.func @_gated_conv_kernel(%arg0: i32, %arg1: memref<256x512xbf16, #tpu.memory_space<vmem>>, %arg2: memref<32x256xbf16, #tpu.memory_space<vmem>>, %arg3: memref<32x1xf32, #tpu.memory_space<vmem>>, %arg4: memref<16x512xbf16, #tpu.memory_space<vmem>>, %arg5: memref<1x16x1xf32, #tpu.memory_space<vmem>>, %arg6: memref<1x16x1xf32, #tpu.memory_space<vmem>>) attributes {dimension_semantics = [#tpu.dimension_semantics<parallel>], iteration_bounds = array<i64: 1>, scalar_prefetch = 0 : i64, scratch_operands = 0 : i64, tpu.core_type = #tpu.core_type<tc>, window_params = [{transform_indices = @transform_0, window_bounds = array<i64: 256, 512>}, {pipeline_mode = #tpu.pipeline_mode<synchronous>, transform_indices = @transform_1, window_bounds = array<i64: 32, 256>}, {pipeline_mode = #tpu.pipeline_mode<synchronous>, transform_indices = @transform_2, window_bounds = array<i64: 32, 1>}, {transform_indices = @transform_3, window_bounds = array<i64: 16, 512>}, {transform_indices = @transform_4, window_bounds = array<i64: 1, 16, 1>}, {transform_indices = @transform_5, window_bounds = array<i64: 1, 16, 1>}]} {
    %c0 = arith.constant 0 : index
    %c0_0 = arith.constant 0 : index
    %0 = vector.load %arg2[%c0, %c0_0] : memref<32x256xbf16, #tpu.memory_space<vmem>>, vector<32x256xbf16>
    %c0_1 = arith.constant 0 : index
    %c0_2 = arith.constant 0 : index
    %1 = vector.load %arg1[%c0_1, %c0_2] : memref<256x512xbf16, #tpu.memory_space<vmem>>, vector<256x512xbf16>
    %cst = arith.constant dense<0.000000e+00> : vector<32x512xf32>
    %2 = tpu.matmul %0, %1, %cst {dimension_numbers = #tpu.dot_dimension_numbers<[1], [0], [0], [1], [0, 0, 1, 1], [], []>} : vector<32x256xbf16>, vector<256x512xbf16>, vector<32x512xf32> -> vector<32x512xf32>
    %c0_3 = arith.constant 0 : index
    %c0_4 = arith.constant 0 : index
    %3 = vector.load %arg3[%c0_3, %c0_4] : memref<32x1xf32, #tpu.memory_space<vmem>>, vector<32x1xf32>
    %4 = vector.broadcast %3 : vector<32x1xf32> to vector<32x512xf32>
    %5 = arith.addf %2, %4 : vector<32x512xf32>
    %6 = vector.extract_strided_slice %5 {offsets = [0, 0], sizes = [16, 512], strides = [1, 1]} : vector<32x512xf32> to vector<16x512xf32>
    %7 = vector.extract_strided_slice %5 {offsets = [16, 0], sizes = [16, 512], strides = [1, 1]} : vector<32x512xf32> to vector<16x512xf32>
    %cst_5 = arith.constant 0.000000e+00 : f32
    %8 = vector.broadcast %cst_5 : f32 to vector<16x512xf32>
    %9 = arith.cmpf oge, %6, %8 : vector<16x512xf32>
    %cst_6 = arith.constant 2.000000e-01 : f32
    %10 = vector.broadcast %cst_6 : f32 to vector<16x512xf32>
    %11 = arith.mulf %10, %6 : vector<16x512xf32>
    %12 = arith.select %9, %6, %11 : vector<16x512xi1>, vector<16x512xf32>
    %cst_7 = arith.constant 5.000000e-01 : f32
    %13 = vector.broadcast %cst_7 : f32 to vector<16x512xf32>
    %14 = arith.mulf %13, %7 : vector<16x512xf32>
    %15 = math.tanh %14 : vector<16x512xf32>
    %cst_8 = arith.constant 1.000000e+00 : f32
    %16 = vector.broadcast %cst_8 : f32 to vector<16x512xf32>
    %17 = arith.addf %15, %16 : vector<16x512xf32>
    %cst_9 = arith.constant 5.000000e-01 : f32
    %18 = vector.broadcast %cst_9 : f32 to vector<16x512xf32>
    %19 = arith.mulf %18, %17 : vector<16x512xf32>
    %20 = arith.mulf %12, %19 : vector<16x512xf32>
    %21 = arith.truncf %20 : vector<16x512xf32> to vector<16x512xbf16>
    %c0_10 = arith.constant 0 : index
    %c0_11 = arith.constant 0 : index
    %22 = vector.load %arg4[%c0_10, %c0_11] : memref<16x512xbf16, #tpu.memory_space<vmem>>, vector<16x512xbf16>
    tpu.vector_store %arg4[%c0_10, %c0_11], %21 {strides = array<i32>} : memref<16x512xbf16, #tpu.memory_space<vmem>>, vector<16x512xbf16>,
    %cst_12 = arith.constant dense<0.000000e+00> : vector<16xf32>
    %23 = vector.multi_reduction <add>, %20, %cst_12 [1] : vector<16x512xf32> to vector<16xf32>
    %24 = vector.shape_cast %23 : vector<16xf32> to vector<16x1xf32>
    %25 = vector.shape_cast %24 : vector<16x1xf32> to vector<1x16x1xf32>
    %c0_13 = arith.constant 0 : index
    %c0_14 = arith.constant 0 : index
    %c0_15 = arith.constant 0 : index
    %26 = vector.load %arg5[%c0_13, %c0_14, %c0_15] : memref<1x16x1xf32, #tpu.memory_space<vmem>>, vector<1x16x1xf32>
    tpu.vector_store %arg5[%c0_13, %c0_14, %c0_15], %25 {strides = array<i32>} : memref<1x16x1xf32, #tpu.memory_space<vmem>>, vector<1x16x1xf32>,
    %27 = arith.mulf %20, %20 : vector<16x512xf32>
    %cst_16 = arith.constant dense<0.000000e+00> : vector<16xf32>
    %28 = vector.multi_reduction <add>, %27, %cst_16 [1] : vector<16x512xf32> to vector<16xf32>
    %29 = vector.shape_cast %28 : vector<16xf32> to vector<16x1xf32>
    %30 = vector.shape_cast %29 : vector<16x1xf32> to vector<1x16x1xf32>
    %c0_17 = arith.constant 0 : index
    %c0_18 = arith.constant 0 : index
    %c0_19 = arith.constant 0 : index
    %31 = vector.load %arg6[%c0_17, %c0_18, %c0_19] : memref<1x16x1xf32, #tpu.memory_space<vmem>>, vector<1x16x1xf32>
    tpu.vector_store %arg6[%c0_17, %c0_18, %c0_19], %30 {strides = array<i32>} : memref<1x16x1xf32, #tpu.memory_space<vmem>>, vector<1x16x1xf32>,
    return
  }
  func.func @transform_0(%arg0: i32) -> (i32, i32) {
    %c0_i32 = arith.constant 0 : i32
    %c0_i32_0 = arith.constant 0 : i32
    return %c0_i32, %arg0 : i32, i32
  }
  func.func @transform_1(%arg0: i32) -> (i32, i32) {
    %c0_i32 = arith.constant 0 : i32
    %c0_i32_0 = arith.constant 0 : i32
    %c0_i32_1 = arith.constant 0 : i32
    return %c0_i32, %c0_i32_0 : i32, i32
  }
  func.func @transform_2(%arg0: i32) -> (i32, i32) {
    %c0_i32 = arith.constant 0 : i32
    %c0_i32_0 = arith.constant 0 : i32
    %c0_i32_1 = arith.constant 0 : i32
    return %c0_i32, %c0_i32_0 : i32, i32
  }
  func.func @transform_3(%arg0: i32) -> (i32, i32) {
    %c0_i32 = arith.constant 0 : i32
    %c0_i32_0 = arith.constant 0 : i32
    return %c0_i32, %arg0 : i32, i32
  }
  func.func @transform_4(%arg0: i32) -> (i32, i32, i32) {
    %c0_i32 = arith.constant 0 : i32
    %c0_i32_0 = arith.constant 0 : i32
    %c0_i32_1 = arith.constant 0 : i32
    return %arg0, %c0_i32, %c0_i32_0 : i32, i32, i32
  }
  func.func @transform_5(%arg0: i32) -> (i32, i32, i32) {
    %c0_i32 = arith.constant 0 : i32
    %c0_i32_0 = arith.constant 0 : i32
    %c0_i32_1 = arith.constant 0 : i32
    return %arg0, %c0_i32, %c0_i32_0 : i32, i32, i32
  }
}

module attributes {stable_mosaic.version = 11 : i64} {
  func.func @_gated_conv_kernel(%arg0: i32, %arg1: memref<256x128xbf16, #tpu.memory_space<vmem>>, %arg2: memref<64x256xbf16, #tpu.memory_space<vmem>>, %arg3: memref<64x1xf32, #tpu.memory_space<vmem>>, %arg4: memref<32x128xbf16, #tpu.memory_space<vmem>>, %arg5: memref<1x32x1xf32, #tpu.memory_space<vmem>>, %arg6: memref<1x32x1xf32, #tpu.memory_space<vmem>>) attributes {dimension_semantics = [#tpu.dimension_semantics<parallel>], iteration_bounds = array<i64: 1>, scalar_prefetch = 0 : i64, scratch_operands = 0 : i64, tpu.core_type = #tpu.core_type<tc>, window_params = [{transform_indices = @transform_0, window_bounds = array<i64: 256, 128>}, {pipeline_mode = #tpu.pipeline_mode<synchronous>, transform_indices = @transform_1, window_bounds = array<i64: 64, 256>}, {pipeline_mode = #tpu.pipeline_mode<synchronous>, transform_indices = @transform_2, window_bounds = array<i64: 64, 1>}, {transform_indices = @transform_3, window_bounds = array<i64: 32, 128>}, {transform_indices = @transform_4, window_bounds = array<i64: 1, 32, 1>}, {transform_indices = @transform_5, window_bounds = array<i64: 1, 32, 1>}]} {
    %c0 = arith.constant 0 : index
    %c0_0 = arith.constant 0 : index
    %0 = vector.load %arg2[%c0, %c0_0] : memref<64x256xbf16, #tpu.memory_space<vmem>>, vector<64x256xbf16>
    %c0_1 = arith.constant 0 : index
    %c0_2 = arith.constant 0 : index
    %1 = vector.load %arg1[%c0_1, %c0_2] : memref<256x128xbf16, #tpu.memory_space<vmem>>, vector<256x128xbf16>
    %cst = arith.constant dense<0.000000e+00> : vector<64x128xf32>
    %2 = tpu.matmul %0, %1, %cst {dimension_numbers = #tpu.dot_dimension_numbers<[1], [0], [0], [1], [0, 0, 1, 1], [], []>} : vector<64x256xbf16>, vector<256x128xbf16>, vector<64x128xf32> -> vector<64x128xf32>
    %c0_3 = arith.constant 0 : index
    %c0_4 = arith.constant 0 : index
    %3 = vector.load %arg3[%c0_3, %c0_4] : memref<64x1xf32, #tpu.memory_space<vmem>>, vector<64x1xf32>
    %4 = vector.broadcast %3 : vector<64x1xf32> to vector<64x128xf32>
    %5 = arith.addf %2, %4 : vector<64x128xf32>
    %6 = vector.extract_strided_slice %5 {offsets = [0, 0], sizes = [32, 128], strides = [1, 1]} : vector<64x128xf32> to vector<32x128xf32>
    %7 = vector.extract_strided_slice %5 {offsets = [32, 0], sizes = [32, 128], strides = [1, 1]} : vector<64x128xf32> to vector<32x128xf32>
    %cst_5 = arith.constant 0.000000e+00 : f32
    %8 = vector.broadcast %cst_5 : f32 to vector<32x128xf32>
    %9 = arith.cmpf oge, %6, %8 : vector<32x128xf32>
    %cst_6 = arith.constant 2.000000e-01 : f32
    %10 = vector.broadcast %cst_6 : f32 to vector<32x128xf32>
    %11 = arith.mulf %10, %6 : vector<32x128xf32>
    %12 = arith.select %9, %6, %11 : vector<32x128xi1>, vector<32x128xf32>
    %cst_7 = arith.constant 5.000000e-01 : f32
    %13 = vector.broadcast %cst_7 : f32 to vector<32x128xf32>
    %14 = arith.mulf %13, %7 : vector<32x128xf32>
    %15 = math.tanh %14 : vector<32x128xf32>
    %cst_8 = arith.constant 1.000000e+00 : f32
    %16 = vector.broadcast %cst_8 : f32 to vector<32x128xf32>
    %17 = arith.addf %15, %16 : vector<32x128xf32>
    %cst_9 = arith.constant 5.000000e-01 : f32
    %18 = vector.broadcast %cst_9 : f32 to vector<32x128xf32>
    %19 = arith.mulf %18, %17 : vector<32x128xf32>
    %20 = arith.mulf %12, %19 : vector<32x128xf32>
    %21 = arith.truncf %20 : vector<32x128xf32> to vector<32x128xbf16>
    %c0_10 = arith.constant 0 : index
    %c0_11 = arith.constant 0 : index
    %22 = vector.load %arg4[%c0_10, %c0_11] : memref<32x128xbf16, #tpu.memory_space<vmem>>, vector<32x128xbf16>
    tpu.vector_store %arg4[%c0_10, %c0_11], %21 {strides = array<i32>} : memref<32x128xbf16, #tpu.memory_space<vmem>>, vector<32x128xbf16>,
    %cst_12 = arith.constant dense<0.000000e+00> : vector<32xf32>
    %23 = vector.multi_reduction <add>, %20, %cst_12 [1] : vector<32x128xf32> to vector<32xf32>
    %24 = vector.shape_cast %23 : vector<32xf32> to vector<32x1xf32>
    %25 = vector.shape_cast %24 : vector<32x1xf32> to vector<1x32x1xf32>
    %c0_13 = arith.constant 0 : index
    %c0_14 = arith.constant 0 : index
    %c0_15 = arith.constant 0 : index
    %26 = vector.load %arg5[%c0_13, %c0_14, %c0_15] : memref<1x32x1xf32, #tpu.memory_space<vmem>>, vector<1x32x1xf32>
    tpu.vector_store %arg5[%c0_13, %c0_14, %c0_15], %25 {strides = array<i32>} : memref<1x32x1xf32, #tpu.memory_space<vmem>>, vector<1x32x1xf32>,
    %27 = arith.mulf %20, %20 : vector<32x128xf32>
    %cst_16 = arith.constant dense<0.000000e+00> : vector<32xf32>
    %28 = vector.multi_reduction <add>, %27, %cst_16 [1] : vector<32x128xf32> to vector<32xf32>
    %29 = vector.shape_cast %28 : vector<32xf32> to vector<32x1xf32>
    %30 = vector.shape_cast %29 : vector<32x1xf32> to vector<1x32x1xf32>
    %c0_17 = arith.constant 0 : index
    %c0_18 = arith.constant 0 : index
    %c0_19 = arith.constant 0 : index
    %31 = vector.load %arg6[%c0_17, %c0_18, %c0_19] : memref<1x32x1xf32, #tpu.memory_space<vmem>>, vector<1x32x1xf32>
    tpu.vector_store %arg6[%c0_17, %c0_18, %c0_19], %30 {strides = array<i32>} : memref<1x32x1xf32, #tpu.memory_space<vmem>>, vector<1x32x1xf32>,
    return
  }
  func.func @transform_0(%arg0: i32) -> (i32, i32) {
    %c0_i32 = arith.constant 0 : i32
    %c0_i32_0 = arith.constant 0 : i32
    return %c0_i32, %arg0 : i32, i32
  }
  func.func @transform_1(%arg0: i32) -> (i32, i32) {
    %c0_i32 = arith.constant 0 : i32
    %c0_i32_0 = arith.constant 0 : i32
    %c0_i32_1 = arith.constant 0 : i32
    return %c0_i32, %c0_i32_0 : i32, i32
  }
  func.func @transform_2(%arg0: i32) -> (i32, i32) {
    %c0_i32 = arith.constant 0 : i32
    %c0_i32_0 = arith.constant 0 : i32
    %c0_i32_1 = arith.constant 0 : i32
    return %c0_i32, %c0_i32_0 : i32, i32
  }
  func.func @transform_3(%arg0: i32) -> (i32, i32) {
    %c0_i32 = arith.constant 0 : i32
    %c0_i32_0 = arith.constant 0 : i32
    return %c0_i32, %arg0 : i32, i32
  }
  func.func @transform_4(%arg0: i32) -> (i32, i32, i32) {
    %c0_i32 = arith.constant 0 : i32
    %c0_i32_0 = arith.constant 0 : i32
    %c0_i32_1 = arith.constant 0 : i32
    return %arg0, %c0_i32, %c0_i32_0 : i32, i32, i32
  }
  func.func @transform_5(%arg0: i32) -> (i32, i32, i32) {
    %c0_i32 = arith.constant 0 : i32
    %c0_i32_0 = arith.constant 0 : i32
    %c0_i32_1 = arith.constant 0 : i32
    return %arg0, %c0_i32, %c0_i32_0 : i32, i32, i32
  }
}

module attributes {stable_mosaic.version = 11 : i64} {
  func.func @_gated_conv_kernel(%arg0: i32, %arg1: memref<384x128xbf16, #tpu.memory_space<vmem>>, %arg2: memref<64x384xbf16, #tpu.memory_space<vmem>>, %arg3: memref<64x1xf32, #tpu.memory_space<vmem>>, %arg4: memref<32x128xbf16, #tpu.memory_space<vmem>>, %arg5: memref<1x32x1xf32, #tpu.memory_space<vmem>>, %arg6: memref<1x32x1xf32, #tpu.memory_space<vmem>>) attributes {dimension_semantics = [#tpu.dimension_semantics<parallel>], iteration_bounds = array<i64: 1>, scalar_prefetch = 0 : i64, scratch_operands = 0 : i64, tpu.core_type = #tpu.core_type<tc>, window_params = [{transform_indices = @transform_0, window_bounds = array<i64: 384, 128>}, {pipeline_mode = #tpu.pipeline_mode<synchronous>, transform_indices = @transform_1, window_bounds = array<i64: 64, 384>}, {pipeline_mode = #tpu.pipeline_mode<synchronous>, transform_indices = @transform_2, window_bounds = array<i64: 64, 1>}, {transform_indices = @transform_3, window_bounds = array<i64: 32, 128>}, {transform_indices = @transform_4, window_bounds = array<i64: 1, 32, 1>}, {transform_indices = @transform_5, window_bounds = array<i64: 1, 32, 1>}]} {
    %c0 = arith.constant 0 : index
    %c0_0 = arith.constant 0 : index
    %0 = vector.load %arg2[%c0, %c0_0] : memref<64x384xbf16, #tpu.memory_space<vmem>>, vector<64x384xbf16>
    %c0_1 = arith.constant 0 : index
    %c0_2 = arith.constant 0 : index
    %1 = vector.load %arg1[%c0_1, %c0_2] : memref<384x128xbf16, #tpu.memory_space<vmem>>, vector<384x128xbf16>
    %cst = arith.constant dense<0.000000e+00> : vector<64x128xf32>
    %2 = tpu.matmul %0, %1, %cst {dimension_numbers = #tpu.dot_dimension_numbers<[1], [0], [0], [1], [0, 0, 1, 1], [], []>} : vector<64x384xbf16>, vector<384x128xbf16>, vector<64x128xf32> -> vector<64x128xf32>
    %c0_3 = arith.constant 0 : index
    %c0_4 = arith.constant 0 : index
    %3 = vector.load %arg3[%c0_3, %c0_4] : memref<64x1xf32, #tpu.memory_space<vmem>>, vector<64x1xf32>
    %4 = vector.broadcast %3 : vector<64x1xf32> to vector<64x128xf32>
    %5 = arith.addf %2, %4 : vector<64x128xf32>
    %6 = vector.extract_strided_slice %5 {offsets = [0, 0], sizes = [32, 128], strides = [1, 1]} : vector<64x128xf32> to vector<32x128xf32>
    %7 = vector.extract_strided_slice %5 {offsets = [32, 0], sizes = [32, 128], strides = [1, 1]} : vector<64x128xf32> to vector<32x128xf32>
    %cst_5 = arith.constant 0.000000e+00 : f32
    %8 = vector.broadcast %cst_5 : f32 to vector<32x128xf32>
    %9 = arith.cmpf oge, %6, %8 : vector<32x128xf32>
    %cst_6 = arith.constant 2.000000e-01 : f32
    %10 = vector.broadcast %cst_6 : f32 to vector<32x128xf32>
    %11 = arith.mulf %10, %6 : vector<32x128xf32>
    %12 = arith.select %9, %6, %11 : vector<32x128xi1>, vector<32x128xf32>
    %cst_7 = arith.constant 5.000000e-01 : f32
    %13 = vector.broadcast %cst_7 : f32 to vector<32x128xf32>
    %14 = arith.mulf %13, %7 : vector<32x128xf32>
    %15 = math.tanh %14 : vector<32x128xf32>
    %cst_8 = arith.constant 1.000000e+00 : f32
    %16 = vector.broadcast %cst_8 : f32 to vector<32x128xf32>
    %17 = arith.addf %15, %16 : vector<32x128xf32>
    %cst_9 = arith.constant 5.000000e-01 : f32
    %18 = vector.broadcast %cst_9 : f32 to vector<32x128xf32>
    %19 = arith.mulf %18, %17 : vector<32x128xf32>
    %20 = arith.mulf %12, %19 : vector<32x128xf32>
    %21 = arith.truncf %20 : vector<32x128xf32> to vector<32x128xbf16>
    %c0_10 = arith.constant 0 : index
    %c0_11 = arith.constant 0 : index
    %22 = vector.load %arg4[%c0_10, %c0_11] : memref<32x128xbf16, #tpu.memory_space<vmem>>, vector<32x128xbf16>
    tpu.vector_store %arg4[%c0_10, %c0_11], %21 {strides = array<i32>} : memref<32x128xbf16, #tpu.memory_space<vmem>>, vector<32x128xbf16>,
    %cst_12 = arith.constant dense<0.000000e+00> : vector<32xf32>
    %23 = vector.multi_reduction <add>, %20, %cst_12 [1] : vector<32x128xf32> to vector<32xf32>
    %24 = vector.shape_cast %23 : vector<32xf32> to vector<32x1xf32>
    %25 = vector.shape_cast %24 : vector<32x1xf32> to vector<1x32x1xf32>
    %c0_13 = arith.constant 0 : index
    %c0_14 = arith.constant 0 : index
    %c0_15 = arith.constant 0 : index
    %26 = vector.load %arg5[%c0_13, %c0_14, %c0_15] : memref<1x32x1xf32, #tpu.memory_space<vmem>>, vector<1x32x1xf32>
    tpu.vector_store %arg5[%c0_13, %c0_14, %c0_15], %25 {strides = array<i32>} : memref<1x32x1xf32, #tpu.memory_space<vmem>>, vector<1x32x1xf32>,
    %27 = arith.mulf %20, %20 : vector<32x128xf32>
    %cst_16 = arith.constant dense<0.000000e+00> : vector<32xf32>
    %28 = vector.multi_reduction <add>, %27, %cst_16 [1] : vector<32x128xf32> to vector<32xf32>
    %29 = vector.shape_cast %28 : vector<32xf32> to vector<32x1xf32>
    %30 = vector.shape_cast %29 : vector<32x1xf32> to vector<1x32x1xf32>
    %c0_17 = arith.constant 0 : index
    %c0_18 = arith.constant 0 : index
    %c0_19 = arith.constant 0 : index
    %31 = vector.load %arg6[%c0_17, %c0_18, %c0_19] : memref<1x32x1xf32, #tpu.memory_space<vmem>>, vector<1x32x1xf32>
    tpu.vector_store %arg6[%c0_17, %c0_18, %c0_19], %30 {strides = array<i32>} : memref<1x32x1xf32, #tpu.memory_space<vmem>>, vector<1x32x1xf32>,
    return
  }
  func.func @transform_0(%arg0: i32) -> (i32, i32) {
    %c0_i32 = arith.constant 0 : i32
    %c0_i32_0 = arith.constant 0 : i32
    return %c0_i32, %arg0 : i32, i32
  }
  func.func @transform_1(%arg0: i32) -> (i32, i32) {
    %c0_i32 = arith.constant 0 : i32
    %c0_i32_0 = arith.constant 0 : i32
    %c0_i32_1 = arith.constant 0 : i32
    return %c0_i32, %c0_i32_0 : i32, i32
  }
  func.func @transform_2(%arg0: i32) -> (i32, i32) {
    %c0_i32 = arith.constant 0 : i32
    %c0_i32_0 = arith.constant 0 : i32
    %c0_i32_1 = arith.constant 0 : i32
    return %c0_i32, %c0_i32_0 : i32, i32
  }
  func.func @transform_3(%arg0: i32) -> (i32, i32) {
    %c0_i32 = arith.constant 0 : i32
    %c0_i32_0 = arith.constant 0 : i32
    return %c0_i32, %arg0 : i32, i32
  }
  func.func @transform_4(%arg0: i32) -> (i32, i32, i32) {
    %c0_i32 = arith.constant 0 : i32
    %c0_i32_0 = arith.constant 0 : i32
    %c0_i32_1 = arith.constant 0 : i32
    return %arg0, %c0_i32, %c0_i32_0 : i32, i32, i32
  }
  func.func @transform_5(%arg0: i32) -> (i32, i32, i32) {
    %c0_i32 = arith.constant 0 : i32
    %c0_i32_0 = arith.constant 0 : i32
    %c0_i32_1 = arith.constant 0 : i32
    return %arg0, %c0_i32, %c0_i32_0 : i32, i32, i32
  }
}

module attributes {stable_mosaic.version = 11 : i64} {
  func.func @_gated_conv_kernel(%arg0: i32, %arg1: memref<384x512xbf16, #tpu.memory_space<vmem>>, %arg2: memref<32x384xbf16, #tpu.memory_space<vmem>>, %arg3: memref<32x1xf32, #tpu.memory_space<vmem>>, %arg4: memref<16x512xbf16, #tpu.memory_space<vmem>>, %arg5: memref<1x16x1xf32, #tpu.memory_space<vmem>>, %arg6: memref<1x16x1xf32, #tpu.memory_space<vmem>>) attributes {dimension_semantics = [#tpu.dimension_semantics<parallel>], iteration_bounds = array<i64: 1>, scalar_prefetch = 0 : i64, scratch_operands = 0 : i64, tpu.core_type = #tpu.core_type<tc>, window_params = [{transform_indices = @transform_0, window_bounds = array<i64: 384, 512>}, {pipeline_mode = #tpu.pipeline_mode<synchronous>, transform_indices = @transform_1, window_bounds = array<i64: 32, 384>}, {pipeline_mode = #tpu.pipeline_mode<synchronous>, transform_indices = @transform_2, window_bounds = array<i64: 32, 1>}, {transform_indices = @transform_3, window_bounds = array<i64: 16, 512>}, {transform_indices = @transform_4, window_bounds = array<i64: 1, 16, 1>}, {transform_indices = @transform_5, window_bounds = array<i64: 1, 16, 1>}]} {
    %c0 = arith.constant 0 : index
    %c0_0 = arith.constant 0 : index
    %0 = vector.load %arg2[%c0, %c0_0] : memref<32x384xbf16, #tpu.memory_space<vmem>>, vector<32x384xbf16>
    %c0_1 = arith.constant 0 : index
    %c0_2 = arith.constant 0 : index
    %1 = vector.load %arg1[%c0_1, %c0_2] : memref<384x512xbf16, #tpu.memory_space<vmem>>, vector<384x512xbf16>
    %cst = arith.constant dense<0.000000e+00> : vector<32x512xf32>
    %2 = tpu.matmul %0, %1, %cst {dimension_numbers = #tpu.dot_dimension_numbers<[1], [0], [0], [1], [0, 0, 1, 1], [], []>} : vector<32x384xbf16>, vector<384x512xbf16>, vector<32x512xf32> -> vector<32x512xf32>
    %c0_3 = arith.constant 0 : index
    %c0_4 = arith.constant 0 : index
    %3 = vector.load %arg3[%c0_3, %c0_4] : memref<32x1xf32, #tpu.memory_space<vmem>>, vector<32x1xf32>
    %4 = vector.broadcast %3 : vector<32x1xf32> to vector<32x512xf32>
    %5 = arith.addf %2, %4 : vector<32x512xf32>
    %6 = vector.extract_strided_slice %5 {offsets = [0, 0], sizes = [16, 512], strides = [1, 1]} : vector<32x512xf32> to vector<16x512xf32>
    %7 = vector.extract_strided_slice %5 {offsets = [16, 0], sizes = [16, 512], strides = [1, 1]} : vector<32x512xf32> to vector<16x512xf32>
    %cst_5 = arith.constant 0.000000e+00 : f32
    %8 = vector.broadcast %cst_5 : f32 to vector<16x512xf32>
    %9 = arith.cmpf oge, %6, %8 : vector<16x512xf32>
    %cst_6 = arith.constant 2.000000e-01 : f32
    %10 = vector.broadcast %cst_6 : f32 to vector<16x512xf32>
    %11 = arith.mulf %10, %6 : vector<16x512xf32>
    %12 = arith.select %9, %6, %11 : vector<16x512xi1>, vector<16x512xf32>
    %cst_7 = arith.constant 5.000000e-01 : f32
    %13 = vector.broadcast %cst_7 : f32 to vector<16x512xf32>
    %14 = arith.mulf %13, %7 : vector<16x512xf32>
    %15 = math.tanh %14 : vector<16x512xf32>
    %cst_8 = arith.constant 1.000000e+00 : f32
    %16 = vector.broadcast %cst_8 : f32 to vector<16x512xf32>
    %17 = arith.addf %15, %16 : vector<16x512xf32>
    %cst_9 = arith.constant 5.000000e-01 : f32
    %18 = vector.broadcast %cst_9 : f32 to vector<16x512xf32>
    %19 = arith.mulf %18, %17 : vector<16x512xf32>
    %20 = arith.mulf %12, %19 : vector<16x512xf32>
    %21 = arith.truncf %20 : vector<16x512xf32> to vector<16x512xbf16>
    %c0_10 = arith.constant 0 : index
    %c0_11 = arith.constant 0 : index
    %22 = vector.load %arg4[%c0_10, %c0_11] : memref<16x512xbf16, #tpu.memory_space<vmem>>, vector<16x512xbf16>
    tpu.vector_store %arg4[%c0_10, %c0_11], %21 {strides = array<i32>} : memref<16x512xbf16, #tpu.memory_space<vmem>>, vector<16x512xbf16>,
    %cst_12 = arith.constant dense<0.000000e+00> : vector<16xf32>
    %23 = vector.multi_reduction <add>, %20, %cst_12 [1] : vector<16x512xf32> to vector<16xf32>
    %24 = vector.shape_cast %23 : vector<16xf32> to vector<16x1xf32>
    %25 = vector.shape_cast %24 : vector<16x1xf32> to vector<1x16x1xf32>
    %c0_13 = arith.constant 0 : index
    %c0_14 = arith.constant 0 : index
    %c0_15 = arith.constant 0 : index
    %26 = vector.load %arg5[%c0_13, %c0_14, %c0_15] : memref<1x16x1xf32, #tpu.memory_space<vmem>>, vector<1x16x1xf32>
    tpu.vector_store %arg5[%c0_13, %c0_14, %c0_15], %25 {strides = array<i32>} : memref<1x16x1xf32, #tpu.memory_space<vmem>>, vector<1x16x1xf32>,
    %27 = arith.mulf %20, %20 : vector<16x512xf32>
    %cst_16 = arith.constant dense<0.000000e+00> : vector<16xf32>
    %28 = vector.multi_reduction <add>, %27, %cst_16 [1] : vector<16x512xf32> to vector<16xf32>
    %29 = vector.shape_cast %28 : vector<16xf32> to vector<16x1xf32>
    %30 = vector.shape_cast %29 : vector<16x1xf32> to vector<1x16x1xf32>
    %c0_17 = arith.constant 0 : index
    %c0_18 = arith.constant 0 : index
    %c0_19 = arith.constant 0 : index
    %31 = vector.load %arg6[%c0_17, %c0_18, %c0_19] : memref<1x16x1xf32, #tpu.memory_space<vmem>>, vector<1x16x1xf32>
    tpu.vector_store %arg6[%c0_17, %c0_18, %c0_19], %30 {strides = array<i32>} : memref<1x16x1xf32, #tpu.memory_space<vmem>>, vector<1x16x1xf32>,
    return
  }
  func.func @transform_0(%arg0: i32) -> (i32, i32) {
    %c0_i32 = arith.constant 0 : i32
    %c0_i32_0 = arith.constant 0 : i32
    return %c0_i32, %arg0 : i32, i32
  }
  func.func @transform_1(%arg0: i32) -> (i32, i32) {
    %c0_i32 = arith.constant 0 : i32
    %c0_i32_0 = arith.constant 0 : i32
    %c0_i32_1 = arith.constant 0 : i32
    return %c0_i32, %c0_i32_0 : i32, i32
  }
  func.func @transform_2(%arg0: i32) -> (i32, i32) {
    %c0_i32 = arith.constant 0 : i32
    %c0_i32_0 = arith.constant 0 : i32
    %c0_i32_1 = arith.constant 0 : i32
    return %c0_i32, %c0_i32_0 : i32, i32
  }
  func.func @transform_3(%arg0: i32) -> (i32, i32) {
    %c0_i32 = arith.constant 0 : i32
    %c0_i32_0 = arith.constant 0 : i32
    return %c0_i32, %arg0 : i32, i32
  }
  func.func @transform_4(%arg0: i32) -> (i32, i32, i32) {
    %c0_i32 = arith.constant 0 : i32
    %c0_i32_0 = arith.constant 0 : i32
    %c0_i32_1 = arith.constant 0 : i32
    return %arg0, %c0_i32, %c0_i32_0 : i32, i32, i32
  }
  func.func @transform_5(%arg0: i32) -> (i32, i32, i32) {
    %c0_i32 = arith.constant 0 : i32
    %c0_i32_0 = arith.constant 0 : i32
    %c0_i32_1 = arith.constant 0 : i32
    return %arg0, %c0_i32, %c0_i32_0 : i32, i32, i32
  }
}

module attributes {stable_mosaic.version = 11 : i64} {
  func.func @_gated_conv_kernel(%arg0: i32, %arg1: memref<256x1024xbf16, #tpu.memory_space<vmem>>, %arg2: memref<16x256xbf16, #tpu.memory_space<vmem>>, %arg3: memref<16x1xf32, #tpu.memory_space<vmem>>, %arg4: memref<8x1024xbf16, #tpu.memory_space<vmem>>, %arg5: memref<1x8x1xf32, #tpu.memory_space<vmem>>, %arg6: memref<1x8x1xf32, #tpu.memory_space<vmem>>) attributes {dimension_semantics = [#tpu.dimension_semantics<parallel>], iteration_bounds = array<i64: 2>, scalar_prefetch = 0 : i64, scratch_operands = 0 : i64, tpu.core_type = #tpu.core_type<tc>, window_params = [{transform_indices = @transform_0, window_bounds = array<i64: 256, 1024>}, {pipeline_mode = #tpu.pipeline_mode<synchronous>, transform_indices = @transform_1, window_bounds = array<i64: 16, 256>}, {pipeline_mode = #tpu.pipeline_mode<synchronous>, transform_indices = @transform_2, window_bounds = array<i64: 16, 1>}, {transform_indices = @transform_3, window_bounds = array<i64: 8, 1024>}, {transform_indices = @transform_4, window_bounds = array<i64: 1, 8, 1>}, {transform_indices = @transform_5, window_bounds = array<i64: 1, 8, 1>}]} {
    %c0 = arith.constant 0 : index
    %c0_0 = arith.constant 0 : index
    %0 = vector.load %arg2[%c0, %c0_0] : memref<16x256xbf16, #tpu.memory_space<vmem>>, vector<16x256xbf16>
    %c0_1 = arith.constant 0 : index
    %c0_2 = arith.constant 0 : index
    %1 = vector.load %arg1[%c0_1, %c0_2] : memref<256x1024xbf16, #tpu.memory_space<vmem>>, vector<256x1024xbf16>
    %cst = arith.constant dense<0.000000e+00> : vector<16x1024xf32>
    %2 = tpu.matmul %0, %1, %cst {dimension_numbers = #tpu.dot_dimension_numbers<[1], [0], [0], [1], [0, 0, 1, 1], [], []>} : vector<16x256xbf16>, vector<256x1024xbf16>, vector<16x1024xf32> -> vector<16x1024xf32>
    %c0_3 = arith.constant 0 : index
    %c0_4 = arith.constant 0 : index
    %3 = vector.load %arg3[%c0_3, %c0_4] : memref<16x1xf32, #tpu.memory_space<vmem>>, vector<16x1xf32>
    %4 = vector.broadcast %3 : vector<16x1xf32> to vector<16x1024xf32>
    %5 = arith.addf %2, %4 : vector<16x1024xf32>
    %6 = vector.extract_strided_slice %5 {offsets = [0, 0], sizes = [8, 1024], strides = [1, 1]} : vector<16x1024xf32> to vector<8x1024xf32>
    %7 = vector.extract_strided_slice %5 {offsets = [8, 0], sizes = [8, 1024], strides = [1, 1]} : vector<16x1024xf32> to vector<8x1024xf32>
    %cst_5 = arith.constant 0.000000e+00 : f32
    %8 = vector.broadcast %cst_5 : f32 to vector<8x1024xf32>
    %9 = arith.cmpf oge, %6, %8 : vector<8x1024xf32>
    %cst_6 = arith.constant 2.000000e-01 : f32
    %10 = vector.broadcast %cst_6 : f32 to vector<8x1024xf32>
    %11 = arith.mulf %10, %6 : vector<8x1024xf32>
    %12 = arith.select %9, %6, %11 : vector<8x1024xi1>, vector<8x1024xf32>
    %cst_7 = arith.constant 5.000000e-01 : f32
    %13 = vector.broadcast %cst_7 : f32 to vector<8x1024xf32>
    %14 = arith.mulf %13, %7 : vector<8x1024xf32>
    %15 = math.tanh %14 : vector<8x1024xf32>
    %cst_8 = arith.constant 1.000000e+00 : f32
    %16 = vector.broadcast %cst_8 : f32 to vector<8x1024xf32>
    %17 = arith.addf %15, %16 : vector<8x1024xf32>
    %cst_9 = arith.constant 5.000000e-01 : f32
    %18 = vector.broadcast %cst_9 : f32 to vector<8x1024xf32>
    %19 = arith.mulf %18, %17 : vector<8x1024xf32>
    %20 = arith.mulf %12, %19 : vector<8x1024xf32>
    %21 = arith.truncf %20 : vector<8x1024xf32> to vector<8x1024xbf16>
    %c0_10 = arith.constant 0 : index
    %c0_11 = arith.constant 0 : index
    %22 = vector.load %arg4[%c0_10, %c0_11] : memref<8x1024xbf16, #tpu.memory_space<vmem>>, vector<8x1024xbf16>
    tpu.vector_store %arg4[%c0_10, %c0_11], %21 {strides = array<i32>} : memref<8x1024xbf16, #tpu.memory_space<vmem>>, vector<8x1024xbf16>,
    %cst_12 = arith.constant dense<0.000000e+00> : vector<8xf32>
    %23 = vector.multi_reduction <add>, %20, %cst_12 [1] : vector<8x1024xf32> to vector<8xf32>
    %24 = vector.shape_cast %23 : vector<8xf32> to vector<8x1xf32>
    %25 = vector.shape_cast %24 : vector<8x1xf32> to vector<1x8x1xf32>
    %c0_13 = arith.constant 0 : index
    %c0_14 = arith.constant 0 : index
    %c0_15 = arith.constant 0 : index
    %26 = vector.load %arg5[%c0_13, %c0_14, %c0_15] : memref<1x8x1xf32, #tpu.memory_space<vmem>>, vector<1x8x1xf32>
    tpu.vector_store %arg5[%c0_13, %c0_14, %c0_15], %25 {strides = array<i32>} : memref<1x8x1xf32, #tpu.memory_space<vmem>>, vector<1x8x1xf32>,
    %27 = arith.mulf %20, %20 : vector<8x1024xf32>
    %cst_16 = arith.constant dense<0.000000e+00> : vector<8xf32>
    %28 = vector.multi_reduction <add>, %27, %cst_16 [1] : vector<8x1024xf32> to vector<8xf32>
    %29 = vector.shape_cast %28 : vector<8xf32> to vector<8x1xf32>
    %30 = vector.shape_cast %29 : vector<8x1xf32> to vector<1x8x1xf32>
    %c0_17 = arith.constant 0 : index
    %c0_18 = arith.constant 0 : index
    %c0_19 = arith.constant 0 : index
    %31 = vector.load %arg6[%c0_17, %c0_18, %c0_19] : memref<1x8x1xf32, #tpu.memory_space<vmem>>, vector<1x8x1xf32>
    tpu.vector_store %arg6[%c0_17, %c0_18, %c0_19], %30 {strides = array<i32>} : memref<1x8x1xf32, #tpu.memory_space<vmem>>, vector<1x8x1xf32>,
    return
  }
  func.func @transform_0(%arg0: i32) -> (i32, i32) {
    %c0_i32 = arith.constant 0 : i32
    %c0_i32_0 = arith.constant 0 : i32
    return %c0_i32, %arg0 : i32, i32
  }
  func.func @transform_1(%arg0: i32) -> (i32, i32) {
    %c0_i32 = arith.constant 0 : i32
    %c0_i32_0 = arith.constant 0 : i32
    %c0_i32_1 = arith.constant 0 : i32
    return %c0_i32, %c0_i32_0 : i32, i32
  }
  func.func @transform_2(%arg0: i32) -> (i32, i32) {
    %c0_i32 = arith.constant 0 : i32
    %c0_i32_0 = arith.constant 0 : i32
    %c0_i32_1 = arith.constant 0 : i32
    return %c0_i32, %c0_i32_0 : i32, i32
  }
  func.func @transform_3(%arg0: i32) -> (i32, i32) {
    %c0_i32 = arith.constant 0 : i32
    %c0_i32_0 = arith.constant 0 : i32
    return %c0_i32, %arg0 : i32, i32
  }
  func.func @transform_4(%arg0: i32) -> (i32, i32, i32) {
    %c0_i32 = arith.constant 0 : i32
    %c0_i32_0 = arith.constant 0 : i32
    %c0_i32_1 = arith.constant 0 : i32
    return %arg0, %c0_i32, %c0_i32_0 : i32, i32, i32
  }
  func.func @transform_5(%arg0: i32) -> (i32, i32, i32) {
    %c0_i32 = arith.constant 0 : i32
    %c0_i32_0 = arith.constant 0 : i32
    %c0_i32_1 = arith.constant 0 : i32
    return %arg0, %c0_i32, %c0_i32_0 : i32, i32, i32
  }
}

module attributes {stable_mosaic.version = 11 : i64} {
  func.func @_gated_conv_kernel(%arg0: i32, %arg1: memref<128x1024xbf16, #tpu.memory_space<vmem>>, %arg2: memref<8x128xbf16, #tpu.memory_space<vmem>>, %arg3: memref<8x1xf32, #tpu.memory_space<vmem>>, %arg4: memref<4x1024xbf16, #tpu.memory_space<vmem>>, %arg5: memref<1x4x1xf32, #tpu.memory_space<vmem>>, %arg6: memref<1x4x1xf32, #tpu.memory_space<vmem>>) attributes {dimension_semantics = [#tpu.dimension_semantics<parallel>], iteration_bounds = array<i64: 2>, scalar_prefetch = 0 : i64, scratch_operands = 0 : i64, tpu.core_type = #tpu.core_type<tc>, window_params = [{transform_indices = @transform_0, window_bounds = array<i64: 128, 1024>}, {pipeline_mode = #tpu.pipeline_mode<synchronous>, transform_indices = @transform_1, window_bounds = array<i64: 8, 128>}, {pipeline_mode = #tpu.pipeline_mode<synchronous>, transform_indices = @transform_2, window_bounds = array<i64: 8, 1>}, {transform_indices = @transform_3, window_bounds = array<i64: 4, 1024>}, {transform_indices = @transform_4, window_bounds = array<i64: 1, 4, 1>}, {transform_indices = @transform_5, window_bounds = array<i64: 1, 4, 1>}]} {
    %c0 = arith.constant 0 : index
    %c0_0 = arith.constant 0 : index
    %0 = vector.load %arg2[%c0, %c0_0] : memref<8x128xbf16, #tpu.memory_space<vmem>>, vector<8x128xbf16>
    %c0_1 = arith.constant 0 : index
    %c0_2 = arith.constant 0 : index
    %1 = vector.load %arg1[%c0_1, %c0_2] : memref<128x1024xbf16, #tpu.memory_space<vmem>>, vector<128x1024xbf16>
    %cst = arith.constant dense<0.000000e+00> : vector<8x1024xf32>
    %2 = tpu.matmul %0, %1, %cst {dimension_numbers = #tpu.dot_dimension_numbers<[1], [0], [0], [1], [0, 0, 1, 1], [], []>} : vector<8x128xbf16>, vector<128x1024xbf16>, vector<8x1024xf32> -> vector<8x1024xf32>
    %c0_3 = arith.constant 0 : index
    %c0_4 = arith.constant 0 : index
    %3 = vector.load %arg3[%c0_3, %c0_4] : memref<8x1xf32, #tpu.memory_space<vmem>>, vector<8x1xf32>
    %4 = vector.broadcast %3 : vector<8x1xf32> to vector<8x1024xf32>
    %5 = arith.addf %2, %4 : vector<8x1024xf32>
    %6 = vector.extract_strided_slice %5 {offsets = [0, 0], sizes = [4, 1024], strides = [1, 1]} : vector<8x1024xf32> to vector<4x1024xf32>
    %7 = vector.extract_strided_slice %5 {offsets = [4, 0], sizes = [4, 1024], strides = [1, 1]} : vector<8x1024xf32> to vector<4x1024xf32>
    %cst_5 = arith.constant 0.000000e+00 : f32
    %8 = vector.broadcast %cst_5 : f32 to vector<4x1024xf32>
    %9 = arith.cmpf oge, %6, %8 : vector<4x1024xf32>
    %cst_6 = arith.constant 2.000000e-01 : f32
    %10 = vector.broadcast %cst_6 : f32 to vector<4x1024xf32>
    %11 = arith.mulf %10, %6 : vector<4x1024xf32>
    %12 = arith.select %9, %6, %11 : vector<4x1024xi1>, vector<4x1024xf32>
    %cst_7 = arith.constant 5.000000e-01 : f32
    %13 = vector.broadcast %cst_7 : f32 to vector<4x1024xf32>
    %14 = arith.mulf %13, %7 : vector<4x1024xf32>
    %15 = math.tanh %14 : vector<4x1024xf32>
    %cst_8 = arith.constant 1.000000e+00 : f32
    %16 = vector.broadcast %cst_8 : f32 to vector<4x1024xf32>
    %17 = arith.addf %15, %16 : vector<4x1024xf32>
    %cst_9 = arith.constant 5.000000e-01 : f32
    %18 = vector.broadcast %cst_9 : f32 to vector<4x1024xf32>
    %19 = arith.mulf %18, %17 : vector<4x1024xf32>
    %20 = arith.mulf %12, %19 : vector<4x1024xf32>
    %21 = arith.truncf %20 : vector<4x1024xf32> to vector<4x1024xbf16>
    %c0_10 = arith.constant 0 : index
    %c0_11 = arith.constant 0 : index
    %22 = vector.load %arg4[%c0_10, %c0_11] : memref<4x1024xbf16, #tpu.memory_space<vmem>>, vector<4x1024xbf16>
    tpu.vector_store %arg4[%c0_10, %c0_11], %21 {strides = array<i32>} : memref<4x1024xbf16, #tpu.memory_space<vmem>>, vector<4x1024xbf16>,
    %cst_12 = arith.constant dense<0.000000e+00> : vector<4xf32>
    %23 = vector.multi_reduction <add>, %20, %cst_12 [1] : vector<4x1024xf32> to vector<4xf32>
    %24 = vector.shape_cast %23 : vector<4xf32> to vector<4x1xf32>
    %25 = vector.shape_cast %24 : vector<4x1xf32> to vector<1x4x1xf32>
    %c0_13 = arith.constant 0 : index
    %c0_14 = arith.constant 0 : index
    %c0_15 = arith.constant 0 : index
    %26 = vector.load %arg5[%c0_13, %c0_14, %c0_15] : memref<1x4x1xf32, #tpu.memory_space<vmem>>, vector<1x4x1xf32>
    tpu.vector_store %arg5[%c0_13, %c0_14, %c0_15], %25 {strides = array<i32>} : memref<1x4x1xf32, #tpu.memory_space<vmem>>, vector<1x4x1xf32>,
    %27 = arith.mulf %20, %20 : vector<4x1024xf32>
    %cst_16 = arith.constant dense<0.000000e+00> : vector<4xf32>
    %28 = vector.multi_reduction <add>, %27, %cst_16 [1] : vector<4x1024xf32> to vector<4xf32>
    %29 = vector.shape_cast %28 : vector<4xf32> to vector<4x1xf32>
    %30 = vector.shape_cast %29 : vector<4x1xf32> to vector<1x4x1xf32>
    %c0_17 = arith.constant 0 : index
    %c0_18 = arith.constant 0 : index
    %c0_19 = arith.constant 0 : index
    %31 = vector.load %arg6[%c0_17, %c0_18, %c0_19] : memref<1x4x1xf32, #tpu.memory_space<vmem>>, vector<1x4x1xf32>
    tpu.vector_store %arg6[%c0_17, %c0_18, %c0_19], %30 {strides = array<i32>} : memref<1x4x1xf32, #tpu.memory_space<vmem>>, vector<1x4x1xf32>,
    return
  }
  func.func @transform_0(%arg0: i32) -> (i32, i32) {
    %c0_i32 = arith.constant 0 : i32
    %c0_i32_0 = arith.constant 0 : i32
    return %c0_i32, %arg0 : i32, i32
  }
  func.func @transform_1(%arg0: i32) -> (i32, i32) {
    %c0_i32 = arith.constant 0 : i32
    %c0_i32_0 = arith.constant 0 : i32
    %c0_i32_1 = arith.constant 0 : i32
    return %c0_i32, %c0_i32_0 : i32, i32
  }
  func.func @transform_2(%arg0: i32) -> (i32, i32) {
    %c0_i32 = arith.constant 0 : i32
    %c0_i32_0 = arith.constant 0 : i32
    %c0_i32_1 = arith.constant 0 : i32
    return %c0_i32, %c0_i32_0 : i32, i32
  }
  func.func @transform_3(%arg0: i32) -> (i32, i32) {
    %c0_i32 = arith.constant 0 : i32
    %c0_i32_0 = arith.constant 0 : i32
    return %c0_i32, %arg0 : i32, i32
  }
  func.func @transform_4(%arg0: i32) -> (i32, i32, i32) {
    %c0_i32 = arith.constant 0 : i32
    %c0_i32_0 = arith.constant 0 : i32
    %c0_i32_1 = arith.constant 0 : i32
    return %arg0, %c0_i32, %c0_i32_0 : i32, i32, i32
  }
  func.func @transform_5(%arg0: i32) -> (i32, i32, i32) {
    %c0_i32 = arith.constant 0 : i32
    %c0_i32_0 = arith.constant 0 : i32
    %c0_i32_1 = arith.constant 0 : i32
    return %arg0, %c0_i32, %c0_i32_0 : i32, i32, i32
  }
}

module attributes {stable_mosaic.version = 11 : i64} {
  func.func @_gated_conv_kernel(%arg0: i32, %arg1: memref<128x1024xbf16, #tpu.memory_space<vmem>>, %arg2: memref<2x128xbf16, #tpu.memory_space<vmem>>, %arg3: memref<2x1xf32, #tpu.memory_space<vmem>>, %arg4: memref<1x1024xbf16, #tpu.memory_space<vmem>>, %arg5: memref<1x1x1xf32, #tpu.memory_space<vmem>>, %arg6: memref<1x1x1xf32, #tpu.memory_space<vmem>>) attributes {dimension_semantics = [#tpu.dimension_semantics<parallel>], iteration_bounds = array<i64: 2>, scalar_prefetch = 0 : i64, scratch_operands = 0 : i64, tpu.core_type = #tpu.core_type<tc>, window_params = [{transform_indices = @transform_0, window_bounds = array<i64: 128, 1024>}, {pipeline_mode = #tpu.pipeline_mode<synchronous>, transform_indices = @transform_1, window_bounds = array<i64: 2, 128>}, {pipeline_mode = #tpu.pipeline_mode<synchronous>, transform_indices = @transform_2, window_bounds = array<i64: 2, 1>}, {transform_indices = @transform_3, window_bounds = array<i64: 1, 1024>}, {transform_indices = @transform_4, window_bounds = array<i64: 1, 1, 1>}, {transform_indices = @transform_5, window_bounds = array<i64: 1, 1, 1>}]} {
    %c0 = arith.constant 0 : index
    %c0_0 = arith.constant 0 : index
    %0 = vector.load %arg2[%c0, %c0_0] : memref<2x128xbf16, #tpu.memory_space<vmem>>, vector<2x128xbf16>
    %c0_1 = arith.constant 0 : index
    %c0_2 = arith.constant 0 : index
    %1 = vector.load %arg1[%c0_1, %c0_2] : memref<128x1024xbf16, #tpu.memory_space<vmem>>, vector<128x1024xbf16>
    %cst = arith.constant dense<0.000000e+00> : vector<2x1024xf32>
    %2 = tpu.matmul %0, %1, %cst {dimension_numbers = #tpu.dot_dimension_numbers<[1], [0], [0], [1], [0, 0, 1, 1], [], []>} : vector<2x128xbf16>, vector<128x1024xbf16>, vector<2x1024xf32> -> vector<2x1024xf32>
    %c0_3 = arith.constant 0 : index
    %c0_4 = arith.constant 0 : index
    %3 = vector.load %arg3[%c0_3, %c0_4] : memref<2x1xf32, #tpu.memory_space<vmem>>, vector<2x1xf32>
    %4 = vector.broadcast %3 : vector<2x1xf32> to vector<2x1024xf32>
    %5 = arith.addf %2, %4 : vector<2x1024xf32>
    %6 = vector.extract_strided_slice %5 {offsets = [0, 0], sizes = [1, 1024], strides = [1, 1]} : vector<2x1024xf32> to vector<1x1024xf32>
    %7 = vector.extract_strided_slice %5 {offsets = [1, 0], sizes = [1, 1024], strides = [1, 1]} : vector<2x1024xf32> to vector<1x1024xf32>
    %cst_5 = arith.constant 5.000000e-01 : f32
    %8 = vector.broadcast %cst_5 : f32 to vector<1x1024xf32>
    %9 = arith.mulf %8, %7 : vector<1x1024xf32>
    %10 = math.tanh %9 : vector<1x1024xf32>
    %cst_6 = arith.constant 1.000000e+00 : f32
    %11 = vector.broadcast %cst_6 : f32 to vector<1x1024xf32>
    %12 = arith.addf %10, %11 : vector<1x1024xf32>
    %cst_7 = arith.constant 5.000000e-01 : f32
    %13 = vector.broadcast %cst_7 : f32 to vector<1x1024xf32>
    %14 = arith.mulf %13, %12 : vector<1x1024xf32>
    %15 = arith.mulf %6, %14 : vector<1x1024xf32>
    %16 = arith.truncf %15 : vector<1x1024xf32> to vector<1x1024xbf16>
    %c0_8 = arith.constant 0 : index
    %c0_9 = arith.constant 0 : index
    %17 = vector.load %arg4[%c0_8, %c0_9] : memref<1x1024xbf16, #tpu.memory_space<vmem>>, vector<1x1024xbf16>
    tpu.vector_store %arg4[%c0_8, %c0_9], %16 {strides = array<i32>} : memref<1x1024xbf16, #tpu.memory_space<vmem>>, vector<1x1024xbf16>,
    %cst_10 = arith.constant dense<0.000000e+00> : vector<1xf32>
    %18 = vector.multi_reduction <add>, %15, %cst_10 [1] : vector<1x1024xf32> to vector<1xf32>
    %19 = vector.shape_cast %18 : vector<1xf32> to vector<1x1xf32>
    %20 = vector.shape_cast %19 : vector<1x1xf32> to vector<1x1x1xf32>
    %c0_11 = arith.constant 0 : index
    %c0_12 = arith.constant 0 : index
    %c0_13 = arith.constant 0 : index
    %21 = vector.load %arg5[%c0_11, %c0_12, %c0_13] : memref<1x1x1xf32, #tpu.memory_space<vmem>>, vector<1x1x1xf32>
    tpu.vector_store %arg5[%c0_11, %c0_12, %c0_13], %20 {strides = array<i32>} : memref<1x1x1xf32, #tpu.memory_space<vmem>>, vector<1x1x1xf32>,
    %22 = arith.mulf %15, %15 : vector<1x1024xf32>
    %cst_14 = arith.constant dense<0.000000e+00> : vector<1xf32>
    %23 = vector.multi_reduction <add>, %22, %cst_14 [1] : vector<1x1024xf32> to vector<1xf32>
    %24 = vector.shape_cast %23 : vector<1xf32> to vector<1x1xf32>
    %25 = vector.shape_cast %24 : vector<1x1xf32> to vector<1x1x1xf32>
    %c0_15 = arith.constant 0 : index
    %c0_16 = arith.constant 0 : index
    %c0_17 = arith.constant 0 : index
    %26 = vector.load %arg6[%c0_15, %c0_16, %c0_17] : memref<1x1x1xf32, #tpu.memory_space<vmem>>, vector<1x1x1xf32>
    tpu.vector_store %arg6[%c0_15, %c0_16, %c0_17], %25 {strides = array<i32>} : memref<1x1x1xf32, #tpu.memory_space<vmem>>, vector<1x1x1xf32>,
    return
  }
  func.func @transform_0(%arg0: i32) -> (i32, i32) {
    %c0_i32 = arith.constant 0 : i32
    %c0_i32_0 = arith.constant 0 : i32
    return %c0_i32, %arg0 : i32, i32
  }
  func.func @transform_1(%arg0: i32) -> (i32, i32) {
    %c0_i32 = arith.constant 0 : i32
    %c0_i32_0 = arith.constant 0 : i32
    %c0_i32_1 = arith.constant 0 : i32
    return %c0_i32, %c0_i32_0 : i32, i32
  }
  func.func @transform_2(%arg0: i32) -> (i32, i32) {
    %c0_i32 = arith.constant 0 : i32
    %c0_i32_0 = arith.constant 0 : i32
    %c0_i32_1 = arith.constant 0 : i32
    return %c0_i32, %c0_i32_0 : i32, i32
  }
  func.func @transform_3(%arg0: i32) -> (i32, i32) {
    %c0_i32 = arith.constant 0 : i32
    %c0_i32_0 = arith.constant 0 : i32
    return %c0_i32, %arg0 : i32, i32
  }
  func.func @transform_4(%arg0: i32) -> (i32, i32, i32) {
    %c0_i32 = arith.constant 0 : i32
    %c0_i32_0 = arith.constant 0 : i32
    %c0_i32_1 = arith.constant 0 : i32
    return %arg0, %c0_i32, %c0_i32_0 : i32, i32, i32
  }
  func.func @transform_5(%arg0: i32) -> (i32, i32, i32) {
    %c0_i32 = arith.constant 0 : i32
    %c0_i32_0 = arith.constant 0 : i32
    %c0_i32_1 = arith.constant 0 : i32
    return %arg0, %c0_i32, %c0_i32_0 : i32, i32, i32
  }
}

</mosaic_0001>

<llo_original>
// kernel: mul.225
$region0: #{mul.225}
  %s0 = inlined_call_operand.vmem [shape: f32[8,16], index: 0, kind: input, shape index: {}]
  %s1 = inlined_call_operand.vmem [shape: f32[128], index: 1, kind: output, shape index: {}]
  $region1: #{mul.225} parent=0
    #allocation0 [shape = 'u8[4096]{0}', space=vmem, size = 0x1000, scoped, tag = 'scoped mem for output reshape']
    %v2 = vld [vmem:[%s0] sm:$0x1]
    %vm3 = vcmask 130048
    %4 = vst.msk [vmem:[#allocation0] sm:$0x1] %vm3, %v2
    %s5 = scalar_lea.vmem %s0, 7
    %v6 = vld [vmem:[%s5] sm:$0x1]
    %7 = vrot.lane.b32.xlu0 %v6, 112
    %v8 = vpop.permute.xlu0 %7
    %vm9 = vcmask 1048448
    %10 = vst.msk [vmem:[#allocation0] sm:$0x1] %vm9, %v8
    %s11 = scalar_lea.vmem %s0, 6
    %v12 = vld [vmem:[%s11] sm:$0x1]
    %13 = vrot.lane.b32.xlu0 %v12, 96
    %v14 = vpop.permute.xlu0 %13
    %vm15 = vcmask 917248
    %16 = vst.msk [vmem:[#allocation0] sm:$0x1] %vm15, %v14
    %s17 = scalar_lea.vmem %s0, 5
    %v18 = vld [vmem:[%s17] sm:$0x1]
    %19 = vrot.lane.b32.xlu0 %v18, 80
    %v20 = vpop.permute.xlu0 %19
    %vm21 = vcmask 786048
    %22 = vst.msk [vmem:[#allocation0] sm:$0x1] %vm21, %v20
    %s23 = scalar_lea.vmem %s0, 4
    %v24 = vld [vmem:[%s23] sm:$0x1]
    %25 = vrot.lane.b32.xlu0 %v24, 64
    %v26 = vpop.permute.xlu0 %25
    %vm27 = vcmask 654848
    %28 = vst.msk [vmem:[#allocation0] sm:$0x1] %vm27, %v26
    %s29 = scalar_lea.vmem %s0, 3
    %v30 = vld [vmem:[%s29] sm:$0x1]
    %31 = vrot.lane.b32.xlu0 %v30, 48
    %v32 = vpop.permute.xlu0 %31
    %vm33 = vcmask 523648
    %34 = vst.msk [vmem:[#allocation0] sm:$0x1] %vm33, %v32
    %s35 = scalar_lea.vmem %s0, 2
    %v36 = vld [vmem:[%s35] sm:$0x1]
    %37 = vrot.lane.b32.xlu0 %v36, 32
    %v38 = vpop.permute.xlu0 %37
    %vm39 = vcmask 392448
    %40 = vst.msk [vmem:[#allocation0] sm:$0x1] %vm39, %v38
    %s41 = scalar_lea.vmem %s0, 1
    %v42 = vld [vmem:[%s41] sm:$0x1]
    %43 = vrot.lane.b32.xlu0 %v42, 16
    %v44 = vpop.permute.xlu0 %43
    %vm45 = vcmask 261248
    %46 = vst.msk [vmem:[#allocation0] sm:$0x1] %vm45, %v44
    %s48 = ssub.s32 2, 1
    %v49 = vld [vmem:[#allocation0] sm:%s48]
    %s51 = ssub.s32 2, 1
    %52 = vst [vmem:[%s1] sm:%s51] %v49

// kernel: mul.29
$region0: #{mul.29}
  #allocation0 [shape = 's32[1]{0}', space=sflag, size = 0x4, scoped, tag = 'scoped memory for mul.29']
  %s0 = inlined_call_operand.vmem [shape: f32[128], index: 0, kind: input, shape index: {}]
  %s1 = inlined_call_operand.vmem [shape: f32[128], index: 1, kind: input, shape index: {}]
  %s2 = inlined_call_operand.vmem [shape: f32[128], index: 2, kind: output, shape index: {}]
  %v3 = vld [vmem:[%s0] sm:$0x1]
  %v4 = vld [vmem:[%s1] sm:$0x1]
  %5 = xla_tuple %v3, %v4
  %6 = xla_tuple %5
  %v7 = vmul.f32 %v3, %v4
  %8 = xla_tuple %v7
  %9 = vst [vmem:[%s2] sm:$0x1] %v7

// kernel: _lambda_.17
$region0: #{_lambda_.17}
  #allocation0 [shape = 'u32[]', space=smem, size = 0x4, offset = 0x4, fixed_abs, tag = 'smem constant byte address 0x4 - core index']
  #allocation1 [shape = 'u32[72,128]{1,0:T(1,128)}', space=vmem, size = 0x9000, scoped, tag = 'internal scratch']
  %s0 = inlined_call_operand.vmem [shape: bf16[128,2048], index: 0, kind: input, shape index: {}]
  %s1 = inlined_call_operand.vmem [shape: bf16[16,128], index: 1, kind: input, shape index: {}]
  %s2 = inlined_call_operand.vmem [shape: f32[16,1], index: 2, kind: input, shape index: {}]
  %s3 = inlined_call_operand.vmem [shape: bf16[8,2048], index: 3, kind: output, shape index: {0}]
  %s4 = inlined_call_operand.vmem [shape: f32[2,8,1], index: 4, kind: output, shape index: {1}]
  %s5 = inlined_call_operand.vmem [shape: f32[2,8,1], index: 5, kind: output, shape index: {2}]
  %6 = xla_tuple %s3, %s4, %s5
  %s7 = sld [smem:[#allocation0]]
  $region84: #{_lambda_.17} parent=0
    _
  %s9 = ssub.s32 1, %s7
  %s10 = scalar_select 0, %s9, %s7
  $region1: #{_lambda_.17} parent=0
    #allocation2 [shape = 'u8[524288]{0}', space=vmem, size = 0x80000, scoped, tag = 'input window, operand 0']
    loop: start=0, step=1, limit=4
    $region2: #{_lambda_.17} parent=1 // loop_pre_header
      _
    $region3: #{_lambda_.17} parent=1 // loop_header
      %s12 = sphi 0, %s16
      %p13 = scmp.ge.s32.totalorder %s12, 4
      %s22 = sphi 0, %s24
      %s25 = sphi 0, %s22
      %s26 = sphi 0, %s25
      %s42 = sphi 0, %s26
      %s46 = sphi 0, %s46
      %s48 = sphi 0, %s46
      %s49 = sphi 0, %s48
      %s63 = sphi 0, %s49
      %s67 = sphi 0, %s67
      %s69 = sphi 0, %s67
      %s70 = sphi 0, %s69
      %s84 = sphi 0, %s70
      %s90 = sphi 0, %s92
      %s93 = sphi 0, %s90
      %s94 = sphi 0, %s93
      %s110 = sphi 0, %s94
      %s116 = sphi 0, %s118
      %s119 = sphi 0, %s116
      %s120 = sphi 0, %s119
      %s136 = sphi 0, %s120
      %s142 = sphi 0, %s144
      %s145 = sphi 0, %s142
      %s146 = sphi 0, %s145
      %s162 = sphi 0, %s146
    $region4: #{_lambda_.17} parent=1 // loop_header_branch
      %15 = sbr.rel (%p13) target = $region8
    $region5: #{_lambda_.17} parent=1 // loop_body
      %s17 = ssub.s32 %s12, 1
      %s18 = ssub.s32 %s12, 2
      %s19 = sadd.s32 %s12, 1
      %s20 = ssub.s32 %s12, %s19
      %p21 = scmp.eq.s32.totalorder %s20, 0
      %s23 = sadd.s32 %s22, 1
      %s24 = scalar_select %p21, %s22, %s23
      %p27 = pneg %p21
      %p28 = scmp.eq.s32.totalorder %s12, 1
      %p29 = por %p27, %p28
      %p30 = scmp.ne.s32.totalorder %s22, %s25
      %p31 = scmp.eq.s32.totalorder %s12, 0
      %p32 = por %p30, %p31
      %p33 = scmp.ne.s32.totalorder %s22, %s25
      %p34 = scmp.eq.s32.totalorder %s17, 1
      %p35 = por %p33, %p34
      %p36 = scmp.ne.s32.totalorder %s25, %s26
      %p37 = scmp.eq.s32.totalorder %s17, 0
      %p38 = por %p36, %p37
      %p39 = scmp.ne.s32.totalorder %s25, %s26
      %p40 = scmp.eq.s32.totalorder %s18, 1
      %p41 = por %p39, %p40
      %p43 = scmp.ne.s32.totalorder %s26, %s42
      %p44 = scmp.eq.s32.totalorder %s18, 0
      %p45 = por %p43, %p44
      %s47 = sadd.s32 %s46, 1
      %p50 = scmp.eq.s32.totalorder %s12, 1
      %p51 = scmp.ne.s32.totalorder %s46, %s48
      %p52 = scmp.eq.s32.totalorder %s12, 0
      %p53 = por %p51, %p52
      %p54 = scmp.ne.s32.totalorder %s46, %s48
      %p55 = scmp.eq.s32.totalorder %s17, 1
      %p56 = por %p54, %p55
      %p57 = scmp.ne.s32.totalorder %s48, %s49
      %p58 = scmp.eq.s32.totalorder %s17, 0
      %p59 = por %p57, %p58
      %p60 = scmp.ne.s32.totalorder %s48, %s49
      %p61 = scmp.eq.s32.totalorder %s18, 1
      %p62 = por %p60, %p61
      %p64 = scmp.ne.s32.totalorder %s49, %s63
      %p65 = scmp.eq.s32.totalorder %s18, 0
      %p66 = por %p64, %p65
      %s68 = sadd.s32 %s67, 1
      %p71 = scmp.eq.s32.totalorder %s12, 1
      %p72 = scmp.ne.s32.totalorder %s67, %s69
      %p73 = scmp.eq.s32.totalorder %s12, 0
      %p74 = por %p72, %p73
      %p75 = scmp.ne.s32.totalorder %s67, %s69
      %p76 = scmp.eq.s32.totalorder %s17, 1
      %p77 = por %p75, %p76
      %p78 = scmp.ne.s32.totalorder %s69, %s70
      %p79 = scmp.eq.s32.totalorder %s17, 0
      %p80 = por %p78, %p79
      %p81 = scmp.ne.s32.totalorder %s69, %s70
      %p82 = scmp.eq.s32.totalorder %s18, 1
      %p83 = por %p81, %p82
      %p85 = scmp.ne.s32.totalorder %s70, %s84
      %p86 = scmp.eq.s32.totalorder %s18, 0
      %p87 = por %p85, %p86
      %s88 = ssub.s32 %s12, %s19
      %p89 = scmp.eq.s32.totalorder %s88, 0
      %s91 = sadd.s32 %s90, 1
      %s92 = scalar_select %p89, %s90, %s91
      %p95 = pneg %p89
      %p96 = scmp.eq.s32.totalorder %s12, 1
      %p97 = por %p95, %p96
      %p98 = scmp.ne.s32.totalorder %s90, %s93
      %p99 = scmp.eq.s32.totalorder %s12, 0
      %p100 = por %p98, %p99
      %p101 = scmp.ne.s32.totalorder %s90, %s93
      %p102 = scmp.eq.s32.totalorder %s17, 1
      %p103 = por %p101, %p102
      %p104 = scmp.ne.s32.totalorder %s93, %s94
      %p105 = scmp.eq.s32.totalorder %s17, 0
      %p106 = por %p104, %p105
      %p107 = scmp.ne.s32.totalorder %s93, %s94
      %p108 = scmp.eq.s32.totalorder %s18, 1
      %p109 = por %p107, %p108
      %p111 = scmp.ne.s32.totalorder %s94, %s110
      %p112 = scmp.eq.s32.totalorder %s18, 0
      %p113 = por %p111, %p112
      %s114 = ssub.s32 %s12, %s19
      %p115 = scmp.eq.s32.totalorder %s114, 0
      %s117 = sadd.s32 %s116, 1
      %s118 = scalar_select %p115, %s116, %s117
      %p121 = pneg %p115
      %p122 = scmp.eq.s32.totalorder %s12, 1
      %p123 = por %p121, %p122
      %p124 = scmp.ne.s32.totalorder %s116, %s119
      %p125 = scmp.eq.s32.totalorder %s12, 0
      %p126 = por %p124, %p125
      %p127 = scmp.ne.s32.totalorder %s116, %s119
      %p128 = scmp.eq.s32.totalorder %s17, 1
      %p129 = por %p127, %p128
      %p130 = scmp.ne.s32.totalorder %s119, %s120
      %p131 = scmp.eq.s32.totalorder %s17, 0
      %p132 = por %p130, %p131
      %p133 = scmp.ne.s32.totalorder %s119, %s120
      %p134 = scmp.eq.s32.totalorder %s18, 1
      %p135 = por %p133, %p134
      %p137 = scmp.ne.s32.totalorder %s120, %s136
      %p138 = scmp.eq.s32.totalorder %s18, 0
      %p139 = por %p137, %p138
      %s140 = ssub.s32 %s12, %s19
      %p141 = scmp.eq.s32.totalorder %s140, 0
      %s143 = sadd.s32 %s142, 1
      %s144 = scalar_select %p141, %s142, %s143
      %p147 = pneg %p141
      %p148 = scmp.eq.s32.totalorder %s12, 1
      %p149 = por %p147, %p148
      %p150 = scmp.ne.s32.totalorder %s142, %s145
      %p151 = scmp.eq.s32.totalorder %s12, 0
      %p152 = por %p150, %p151
      %p153 = scmp.ne.s32.totalorder %s142, %s145
      %p154 = scmp.eq.s32.totalorder %s17, 1
      %p155 = por %p153, %p154
      %p156 = scmp.ne.s32.totalorder %s145, %s146
      %p157 = scmp.eq.s32.totalorder %s17, 0
      %p158 = por %p156, %p157
      %p159 = scmp.ne.s32.totalorder %s145, %s146
      %p160 = scmp.eq.s32.totalorder %s18, 1
      %p161 = por %p159, %p160
      %p163 = scmp.ne.s32.totalorder %s146, %s162
      %p164 = scmp.eq.s32.totalorder %s18, 0
      %p165 = por %p163, %p164
      %p166 = scmp.le.s32.totalorder 1, %s12
      %p167 = scmp.lt.s32.totalorder %s12, 3
      %p168 = pnand %p166, %p167
      %p169 = pneg %p168
      // Predicated region
      $region9: #{_lambda_.17} parent=5 // pred_check
        _
      $region10: #{_lambda_.17} parent=5 // pred_check_branch
        %171 = sbr.rel (%p168) target = $region12
      $region11: #{_lambda_.17} parent=5 // pred_region
        %s172 = ssub.s32 %s12, 1
        // Predicated region
        $region13: #{_lambda_.17} parent=11 // pred_check
          %p173 = pneg %p59
        $region14: #{_lambda_.17} parent=11 // pred_check_branch
          %175 = sbr.rel (%p173) target = $region16
        $region15: #{_lambda_.17} parent=11 // pred_region
          _
        $region16: #{_lambda_.17} parent=11 // pred_fallthru
          _
        // Predicated region
        $region17: #{_lambda_.17} parent=11 // pred_check
          %p176 = pneg %p80
        $region18: #{_lambda_.17} parent=11 // pred_check_branch
          %178 = sbr.rel (%p176) target = $region20
        $region19: #{_lambda_.17} parent=11 // pred_region
          _
        $region20: #{_lambda_.17} parent=11 // pred_fallthru
          _
      $region12: #{_lambda_.17} parent=5 // pred_fallthru
        _
      %p179 = scmp.lt.s32.totalorder %s12, 2
      // Predicated region
      $region21: #{_lambda_.17} parent=5 // pred_check
        %p180 = pneg %p179
      $region22: #{_lambda_.17} parent=5 // pred_check_branch
        %182 = sbr.rel (%p180) target = $region24
      $region23: #{_lambda_.17} parent=5 // pred_region
        // Predicated region
        $region25: #{_lambda_.17} parent=23 // pred_check
          %p183 = pneg %p32
        $region26: #{_lambda_.17} parent=23 // pred_check_branch
          %185 = sbr.rel (%p183) target = $region28
        $region27: #{_lambda_.17} parent=23 // pred_region
          %s186 = sand.u32 %s22, 1
          %s187 = sand.u32 %s22, 1
          %s188 = smul.addr %s187, 512
          %s189 = scalar_lea.vmem [#allocation2], %s188
          %s190 = smul.u32 8, %s12
          %s191 = smul.addr %s190, 4
          %s192 = scalar_lea.vmem %s0, %s191
          // Predicated region
          $region29: #{_lambda_.17} parent=27 // pred_check
            _
          $region30: #{_lambda_.17} parent=27 // pred_check_branch
            %194 = sbr.rel (0) target = $region32
          $region31: #{_lambda_.17} parent=27 // pred_region
            // Predicated region
            $region33: #{_lambda_.17} parent=31 // pred_check
              _
            $region34: #{_lambda_.17} parent=31 // pred_check_branch
              %196 = sbr.rel (0) target = $region36
            $region35: #{_lambda_.17} parent=31 // pred_region
              loop: start=0, step=1, limit=1
              $region37: #{_lambda_.17} parent=35 // loop_pre_header
                _
              $region38: #{_lambda_.17} parent=35 // loop_header
                %s198 = sphi 0, %s202
                %p199 = scmp.ge.s32.totalorder %s198, 1
                %s203 = sphi %s192, %s192
                %s204 = sphi %s189, %s189
              $region39: #{_lambda_.17} parent=35 // loop_header_branch
                %201 = sbr.rel (%p199) target = $region43
              $region40: #{_lambda_.17} parent=35 // loop_body
                %v205 = vld [vmem:[%s203] sm:$0xff]
                %206 = vst [vmem:[%s204] sm:$0xff] %v205
                %v207 = vld [vmem:[%s203 + $0x8] sm:$0xff]
                %208 = vst [vmem:[%s204 + $0x8] sm:$0xff] %v207
                %v209 = vld [vmem:[%s203 + $0x10] sm:$0xff]
                %210 = vst [vmem:[%s204 + $0x10] sm:$0xff] %v209
                %v211 = vld [vmem:[%s203 + $0x18] sm:$0xff]
                %212 = vst [vmem:[%s204 + $0x18] sm:$0xff] %v211
                %v213 = vld [vmem:[%s203 + $0x40] sm:$0xff]
                %214 = vst [vmem:[%s204 + $0x20] sm:$0xff] %v213
                %v215 = vld [vmem:[%s203 + $0x48] sm:$0xff]
                %216 = vst [vmem:[%s204 + $0x28] sm:$0xff] %v215
                %v217 = vld [vmem:[%s203 + $0x50] sm:$0xff]
                %218 = vst [vmem:[%s204 + $0x30] sm:$0xff] %v217
                %v219 = vld [vmem:[%s203 + $0x58] sm:$0xff]
                %220 = vst [vmem:[%s204 + $0x38] sm:$0xff] %v219
                %v221 = vld [vmem:[%s203 + $0x80] sm:$0xff]
                %222 = vst [vmem:[%s204 + $0x40] sm:$0xff] %v221
                %v223 = vld [vmem:[%s203 + $0x88] sm:$0xff]
                %224 = vst [vmem:[%s204 + $0x48] sm:$0xff] %v223
                %v225 = vld [vmem:[%s203 + $0x90] sm:$0xff]
                %226 = vst [vmem:[%s204 + $0x50] sm:$0xff] %v225
                %v227 = vld [vmem:[%s203 + $0x98] sm:$0xff]
                %228 = vst [vmem:[%s204 + $0x58] sm:$0xff] %v227
                %v229 = vld [vmem:[%s203 + $0xc0] sm:$0xff]
                %230 = vst [vmem:[%s204 + $0x60] sm:$0xff] %v229
                %v231 = vld [vmem:[%s203 + $0xc8] sm:$0xff]
                %232 = vst [vmem:[%s204 + $0x68] sm:$0xff] %v231
                %v233 = vld [vmem:[%s203 + $0xd0] sm:$0xff]
                %234 = vst [vmem:[%s204 + $0x70] sm:$0xff] %v233
                %v235 = vld [vmem:[%s203 + $0xd8] sm:$0xff]
                %236 = vst [vmem:[%s204 + $0x78] sm:$0xff] %v235
                %v237 = vld [vmem:[%s203 + $0x100] sm:$0xff]
                %238 = vst [vmem:[%s204 + $0x80] sm:$0xff] %v237
                %v239 = vld [vmem:[%s203 + $0x108] sm:$0xff]
                %240 = vst [vmem:[%s204 + $0x88] sm:$0xff] %v239
                %v241 = vld [vmem:[%s203 + $0x110] sm:$0xff]
                %242 = vst [vmem:[%s204 + $0x90] sm:$0xff] %v241
                %v243 = vld [vmem:[%s203 + $0x118] sm:$0xff]
                %244 = vst [vmem:[%s204 + $0x98] sm:$0xff] %v243
                %v245 = vld [vmem:[%s203 + $0x140] sm:$0xff]
                %246 = vst [vmem:[%s204 + $0xa0] sm:$0xff] %v245
                %v247 = vld [vmem:[%s203 + $0x148] sm:$0xff]
                %248 = vst [vmem:[%s204 + $0xa8] sm:$0xff] %v247
                %v249 = vld [vmem:[%s203 + $0x150] sm:$0xff]
                %250 = vst [vmem:[%s204 + $0xb0] sm:$0xff] %v249
                %v251 = vld [vmem:[%s203 + $0x158] sm:$0xff]
                %252 = vst [vmem:[%s204 + $0xb8] sm:$0xff] %v251
                %v253 = vld [vmem:[%s203 + $0x180] sm:$0xff]
                %254 = vst [vmem:[%s204 + $0xc0] sm:$0xff] %v253
                %v255 = vld [vmem:[%s203 + $0x188] sm:$0xff]
                %256 = vst [vmem:[%s204 + $0xc8] sm:$0xff] %v255
                %v257 = vld [vmem:[%s203 + $0x190] sm:$0xff]
                %258 = vst [vmem:[%s204 + $0xd0] sm:$0xff] %v257
                %v259 = vld [vmem:[%s203 + $0x198] sm:$0xff]
                %260 = vst [vmem:[%s204 + $0xd8] sm:$0xff] %v259
                %v261 = vld [vmem:[%s203 + $0x1c0] sm:$0xff]
                %262 = vst [vmem:[%s204 + $0xe0] sm:$0xff] %v261
                %v263 = vld [vmem:[%s203 + $0x1c8] sm:$0xff]
                %264 = vst [vmem:[%s204 + $0xe8] sm:$0xff] %v263
                %v265 = vld [vmem:[%s203 + $0x1d0] sm:$0xff]
                %266 = vst [vmem:[%s204 + $0xf0] sm:$0xff] %v265
                %v267 = vld [vmem:[%s203 + $0x1d8] sm:$0xff]
                %268 = vst [vmem:[%s204 + $0xf8] sm:$0xff] %v267
                %v269 = vld [vmem:[%s203 + $0x200] sm:$0xff]
                %270 = vst [vmem:[%s204 + $0x100] sm:$0xff] %v269
                %v271 = vld [vmem:[%s203 + $0x208] sm:$0xff]
                %272 = vst [vmem:[%s204 + $0x108] sm:$0xff] %v271
                %v273 = vld [vmem:[%s203 + $0x210] sm:$0xff]
                %274 = vst [vmem:[%s204 + $0x110] sm:$0xff] %v273
                %v275 = vld [vmem:[%s203 + $0x218] sm:$0xff]
                %276 = vst [vmem:[%s204 + $0x118] sm:$0xff] %v275
                %v277 = vld [vmem:[%s203 + $0x240] sm:$0xff]
                %278 = vst [vmem:[%s204 + $0x120] sm:$0xff] %v277
                %v279 = vld [vmem:[%s203 + $0x248] sm:$0xff]
                %280 = vst [vmem:[%s204 + $0x128] sm:$0xff] %v279
                %v281 = vld [vmem:[%s203 + $0x250] sm:$0xff]
                %282 = vst [vmem:[%s204 + $0x130] sm:$0xff] %v281
                %v283 = vld [vmem:[%s203 + $0x258] sm:$0xff]
                %284 = vst [vmem:[%s204 + $0x138] sm:$0xff] %v283
                %v285 = vld [vmem:[%s203 + $0x280] sm:$0xff]
                %286 = vst [vmem:[%s204 + $0x140] sm:$0xff] %v285
                %v287 = vld [vmem:[%s203 + $0x288] sm:$0xff]
                %288 = vst [vmem:[%s204 + $0x148] sm:$0xff] %v287
                %v289 = vld [vmem:[%s203 + $0x290] sm:$0xff]
                %290 = vst [vmem:[%s204 + $0x150] sm:$0xff] %v289
                %v291 = vld [vmem:[%s203 + $0x298] sm:$0xff]
                %292 = vst [vmem:[%s204 + $0x158] sm:$0xff] %v291
                %v293 = vld [vmem:[%s203 + $0x2c0] sm:$0xff]
                %294 = vst [vmem:[%s204 + $0x160] sm:$0xff] %v293
                %v295 = vld [vmem:[%s203 + $0x2c8] sm:$0xff]
                %296 = vst [vmem:[%s204 + $0x168] sm:$0xff] %v295
                %v297 = vld [vmem:[%s203 + $0x2d0] sm:$0xff]
                %298 = vst [vmem:[%s204 + $0x170] sm:$0xff] %v297
                %v299 = vld [vmem:[%s203 + $0x2d8] sm:$0xff]
                %300 = vst [vmem:[%s204 + $0x178] sm:$0xff] %v299
                %v301 = vld [vmem:[%s203 + $0x300] sm:$0xff]
                %302 = vst [vmem:[%s204 + $0x180] sm:$0xff] %v301
                %v303 = vld [vmem:[%s203 + $0x308] sm:$0xff]
                %304 = vst [vmem:[%s204 + $0x188] sm:$0xff] %v303
                %v305 = vld [vmem:[%s203 + $0x310] sm:$0xff]
                %306 = vst [vmem:[%s204 + $0x190] sm:$0xff] %v305
                %v307 = vld [vmem:[%s203 + $0x318] sm:$0xff]
                %308 = vst [vmem:[%s204 + $0x198] sm:$0xff] %v307
                %v309 = vld [vmem:[%s203 + $0x340] sm:$0xff]
                %310 = vst [vmem:[%s204 + $0x1a0] sm:$0xff] %v309
                %v311 = vld [vmem:[%s203 + $0x348] sm:$0xff]
                %312 = vst [vmem:[%s204 + $0x1a8] sm:$0xff] %v311
                %v313 = vld [vmem:[%s203 + $0x350] sm:$0xff]
                %314 = vst [vmem:[%s204 + $0x1b0] sm:$0xff] %v313
                %v315 = vld [vmem:[%s203 + $0x358] sm:$0xff]
                %316 = vst [vmem:[%s204 + $0x1b8] sm:$0xff] %v315
                %v317 = vld [vmem:[%s203 + $0x380] sm:$0xff]
                %318 = vst [vmem:[%s204 + $0x1c0] sm:$0xff] %v317
                %v319 = vld [vmem:[%s203 + $0x388] sm:$0xff]
                %320 = vst [vmem:[%s204 + $0x1c8] sm:$0xff] %v319
                %v321 = vld [vmem:[%s203 + $0x390] sm:$0xff]
                %322 = vst [vmem:[%s204 + $0x1d0] sm:$0xff] %v321
                %v323 = vld [vmem:[%s203 + $0x398] sm:$0xff]
                %324 = vst [vmem:[%s204 + $0x1d8] sm:$0xff] %v323
                %v325 = vld [vmem:[%s203 + $0x3c0] sm:$0xff]
                %326 = vst [vmem:[%s204 + $0x1e0] sm:$0xff] %v325
                %v327 = vld [vmem:[%s203 + $0x3c8] sm:$0xff]
                %328 = vst [vmem:[%s204 + $0x1e8] sm:$0xff] %v327
                %v329 = vld [vmem:[%s203 + $0x3d0] sm:$0xff]
                %330 = vst [vmem:[%s204 + $0x1f0] sm:$0xff] %v329
                %v331 = vld [vmem:[%s203 + $0x3d8] sm:$0xff]
                %332 = vst [vmem:[%s204 + $0x1f8] sm:$0xff] %v331
              $region41: #{_lambda_.17} parent=35 // loop_footer
                %s202 = sadd.s32 1, %s198
              $region42: #{_lambda_.17} parent=35 // loop_footer_branch
                %197 = sbr.rel target = $region38
              $region43: #{_lambda_.17} parent=35 // loop_exit
                _
            $region36: #{_lambda_.17} parent=31 // pred_fallthru
              _
            // Predicated region
            $region44: #{_lambda_.17} parent=31 // pred_check
              _
            $region45: #{_lambda_.17} parent=31 // pred_check_branch
              %334 = sbr.rel target = $region47
            $region46: #{_lambda_.17} parent=31 // pred_region
              _
            $region47: #{_lambda_.17} parent=31 // pred_fallthru
              _
          $region32: #{_lambda_.17} parent=27 // pred_fallthru
            _
          %335 = vnop
        $region28: #{_lambda_.17} parent=23 // pred_fallthru
          _
      $region24: #{_lambda_.17} parent=5 // pred_fallthru
        _
      %p336 = scmp.le.s32.totalorder 1, %s12
      %p337 = scmp.lt.s32.totalorder %s12, 3
      %p338 = pnand %p336, %p337
      %p339 = pneg %p338
      // Predicated region
      $region48: #{_lambda_.17} parent=5 // pred_check
        _
      $region49: #{_lambda_.17} parent=5 // pred_check_branch
        %341 = sbr.rel (%p338) target = $region51
      $region50: #{_lambda_.17} parent=5 // pred_region
        %s342 = ssub.s32 %s12, 1
        %s343 = sand.u32 %s25, 1
        %s344 = sand.u32 %s25, 1
        %s345 = smul.addr %s344, 512
        %s346 = scalar_lea.vmem [#allocation2], %s345
        // Predicated region
        $region52: #{_lambda_.17} parent=50 // pred_check
          %p347 = pneg %p38
        $region53: #{_lambda_.17} parent=50 // pred_check_branch
          %349 = sbr.rel (%p347) target = $region55
        $region54: #{_lambda_.17} parent=50 // pred_region
          _
        $region55: #{_lambda_.17} parent=50 // pred_fallthru
          _
        %s350 = sand.u32 %s25, 1
        %s351 = sand.u32 %s25, 1
        %s352 = smul.addr %s351, 512
        %s353 = scalar_lea.vmem [#allocation2], %s352
        %p354 = pneg %p38
        %p355 = pneg %p35
        %p356 = pneg %p59
        %p357 = pneg %p56
        %p358 = pneg %p80
        %p359 = pneg %p77
        %p360 = pneg %p106
        %p361 = pneg %p103
        %s362 = smul.u32 8, %s17
        %p363 = scmp.lt.s32.totalorder %s362, 15
        %s364 = scalar_select %p363, %s362, 15
        %s365 = smul.addr %s364, 4
        %s366 = scalar_lea.vmem %s3, %s365
        %p367 = pneg %p132
        %p368 = pneg %p129
        %p369 = scmp.lt.s32.totalorder %s17, 1
        %s370 = scalar_select %p369, %s17, 1
        %s371 = smul.addr %s370, 8
        %s372 = scalar_lea.vmem %s4, %s371
        %p373 = pneg %p158
        %p374 = pneg %p155
        %p375 = scmp.lt.s32.totalorder %s17, 1
        %s376 = scalar_select %p375, %s17, 1
        %s377 = smul.addr %s376, 8
        %s378 = scalar_lea.vmem %s5, %s377
        %s379 = smul.u32 8, %s17
        %s380 = smul.u32 8, %s17
        %p381 = scmp.lt.s32.totalorder %s380, 15
        %s382 = scalar_select %p381, %s380, 15
        %s383 = smul.addr %s382, 4
        %s384 = scalar_lea.vmem %s3, %s383
        %s385 = smul.u32 8, %s17
        %p386 = scmp.lt.s32.totalorder %s17, 1
        %s387 = scalar_select %p386, %s17, 1
        %s388 = smul.addr %s387, 8
        %s389 = scalar_lea.vmem %s4, %s388
        %p390 = scmp.lt.s32.totalorder %s17, 1
        %s391 = scalar_select %p390, %s17, 1
        %s392 = smul.addr %s391, 8
        %s393 = scalar_lea.vmem %s5, %s392
        %v394 = vld [vmem:[%s1] sm:$0xf]
        %v395 = vld [vmem:[%s1 + $0x4] sm:$0xf]
        %v396 = vld [vmem:[%s346] sm:$0xff]
        %v397 = vld [vmem:[%s346 + $0x8] sm:$0xff]
        %v398 = vld [vmem:[%s346 + $0x10] sm:$0xff]
        %v399 = vld [vmem:[%s346 + $0x18] sm:$0xff]
        %v400 = vld [vmem:[%s346 + $0x20] sm:$0xff]
        %v401 = vld [vmem:[%s346 + $0x28] sm:$0xff]
        %v402 = vld [vmem:[%s346 + $0x30] sm:$0xff]
        %v403 = vld [vmem:[%s346 + $0x38] sm:$0xff]
        %v404 = vld [vmem:[%s346 + $0x40] sm:$0xff]
        %v405 = vld [vmem:[%s346 + $0x48] sm:$0xff]
        %v406 = vld [vmem:[%s346 + $0x50] sm:$0xff]
        %v407 = vld [vmem:[%s346 + $0x58] sm:$0xff]
        %v408 = vld [vmem:[%s346 + $0x60] sm:$0xff]
        %v409 = vld [vmem:[%s346 + $0x68] sm:$0xff]
        %v410 = vld [vmem:[%s346 + $0x70] sm:$0xff]
        %v411 = vld [vmem:[%s346 + $0x78] sm:$0xff]
        %v412 = vld [vmem:[%s346 + $0x80] sm:$0xff]
        %v413 = vld [vmem:[%s346 + $0x88] sm:$0xff]
        %v414 = vld [vmem:[%s346 + $0x90] sm:$0xff]
        %v415 = vld [vmem:[%s346 + $0x98] sm:$0xff]
        %v416 = vld [vmem:[%s346 + $0xa0] sm:$0xff]
        %v417 = vld [vmem:[%s346 + $0xa8] sm:$0xff]
        %v418 = vld [vmem:[%s346 + $0xb0] sm:$0xff]
        %v419 = vld [vmem:[%s346 + $0xb8] sm:$0xff]
        %v420 = vld [vmem:[%s346 + $0xc0] sm:$0xff]
        %v421 = vld [vmem:[%s346 + $0xc8] sm:$0xff]
        %v422 = vld [vmem:[%s346 + $0xd0] sm:$0xff]
        %v423 = vld [vmem:[%s346 + $0xd8] sm:$0xff]
        %v424 = vld [vmem:[%s346 + $0xe0] sm:$0xff]
        %v425 = vld [vmem:[%s346 + $0xe8] sm:$0xff]
        %v426 = vld [vmem:[%s346 + $0xf0] sm:$0xff]
        %v427 = vld [vmem:[%s346 + $0xf8] sm:$0xff]
        %v428 = vld [vmem:[%s346 + $0x100] sm:$0xff]
        %v429 = vld [vmem:[%s346 + $0x108] sm:$0xff]
        %v430 = vld [vmem:[%s346 + $0x110] sm:$0xff]
        %v431 = vld [vmem:[%s346 + $0x118] sm:$0xff]
        %v432 = vld [vmem:[%s346 + $0x120] sm:$0xff]
        %v433 = vld [vmem:[%s346 + $0x128] sm:$0xff]
        %v434 = vld [vmem:[%s346 + $0x130] sm:$0xff]
        %v435 = vld [vmem:[%s346 + $0x138] sm:$0xff]
        %v436 = vld [vmem:[%s346 + $0x140] sm:$0xff]
        %v437 = vld [vmem:[%s346 + $0x148] sm:$0xff]
        %v438 = vld [vmem:[%s346 + $0x150] sm:$0xff]
        %v439 = vld [vmem:[%s346 + $0x158] sm:$0xff]
        %v440 = vld [vmem:[%s346 + $0x160] sm:$0xff]
        %v441 = vld [vmem:[%s346 + $0x168] sm:$0xff]
        %v442 = vld [vmem:[%s346 + $0x170] sm:$0xff]
        %v443 = vld [vmem:[%s346 + $0x178] sm:$0xff]
        %v444 = vld [vmem:[%s346 + $0x180] sm:$0xff]
        %v445 = vld [vmem:[%s346 + $0x188] sm:$0xff]
        %v446 = vld [vmem:[%s346 + $0x190] sm:$0xff]
        %v447 = vld [vmem:[%s346 + $0x198] sm:$0xff]
        %v448 = vld [vmem:[%s346 + $0x1a0] sm:$0xff]
        %v449 = vld [vmem:[%s346 + $0x1a8] sm:$0xff]
        %v450 = vld [vmem:[%s346 + $0x1b0] sm:$0xff]
        %v451 = vld [vmem:[%s346 + $0x1b8] sm:$0xff]
        %v452 = vld [vmem:[%s346 + $0x1c0] sm:$0xff]
        %v453 = vld [vmem:[%s346 + $0x1c8] sm:$0xff]
        %v454 = vld [vmem:[%s346 + $0x1d0] sm:$0xff]
        %v455 = vld [vmem:[%s346 + $0x1d8] sm:$0xff]
        %v456 = vld [vmem:[%s346 + $0x1e0] sm:$0xff]
        %v457 = vld [vmem:[%s346 + $0x1e8] sm:$0xff]
        %v458 = vld [vmem:[%s346 + $0x1f0] sm:$0xff]
        %v459 = vld [vmem:[%s346 + $0x1f8] sm:$0xff]
        %v460 = vld [vmem:[%s2] sm:$0xff]
        %v461 = vld [vmem:[%s2 + $0x8] sm:$0xff]
        %463 = vset.pattern.permute.xlu0 0
        %464 = vperm.xlu0 %463, %v460
        %v465 = vpop.permute.xlu0 %464
        %468 = vset.pattern.permute.xlu0 0
        %469 = vperm.xlu0 %468, %v461
        %v470 = vpop.permute.xlu0 %469
        %v474 = vunpack.c.l.b16 %v394
        %v475 = vunpack.c.l.b16 %v395
        %v476 = vpack.c.b16 %v475, %v474
        %v542 = vunpack.c.l.b16 %v396
        %v543 = vunpack.c.h.b16 %v396
        %v544 = vunpack.c.l.b16 %v397
        %v545 = vunpack.c.h.b16 %v397
        %v546 = vunpack.c.l.b16 %v398
        %v547 = vunpack.c.h.b16 %v398
        %v548 = vunpack.c.l.b16 %v399
        %v549 = vunpack.c.h.b16 %v399
        %v550 = vunpack.c.l.b16 %v400
        %v551 = vunpack.c.h.b16 %v400
        %v552 = vunpack.c.l.b16 %v401
        %v553 = vunpack.c.h.b16 %v401
        %v554 = vunpack.c.l.b16 %v402
        %v555 = vunpack.c.h.b16 %v402
        %v556 = vunpack.c.l.b16 %v403
        %v557 = vunpack.c.h.b16 %v403
        %v558 = vunpack.c.l.b16 %v404
        %v559 = vunpack.c.h.b16 %v404
        %v560 = vunpack.c.l.b16 %v405
        %v561 = vunpack.c.h.b16 %v405
        %v562 = vunpack.c.l.b16 %v406
        %v563 = vunpack.c.h.b16 %v406
        %v564 = vunpack.c.l.b16 %v407
        %v565 = vunpack.c.h.b16 %v407
        %v566 = vunpack.c.l.b16 %v408
        %v567 = vunpack.c.h.b16 %v408
        %v568 = vunpack.c.l.b16 %v409
        %v569 = vunpack.c.h.b16 %v409
        %v570 = vunpack.c.l.b16 %v410
        %v571 = vunpack.c.h.b16 %v410
        %v572 = vunpack.c.l.b16 %v411
        %v573 = vunpack.c.h.b16 %v411
        %v574 = vunpack.c.l.b16 %v412
        %v575 = vunpack.c.h.b16 %v412
        %v576 = vunpack.c.l.b16 %v413
        %v577 = vunpack.c.h.b16 %v413
        %v578 = vunpack.c.l.b16 %v414
        %v579 = vunpack.c.h.b16 %v414
        %v580 = vunpack.c.l.b16 %v415
        %v581 = vunpack.c.h.b16 %v415
        %v582 = vunpack.c.l.b16 %v416
        %v583 = vunpack.c.h.b16 %v416
        %v584 = vunpack.c.l.b16 %v417
        %v585 = vunpack.c.h.b16 %v417
        %v586 = vunpack.c.l.b16 %v418
        %v587 = vunpack.c.h.b16 %v418
        %v588 = vunpack.c.l.b16 %v419
        %v589 = vunpack.c.h.b16 %v419
        %v590 = vunpack.c.l.b16 %v420
        %v591 = vunpack.c.h.b16 %v420
        %v592 = vunpack.c.l.b16 %v421
        %v593 = vunpack.c.h.b16 %v421
        %v594 = vunpack.c.l.b16 %v422
        %v595 = vunpack.c.h.b16 %v422
        %v596 = vunpack.c.l.b16 %v423
        %v597 = vunpack.c.h.b16 %v423
        %v598 = vunpack.c.l.b16 %v424
        %v599 = vunpack.c.h.b16 %v424
        %v600 = vunpack.c.l.b16 %v425
        %v601 = vunpack.c.h.b16 %v425
        %v602 = vunpack.c.l.b16 %v426
        %v603 = vunpack.c.h.b16 %v426
        %v604 = vunpack.c.l.b16 %v427
        %v605 = vunpack.c.h.b16 %v427
        %v606 = vunpack.c.l.b16 %v428
        %v607 = vunpack.c.h.b16 %v428
        %v608 = vunpack.c.l.b16 %v429
        %v609 = vunpack.c.h.b16 %v429
        %v610 = vunpack.c.l.b16 %v430
        %v611 = vunpack.c.h.b16 %v430
        %v612 = vunpack.c.l.b16 %v431
        %v613 = vunpack.c.h.b16 %v431
        %v614 = vunpack.c.l.b16 %v432
        %v615 = vunpack.c.h.b16 %v432
        %v616 = vunpack.c.l.b16 %v433
        %v617 = vunpack.c.h.b16 %v433
        %v618 = vunpack.c.l.b16 %v434
        %v619 = vunpack.c.h.b16 %v434
        %v620 = vunpack.c.l.b16 %v435
        %v621 = vunpack.c.h.b16 %v435
        %v622 = vunpack.c.l.b16 %v436
        %v623 = vunpack.c.h.b16 %v436
        %v624 = vunpack.c.l.b16 %v437
        %v625 = vunpack.c.h.b16 %v437
        %v626 = vunpack.c.l.b16 %v438
        %v627 = vunpack.c.h.b16 %v438
        %v628 = vunpack.c.l.b16 %v439
        %v629 = vunpack.c.h.b16 %v439
        %v630 = vunpack.c.l.b16 %v440
        %v631 = vunpack.c.h.b16 %v440
        %v632 = vunpack.c.l.b16 %v441
        %v633 = vunpack.c.h.b16 %v441
        %v634 = vunpack.c.l.b16 %v442
        %v635 = vunpack.c.h.b16 %v442
        %v636 = vunpack.c.l.b16 %v443
        %v637 = vunpack.c.h.b16 %v443
        %v638 = vunpack.c.l.b16 %v444
        %v639 = vunpack.c.h.b16 %v444
        %v640 = vunpack.c.l.b16 %v445
        %v641 = vunpack.c.h.b16 %v445
        %v642 = vunpack.c.l.b16 %v446
        %v643 = vunpack.c.h.b16 %v446
        %v644 = vunpack.c.l.b16 %v447
        %v645 = vunpack.c.h.b16 %v447
        %v646 = vunpack.c.l.b16 %v448
        %v647 = vunpack.c.h.b16 %v448
        %v648 = vunpack.c.l.b16 %v449
        %v649 = vunpack.c.h.b16 %v449
        %v650 = vunpack.c.l.b16 %v450
        %v651 = vunpack.c.h.b16 %v450
        %v652 = vunpack.c.l.b16 %v451
        %v653 = vunpack.c.h.b16 %v451
        %v654 = vunpack.c.l.b16 %v452
        %v655 = vunpack.c.h.b16 %v452
        %v656 = vunpack.c.l.b16 %v453
        %v657 = vunpack.c.h.b16 %v453
        %v658 = vunpack.c.l.b16 %v454
        %v659 = vunpack.c.h.b16 %v454
        %v660 = vunpack.c.l.b16 %v455
        %v661 = vunpack.c.h.b16 %v455
        %v662 = vunpack.c.l.b16 %v456
        %v663 = vunpack.c.h.b16 %v456
        %v664 = vunpack.c.l.b16 %v457
        %v665 = vunpack.c.h.b16 %v457
        %v666 = vunpack.c.l.b16 %v458
        %v667 = vunpack.c.h.b16 %v458
        %v668 = vunpack.c.l.b16 %v459
        %v669 = vunpack.c.h.b16 %v459
        %v670 = vpack.c.b16 %v550, %v542
        %v671 = vpack.c.b16 %v551, %v543
        %v672 = vpack.c.b16 %v552, %v544
        %v673 = vpack.c.b16 %v553, %v545
        %v674 = vpack.c.b16 %v554, %v546
        %v675 = vpack.c.b16 %v555, %v547
        %v676 = vpack.c.b16 %v556, %v548
        %v677 = vpack.c.b16 %v557, %v549
        %v678 = vpack.c.b16 %v566, %v558
        %v679 = vpack.c.b16 %v567, %v559
        %v680 = vpack.c.b16 %v568, %v560
        %v681 = vpack.c.b16 %v569, %v561
        %v682 = vpack.c.b16 %v570, %v562
        %v683 = vpack.c.b16 %v571, %v563
        %v684 = vpack.c.b16 %v572, %v564
        %v685 = vpack.c.b16 %v573, %v565
        %v686 = vpack.c.b16 %v582, %v574
        %v687 = vpack.c.b16 %v583, %v575
        %v688 = vpack.c.b16 %v584, %v576
        %v689 = vpack.c.b16 %v585, %v577
        %v690 = vpack.c.b16 %v586, %v578
        %v691 = vpack.c.b16 %v587, %v579
        %v692 = vpack.c.b16 %v588, %v580
        %v693 = vpack.c.b16 %v589, %v581
        %v694 = vpack.c.b16 %v598, %v590
        %v695 = vpack.c.b16 %v599, %v591
        %v696 = vpack.c.b16 %v600, %v592
        %v697 = vpack.c.b16 %v601, %v593
        %v698 = vpack.c.b16 %v602, %v594
        %v699 = vpack.c.b16 %v603, %v595
        %v700 = vpack.c.b16 %v604, %v596
        %v701 = vpack.c.b16 %v605, %v597
        %v702 = vpack.c.b16 %v614, %v606
        %v703 = vpack.c.b16 %v615, %v607
        %v704 = vpack.c.b16 %v616, %v608
        %v705 = vpack.c.b16 %v617, %v609
        %v706 = vpack.c.b16 %v618, %v610
        %v707 = vpack.c.b16 %v619, %v611
        %v708 = vpack.c.b16 %v620, %v612
        %v709 = vpack.c.b16 %v621, %v613
        %v710 = vpack.c.b16 %v630, %v622
        %v711 = vpack.c.b16 %v631, %v623
        %v712 = vpack.c.b16 %v632, %v624
        %v713 = vpack.c.b16 %v633, %v625
        %v714 = vpack.c.b16 %v634, %v626
        %v715 = vpack.c.b16 %v635, %v627
        %v716 = vpack.c.b16 %v636, %v628
        %v717 = vpack.c.b16 %v637, %v629
        %v718 = vpack.c.b16 %v646, %v638
        %v719 = vpack.c.b16 %v647, %v639
        %v720 = vpack.c.b16 %v648, %v640
        %v721 = vpack.c.b16 %v649, %v641
        %v722 = vpack.c.b16 %v650, %v642
        %v723 = vpack.c.b16 %v651, %v643
        %v724 = vpack.c.b16 %v652, %v644
        %v725 = vpack.c.b16 %v653, %v645
        %v726 = vpack.c.b16 %v662, %v654
        %v727 = vpack.c.b16 %v663, %v655
        %v728 = vpack.c.b16 %v664, %v656
        %v729 = vpack.c.b16 %v665, %v657
        %v730 = vpack.c.b16 %v666, %v658
        %v731 = vpack.c.b16 %v667, %v659
        %v732 = vpack.c.b16 %v668, %v660
        %v733 = vpack.c.b16 %v669, %v661
        %798 = vmatpush.bf16.msra.mxu0 %v726
        %799 = vmatpush.bf16.msra.mxu0 %v718
        %800 = vmatpush.bf16.msra.mxu0 %v710
        %801 = vmatpush.bf16.msra.mxu0 %v702
        %802 = vmatpush.bf16.msra.mxu0 %v694
        %803 = vmatpush.bf16.msra.mxu0 %v686
        %804 = vmatpush.bf16.msra.mxu0 %v678
        %805 = vmatpush.bf16.msra.mxu0 %v670
        %806 = vmatmul.bf16.gmra.mxu0 %v476
        %v807 = vpop.f32.mrf.mxu0
        %v808 = vadd.f32 %v465, %v807
        %v809 = vpop.f32.mrf.mxu0
        %v810 = vadd.f32 %v470, %v809
        %811 = vdwg.mxu0
        %812 = vmatpush.bf16.msra.mxu0 %v727
        %813 = vmatpush.bf16.msra.mxu0 %v719
        %814 = vmatpush.bf16.msra.mxu0 %v711
        %815 = vmatpush.bf16.msra.mxu0 %v703
        %816 = vmatpush.bf16.msra.mxu0 %v695
        %817 = vmatpush.bf16.msra.mxu0 %v687
        %818 = vmatpush.bf16.msra.mxu0 %v679
        %819 = vmatpush.bf16.msra.mxu0 %v671
        %820 = vmatmul.bf16.gmra.mxu0 %v476
        %v821 = vpop.f32.mrf.mxu0
        %v822 = vadd.f32 %v465, %v821
        %v823 = vpop.f32.mrf.mxu0
        %v824 = vadd.f32 %v470, %v823
        %825 = vdwg.mxu0
        %826 = vmatpush.bf16.msra.mxu0 %v728
        %827 = vmatpush.bf16.msra.mxu0 %v720
        %828 = vmatpush.bf16.msra.mxu0 %v712
        %829 = vmatpush.bf16.msra.mxu0 %v704
        %830 = vmatpush.bf16.msra.mxu0 %v696
        %831 = vmatpush.bf16.msra.mxu0 %v688
        %832 = vmatpush.bf16.msra.mxu0 %v680
        %833 = vmatpush.bf16.msra.mxu0 %v672
        %834 = vmatmul.bf16.gmra.mxu0 %v476
        %v835 = vpop.f32.mrf.mxu0
        %v836 = vadd.f32 %v465, %v835
        %v837 = vpop.f32.mrf.mxu0
        %v838 = vadd.f32 %v470, %v837
        %839 = vdwg.mxu0
        %840 = vmatpush.bf16.msra.mxu0 %v729
        %841 = vmatpush.bf16.msra.mxu0 %v721
        %842 = vmatpush.bf16.msra.mxu0 %v713
        %843 = vmatpush.bf16.msra.mxu0 %v705
        %844 = vmatpush.bf16.msra.mxu0 %v697
        %845 = vmatpush.bf16.msra.mxu0 %v689
        %846 = vmatpush.bf16.msra.mxu0 %v681
        %847 = vmatpush.bf16.msra.mxu0 %v673
        %848 = vmatmul.bf16.gmra.mxu0 %v476
        %v849 = vpop.f32.mrf.mxu0
        %v850 = vadd.f32 %v465, %v849
        %v851 = vpop.f32.mrf.mxu0
        %v852 = vadd.f32 %v470, %v851
        %853 = vdwg.mxu0
        %854 = vmatpush.bf16.msra.mxu0 %v730
        %855 = vmatpush.bf16.msra.mxu0 %v722
        %856 = vmatpush.bf16.msra.mxu0 %v714
        %857 = vmatpush.bf16.msra.mxu0 %v706
        %858 = vmatpush.bf16.msra.mxu0 %v698
        %859 = vmatpush.bf16.msra.mxu0 %v690
        %860 = vmatpush.bf16.msra.mxu0 %v682
        %861 = vmatpush.bf16.msra.mxu0 %v674
        %862 = vmatmul.bf16.gmra.mxu0 %v476
        %v863 = vpop.f32.mrf.mxu0
        %v864 = vadd.f32 %v465, %v863
        %v865 = vpop.f32.mrf.mxu0
        %v866 = vadd.f32 %v470, %v865
        %867 = vdwg.mxu0
        %868 = vmatpush.bf16.msra.mxu0 %v731
        %869 = vmatpush.bf16.msra.mxu0 %v723
        %870 = vmatpush.bf16.msra.mxu0 %v715
        %871 = vmatpush.bf16.msra.mxu0 %v707
        %872 = vmatpush.bf16.msra.mxu0 %v699
        %873 = vmatpush.bf16.msra.mxu0 %v691
        %874 = vmatpush.bf16.msra.mxu0 %v683
        %875 = vmatpush.bf16.msra.mxu0 %v675
        %876 = vmatmul.bf16.gmra.mxu0 %v476
        %v877 = vpop.f32.mrf.mxu0
        %v878 = vadd.f32 %v465, %v877
        %v879 = vpop.f32.mrf.mxu0
        %v880 = vadd.f32 %v470, %v879
        %881 = vdwg.mxu0
        %882 = vmatpush.bf16.msra.mxu0 %v732
        %883 = vmatpush.bf16.msra.mxu0 %v724
        %884 = vmatpush.bf16.msra.mxu0 %v716
        %885 = vmatpush.bf16.msra.mxu0 %v708
        %886 = vmatpush.bf16.msra.mxu0 %v700
        %887 = vmatpush.bf16.msra.mxu0 %v692
        %888 = vmatpush.bf16.msra.mxu0 %v684
        %889 = vmatpush.bf16.msra.mxu0 %v676
        %890 = vmatmul.bf16.gmra.mxu0 %v476
        %v891 = vpop.f32.mrf.mxu0
        %v892 = vadd.f32 %v465, %v891
        %v893 = vpop.f32.mrf.mxu0
        %v894 = vadd.f32 %v470, %v893
        %895 = vdwg.mxu0
        %896 = vmatpush.bf16.msra.mxu0 %v733
        %897 = vmatpush.bf16.msra.mxu0 %v725
        %898 = vmatpush.bf16.msra.mxu0 %v717
        %899 = vmatpush.bf16.msra.mxu0 %v709
        %900 = vmatpush.bf16.msra.mxu0 %v701
        %901 = vmatpush.bf16.msra.mxu0 %v693
        %902 = vmatpush.bf16.msra.mxu0 %v685
        %903 = vmatpush.bf16.msra.mxu0 %v677
        %904 = vmatmul.bf16.gmra.mxu0 %v476
        %v905 = vpop.f32.mrf.mxu0
        %v906 = vadd.f32 %v465, %v905
        %v907 = vpop.f32.mrf.mxu0
        %v908 = vadd.f32 %v470, %v907
        %909 = vdwg.mxu0
        %vm910 = vcmp.ge.f32.partialorder %v808, 0.0
        %vm911 = vcmp.ge.f32.partialorder %v822, 0.0
        %vm912 = vcmp.ge.f32.partialorder %v836, 0.0
        %vm913 = vcmp.ge.f32.partialorder %v850, 0.0
        %vm914 = vcmp.ge.f32.partialorder %v864, 0.0
        %vm915 = vcmp.ge.f32.partialorder %v878, 0.0
        %vm916 = vcmp.ge.f32.partialorder %v892, 0.0
        %vm917 = vcmp.ge.f32.partialorder %v906, 0.0
        %v918 = vmul.f32 %v808, 0.2
        %v919 = vmul.f32 %v822, 0.2
        %v920 = vmul.f32 %v836, 0.2
        %v921 = vmul.f32 %v850, 0.2
        %v922 = vmul.f32 %v864, 0.2
        %v923 = vmul.f32 %v878, 0.2
        %v924 = vmul.f32 %v892, 0.2
        %v925 = vmul.f32 %v906, 0.2
        %v926 = vsel %vm910, %v808, %v918
        %v927 = vsel %vm911, %v822, %v919
        %v928 = vsel %vm912, %v836, %v920
        %v929 = vsel %vm913, %v850, %v921
        %v930 = vsel %vm914, %v864, %v922
        %v931 = vsel %vm915, %v878, %v923
        %v932 = vsel %vm916, %v892, %v924
        %v933 = vsel %vm917, %v906, %v925
        %v934 = vmul.f32 %v810, 0.5
        %v935 = vmul.f32 %v824, 0.5
        %v936 = vmul.f32 %v838, 0.5
        %v937 = vmul.f32 %v852, 0.5
        %v938 = vmul.f32 %v866, 0.5
        %v939 = vmul.f32 %v880, 0.5
        %v940 = vmul.f32 %v894, 0.5
        %v941 = vmul.f32 %v908, 0.5
        %v942 = vtanh.pop %v934
        %v943 = vtanh.pop %v935
        %v944 = vtanh.pop %v936
        %v945 = vtanh.pop %v937
        %v946 = vtanh.pop %v938
        %v947 = vtanh.pop %v939
        %v948 = vtanh.pop %v940
        %v949 = vtanh.pop %v941
        %v950 = vadd.f32 %v942, 1.0
        %v951 = vadd.f32 %v943, 1.0
        %v952 = vadd.f32 %v944, 1.0
        %v953 = vadd.f32 %v945, 1.0
        %v954 = vadd.f32 %v946, 1.0
        %v955 = vadd.f32 %v947, 1.0
        %v956 = vadd.f32 %v948, 1.0
        %v957 = vadd.f32 %v949, 1.0
        %v958 = vmul.f32 %v950, 0.5
        %v959 = vmul.f32 %v951, 0.5
        %v960 = vmul.f32 %v952, 0.5
        %v961 = vmul.f32 %v953, 0.5
        %v962 = vmul.f32 %v954, 0.5
        %v963 = vmul.f32 %v955, 0.5
        %v964 = vmul.f32 %v956, 0.5
        %v965 = vmul.f32 %v957, 0.5
        %v966 = vmul.f32 %v926, %v958
        %v967 = vmul.f32 %v927, %v959
        %v968 = vmul.f32 %v928, %v960
        %v969 = vmul.f32 %v929, %v961
        %v970 = vmul.f32 %v930, %v962
        %v971 = vmul.f32 %v931, %v963
        %v972 = vmul.f32 %v932, %v964
        %v973 = vmul.f32 %v933, %v965
        %v974 = vpack.c.bf16 %v967, %v966
        %v975 = vpack.c.bf16 %v969, %v968
        %v976 = vpack.c.bf16 %v971, %v970
        %v977 = vpack.c.bf16 %v973, %v972
        %978 = vst [vmem:[%s384] sm:$0xff] %v974
        %979 = vst [vmem:[%s384 + $0x8] sm:$0xff] %v975
        %980 = vst [vmem:[%s384 + $0x10] sm:$0xff] %v976
        %981 = vst [vmem:[%s384 + $0x18] sm:$0xff] %v977
        %v982 = vadd.f32 %v966, %v967
        %v983 = vadd.f32 %v982, %v968
        %v984 = vadd.f32 %v983, %v969
        %v985 = vadd.f32 %v984, %v970
        %v986 = vadd.f32 %v985, %v971
        %v987 = vadd.f32 %v986, %v972
        %v988 = vadd.f32 %v987, %v973
        %989 = vadd.xlane.f32.xlu0 %v988
        %v990 = vpop.xlane.xlu0 %989
        %vm991 = vcmask 7168
        %992 = vst.msk [vmem:[%s389] sm:$0xff] %vm991, %v990
        %v993 = vmul.f32 %v966, %v966
        %v994 = vmul.f32 %v967, %v967
        %v995 = vmul.f32 %v968, %v968
        %v996 = vmul.f32 %v969, %v969
        %v997 = vmul.f32 %v970, %v970
        %v998 = vmul.f32 %v971, %v971
        %v999 = vmul.f32 %v972, %v972
        %v1000 = vmul.f32 %v973, %v973
        %v1001 = vadd.f32 %v993, %v994
        %v1002 = vadd.f32 %v1001, %v995
        %v1003 = vadd.f32 %v1002, %v996
        %v1004 = vadd.f32 %v1003, %v997
        %v1005 = vadd.f32 %v1004, %v998
        %v1006 = vadd.f32 %v1005, %v999
        %v1007 = vadd.f32 %v1006, %v1000
        %1008 = vadd.xlane.f32.xlu0 %v1007
        %v1009 = vpop.xlane.xlu0 %1008
        %1010 = vst.msk [vmem:[%s393] sm:$0xff] %vm991, %v1009
        %s1011 = smul.u32 8, %s17
        %p1012 = scmp.lt.s32.totalorder %s1011, 15
        %s1013 = scalar_select %p1012, %s1011, 15
        %s1014 = smul.addr %s1013, 4
        %s1015 = scalar_lea.vmem %s3, %s1014
        %p1016 = scmp.lt.s32.totalorder %s17, 1
        %s1017 = scalar_select %p1016, %s17, 1
        %s1018 = smul.addr %s1017, 8
        %s1019 = scalar_lea.vmem %s4, %s1018
        %p1020 = scmp.lt.s32.totalorder %s17, 1
        %s1021 = scalar_select %p1020, %s17, 1
        %s1022 = smul.addr %s1021, 8
        %s1023 = scalar_lea.vmem %s5, %s1022
        // Predicated region
        $region56: #{_lambda_.17} parent=50 // pred_check
          %p1024 = pneg %p103
        $region57: #{_lambda_.17} parent=50 // pred_check_branch
          %1026 = sbr.rel (%p1024) target = $region59
        $region58: #{_lambda_.17} parent=50 // pred_region
          %s1027 = smul.u32 8, %s17
        $region59: #{_lambda_.17} parent=50 // pred_fallthru
          _
        // Predicated region
        $region60: #{_lambda_.17} parent=50 // pred_check
          %p1028 = pneg %p129
        $region61: #{_lambda_.17} parent=50 // pred_check_branch
          %1030 = sbr.rel (%p1028) target = $region63
        $region62: #{_lambda_.17} parent=50 // pred_region
          _
        $region63: #{_lambda_.17} parent=50 // pred_fallthru
          _
        // Predicated region
        $region64: #{_lambda_.17} parent=50 // pred_check
          %p1031 = pneg %p155
        $region65: #{_lambda_.17} parent=50 // pred_check_branch
          %1033 = sbr.rel (%p1031) target = $region67
        $region66: #{_lambda_.17} parent=50 // pred_region
          _
        $region67: #{_lambda_.17} parent=50 // pred_fallthru
          _
      $region51: #{_lambda_.17} parent=5 // pred_fallthru
        _
      %p1034 = scmp.le.s32.totalorder 2, %s12
      // Predicated region
      $region68: #{_lambda_.17} parent=5 // pred_check
        %p1035 = pneg %p1034
      $region69: #{_lambda_.17} parent=5 // pred_check_branch
        %1037 = sbr.rel (%p1035) target = $region71
      $region70: #{_lambda_.17} parent=5 // pred_region
        %s1038 = ssub.s32 %s12, 2
        // Predicated region
        $region72: #{_lambda_.17} parent=70 // pred_check
          %p1039 = pneg %p109
        $region73: #{_lambda_.17} parent=70 // pred_check_branch
          %1041 = sbr.rel (%p1039) target = $region75
        $region74: #{_lambda_.17} parent=70 // pred_region
          %s1042 = smul.u32 8, %s18
          %p1043 = scmp.lt.s32.totalorder %s1042, 15
          %s1044 = scalar_select %p1043, %s1042, 15
          %s1045 = smul.addr %s1044, 4
          %s1046 = scalar_lea.vmem %s3, %s1045
        $region75: #{_lambda_.17} parent=70 // pred_fallthru
          _
        // Predicated region
        $region76: #{_lambda_.17} parent=70 // pred_check
          %p1047 = pneg %p135
        $region77: #{_lambda_.17} parent=70 // pred_check_branch
          %1049 = sbr.rel (%p1047) target = $region79
        $region78: #{_lambda_.17} parent=70 // pred_region
          %p1050 = scmp.lt.s32.totalorder %s18, 1
          %s1051 = scalar_select %p1050, %s18, 1
          %s1052 = smul.addr %s1051, 8
          %s1053 = scalar_lea.vmem %s4, %s1052
        $region79: #{_lambda_.17} parent=70 // pred_fallthru
          _
        // Predicated region
        $region80: #{_lambda_.17} parent=70 // pred_check
          %p1054 = pneg %p161
        $region81: #{_lambda_.17} parent=70 // pred_check_branch
          %1056 = sbr.rel (%p1054) target = $region83
        $region82: #{_lambda_.17} parent=70 // pred_region
          %p1057 = scmp.lt.s32.totalorder %s18, 1
          %s1058 = scalar_select %p1057, %s18, 1
          %s1059 = smul.addr %s1058, 8
          %s1060 = scalar_lea.vmem %s5, %s1059
        $region83: #{_lambda_.17} parent=70 // pred_fallthru
          _
      $region71: #{_lambda_.17} parent=5 // pred_fallthru
        _
    $region6: #{_lambda_.17} parent=1 // loop_footer
      %s16 = sadd.s32 1, %s12
    $region7: #{_lambda_.17} parent=1 // loop_footer_branch
      %11 = sbr.rel target = $region3
    $region8: #{_lambda_.17} parent=1 // loop_exit
      _

// kernel: _lambda_.18
$region0: #{_lambda_.18}
  #allocation0 [shape = 'u32[]', space=smem, size = 0x4, offset = 0x4, fixed_abs, tag = 'smem constant byte address 0x4 - core index']
  #allocation1 [shape = 'u32[72,128]{1,0:T(1,128)}', space=vmem, size = 0x9000, scoped, tag = 'internal scratch']
  %s0 = inlined_call_operand.vmem [shape: bf16[128,512], index: 0, kind: input, shape index: {}]
  %s1 = inlined_call_operand.vmem [shape: bf16[32,128], index: 1, kind: input, shape index: {}]
  %s2 = inlined_call_operand.vmem [shape: f32[32,1], index: 2, kind: input, shape index: {}]
  %s3 = inlined_call_operand.vmem [shape: bf16[16,512], index: 3, kind: output, shape index: {0}]
  %s4 = inlined_call_operand.vmem [shape: f32[1,16,1], index: 4, kind: output, shape index: {1}]
  %s5 = inlined_call_operand.vmem [shape: f32[1,16,1], index: 5, kind: output, shape index: {2}]
  %6 = xla_tuple %s3, %s4, %s5
  %s7 = sld [smem:[#allocation0]]
  $region38: #{_lambda_.18} parent=0
    _
  %s9 = ssub.s32 1, %s7
  %s10 = scalar_select 0, %s9, %s7
  // Predicated region
  $region2: #{_lambda_.18} parent=0 // pred_check
    _
  $region3: #{_lambda_.18} parent=0 // pred_check_branch
    %12 = sbr.rel (0) target = $region5
  $region4: #{_lambda_.18} parent=0 // pred_region
    _
  $region5: #{_lambda_.18} parent=0 // pred_fallthru
    _
  // Predicated region
  $region6: #{_lambda_.18} parent=0 // pred_check
    _
  $region7: #{_lambda_.18} parent=0 // pred_check_branch
    %14 = sbr.rel (0) target = $region9
  $region8: #{_lambda_.18} parent=0 // pred_region
    _
  $region9: #{_lambda_.18} parent=0 // pred_fallthru
    _
  // Predicated region
  $region10: #{_lambda_.18} parent=0 // pred_check
    _
  $region11: #{_lambda_.18} parent=0 // pred_check_branch
    %16 = sbr.rel (0) target = $region13
  $region12: #{_lambda_.18} parent=0 // pred_region
    _
  $region13: #{_lambda_.18} parent=0 // pred_fallthru
    _
  %v17 = vld [vmem:[%s1] sm:$0xf]
  %v18 = vld [vmem:[%s1 + $0x4] sm:$0xf]
  %v19 = vld [vmem:[%s1 + $0x8] sm:$0xf]
  %v20 = vld [vmem:[%s1 + $0xc] sm:$0xf]
  %v21 = vld [vmem:[%s0] sm:$0xff]
  %v22 = vld [vmem:[%s0 + $0x8] sm:$0xff]
  %v23 = vld [vmem:[%s0 + $0x10] sm:$0xff]
  %v24 = vld [vmem:[%s0 + $0x18] sm:$0xff]
  %v25 = vld [vmem:[%s0 + $0x20] sm:$0xff]
  %v26 = vld [vmem:[%s0 + $0x28] sm:$0xff]
  %v27 = vld [vmem:[%s0 + $0x30] sm:$0xff]
  %v28 = vld [vmem:[%s0 + $0x38] sm:$0xff]
  %v29 = vld [vmem:[%s0 + $0x40] sm:$0xff]
  %v30 = vld [vmem:[%s0 + $0x48] sm:$0xff]
  %v31 = vld [vmem:[%s0 + $0x50] sm:$0xff]
  %v32 = vld [vmem:[%s0 + $0x58] sm:$0xff]
  %v33 = vld [vmem:[%s0 + $0x60] sm:$0xff]
  %v34 = vld [vmem:[%s0 + $0x68] sm:$0xff]
  %v35 = vld [vmem:[%s0 + $0x70] sm:$0xff]
  %v36 = vld [vmem:[%s0 + $0x78] sm:$0xff]
  %v37 = vld [vmem:[%s0 + $0x80] sm:$0xff]
  %v38 = vld [vmem:[%s0 + $0x88] sm:$0xff]
  %v39 = vld [vmem:[%s0 + $0x90] sm:$0xff]
  %v40 = vld [vmem:[%s0 + $0x98] sm:$0xff]
  %v41 = vld [vmem:[%s0 + $0xa0] sm:$0xff]
  %v42 = vld [vmem:[%s0 + $0xa8] sm:$0xff]
  %v43 = vld [vmem:[%s0 + $0xb0] sm:$0xff]
  %v44 = vld [vmem:[%s0 + $0xb8] sm:$0xff]
  %v45 = vld [vmem:[%s0 + $0xc0] sm:$0xff]
  %v46 = vld [vmem:[%s0 + $0xc8] sm:$0xff]
  %v47 = vld [vmem:[%s0 + $0xd0] sm:$0xff]
  %v48 = vld [vmem:[%s0 + $0xd8] sm:$0xff]
  %v49 = vld [vmem:[%s0 + $0xe0] sm:$0xff]
  %v50 = vld [vmem:[%s0 + $0xe8] sm:$0xff]
  %v51 = vld [vmem:[%s0 + $0xf0] sm:$0xff]
  %v52 = vld [vmem:[%s0 + $0xf8] sm:$0xff]
  %v53 = vld [vmem:[%s2] sm:$0xff]
  %v54 = vld [vmem:[%s2 + $0x8] sm:$0xff]
  %v55 = vld [vmem:[%s2 + $0x10] sm:$0xff]
  %v56 = vld [vmem:[%s2 + $0x18] sm:$0xff]
  %58 = vset.pattern.permute.xlu0 0
  %59 = vperm.xlu0 %58, %v53
  %v60 = vpop.permute.xlu0 %59
  %63 = vset.pattern.permute.xlu0 0
  %64 = vperm.xlu0 %63, %v54
  %v65 = vpop.permute.xlu0 %64
  %68 = vset.pattern.permute.xlu0 0
  %69 = vperm.xlu0 %68, %v55
  %v70 = vpop.permute.xlu0 %69
  %73 = vset.pattern.permute.xlu0 0
  %74 = vperm.xlu0 %73, %v56
  %v75 = vpop.permute.xlu0 %74
  %v81 = vunpack.c.l.b16 %v17
  %v82 = vunpack.c.l.b16 %v18
  %v83 = vunpack.c.l.b16 %v19
  %v84 = vunpack.c.l.b16 %v20
  %v85 = vpack.c.b16 %v82, %v81
  %v86 = vpack.c.b16 %v84, %v83
  %v121 = vunpack.c.l.b16 %v21
  %v122 = vunpack.c.h.b16 %v21
  %v123 = vunpack.c.l.b16 %v22
  %v124 = vunpack.c.h.b16 %v22
  %v125 = vunpack.c.l.b16 %v23
  %v126 = vunpack.c.h.b16 %v23
  %v127 = vunpack.c.l.b16 %v24
  %v128 = vunpack.c.h.b16 %v24
  %v129 = vunpack.c.l.b16 %v25
  %v130 = vunpack.c.h.b16 %v25
  %v131 = vunpack.c.l.b16 %v26
  %v132 = vunpack.c.h.b16 %v26
  %v133 = vunpack.c.l.b16 %v27
  %v134 = vunpack.c.h.b16 %v27
  %v135 = vunpack.c.l.b16 %v28
  %v136 = vunpack.c.h.b16 %v28
  %v137 = vunpack.c.l.b16 %v29
  %v138 = vunpack.c.h.b16 %v29
  %v139 = vunpack.c.l.b16 %v30
  %v140 = vunpack.c.h.b16 %v30
  %v141 = vunpack.c.l.b16 %v31
  %v142 = vunpack.c.h.b16 %v31
  %v143 = vunpack.c.l.b16 %v32
  %v144 = vunpack.c.h.b16 %v32
  %v145 = vunpack.c.l.b16 %v33
  %v146 = vunpack.c.h.b16 %v33
  %v147 = vunpack.c.l.b16 %v34
  %v148 = vunpack.c.h.b16 %v34
  %v149 = vunpack.c.l.b16 %v35
  %v150 = vunpack.c.h.b16 %v35
  %v151 = vunpack.c.l.b16 %v36
  %v152 = vunpack.c.h.b16 %v36
  %v153 = vunpack.c.l.b16 %v37
  %v154 = vunpack.c.h.b16 %v37
  %v155 = vunpack.c.l.b16 %v38
  %v156 = vunpack.c.h.b16 %v38
  %v157 = vunpack.c.l.b16 %v39
  %v158 = vunpack.c.h.b16 %v39
  %v159 = vunpack.c.l.b16 %v40
  %v160 = vunpack.c.h.b16 %v40
  %v161 = vunpack.c.l.b16 %v41
  %v162 = vunpack.c.h.b16 %v41
  %v163 = vunpack.c.l.b16 %v42
  %v164 = vunpack.c.h.b16 %v42
  %v165 = vunpack.c.l.b16 %v43
  %v166 = vunpack.c.h.b16 %v43
  %v167 = vunpack.c.l.b16 %v44
  %v168 = vunpack.c.h.b16 %v44
  %v169 = vunpack.c.l.b16 %v45
  %v170 = vunpack.c.h.b16 %v45
  %v171 = vunpack.c.l.b16 %v46
  %v172 = vunpack.c.h.b16 %v46
  %v173 = vunpack.c.l.b16 %v47
  %v174 = vunpack.c.h.b16 %v47
  %v175 = vunpack.c.l.b16 %v48
  %v176 = vunpack.c.h.b16 %v48
  %v177 = vunpack.c.l.b16 %v49
  %v178 = vunpack.c.h.b16 %v49
  %v179 = vunpack.c.l.b16 %v50
  %v180 = vunpack.c.h.b16 %v50
  %v181 = vunpack.c.l.b16 %v51
  %v182 = vunpack.c.h.b16 %v51
  %v183 = vunpack.c.l.b16 %v52
  %v184 = vunpack.c.h.b16 %v52
  %v185 = vpack.c.b16 %v125, %v121
  %v186 = vpack.c.b16 %v126, %v122
  %v187 = vpack.c.b16 %v127, %v123
  %v188 = vpack.c.b16 %v128, %v124
  %v189 = vpack.c.b16 %v133, %v129
  %v190 = vpack.c.b16 %v134, %v130
  %v191 = vpack.c.b16 %v135, %v131
  %v192 = vpack.c.b16 %v136, %v132
  %v193 = vpack.c.b16 %v141, %v137
  %v194 = vpack.c.b16 %v142, %v138
  %v195 = vpack.c.b16 %v143, %v139
  %v196 = vpack.c.b16 %v144, %v140
  %v197 = vpack.c.b16 %v149, %v145
  %v198 = vpack.c.b16 %v150, %v146
  %v199 = vpack.c.b16 %v151, %v147
  %v200 = vpack.c.b16 %v152, %v148
  %v201 = vpack.c.b16 %v157, %v153
  %v202 = vpack.c.b16 %v158, %v154
  %v203 = vpack.c.b16 %v159, %v155
  %v204 = vpack.c.b16 %v160, %v156
  %v205 = vpack.c.b16 %v165, %v161
  %v206 = vpack.c.b16 %v166, %v162
  %v207 = vpack.c.b16 %v167, %v163
  %v208 = vpack.c.b16 %v168, %v164
  %v209 = vpack.c.b16 %v173, %v169
  %v210 = vpack.c.b16 %v174, %v170
  %v211 = vpack.c.b16 %v175, %v171
  %v212 = vpack.c.b16 %v176, %v172
  %v213 = vpack.c.b16 %v181, %v177
  %v214 = vpack.c.b16 %v182, %v178
  %v215 = vpack.c.b16 %v183, %v179
  %v216 = vpack.c.b16 %v184, %v180
  %249 = vmatpush.bf16.msra.mxu0 %v213
  %250 = vmatpush.bf16.msra.mxu0 %v209
  %251 = vmatpush.bf16.msra.mxu0 %v205
  %252 = vmatpush.bf16.msra.mxu0 %v201
  %253 = vmatpush.bf16.msra.mxu0 %v197
  %254 = vmatpush.bf16.msra.mxu0 %v193
  %255 = vmatpush.bf16.msra.mxu0 %v189
  %256 = vmatpush.bf16.msra.mxu0 %v185
  %257 = vmatmul.bf16.gmra.mxu0 %v85
  %v258 = vpop.f32.mrf.mxu0
  %v259 = vadd.f32 %v60, %v258
  %v260 = vpop.f32.mrf.mxu0
  %v261 = vadd.f32 %v65, %v260
  %262 = vmatmul.bf16.gmra.mxu0 %v86
  %v263 = vpop.f32.mrf.mxu0
  %v264 = vadd.f32 %v70, %v263
  %v265 = vpop.f32.mrf.mxu0
  %v266 = vadd.f32 %v75, %v265
  %267 = vdwg.mxu0
  %268 = vmatpush.bf16.msra.mxu0 %v214
  %269 = vmatpush.bf16.msra.mxu0 %v210
  %270 = vmatpush.bf16.msra.mxu0 %v206
  %271 = vmatpush.bf16.msra.mxu0 %v202
  %272 = vmatpush.bf16.msra.mxu0 %v198
  %273 = vmatpush.bf16.msra.mxu0 %v194
  %274 = vmatpush.bf16.msra.mxu0 %v190
  %275 = vmatpush.bf16.msra.mxu0 %v186
  %276 = vmatmul.bf16.gmra.mxu0 %v85
  %v277 = vpop.f32.mrf.mxu0
  %v278 = vadd.f32 %v60, %v277
  %v279 = vpop.f32.mrf.mxu0
  %v280 = vadd.f32 %v65, %v279
  %281 = vmatmul.bf16.gmra.mxu0 %v86
  %v282 = vpop.f32.mrf.mxu0
  %v283 = vadd.f32 %v70, %v282
  %v284 = vpop.f32.mrf.mxu0
  %v285 = vadd.f32 %v75, %v284
  %286 = vdwg.mxu0
  %287 = vmatpush.bf16.msra.mxu0 %v215
  %288 = vmatpush.bf16.msra.mxu0 %v211
  %289 = vmatpush.bf16.msra.mxu0 %v207
  %290 = vmatpush.bf16.msra.mxu0 %v203
  %291 = vmatpush.bf16.msra.mxu0 %v199
  %292 = vmatpush.bf16.msra.mxu0 %v195
  %293 = vmatpush.bf16.msra.mxu0 %v191
  %294 = vmatpush.bf16.msra.mxu0 %v187
  %295 = vmatmul.bf16.gmra.mxu0 %v85
  %v296 = vpop.f32.mrf.mxu0
  %v297 = vadd.f32 %v60, %v296
  %v298 = vpop.f32.mrf.mxu0
  %v299 = vadd.f32 %v65, %v298
  %300 = vmatmul.bf16.gmra.mxu0 %v86
  %v301 = vpop.f32.mrf.mxu0
  %v302 = vadd.f32 %v70, %v301
  %v303 = vpop.f32.mrf.mxu0
  %v304 = vadd.f32 %v75, %v303
  %305 = vdwg.mxu0
  %306 = vmatpush.bf16.msra.mxu0 %v216
  %307 = vmatpush.bf16.msra.mxu0 %v212
  %308 = vmatpush.bf16.msra.mxu0 %v208
  %309 = vmatpush.bf16.msra.mxu0 %v204
  %310 = vmatpush.bf16.msra.mxu0 %v200
  %311 = vmatpush.bf16.msra.mxu0 %v196
  %312 = vmatpush.bf16.msra.mxu0 %v192
  %313 = vmatpush.bf16.msra.mxu0 %v188
  %314 = vmatmul.bf16.gmra.mxu0 %v85
  %v315 = vpop.f32.mrf.mxu0
  %v316 = vadd.f32 %v60, %v315
  %v317 = vpop.f32.mrf.mxu0
  %v318 = vadd.f32 %v65, %v317
  %319 = vmatmul.bf16.gmra.mxu0 %v86
  %v320 = vpop.f32.mrf.mxu0
  %v321 = vadd.f32 %v70, %v320
  %v322 = vpop.f32.mrf.mxu0
  %v323 = vadd.f32 %v75, %v322
  %324 = vdwg.mxu0
  %vm325 = vcmp.ge.f32.partialorder %v259, 0.0
  %vm326 = vcmp.ge.f32.partialorder %v278, 0.0
  %vm327 = vcmp.ge.f32.partialorder %v297, 0.0
  %vm328 = vcmp.ge.f32.partialorder %v316, 0.0
  %vm329 = vcmp.ge.f32.partialorder %v261, 0.0
  %vm330 = vcmp.ge.f32.partialorder %v280, 0.0
  %vm331 = vcmp.ge.f32.partialorder %v299, 0.0
  %vm332 = vcmp.ge.f32.partialorder %v318, 0.0
  %v333 = vmul.f32 %v259, 0.2
  %v334 = vmul.f32 %v278, 0.2
  %v335 = vmul.f32 %v297, 0.2
  %v336 = vmul.f32 %v316, 0.2
  %v337 = vmul.f32 %v261, 0.2
  %v338 = vmul.f32 %v280, 0.2
  %v339 = vmul.f32 %v299, 0.2
  %v340 = vmul.f32 %v318, 0.2
  %v341 = vsel %vm325, %v259, %v333
  %v342 = vsel %vm326, %v278, %v334
  %v343 = vsel %vm327, %v297, %v335
  %v344 = vsel %vm328, %v316, %v336
  %v345 = vsel %vm329, %v261, %v337
  %v346 = vsel %vm330, %v280, %v338
  %v347 = vsel %vm331, %v299, %v339
  %v348 = vsel %vm332, %v318, %v340
  %v349 = vmul.f32 %v264, 0.5
  %v350 = vmul.f32 %v283, 0.5
  %v351 = vmul.f32 %v302, 0.5
  %v352 = vmul.f32 %v321, 0.5
  %v353 = vmul.f32 %v266, 0.5
  %v354 = vmul.f32 %v285, 0.5
  %v355 = vmul.f32 %v304, 0.5
  %v356 = vmul.f32 %v323, 0.5
  %v357 = vtanh.pop %v349
  %v358 = vtanh.pop %v350
  %v359 = vtanh.pop %v351
  %v360 = vtanh.pop %v352
  %v361 = vtanh.pop %v353
  %v362 = vtanh.pop %v354
  %v363 = vtanh.pop %v355
  %v364 = vtanh.pop %v356
  %v365 = vadd.f32 %v357, 1.0
  %v366 = vadd.f32 %v358, 1.0
  %v367 = vadd.f32 %v359, 1.0
  %v368 = vadd.f32 %v360, 1.0
  %v369 = vadd.f32 %v361, 1.0
  %v370 = vadd.f32 %v362, 1.0
  %v371 = vadd.f32 %v363, 1.0
  %v372 = vadd.f32 %v364, 1.0
  %v373 = vmul.f32 %v365, 0.5
  %v374 = vmul.f32 %v366, 0.5
  %v375 = vmul.f32 %v367, 0.5
  %v376 = vmul.f32 %v368, 0.5
  %v377 = vmul.f32 %v369, 0.5
  %v378 = vmul.f32 %v370, 0.5
  %v379 = vmul.f32 %v371, 0.5
  %v380 = vmul.f32 %v372, 0.5
  %v381 = vmul.f32 %v341, %v373
  %v382 = vmul.f32 %v342, %v374
  %v383 = vmul.f32 %v343, %v375
  %v384 = vmul.f32 %v344, %v376
  %v385 = vmul.f32 %v345, %v377
  %v386 = vmul.f32 %v346, %v378
  %v387 = vmul.f32 %v347, %v379
  %v388 = vmul.f32 %v348, %v380
  %v389 = vpack.c.bf16 %v382, %v381
  %v390 = vpack.c.bf16 %v384, %v383
  %v391 = vpack.c.bf16 %v386, %v385
  %v392 = vpack.c.bf16 %v388, %v387
  %393 = vst [vmem:[%s3] sm:$0xff] %v389
  %394 = vst [vmem:[%s3 + $0x8] sm:$0xff] %v390
  %395 = vst [vmem:[%s3 + $0x10] sm:$0xff] %v391
  %396 = vst [vmem:[%s3 + $0x18] sm:$0xff] %v392
  %v397 = vadd.f32 %v381, %v382
  %v398 = vadd.f32 %v397, %v383
  %v399 = vadd.f32 %v398, %v384
  %400 = vadd.xlane.f32.xlu0 %v399
  %v401 = vpop.xlane.xlu0 %400
  %v402 = vadd.f32 %v385, %v386
  %v403 = vadd.f32 %v402, %v387
  %v404 = vadd.f32 %v403, %v388
  %405 = vadd.xlane.f32.xlu0 %v404
  %v406 = vpop.xlane.xlu0 %405
  %vm407 = vcmask 7168
  %408 = vst.msk [vmem:[%s4] sm:$0xff] %vm407, %v401
  %409 = vst.msk [vmem:[%s4 + $0x8] sm:$0xff] %vm407, %v406
  %v410 = vmul.f32 %v381, %v381
  %v411 = vmul.f32 %v382, %v382
  %v412 = vmul.f32 %v383, %v383
  %v413 = vmul.f32 %v384, %v384
  %v414 = vmul.f32 %v385, %v385
  %v415 = vmul.f32 %v386, %v386
  %v416 = vmul.f32 %v387, %v387
  %v417 = vmul.f32 %v388, %v388
  %v418 = vadd.f32 %v410, %v411
  %v419 = vadd.f32 %v418, %v412
  %v420 = vadd.f32 %v419, %v413
  %421 = vadd.xlane.f32.xlu0 %v420
  %v422 = vpop.xlane.xlu0 %421
  %v423 = vadd.f32 %v414, %v415
  %v424 = vadd.f32 %v423, %v416
  %v425 = vadd.f32 %v424, %v417
  %426 = vadd.xlane.f32.xlu0 %v425
  %v427 = vpop.xlane.xlu0 %426
  %428 = vst.msk [vmem:[%s5] sm:$0xff] %vm407, %v422
  %429 = vst.msk [vmem:[%s5 + $0x8] sm:$0xff] %vm407, %v427
  // Predicated region
  $region14: #{_lambda_.18} parent=0 // pred_check
    _
  $region15: #{_lambda_.18} parent=0 // pred_check_branch
    %431 = sbr.rel (0) target = $region17
  $region16: #{_lambda_.18} parent=0 // pred_region
    _
  $region17: #{_lambda_.18} parent=0 // pred_fallthru
    _
  // Predicated region
  $region18: #{_lambda_.18} parent=0 // pred_check
    _
  $region19: #{_lambda_.18} parent=0 // pred_check_branch
    %433 = sbr.rel (0) target = $region21
  $region20: #{_lambda_.18} parent=0 // pred_region
    _
  $region21: #{_lambda_.18} parent=0 // pred_fallthru
    _
  // Predicated region
  $region22: #{_lambda_.18} parent=0 // pred_check
    _
  $region23: #{_lambda_.18} parent=0 // pred_check_branch
    %435 = sbr.rel (0) target = $region25
  $region24: #{_lambda_.18} parent=0 // pred_region
    _
  $region25: #{_lambda_.18} parent=0 // pred_fallthru
    _
  // Predicated region
  $region26: #{_lambda_.18} parent=0 // pred_check
    _
  $region27: #{_lambda_.18} parent=0 // pred_check_branch
    %437 = sbr.rel (0) target = $region29
  $region28: #{_lambda_.18} parent=0 // pred_region
    _
  $region29: #{_lambda_.18} parent=0 // pred_fallthru
    _
  // Predicated region
  $region30: #{_lambda_.18} parent=0 // pred_check
    _
  $region31: #{_lambda_.18} parent=0 // pred_check_branch
    %439 = sbr.rel (0) target = $region33
  $region32: #{_lambda_.18} parent=0 // pred_region
    _
  $region33: #{_lambda_.18} parent=0 // pred_fallthru
    _
  // Predicated region
  $region34: #{_lambda_.18} parent=0 // pred_check
    _
  $region35: #{_lambda_.18} parent=0 // pred_check_branch
    %441 = sbr.rel (0) target = $region37
  $region36: #{_lambda_.18} parent=0 // pred_region
    _
  $region37: #{_lambda_.18} parent=0 // pred_fallthru
    _

// kernel: mul.265
$region0: #{mul.265}
  %s0 = inlined_call_operand.vmem [shape: f32[16,16], index: 0, kind: input, shape index: {}]
  %s1 = inlined_call_operand.vmem [shape: f32[256], index: 1, kind: output, shape index: {}]
  $region1: #{mul.265} parent=0
    #allocation0 [shape = 'u8[4096]{0}', space=vmem, size = 0x1000, scoped, tag = 'scoped mem for output reshape']
    %s2 = smov 3
    %v3 = vld [vmem:[%s0] ss:$8 sm:%s2]
    %vm4 = vcmask 130048
    %5 = vst.msk [vmem:[#allocation0] sm:$0x3] %vm4, %v3
    %s6 = scalar_lea.vmem %s0, 7
    %s7 = smov 3
    %v8 = vld [vmem:[%s6] ss:$8 sm:%s7]
    %9 = vrot.lane.b32.xlu0 %v8, 112
    %v10 = vpop.permute.xlu0 %9
    %vm11 = vcmask 1048448
    %12 = vst.msk [vmem:[#allocation0] sm:$0x3] %vm11, %v10
    %s13 = scalar_lea.vmem %s0, 6
    %s14 = smov 3
    %v15 = vld [vmem:[%s13] ss:$8 sm:%s14]
    %16 = vrot.lane.b32.xlu0 %v15, 96
    %v17 = vpop.permute.xlu0 %16
    %vm18 = vcmask 917248
    %19 = vst.msk [vmem:[#allocation0] sm:$0x3] %vm18, %v17
    %s20 = scalar_lea.vmem %s0, 5
    %s21 = smov 3
    %v22 = vld [vmem:[%s20] ss:$8 sm:%s21]
    %23 = vrot.lane.b32.xlu0 %v22, 80
    %v24 = vpop.permute.xlu0 %23
    %vm25 = vcmask 786048
    %26 = vst.msk [vmem:[#allocation0] sm:$0x3] %vm25, %v24
    %s27 = scalar_lea.vmem %s0, 4
    %s28 = smov 3
    %v29 = vld [vmem:[%s27] ss:$8 sm:%s28]
    %30 = vrot.lane.b32.xlu0 %v29, 64
    %v31 = vpop.permute.xlu0 %30
    %vm32 = vcmask 654848
    %33 = vst.msk [vmem:[#allocation0] sm:$0x3] %vm32, %v31
    %s34 = scalar_lea.vmem %s0, 3
    %s35 = smov 3
    %v36 = vld [vmem:[%s34] ss:$8 sm:%s35]
    %37 = vrot.lane.b32.xlu0 %v36, 48
    %v38 = vpop.permute.xlu0 %37
    %vm39 = vcmask 523648
    %40 = vst.msk [vmem:[#allocation0] sm:$0x3] %vm39, %v38
    %s41 = scalar_lea.vmem %s0, 2
    %s42 = smov 3
    %v43 = vld [vmem:[%s41] ss:$8 sm:%s42]
    %44 = vrot.lane.b32.xlu0 %v43, 32
    %v45 = vpop.permute.xlu0 %44
    %vm46 = vcmask 392448
    %47 = vst.msk [vmem:[#allocation0] sm:$0x3] %vm46, %v45
    %s48 = scalar_lea.vmem %s0, 1
    %s49 = smov 3
    %v50 = vld [vmem:[%s48] ss:$8 sm:%s49]
    %51 = vrot.lane.b32.xlu0 %v50, 16
    %v52 = vpop.permute.xlu0 %51
    %vm53 = vcmask 261248
    %54 = vst.msk [vmem:[#allocation0] sm:$0x3] %vm53, %v52
    %s56 = ssub.s32 4, 1
    %v57 = vld [vmem:[#allocation0] sm:%s56]
    %s59 = ssub.s32 4, 1
    %60 = vst [vmem:[%s1] sm:%s59] %v57

// kernel: mul.36
$region0: #{mul.36}
  #allocation0 [shape = 's32[1]{0}', space=sflag, size = 0x4, scoped, tag = 'scoped memory for mul.36']
  %s0 = inlined_call_operand.vmem [shape: f32[256], index: 0, kind: input, shape index: {}]
  %s1 = inlined_call_operand.vmem [shape: f32[256], index: 1, kind: input, shape index: {}]
  %s2 = inlined_call_operand.vmem [shape: f32[256], index: 2, kind: output, shape index: {}]
  %v3 = vld [vmem:[%s0] sm:$0x3]
  %v4 = vld [vmem:[%s1] sm:$0x3]
  %5 = xla_tuple %v3, %v4
  %6 = xla_tuple %5
  %v7 = vmul.f32 %v3, %v4
  %8 = xla_tuple %v7
  %9 = vst [vmem:[%s2] sm:$0x3] %v7

// kernel: _lambda_.19
$region0: #{_lambda_.19}
  #allocation0 [shape = 'u32[]', space=smem, size = 0x4, offset = 0x4, fixed_abs, tag = 'smem constant byte address 0x4 - core index']
  #allocation1 [shape = 'u32[72,128]{1,0:T(1,128)}', space=vmem, size = 0x9000, scoped, tag = 'internal scratch']
  %s0 = inlined_call_operand.vmem [shape: bf16[256,512], index: 0, kind: input, shape index: {}]
  %s1 = inlined_call_operand.vmem [shape: bf16[32,256], index: 1, kind: input, shape index: {}]
  %s2 = inlined_call_operand.vmem [shape: f32[32,1], index: 2, kind: input, shape index: {}]
  %s3 = inlined_call_operand.vmem [shape: bf16[16,512], index: 3, kind: output, shape index: {0}]
  %s4 = inlined_call_operand.vmem [shape: f32[1,16,1], index: 4, kind: output, shape index: {1}]
  %s5 = inlined_call_operand.vmem [shape: f32[1,16,1], index: 5, kind: output, shape index: {2}]
  %6 = xla_tuple %s3, %s4, %s5
  %s7 = sld [smem:[#allocation0]]
  $region38: #{_lambda_.19} parent=0
    _
  %s9 = ssub.s32 1, %s7
  %s10 = scalar_select 0, %s9, %s7
  // Predicated region
  $region2: #{_lambda_.19} parent=0 // pred_check
    _
  $region3: #{_lambda_.19} parent=0 // pred_check_branch
    %12 = sbr.rel (0) target = $region5
  $region4: #{_lambda_.19} parent=0 // pred_region
    _
  $region5: #{_lambda_.19} parent=0 // pred_fallthru
    _
  // Predicated region
  $region6: #{_lambda_.19} parent=0 // pred_check
    _
  $region7: #{_lambda_.19} parent=0 // pred_check_branch
    %14 = sbr.rel (0) target = $region9
  $region8: #{_lambda_.19} parent=0 // pred_region
    _
  $region9: #{_lambda_.19} parent=0 // pred_fallthru
    _
  // Predicated region
  $region10: #{_lambda_.19} parent=0 // pred_check
    _
  $region11: #{_lambda_.19} parent=0 // pred_check_branch
    %16 = sbr.rel (0) target = $region13
  $region12: #{_lambda_.19} parent=0 // pred_region
    _
  $region13: #{_lambda_.19} parent=0 // pred_fallthru
    _
  %v17 = vld [vmem:[%s1] sm:$0xff]
  %v18 = vld [vmem:[%s1 + $0x8] sm:$0xff]
  %v19 = vld [vmem:[%s1 + $0x10] sm:$0xff]
  %v20 = vld [vmem:[%s1 + $0x18] sm:$0xff]
  %v21 = vld [vmem:[%s0] sm:$0xff]
  %v22 = vld [vmem:[%s0 + $0x8] sm:$0xff]
  %v23 = vld [vmem:[%s0 + $0x10] sm:$0xff]
  %v24 = vld [vmem:[%s0 + $0x18] sm:$0xff]
  %v25 = vld [vmem:[%s0 + $0x20] sm:$0xff]
  %v26 = vld [vmem:[%s0 + $0x28] sm:$0xff]
  %v27 = vld [vmem:[%s0 + $0x30] sm:$0xff]
  %v28 = vld [vmem:[%s0 + $0x38] sm:$0xff]
  %v29 = vld [vmem:[%s0 + $0x40] sm:$0xff]
  %v30 = vld [vmem:[%s0 + $0x48] sm:$0xff]
  %v31 = vld [vmem:[%s0 + $0x50] sm:$0xff]
  %v32 = vld [vmem:[%s0 + $0x58] sm:$0xff]
  %v33 = vld [vmem:[%s0 + $0x60] sm:$0xff]
  %v34 = vld [vmem:[%s0 + $0x68] sm:$0xff]
  %v35 = vld [vmem:[%s0 + $0x70] sm:$0xff]
  %v36 = vld [vmem:[%s0 + $0x78] sm:$0xff]
  %v37 = vld [vmem:[%s0 + $0x80] sm:$0xff]
  %v38 = vld [vmem:[%s0 + $0x88] sm:$0xff]
  %v39 = vld [vmem:[%s0 + $0x90] sm:$0xff]
  %v40 = vld [vmem:[%s0 + $0x98] sm:$0xff]
  %v41 = vld [vmem:[%s0 + $0xa0] sm:$0xff]
  %v42 = vld [vmem:[%s0 + $0xa8] sm:$0xff]
  %v43 = vld [vmem:[%s0 + $0xb0] sm:$0xff]
  %v44 = vld [vmem:[%s0 + $0xb8] sm:$0xff]
  %v45 = vld [vmem:[%s0 + $0xc0] sm:$0xff]
  %v46 = vld [vmem:[%s0 + $0xc8] sm:$0xff]
  %v47 = vld [vmem:[%s0 + $0xd0] sm:$0xff]
  %v48 = vld [vmem:[%s0 + $0xd8] sm:$0xff]
  %v49 = vld [vmem:[%s0 + $0xe0] sm:$0xff]
  %v50 = vld [vmem:[%s0 + $0xe8] sm:$0xff]
  %v51 = vld [vmem:[%s0 + $0xf0] sm:$0xff]
  %v52 = vld [vmem:[%s0 + $0xf8] sm:$0xff]
  %v53 = vld [vmem:[%s0 + $0x100] sm:$0xff]
  %v54 = vld [vmem:[%s0 + $0x108] sm:$0xff]
  %v55 = vld [vmem:[%s0 + $0x110] sm:$0xff]
  %v56 = vld [vmem:[%s0 + $0x118] sm:$0xff]
  %v57 = vld [vmem:[%s0 + $0x120] sm:$0xff]
  %v58 = vld [vmem:[%s0 + $0x128] sm:$0xff]
  %v59 = vld [vmem:[%s0 + $0x130] sm:$0xff]
  %v60 = vld [vmem:[%s0 + $0x138] sm:$0xff]
  %v61 = vld [vmem:[%s0 + $0x140] sm:$0xff]
  %v62 = vld [vmem:[%s0 + $0x148] sm:$0xff]
  %v63 = vld [vmem:[%s0 + $0x150] sm:$0xff]
  %v64 = vld [vmem:[%s0 + $0x158] sm:$0xff]
  %v65 = vld [vmem:[%s0 + $0x160] sm:$0xff]
  %v66 = vld [vmem:[%s0 + $0x168] sm:$0xff]
  %v67 = vld [vmem:[%s0 + $0x170] sm:$0xff]
  %v68 = vld [vmem:[%s0 + $0x178] sm:$0xff]
  %v69 = vld [vmem:[%s0 + $0x180] sm:$0xff]
  %v70 = vld [vmem:[%s0 + $0x188] sm:$0xff]
  %v71 = vld [vmem:[%s0 + $0x190] sm:$0xff]
  %v72 = vld [vmem:[%s0 + $0x198] sm:$0xff]
  %v73 = vld [vmem:[%s0 + $0x1a0] sm:$0xff]
  %v74 = vld [vmem:[%s0 + $0x1a8] sm:$0xff]
  %v75 = vld [vmem:[%s0 + $0x1b0] sm:$0xff]
  %v76 = vld [vmem:[%s0 + $0x1b8] sm:$0xff]
  %v77 = vld [vmem:[%s0 + $0x1c0] sm:$0xff]
  %v78 = vld [vmem:[%s0 + $0x1c8] sm:$0xff]
  %v79 = vld [vmem:[%s0 + $0x1d0] sm:$0xff]
  %v80 = vld [vmem:[%s0 + $0x1d8] sm:$0xff]
  %v81 = vld [vmem:[%s0 + $0x1e0] sm:$0xff]
  %v82 = vld [vmem:[%s0 + $0x1e8] sm:$0xff]
  %v83 = vld [vmem:[%s0 + $0x1f0] sm:$0xff]
  %v84 = vld [vmem:[%s0 + $0x1f8] sm:$0xff]
  %v85 = vld [vmem:[%s2] sm:$0xff]
  %v86 = vld [vmem:[%s2 + $0x8] sm:$0xff]
  %v87 = vld [vmem:[%s2 + $0x10] sm:$0xff]
  %v88 = vld [vmem:[%s2 + $0x18] sm:$0xff]
  %90 = vset.pattern.permute.xlu0 0
  %91 = vperm.xlu0 %90, %v85
  %v92 = vpop.permute.xlu0 %91
  %95 = vset.pattern.permute.xlu0 0
  %96 = vperm.xlu0 %95, %v86
  %v97 = vpop.permute.xlu0 %96
  %100 = vset.pattern.permute.xlu0 0
  %101 = vperm.xlu0 %100, %v87
  %v102 = vpop.permute.xlu0 %101
  %105 = vset.pattern.permute.xlu0 0
  %106 = vperm.xlu0 %105, %v88
  %v107 = vpop.permute.xlu0 %106
  %v113 = vunpack.c.l.b16 %v17
  %v114 = vunpack.c.h.b16 %v17
  %v115 = vunpack.c.l.b16 %v18
  %v116 = vunpack.c.h.b16 %v18
  %v117 = vunpack.c.l.b16 %v19
  %v118 = vunpack.c.h.b16 %v19
  %v119 = vunpack.c.l.b16 %v20
  %v120 = vunpack.c.h.b16 %v20
  %v121 = vpack.c.b16 %v115, %v113
  %v122 = vpack.c.b16 %v116, %v114
  %v123 = vpack.c.b16 %v119, %v117
  %v124 = vpack.c.b16 %v120, %v118
  %v193 = vunpack.c.l.b16 %v21
  %v194 = vunpack.c.h.b16 %v21
  %v195 = vunpack.c.l.b16 %v22
  %v196 = vunpack.c.h.b16 %v22
  %v197 = vunpack.c.l.b16 %v23
  %v198 = vunpack.c.h.b16 %v23
  %v199 = vunpack.c.l.b16 %v24
  %v200 = vunpack.c.h.b16 %v24
  %v201 = vunpack.c.l.b16 %v25
  %v202 = vunpack.c.h.b16 %v25
  %v203 = vunpack.c.l.b16 %v26
  %v204 = vunpack.c.h.b16 %v26
  %v205 = vunpack.c.l.b16 %v27
  %v206 = vunpack.c.h.b16 %v27
  %v207 = vunpack.c.l.b16 %v28
  %v208 = vunpack.c.h.b16 %v28
  %v209 = vunpack.c.l.b16 %v29
  %v210 = vunpack.c.h.b16 %v29
  %v211 = vunpack.c.l.b16 %v30
  %v212 = vunpack.c.h.b16 %v30
  %v213 = vunpack.c.l.b16 %v31
  %v214 = vunpack.c.h.b16 %v31
  %v215 = vunpack.c.l.b16 %v32
  %v216 = vunpack.c.h.b16 %v32
  %v217 = vunpack.c.l.b16 %v33
  %v218 = vunpack.c.h.b16 %v33
  %v219 = vunpack.c.l.b16 %v34
  %v220 = vunpack.c.h.b16 %v34
  %v221 = vunpack.c.l.b16 %v35
  %v222 = vunpack.c.h.b16 %v35
  %v223 = vunpack.c.l.b16 %v36
  %v224 = vunpack.c.h.b16 %v36
  %v225 = vunpack.c.l.b16 %v37
  %v226 = vunpack.c.h.b16 %v37
  %v227 = vunpack.c.l.b16 %v38
  %v228 = vunpack.c.h.b16 %v38
  %v229 = vunpack.c.l.b16 %v39
  %v230 = vunpack.c.h.b16 %v39
  %v231 = vunpack.c.l.b16 %v40
  %v232 = vunpack.c.h.b16 %v40
  %v233 = vunpack.c.l.b16 %v41
  %v234 = vunpack.c.h.b16 %v41
  %v235 = vunpack.c.l.b16 %v42
  %v236 = vunpack.c.h.b16 %v42
  %v237 = vunpack.c.l.b16 %v43
  %v238 = vunpack.c.h.b16 %v43
  %v239 = vunpack.c.l.b16 %v44
  %v240 = vunpack.c.h.b16 %v44
  %v241 = vunpack.c.l.b16 %v45
  %v242 = vunpack.c.h.b16 %v45
  %v243 = vunpack.c.l.b16 %v46
  %v244 = vunpack.c.h.b16 %v46
  %v245 = vunpack.c.l.b16 %v47
  %v246 = vunpack.c.h.b16 %v47
  %v247 = vunpack.c.l.b16 %v48
  %v248 = vunpack.c.h.b16 %v48
  %v249 = vunpack.c.l.b16 %v49
  %v250 = vunpack.c.h.b16 %v49
  %v251 = vunpack.c.l.b16 %v50
  %v252 = vunpack.c.h.b16 %v50
  %v253 = vunpack.c.l.b16 %v51
  %v254 = vunpack.c.h.b16 %v51
  %v255 = vunpack.c.l.b16 %v52
  %v256 = vunpack.c.h.b16 %v52
  %v257 = vunpack.c.l.b16 %v53
  %v258 = vunpack.c.h.b16 %v53
  %v259 = vunpack.c.l.b16 %v54
  %v260 = vunpack.c.h.b16 %v54
  %v261 = vunpack.c.l.b16 %v55
  %v262 = vunpack.c.h.b16 %v55
  %v263 = vunpack.c.l.b16 %v56
  %v264 = vunpack.c.h.b16 %v56
  %v265 = vunpack.c.l.b16 %v57
  %v266 = vunpack.c.h.b16 %v57
  %v267 = vunpack.c.l.b16 %v58
  %v268 = vunpack.c.h.b16 %v58
  %v269 = vunpack.c.l.b16 %v59
  %v270 = vunpack.c.h.b16 %v59
  %v271 = vunpack.c.l.b16 %v60
  %v272 = vunpack.c.h.b16 %v60
  %v273 = vunpack.c.l.b16 %v61
  %v274 = vunpack.c.h.b16 %v61
  %v275 = vunpack.c.l.b16 %v62
  %v276 = vunpack.c.h.b16 %v62
  %v277 = vunpack.c.l.b16 %v63
  %v278 = vunpack.c.h.b16 %v63
  %v279 = vunpack.c.l.b16 %v64
  %v280 = vunpack.c.h.b16 %v64
  %v281 = vunpack.c.l.b16 %v65
  %v282 = vunpack.c.h.b16 %v65
  %v283 = vunpack.c.l.b16 %v66
  %v284 = vunpack.c.h.b16 %v66
  %v285 = vunpack.c.l.b16 %v67
  %v286 = vunpack.c.h.b16 %v67
  %v287 = vunpack.c.l.b16 %v68
  %v288 = vunpack.c.h.b16 %v68
  %v289 = vunpack.c.l.b16 %v69
  %v290 = vunpack.c.h.b16 %v69
  %v291 = vunpack.c.l.b16 %v70
  %v292 = vunpack.c.h.b16 %v70
  %v293 = vunpack.c.l.b16 %v71
  %v294 = vunpack.c.h.b16 %v71
  %v295 = vunpack.c.l.b16 %v72
  %v296 = vunpack.c.h.b16 %v72
  %v297 = vunpack.c.l.b16 %v73
  %v298 = vunpack.c.h.b16 %v73
  %v299 = vunpack.c.l.b16 %v74
  %v300 = vunpack.c.h.b16 %v74
  %v301 = vunpack.c.l.b16 %v75
  %v302 = vunpack.c.h.b16 %v75
  %v303 = vunpack.c.l.b16 %v76
  %v304 = vunpack.c.h.b16 %v76
  %v305 = vunpack.c.l.b16 %v77
  %v306 = vunpack.c.h.b16 %v77
  %v307 = vunpack.c.l.b16 %v78
  %v308 = vunpack.c.h.b16 %v78
  %v309 = vunpack.c.l.b16 %v79
  %v310 = vunpack.c.h.b16 %v79
  %v311 = vunpack.c.l.b16 %v80
  %v312 = vunpack.c.h.b16 %v80
  %v313 = vunpack.c.l.b16 %v81
  %v314 = vunpack.c.h.b16 %v81
  %v315 = vunpack.c.l.b16 %v82
  %v316 = vunpack.c.h.b16 %v82
  %v317 = vunpack.c.l.b16 %v83
  %v318 = vunpack.c.h.b16 %v83
  %v319 = vunpack.c.l.b16 %v84
  %v320 = vunpack.c.h.b16 %v84
  %v321 = vpack.c.b16 %v197, %v193
  %v322 = vpack.c.b16 %v198, %v194
  %v323 = vpack.c.b16 %v199, %v195
  %v324 = vpack.c.b16 %v200, %v196
  %v325 = vpack.c.b16 %v205, %v201
  %v326 = vpack.c.b16 %v206, %v202
  %v327 = vpack.c.b16 %v207, %v203
  %v328 = vpack.c.b16 %v208, %v204
  %v329 = vpack.c.b16 %v213, %v209
  %v330 = vpack.c.b16 %v214, %v210
  %v331 = vpack.c.b16 %v215, %v211
  %v332 = vpack.c.b16 %v216, %v212
  %v333 = vpack.c.b16 %v221, %v217
  %v334 = vpack.c.b16 %v222, %v218
  %v335 = vpack.c.b16 %v223, %v219
  %v336 = vpack.c.b16 %v224, %v220
  %v337 = vpack.c.b16 %v229, %v225
  %v338 = vpack.c.b16 %v230, %v226
  %v339 = vpack.c.b16 %v231, %v227
  %v340 = vpack.c.b16 %v232, %v228
  %v341 = vpack.c.b16 %v237, %v233
  %v342 = vpack.c.b16 %v238, %v234
  %v343 = vpack.c.b16 %v239, %v235
  %v344 = vpack.c.b16 %v240, %v236
  %v345 = vpack.c.b16 %v245, %v241
  %v346 = vpack.c.b16 %v246, %v242
  %v347 = vpack.c.b16 %v247, %v243
  %v348 = vpack.c.b16 %v248, %v244
  %v349 = vpack.c.b16 %v253, %v249
  %v350 = vpack.c.b16 %v254, %v250
  %v351 = vpack.c.b16 %v255, %v251
  %v352 = vpack.c.b16 %v256, %v252
  %v353 = vpack.c.b16 %v261, %v257
  %v354 = vpack.c.b16 %v262, %v258
  %v355 = vpack.c.b16 %v263, %v259
  %v356 = vpack.c.b16 %v264, %v260
  %v357 = vpack.c.b16 %v269, %v265
  %v358 = vpack.c.b16 %v270, %v266
  %v359 = vpack.c.b16 %v271, %v267
  %v360 = vpack.c.b16 %v272, %v268
  %v361 = vpack.c.b16 %v277, %v273
  %v362 = vpack.c.b16 %v278, %v274
  %v363 = vpack.c.b16 %v279, %v275
  %v364 = vpack.c.b16 %v280, %v276
  %v365 = vpack.c.b16 %v285, %v281
  %v366 = vpack.c.b16 %v286, %v282
  %v367 = vpack.c.b16 %v287, %v283
  %v368 = vpack.c.b16 %v288, %v284
  %v369 = vpack.c.b16 %v293, %v289
  %v370 = vpack.c.b16 %v294, %v290
  %v371 = vpack.c.b16 %v295, %v291
  %v372 = vpack.c.b16 %v296, %v292
  %v373 = vpack.c.b16 %v301, %v297
  %v374 = vpack.c.b16 %v302, %v298
  %v375 = vpack.c.b16 %v303, %v299
  %v376 = vpack.c.b16 %v304, %v300
  %v377 = vpack.c.b16 %v309, %v305
  %v378 = vpack.c.b16 %v310, %v306
  %v379 = vpack.c.b16 %v311, %v307
  %v380 = vpack.c.b16 %v312, %v308
  %v381 = vpack.c.b16 %v317, %v313
  %v382 = vpack.c.b16 %v318, %v314
  %v383 = vpack.c.b16 %v319, %v315
  %v384 = vpack.c.b16 %v320, %v316
  %449 = vmatpush.bf16.msra.mxu0 %v349
  %450 = vmatpush.bf16.msra.mxu0 %v345
  %451 = vmatpush.bf16.msra.mxu0 %v341
  %452 = vmatpush.bf16.msra.mxu0 %v337
  %453 = vmatpush.bf16.msra.mxu0 %v333
  %454 = vmatpush.bf16.msra.mxu0 %v329
  %455 = vmatpush.bf16.msra.mxu0 %v325
  %456 = vmatpush.bf16.msra.mxu0 %v321
  %457 = vmatmul.bf16.gmra.mxu0 %v121
  %v458 = vpop.f32.mrf.mxu0
  %v459 = vadd.f32 %v92, %v458
  %v460 = vpop.f32.mrf.mxu0
  %v461 = vadd.f32 %v97, %v460
  %462 = vmatmul.bf16.gmra.mxu0 %v123
  %v463 = vpop.f32.mrf.mxu0
  %v464 = vadd.f32 %v102, %v463
  %v465 = vpop.f32.mrf.mxu0
  %v466 = vadd.f32 %v107, %v465
  %467 = vdwg.mxu0
  %468 = vmatpush.bf16.msra.mxu0 %v381
  %469 = vmatpush.bf16.msra.mxu0 %v377
  %470 = vmatpush.bf16.msra.mxu0 %v373
  %471 = vmatpush.bf16.msra.mxu0 %v369
  %472 = vmatpush.bf16.msra.mxu0 %v365
  %473 = vmatpush.bf16.msra.mxu0 %v361
  %474 = vmatpush.bf16.msra.mxu0 %v357
  %475 = vmatpush.bf16.msra.mxu0 %v353
  %476 = vmatmul.bf16.gmra.mxu0 %v122
  %v477 = vpop.f32.mrf.mxu0
  %v478 = vadd.f32 %v459, %v477
  %v479 = vpop.f32.mrf.mxu0
  %v480 = vadd.f32 %v461, %v479
  %481 = vmatmul.bf16.gmra.mxu0 %v124
  %v482 = vpop.f32.mrf.mxu0
  %v483 = vadd.f32 %v464, %v482
  %v484 = vpop.f32.mrf.mxu0
  %v485 = vadd.f32 %v466, %v484
  %486 = vdwg.mxu0
  %487 = vmatpush.bf16.msra.mxu0 %v350
  %488 = vmatpush.bf16.msra.mxu0 %v346
  %489 = vmatpush.bf16.msra.mxu0 %v342
  %490 = vmatpush.bf16.msra.mxu0 %v338
  %491 = vmatpush.bf16.msra.mxu0 %v334
  %492 = vmatpush.bf16.msra.mxu0 %v330
  %493 = vmatpush.bf16.msra.mxu0 %v326
  %494 = vmatpush.bf16.msra.mxu0 %v322
  %495 = vmatmul.bf16.gmra.mxu0 %v121
  %v496 = vpop.f32.mrf.mxu0
  %v497 = vadd.f32 %v92, %v496
  %v498 = vpop.f32.mrf.mxu0
  %v499 = vadd.f32 %v97, %v498
  %500 = vmatmul.bf16.gmra.mxu0 %v123
  %v501 = vpop.f32.mrf.mxu0
  %v502 = vadd.f32 %v102, %v501
  %v503 = vpop.f32.mrf.mxu0
  %v504 = vadd.f32 %v107, %v503
  %505 = vdwg.mxu0
  %506 = vmatpush.bf16.msra.mxu0 %v382
  %507 = vmatpush.bf16.msra.mxu0 %v378
  %508 = vmatpush.bf16.msra.mxu0 %v374
  %509 = vmatpush.bf16.msra.mxu0 %v370
  %510 = vmatpush.bf16.msra.mxu0 %v366
  %511 = vmatpush.bf16.msra.mxu0 %v362
  %512 = vmatpush.bf16.msra.mxu0 %v358
  %513 = vmatpush.bf16.msra.mxu0 %v354
  %514 = vmatmul.bf16.gmra.mxu0 %v122
  %v515 = vpop.f32.mrf.mxu0
  %v516 = vadd.f32 %v497, %v515
  %v517 = vpop.f32.mrf.mxu0
  %v518 = vadd.f32 %v499, %v517
  %519 = vmatmul.bf16.gmra.mxu0 %v124
  %v520 = vpop.f32.mrf.mxu0
  %v521 = vadd.f32 %v502, %v520
  %v522 = vpop.f32.mrf.mxu0
  %v523 = vadd.f32 %v504, %v522
  %524 = vdwg.mxu0
  %525 = vmatpush.bf16.msra.mxu0 %v351
  %526 = vmatpush.bf16.msra.mxu0 %v347
  %527 = vmatpush.bf16.msra.mxu0 %v343
  %528 = vmatpush.bf16.msra.mxu0 %v339
  %529 = vmatpush.bf16.msra.mxu0 %v335
  %530 = vmatpush.bf16.msra.mxu0 %v331
  %531 = vmatpush.bf16.msra.mxu0 %v327
  %532 = vmatpush.bf16.msra.mxu0 %v323
  %533 = vmatmul.bf16.gmra.mxu0 %v121
  %v534 = vpop.f32.mrf.mxu0
  %v535 = vadd.f32 %v92, %v534
  %v536 = vpop.f32.mrf.mxu0
  %v537 = vadd.f32 %v97, %v536
  %538 = vmatmul.bf16.gmra.mxu0 %v123
  %v539 = vpop.f32.mrf.mxu0
  %v540 = vadd.f32 %v102, %v539
  %v541 = vpop.f32.mrf.mxu0
  %v542 = vadd.f32 %v107, %v541
  %543 = vdwg.mxu0
  %544 = vmatpush.bf16.msra.mxu0 %v383
  %545 = vmatpush.bf16.msra.mxu0 %v379
  %546 = vmatpush.bf16.msra.mxu0 %v375
  %547 = vmatpush.bf16.msra.mxu0 %v371
  %548 = vmatpush.bf16.msra.mxu0 %v367
  %549 = vmatpush.bf16.msra.mxu0 %v363
  %550 = vmatpush.bf16.msra.mxu0 %v359
  %551 = vmatpush.bf16.msra.mxu0 %v355
  %552 = vmatmul.bf16.gmra.mxu0 %v122
  %v553 = vpop.f32.mrf.mxu0
  %v554 = vadd.f32 %v535, %v553
  %v555 = vpop.f32.mrf.mxu0
  %v556 = vadd.f32 %v537, %v555
  %557 = vmatmul.bf16.gmra.mxu0 %v124
  %v558 = vpop.f32.mrf.mxu0
  %v559 = vadd.f32 %v540, %v558
  %v560 = vpop.f32.mrf.mxu0
  %v561 = vadd.f32 %v542, %v560
  %562 = vdwg.mxu0
  %563 = vmatpush.bf16.msra.mxu0 %v352
  %564 = vmatpush.bf16.msra.mxu0 %v348
  %565 = vmatpush.bf16.msra.mxu0 %v344
  %566 = vmatpush.bf16.msra.mxu0 %v340
  %567 = vmatpush.bf16.msra.mxu0 %v336
  %568 = vmatpush.bf16.msra.mxu0 %v332
  %569 = vmatpush.bf16.msra.mxu0 %v328
  %570 = vmatpush.bf16.msra.mxu0 %v324
  %571 = vmatmul.bf16.gmra.mxu0 %v121
  %v572 = vpop.f32.mrf.mxu0
  %v573 = vadd.f32 %v92, %v572
  %v574 = vpop.f32.mrf.mxu0
  %v575 = vadd.f32 %v97, %v574
  %576 = vmatmul.bf16.gmra.mxu0 %v123
  %v577 = vpop.f32.mrf.mxu0
  %v578 = vadd.f32 %v102, %v577
  %v579 = vpop.f32.mrf.mxu0
  %v580 = vadd.f32 %v107, %v579
  %581 = vdwg.mxu0
  %582 = vmatpush.bf16.msra.mxu0 %v384
  %583 = vmatpush.bf16.msra.mxu0 %v380
  %584 = vmatpush.bf16.msra.mxu0 %v376
  %585 = vmatpush.bf16.msra.mxu0 %v372
  %586 = vmatpush.bf16.msra.mxu0 %v368
  %587 = vmatpush.bf16.msra.mxu0 %v364
  %588 = vmatpush.bf16.msra.mxu0 %v360
  %589 = vmatpush.bf16.msra.mxu0 %v356
  %590 = vmatmul.bf16.gmra.mxu0 %v122
  %v591 = vpop.f32.mrf.mxu0
  %v592 = vadd.f32 %v573, %v591
  %v593 = vpop.f32.mrf.mxu0
  %v594 = vadd.f32 %v575, %v593
  %595 = vmatmul.bf16.gmra.mxu0 %v124
  %v596 = vpop.f32.mrf.mxu0
  %v597 = vadd.f32 %v578, %v596
  %v598 = vpop.f32.mrf.mxu0
  %v599 = vadd.f32 %v580, %v598
  %600 = vdwg.mxu0
  %vm601 = vcmp.ge.f32.partialorder %v478, 0.0
  %vm602 = vcmp.ge.f32.partialorder %v516, 0.0
  %vm603 = vcmp.ge.f32.partialorder %v554, 0.0
  %vm604 = vcmp.ge.f32.partialorder %v592, 0.0
  %vm605 = vcmp.ge.f32.partialorder %v480, 0.0
  %vm606 = vcmp.ge.f32.partialorder %v518, 0.0
  %vm607 = vcmp.ge.f32.partialorder %v556, 0.0
  %vm608 = vcmp.ge.f32.partialorder %v594, 0.0
  %v609 = vmul.f32 %v478, 0.2
  %v610 = vmul.f32 %v516, 0.2
  %v611 = vmul.f32 %v554, 0.2
  %v612 = vmul.f32 %v592, 0.2
  %v613 = vmul.f32 %v480, 0.2
  %v614 = vmul.f32 %v518, 0.2
  %v615 = vmul.f32 %v556, 0.2
  %v616 = vmul.f32 %v594, 0.2
  %v617 = vsel %vm601, %v478, %v609
  %v618 = vsel %vm602, %v516, %v610
  %v619 = vsel %vm603, %v554, %v611
  %v620 = vsel %vm604, %v592, %v612
  %v621 = vsel %vm605, %v480, %v613
  %v622 = vsel %vm606, %v518, %v614
  %v623 = vsel %vm607, %v556, %v615
  %v624 = vsel %vm608, %v594, %v616
  %v625 = vmul.f32 %v483, 0.5
  %v626 = vmul.f32 %v521, 0.5
  %v627 = vmul.f32 %v559, 0.5
  %v628 = vmul.f32 %v597, 0.5
  %v629 = vmul.f32 %v485, 0.5
  %v630 = vmul.f32 %v523, 0.5
  %v631 = vmul.f32 %v561, 0.5
  %v632 = vmul.f32 %v599, 0.5
  %v633 = vtanh.pop %v625
  %v634 = vtanh.pop %v626
  %v635 = vtanh.pop %v627
  %v636 = vtanh.pop %v628
  %v637 = vtanh.pop %v629
  %v638 = vtanh.pop %v630
  %v639 = vtanh.pop %v631
  %v640 = vtanh.pop %v632
  %v641 = vadd.f32 %v633, 1.0
  %v642 = vadd.f32 %v634, 1.0
  %v643 = vadd.f32 %v635, 1.0
  %v644 = vadd.f32 %v636, 1.0
  %v645 = vadd.f32 %v637, 1.0
  %v646 = vadd.f32 %v638, 1.0
  %v647 = vadd.f32 %v639, 1.0
  %v648 = vadd.f32 %v640, 1.0
  %v649 = vmul.f32 %v641, 0.5
  %v650 = vmul.f32 %v642, 0.5
  %v651 = vmul.f32 %v643, 0.5
  %v652 = vmul.f32 %v644, 0.5
  %v653 = vmul.f32 %v645, 0.5
  %v654 = vmul.f32 %v646, 0.5
  %v655 = vmul.f32 %v647, 0.5
  %v656 = vmul.f32 %v648, 0.5
  %v657 = vmul.f32 %v617, %v649
  %v658 = vmul.f32 %v618, %v650
  %v659 = vmul.f32 %v619, %v651
  %v660 = vmul.f32 %v620, %v652
  %v661 = vmul.f32 %v621, %v653
  %v662 = vmul.f32 %v622, %v654
  %v663 = vmul.f32 %v623, %v655
  %v664 = vmul.f32 %v624, %v656
  %v665 = vpack.c.bf16 %v658, %v657
  %v666 = vpack.c.bf16 %v660, %v659
  %v667 = vpack.c.bf16 %v662, %v661
  %v668 = vpack.c.bf16 %v664, %v663
  %669 = vst [vmem:[%s3] sm:$0xff] %v665
  %670 = vst [vmem:[%s3 + $0x8] sm:$0xff] %v666
  %671 = vst [vmem:[%s3 + $0x10] sm:$0xff] %v667
  %672 = vst [vmem:[%s3 + $0x18] sm:$0xff] %v668
  %v673 = vadd.f32 %v657, %v658
  %v674 = vadd.f32 %v673, %v659
  %v675 = vadd.f32 %v674, %v660
  %676 = vadd.xlane.f32.xlu0 %v675
  %v677 = vpop.xlane.xlu0 %676
  %v678 = vadd.f32 %v661, %v662
  %v679 = vadd.f32 %v678, %v663
  %v680 = vadd.f32 %v679, %v664
  %681 = vadd.xlane.f32.xlu0 %v680
  %v682 = vpop.xlane.xlu0 %681
  %vm683 = vcmask 7168
  %684 = vst.msk [vmem:[%s4] sm:$0xff] %vm683, %v677
  %685 = vst.msk [vmem:[%s4 + $0x8] sm:$0xff] %vm683, %v682
  %v686 = vmul.f32 %v657, %v657
  %v687 = vmul.f32 %v658, %v658
  %v688 = vmul.f32 %v659, %v659
  %v689 = vmul.f32 %v660, %v660
  %v690 = vmul.f32 %v661, %v661
  %v691 = vmul.f32 %v662, %v662
  %v692 = vmul.f32 %v663, %v663
  %v693 = vmul.f32 %v664, %v664
  %v694 = vadd.f32 %v686, %v687
  %v695 = vadd.f32 %v694, %v688
  %v696 = vadd.f32 %v695, %v689
  %697 = vadd.xlane.f32.xlu0 %v696
  %v698 = vpop.xlane.xlu0 %697
  %v699 = vadd.f32 %v690, %v691
  %v700 = vadd.f32 %v699, %v692
  %v701 = vadd.f32 %v700, %v693
  %702 = vadd.xlane.f32.xlu0 %v701
  %v703 = vpop.xlane.xlu0 %702
  %704 = vst.msk [vmem:[%s5] sm:$0xff] %vm683, %v698
  %705 = vst.msk [vmem:[%s5 + $0x8] sm:$0xff] %vm683, %v703
  // Predicated region
  $region14: #{_lambda_.19} parent=0 // pred_check
    _
  $region15: #{_lambda_.19} parent=0 // pred_check_branch
    %707 = sbr.rel (0) target = $region17
  $region16: #{_lambda_.19} parent=0 // pred_region
    _
  $region17: #{_lambda_.19} parent=0 // pred_fallthru
    _
  // Predicated region
  $region18: #{_lambda_.19} parent=0 // pred_check
    _
  $region19: #{_lambda_.19} parent=0 // pred_check_branch
    %709 = sbr.rel (0) target = $region21
  $region20: #{_lambda_.19} parent=0 // pred_region
    _
  $region21: #{_lambda_.19} parent=0 // pred_fallthru
    _
  // Predicated region
  $region22: #{_lambda_.19} parent=0 // pred_check
    _
  $region23: #{_lambda_.19} parent=0 // pred_check_branch
    %711 = sbr.rel (0) target = $region25
  $region24: #{_lambda_.19} parent=0 // pred_region
    _
  $region25: #{_lambda_.19} parent=0 // pred_fallthru
    _
  // Predicated region
  $region26: #{_lambda_.19} parent=0 // pred_check
    _
  $region27: #{_lambda_.19} parent=0 // pred_check_branch
    %713 = sbr.rel (0) target = $region29
  $region28: #{_lambda_.19} parent=0 // pred_region
    _
  $region29: #{_lambda_.19} parent=0 // pred_fallthru
    _
  // Predicated region
  $region30: #{_lambda_.19} parent=0 // pred_check
    _
  $region31: #{_lambda_.19} parent=0 // pred_check_branch
    %715 = sbr.rel (0) target = $region33
  $region32: #{_lambda_.19} parent=0 // pred_region
    _
  $region33: #{_lambda_.19} parent=0 // pred_fallthru
    _
  // Predicated region
  $region34: #{_lambda_.19} parent=0 // pred_check
    _
  $region35: #{_lambda_.19} parent=0 // pred_check_branch
    %717 = sbr.rel (0) target = $region37
  $region36: #{_lambda_.19} parent=0 // pred_region
    _
  $region37: #{_lambda_.19} parent=0 // pred_fallthru
    _

// kernel: _lambda_.20
$region0: #{_lambda_.20}
  #allocation0 [shape = 'u32[]', space=smem, size = 0x4, offset = 0x4, fixed_abs, tag = 'smem constant byte address 0x4 - core index']
  #allocation1 [shape = 'u32[72,128]{1,0:T(1,128)}', space=vmem, size = 0x9000, scoped, tag = 'internal scratch']
  %s0 = inlined_call_operand.vmem [shape: bf16[256,128], index: 0, kind: input, shape index: {}]
  %s1 = inlined_call_operand.vmem [shape: bf16[64,256], index: 1, kind: input, shape index: {}]
  %s2 = inlined_call_operand.vmem [shape: f32[64,1], index: 2, kind: input, shape index: {}]
  %s3 = inlined_call_operand.vmem [shape: bf16[32,128], index: 3, kind: output, shape index: {0}]
  %s4 = inlined_call_operand.vmem [shape: f32[1,32,1], index: 4, kind: output, shape index: {1}]
  %s5 = inlined_call_operand.vmem [shape: f32[1,32,1], index: 5, kind: output, shape index: {2}]
  %6 = xla_tuple %s3, %s4, %s5
  %s7 = sld [smem:[#allocation0]]
  $region38: #{_lambda_.20} parent=0
    _
  %s9 = ssub.s32 1, %s7
  %s10 = scalar_select 0, %s9, %s7
  // Predicated region
  $region2: #{_lambda_.20} parent=0 // pred_check
    _
  $region3: #{_lambda_.20} parent=0 // pred_check_branch
    %12 = sbr.rel (0) target = $region5
  $region4: #{_lambda_.20} parent=0 // pred_region
    _
  $region5: #{_lambda_.20} parent=0 // pred_fallthru
    _
  // Predicated region
  $region6: #{_lambda_.20} parent=0 // pred_check
    _
  $region7: #{_lambda_.20} parent=0 // pred_check_branch
    %14 = sbr.rel (0) target = $region9
  $region8: #{_lambda_.20} parent=0 // pred_region
    _
  $region9: #{_lambda_.20} parent=0 // pred_fallthru
    _
  // Predicated region
  $region10: #{_lambda_.20} parent=0 // pred_check
    _
  $region11: #{_lambda_.20} parent=0 // pred_check_branch
    %16 = sbr.rel (0) target = $region13
  $region12: #{_lambda_.20} parent=0 // pred_region
    _
  $region13: #{_lambda_.20} parent=0 // pred_fallthru
    _
  %v17 = vld [vmem:[%s1] sm:$0xff]
  %v18 = vld [vmem:[%s1 + $0x8] sm:$0xff]
  %v19 = vld [vmem:[%s1 + $0x10] sm:$0xff]
  %v20 = vld [vmem:[%s1 + $0x18] sm:$0xff]
  %v21 = vld [vmem:[%s1 + $0x20] sm:$0xff]
  %v22 = vld [vmem:[%s1 + $0x28] sm:$0xff]
  %v23 = vld [vmem:[%s1 + $0x30] sm:$0xff]
  %v24 = vld [vmem:[%s1 + $0x38] sm:$0xff]
  %v25 = vld [vmem:[%s0] sm:$0xf]
  %v26 = vld [vmem:[%s0 + $0x4] sm:$0xf]
  %v27 = vld [vmem:[%s0 + $0x8] sm:$0xf]
  %v28 = vld [vmem:[%s0 + $0xc] sm:$0xf]
  %v29 = vld [vmem:[%s0 + $0x10] sm:$0xf]
  %v30 = vld [vmem:[%s0 + $0x14] sm:$0xf]
  %v31 = vld [vmem:[%s0 + $0x18] sm:$0xf]
  %v32 = vld [vmem:[%s0 + $0x1c] sm:$0xf]
  %v33 = vld [vmem:[%s0 + $0x20] sm:$0xf]
  %v34 = vld [vmem:[%s0 + $0x24] sm:$0xf]
  %v35 = vld [vmem:[%s0 + $0x28] sm:$0xf]
  %v36 = vld [vmem:[%s0 + $0x2c] sm:$0xf]
  %v37 = vld [vmem:[%s0 + $0x30] sm:$0xf]
  %v38 = vld [vmem:[%s0 + $0x34] sm:$0xf]
  %v39 = vld [vmem:[%s0 + $0x38] sm:$0xf]
  %v40 = vld [vmem:[%s0 + $0x3c] sm:$0xf]
  %v41 = vld [vmem:[%s0 + $0x40] sm:$0xf]
  %v42 = vld [vmem:[%s0 + $0x44] sm:$0xf]
  %v43 = vld [vmem:[%s0 + $0x48] sm:$0xf]
  %v44 = vld [vmem:[%s0 + $0x4c] sm:$0xf]
  %v45 = vld [vmem:[%s0 + $0x50] sm:$0xf]
  %v46 = vld [vmem:[%s0 + $0x54] sm:$0xf]
  %v47 = vld [vmem:[%s0 + $0x58] sm:$0xf]
  %v48 = vld [vmem:[%s0 + $0x5c] sm:$0xf]
  %v49 = vld [vmem:[%s0 + $0x60] sm:$0xf]
  %v50 = vld [vmem:[%s0 + $0x64] sm:$0xf]
  %v51 = vld [vmem:[%s0 + $0x68] sm:$0xf]
  %v52 = vld [vmem:[%s0 + $0x6c] sm:$0xf]
  %v53 = vld [vmem:[%s0 + $0x70] sm:$0xf]
  %v54 = vld [vmem:[%s0 + $0x74] sm:$0xf]
  %v55 = vld [vmem:[%s0 + $0x78] sm:$0xf]
  %v56 = vld [vmem:[%s0 + $0x7c] sm:$0xf]
  %v57 = vld [vmem:[%s2] sm:$0xff]
  %v58 = vld [vmem:[%s2 + $0x8] sm:$0xff]
  %v59 = vld [vmem:[%s2 + $0x10] sm:$0xff]
  %v60 = vld [vmem:[%s2 + $0x18] sm:$0xff]
  %v61 = vld [vmem:[%s2 + $0x20] sm:$0xff]
  %v62 = vld [vmem:[%s2 + $0x28] sm:$0xff]
  %v63 = vld [vmem:[%s2 + $0x30] sm:$0xff]
  %v64 = vld [vmem:[%s2 + $0x38] sm:$0xff]
  %66 = vset.pattern.permute.xlu0 0
  %67 = vperm.xlu0 %66, %v57
  %v68 = vpop.permute.xlu0 %67
  %71 = vset.pattern.permute.xlu0 0
  %72 = vperm.xlu0 %71, %v58
  %v73 = vpop.permute.xlu0 %72
  %76 = vset.pattern.permute.xlu0 0
  %77 = vperm.xlu0 %76, %v59
  %v78 = vpop.permute.xlu0 %77
  %81 = vset.pattern.permute.xlu0 0
  %82 = vperm.xlu0 %81, %v60
  %v83 = vpop.permute.xlu0 %82
  %86 = vset.pattern.permute.xlu0 0
  %87 = vperm.xlu0 %86, %v61
  %v88 = vpop.permute.xlu0 %87
  %91 = vset.pattern.permute.xlu0 0
  %92 = vperm.xlu0 %91, %v62
  %v93 = vpop.permute.xlu0 %92
  %96 = vset.pattern.permute.xlu0 0
  %97 = vperm.xlu0 %96, %v63
  %v98 = vpop.permute.xlu0 %97
  %101 = vset.pattern.permute.xlu0 0
  %102 = vperm.xlu0 %101, %v64
  %v103 = vpop.permute.xlu0 %102
  %v113 = vunpack.c.l.b16 %v17
  %v114 = vunpack.c.h.b16 %v17
  %v115 = vunpack.c.l.b16 %v18
  %v116 = vunpack.c.h.b16 %v18
  %v117 = vunpack.c.l.b16 %v19
  %v118 = vunpack.c.h.b16 %v19
  %v119 = vunpack.c.l.b16 %v20
  %v120 = vunpack.c.h.b16 %v20
  %v121 = vunpack.c.l.b16 %v21
  %v122 = vunpack.c.h.b16 %v21
  %v123 = vunpack.c.l.b16 %v22
  %v124 = vunpack.c.h.b16 %v22
  %v125 = vunpack.c.l.b16 %v23
  %v126 = vunpack.c.h.b16 %v23
  %v127 = vunpack.c.l.b16 %v24
  %v128 = vunpack.c.h.b16 %v24
  %v129 = vpack.c.b16 %v115, %v113
  %v130 = vpack.c.b16 %v116, %v114
  %v131 = vpack.c.b16 %v119, %v117
  %v132 = vpack.c.b16 %v120, %v118
  %v133 = vpack.c.b16 %v123, %v121
  %v134 = vpack.c.b16 %v124, %v122
  %v135 = vpack.c.b16 %v127, %v125
  %v136 = vpack.c.b16 %v128, %v126
  %v177 = vunpack.c.l.b16 %v25
  %v178 = vunpack.c.l.b16 %v26
  %v179 = vunpack.c.l.b16 %v27
  %v180 = vunpack.c.l.b16 %v28
  %v181 = vunpack.c.l.b16 %v29
  %v182 = vunpack.c.l.b16 %v30
  %v183 = vunpack.c.l.b16 %v31
  %v184 = vunpack.c.l.b16 %v32
  %v185 = vunpack.c.l.b16 %v33
  %v186 = vunpack.c.l.b16 %v34
  %v187 = vunpack.c.l.b16 %v35
  %v188 = vunpack.c.l.b16 %v36
  %v189 = vunpack.c.l.b16 %v37
  %v190 = vunpack.c.l.b16 %v38
  %v191 = vunpack.c.l.b16 %v39
  %v192 = vunpack.c.l.b16 %v40
  %v193 = vunpack.c.l.b16 %v41
  %v194 = vunpack.c.l.b16 %v42
  %v195 = vunpack.c.l.b16 %v43
  %v196 = vunpack.c.l.b16 %v44
  %v197 = vunpack.c.l.b16 %v45
  %v198 = vunpack.c.l.b16 %v46
  %v199 = vunpack.c.l.b16 %v47
  %v200 = vunpack.c.l.b16 %v48
  %v201 = vunpack.c.l.b16 %v49
  %v202 = vunpack.c.l.b16 %v50
  %v203 = vunpack.c.l.b16 %v51
  %v204 = vunpack.c.l.b16 %v52
  %v205 = vunpack.c.l.b16 %v53
  %v206 = vunpack.c.l.b16 %v54
  %v207 = vunpack.c.l.b16 %v55
  %v208 = vunpack.c.l.b16 %v56
  %v209 = vpack.c.b16 %v178, %v177
  %v210 = vpack.c.b16 %v180, %v179
  %v211 = vpack.c.b16 %v182, %v181
  %v212 = vpack.c.b16 %v184, %v183
  %v213 = vpack.c.b16 %v186, %v185
  %v214 = vpack.c.b16 %v188, %v187
  %v215 = vpack.c.b16 %v190, %v189
  %v216 = vpack.c.b16 %v192, %v191
  %v217 = vpack.c.b16 %v194, %v193
  %v218 = vpack.c.b16 %v196, %v195
  %v219 = vpack.c.b16 %v198, %v197
  %v220 = vpack.c.b16 %v200, %v199
  %v221 = vpack.c.b16 %v202, %v201
  %v222 = vpack.c.b16 %v204, %v203
  %v223 = vpack.c.b16 %v206, %v205
  %v224 = vpack.c.b16 %v208, %v207
  %241 = vmatpush.bf16.msra.mxu0 %v216
  %242 = vmatpush.bf16.msra.mxu0 %v215
  %243 = vmatpush.bf16.msra.mxu0 %v214
  %244 = vmatpush.bf16.msra.mxu0 %v213
  %245 = vmatpush.bf16.msra.mxu0 %v212
  %246 = vmatpush.bf16.msra.mxu0 %v211
  %247 = vmatpush.bf16.msra.mxu0 %v210
  %248 = vmatpush.bf16.msra.mxu0 %v209
  %249 = vmatmul.bf16.gmra.mxu0 %v129
  %v250 = vpop.f32.mrf.mxu0
  %v251 = vadd.f32 %v68, %v250
  %v252 = vpop.f32.mrf.mxu0
  %v253 = vadd.f32 %v73, %v252
  %254 = vmatmul.bf16.gmra.mxu0 %v131
  %v255 = vpop.f32.mrf.mxu0
  %v256 = vadd.f32 %v78, %v255
  %v257 = vpop.f32.mrf.mxu0
  %v258 = vadd.f32 %v83, %v257
  %259 = vmatmul.bf16.gmra.mxu0 %v133
  %v260 = vpop.f32.mrf.mxu0
  %v261 = vadd.f32 %v88, %v260
  %v262 = vpop.f32.mrf.mxu0
  %v263 = vadd.f32 %v93, %v262
  %264 = vmatmul.bf16.gmra.mxu0 %v135
  %v265 = vpop.f32.mrf.mxu0
  %v266 = vadd.f32 %v98, %v265
  %v267 = vpop.f32.mrf.mxu0
  %v268 = vadd.f32 %v103, %v267
  %269 = vdwg.mxu0
  %270 = vmatpush.bf16.msra.mxu0 %v224
  %271 = vmatpush.bf16.msra.mxu0 %v223
  %272 = vmatpush.bf16.msra.mxu0 %v222
  %273 = vmatpush.bf16.msra.mxu0 %v221
  %274 = vmatpush.bf16.msra.mxu0 %v220
  %275 = vmatpush.bf16.msra.mxu0 %v219
  %276 = vmatpush.bf16.msra.mxu0 %v218
  %277 = vmatpush.bf16.msra.mxu0 %v217
  %278 = vmatmul.bf16.gmra.mxu0 %v130
  %v279 = vpop.f32.mrf.mxu0
  %v280 = vadd.f32 %v251, %v279
  %v281 = vpop.f32.mrf.mxu0
  %v282 = vadd.f32 %v253, %v281
  %283 = vmatmul.bf16.gmra.mxu0 %v132
  %v284 = vpop.f32.mrf.mxu0
  %v285 = vadd.f32 %v256, %v284
  %v286 = vpop.f32.mrf.mxu0
  %v287 = vadd.f32 %v258, %v286
  %288 = vmatmul.bf16.gmra.mxu0 %v134
  %v289 = vpop.f32.mrf.mxu0
  %v290 = vadd.f32 %v261, %v289
  %v291 = vpop.f32.mrf.mxu0
  %v292 = vadd.f32 %v263, %v291
  %293 = vmatmul.bf16.gmra.mxu0 %v136
  %v294 = vpop.f32.mrf.mxu0
  %v295 = vadd.f32 %v266, %v294
  %v296 = vpop.f32.mrf.mxu0
  %v297 = vadd.f32 %v268, %v296
  %298 = vdwg.mxu0
  %vm299 = vcmp.ge.f32.partialorder %v280, 0.0
  %vm300 = vcmp.ge.f32.partialorder %v282, 0.0
  %vm301 = vcmp.ge.f32.partialorder %v285, 0.0
  %vm302 = vcmp.ge.f32.partialorder %v287, 0.0
  %v303 = vmul.f32 %v280, 0.2
  %v304 = vmul.f32 %v282, 0.2
  %v305 = vmul.f32 %v285, 0.2
  %v306 = vmul.f32 %v287, 0.2
  %v307 = vsel %vm299, %v280, %v303
  %v308 = vsel %vm300, %v282, %v304
  %v309 = vsel %vm301, %v285, %v305
  %v310 = vsel %vm302, %v287, %v306
  %v311 = vmul.f32 %v290, 0.5
  %v312 = vmul.f32 %v292, 0.5
  %v313 = vmul.f32 %v295, 0.5
  %v314 = vmul.f32 %v297, 0.5
  %v315 = vtanh.pop %v311
  %v316 = vtanh.pop %v312
  %v317 = vtanh.pop %v313
  %v318 = vtanh.pop %v314
  %v319 = vadd.f32 %v315, 1.0
  %v320 = vadd.f32 %v316, 1.0
  %v321 = vadd.f32 %v317, 1.0
  %v322 = vadd.f32 %v318, 1.0
  %v323 = vmul.f32 %v319, 0.5
  %v324 = vmul.f32 %v320, 0.5
  %v325 = vmul.f32 %v321, 0.5
  %v326 = vmul.f32 %v322, 0.5
  %v327 = vmul.f32 %v307, %v323
  %v328 = vmul.f32 %v308, %v324
  %v329 = vmul.f32 %v309, %v325
  %v330 = vmul.f32 %v310, %v326
  %v331 = vpack.c.bf16 %v327, %v327
  %v332 = vpack.c.bf16 %v328, %v328
  %v333 = vpack.c.bf16 %v329, %v329
  %v334 = vpack.c.bf16 %v330, %v330
  %335 = vst [vmem:[%s3] sm:$0xf] %v331
  %336 = vst [vmem:[%s3 + $0x4] sm:$0xf] %v332
  %337 = vst [vmem:[%s3 + $0x8] sm:$0xf] %v333
  %338 = vst [vmem:[%s3 + $0xc] sm:$0xf] %v334
  %339 = vadd.xlane.f32.xlu0 %v327
  %v340 = vpop.xlane.xlu0 %339
  %341 = vadd.xlane.f32.xlu0 %v328
  %v342 = vpop.xlane.xlu0 %341
  %343 = vadd.xlane.f32.xlu0 %v329
  %v344 = vpop.xlane.xlu0 %343
  %345 = vadd.xlane.f32.xlu0 %v330
  %v346 = vpop.xlane.xlu0 %345
  %vm347 = vcmask 7168
  %348 = vst.msk [vmem:[%s4] sm:$0xff] %vm347, %v340
  %349 = vst.msk [vmem:[%s4 + $0x8] sm:$0xff] %vm347, %v342
  %350 = vst.msk [vmem:[%s4 + $0x10] sm:$0xff] %vm347, %v344
  %351 = vst.msk [vmem:[%s4 + $0x18] sm:$0xff] %vm347, %v346
  %v352 = vmul.f32 %v327, %v327
  %v353 = vmul.f32 %v328, %v328
  %v354 = vmul.f32 %v329, %v329
  %v355 = vmul.f32 %v330, %v330
  %356 = vadd.xlane.f32.xlu0 %v352
  %v357 = vpop.xlane.xlu0 %356
  %358 = vadd.xlane.f32.xlu0 %v353
  %v359 = vpop.xlane.xlu0 %358
  %360 = vadd.xlane.f32.xlu0 %v354
  %v361 = vpop.xlane.xlu0 %360
  %362 = vadd.xlane.f32.xlu0 %v355
  %v363 = vpop.xlane.xlu0 %362
  %364 = vst.msk [vmem:[%s5] sm:$0xff] %vm347, %v357
  %365 = vst.msk [vmem:[%s5 + $0x8] sm:$0xff] %vm347, %v359
  %366 = vst.msk [vmem:[%s5 + $0x10] sm:$0xff] %vm347, %v361
  %367 = vst.msk [vmem:[%s5 + $0x18] sm:$0xff] %vm347, %v363
  // Predicated region
  $region14: #{_lambda_.20} parent=0 // pred_check
    _
  $region15: #{_lambda_.20} parent=0 // pred_check_branch
    %369 = sbr.rel (0) target = $region17
  $region16: #{_lambda_.20} parent=0 // pred_region
    _
  $region17: #{_lambda_.20} parent=0 // pred_fallthru
    _
  // Predicated region
  $region18: #{_lambda_.20} parent=0 // pred_check
    _
  $region19: #{_lambda_.20} parent=0 // pred_check_branch
    %371 = sbr.rel (0) target = $region21
  $region20: #{_lambda_.20} parent=0 // pred_region
    _
  $region21: #{_lambda_.20} parent=0 // pred_fallthru
    _
  // Predicated region
  $region22: #{_lambda_.20} parent=0 // pred_check
    _
  $region23: #{_lambda_.20} parent=0 // pred_check_branch
    %373 = sbr.rel (0) target = $region25
  $region24: #{_lambda_.20} parent=0 // pred_region
    _
  $region25: #{_lambda_.20} parent=0 // pred_fallthru
    _
  // Predicated region
  $region26: #{_lambda_.20} parent=0 // pred_check
    _
  $region27: #{_lambda_.20} parent=0 // pred_check_branch
    %375 = sbr.rel (0) target = $region29
  $region28: #{_lambda_.20} parent=0 // pred_region
    _
  $region29: #{_lambda_.20} parent=0 // pred_fallthru
    _
  // Predicated region
  $region30: #{_lambda_.20} parent=0 // pred_check
    _
  $region31: #{_lambda_.20} parent=0 // pred_check_branch
    %377 = sbr.rel (0) target = $region33
  $region32: #{_lambda_.20} parent=0 // pred_region
    _
  $region33: #{_lambda_.20} parent=0 // pred_fallthru
    _
  // Predicated region
  $region34: #{_lambda_.20} parent=0 // pred_check
    _
  $region35: #{_lambda_.20} parent=0 // pred_check_branch
    %379 = sbr.rel (0) target = $region37
  $region36: #{_lambda_.20} parent=0 // pred_region
    _
  $region37: #{_lambda_.20} parent=0 // pred_fallthru
    _

// kernel: _lambda_.21
$region0: #{_lambda_.21}
  #allocation0 [shape = 'u32[]', space=smem, size = 0x4, offset = 0x4, fixed_abs, tag = 'smem constant byte address 0x4 - core index']
  #allocation1 [shape = 'u32[72,128]{1,0:T(1,128)}', space=vmem, size = 0x9000, scoped, tag = 'internal scratch']
  %s0 = inlined_call_operand.vmem [shape: bf16[384,128], index: 0, kind: input, shape index: {}]
  %s1 = inlined_call_operand.vmem [shape: bf16[64,384], index: 1, kind: input, shape index: {}]
  %s2 = inlined_call_operand.vmem [shape: f32[64,1], index: 2, kind: input, shape index: {}]
  %s3 = inlined_call_operand.vmem [shape: bf16[32,128], index: 3, kind: output, shape index: {0}]
  %s4 = inlined_call_operand.vmem [shape: f32[1,32,1], index: 4, kind: output, shape index: {1}]
  %s5 = inlined_call_operand.vmem [shape: f32[1,32,1], index: 5, kind: output, shape index: {2}]
  %6 = xla_tuple %s3, %s4, %s5
  %s7 = sld [smem:[#allocation0]]
  $region38: #{_lambda_.21} parent=0
    _
  %s9 = ssub.s32 1, %s7
  %s10 = scalar_select 0, %s9, %s7
  // Predicated region
  $region2: #{_lambda_.21} parent=0 // pred_check
    _
  $region3: #{_lambda_.21} parent=0 // pred_check_branch
    %12 = sbr.rel (0) target = $region5
  $region4: #{_lambda_.21} parent=0 // pred_region
    _
  $region5: #{_lambda_.21} parent=0 // pred_fallthru
    _
  // Predicated region
  $region6: #{_lambda_.21} parent=0 // pred_check
    _
  $region7: #{_lambda_.21} parent=0 // pred_check_branch
    %14 = sbr.rel (0) target = $region9
  $region8: #{_lambda_.21} parent=0 // pred_region
    _
  $region9: #{_lambda_.21} parent=0 // pred_fallthru
    _
  // Predicated region
  $region10: #{_lambda_.21} parent=0 // pred_check
    _
  $region11: #{_lambda_.21} parent=0 // pred_check_branch
    %16 = sbr.rel (0) target = $region13
  $region12: #{_lambda_.21} parent=0 // pred_region
    _
  $region13: #{_lambda_.21} parent=0 // pred_fallthru
    _
  %v17 = vld [vmem:[%s1] sm:$0xff]
  %v18 = vld [vmem:[%s1 + $0x8] sm:$0xf]
  %v19 = vld [vmem:[%s1 + $0xc] sm:$0xff]
  %v20 = vld [vmem:[%s1 + $0x14] sm:$0xf]
  %v21 = vld [vmem:[%s1 + $0x18] sm:$0xff]
  %v22 = vld [vmem:[%s1 + $0x20] sm:$0xf]
  %v23 = vld [vmem:[%s1 + $0x24] sm:$0xff]
  %v24 = vld [vmem:[%s1 + $0x2c] sm:$0xf]
  %v25 = vld [vmem:[%s1 + $0x30] sm:$0xff]
  %v26 = vld [vmem:[%s1 + $0x38] sm:$0xf]
  %v27 = vld [vmem:[%s1 + $0x3c] sm:$0xff]
  %v28 = vld [vmem:[%s1 + $0x44] sm:$0xf]
  %v29 = vld [vmem:[%s1 + $0x48] sm:$0xff]
  %v30 = vld [vmem:[%s1 + $0x50] sm:$0xf]
  %v31 = vld [vmem:[%s1 + $0x54] sm:$0xff]
  %v32 = vld [vmem:[%s1 + $0x5c] sm:$0xf]
  %v33 = vld [vmem:[%s0] sm:$0xf]
  %v34 = vld [vmem:[%s0 + $0x4] sm:$0xf]
  %v35 = vld [vmem:[%s0 + $0x8] sm:$0xf]
  %v36 = vld [vmem:[%s0 + $0xc] sm:$0xf]
  %v37 = vld [vmem:[%s0 + $0x10] sm:$0xf]
  %v38 = vld [vmem:[%s0 + $0x14] sm:$0xf]
  %v39 = vld [vmem:[%s0 + $0x18] sm:$0xf]
  %v40 = vld [vmem:[%s0 + $0x1c] sm:$0xf]
  %v41 = vld [vmem:[%s0 + $0x20] sm:$0xf]
  %v42 = vld [vmem:[%s0 + $0x24] sm:$0xf]
  %v43 = vld [vmem:[%s0 + $0x28] sm:$0xf]
  %v44 = vld [vmem:[%s0 + $0x2c] sm:$0xf]
  %v45 = vld [vmem:[%s0 + $0x30] sm:$0xf]
  %v46 = vld [vmem:[%s0 + $0x34] sm:$0xf]
  %v47 = vld [vmem:[%s0 + $0x38] sm:$0xf]
  %v48 = vld [vmem:[%s0 + $0x3c] sm:$0xf]
  %v49 = vld [vmem:[%s0 + $0x40] sm:$0xf]
  %v50 = vld [vmem:[%s0 + $0x44] sm:$0xf]
  %v51 = vld [vmem:[%s0 + $0x48] sm:$0xf]
  %v52 = vld [vmem:[%s0 + $0x4c] sm:$0xf]
  %v53 = vld [vmem:[%s0 + $0x50] sm:$0xf]
  %v54 = vld [vmem:[%s0 + $0x54] sm:$0xf]
  %v55 = vld [vmem:[%s0 + $0x58] sm:$0xf]
  %v56 = vld [vmem:[%s0 + $0x5c] sm:$0xf]
  %v57 = vld [vmem:[%s0 + $0x60] sm:$0xf]
  %v58 = vld [vmem:[%s0 + $0x64] sm:$0xf]
  %v59 = vld [vmem:[%s0 + $0x68] sm:$0xf]
  %v60 = vld [vmem:[%s0 + $0x6c] sm:$0xf]
  %v61 = vld [vmem:[%s0 + $0x70] sm:$0xf]
  %v62 = vld [vmem:[%s0 + $0x74] sm:$0xf]
  %v63 = vld [vmem:[%s0 + $0x78] sm:$0xf]
  %v64 = vld [vmem:[%s0 + $0x7c] sm:$0xf]
  %v65 = vld [vmem:[%s0 + $0x80] sm:$0xf]
  %v66 = vld [vmem:[%s0 + $0x84] sm:$0xf]
  %v67 = vld [vmem:[%s0 + $0x88] sm:$0xf]
  %v68 = vld [vmem:[%s0 + $0x8c] sm:$0xf]
  %v69 = vld [vmem:[%s0 + $0x90] sm:$0xf]
  %v70 = vld [vmem:[%s0 + $0x94] sm:$0xf]
  %v71 = vld [vmem:[%s0 + $0x98] sm:$0xf]
  %v72 = vld [vmem:[%s0 + $0x9c] sm:$0xf]
  %v73 = vld [vmem:[%s0 + $0xa0] sm:$0xf]
  %v74 = vld [vmem:[%s0 + $0xa4] sm:$0xf]
  %v75 = vld [vmem:[%s0 + $0xa8] sm:$0xf]
  %v76 = vld [vmem:[%s0 + $0xac] sm:$0xf]
  %v77 = vld [vmem:[%s0 + $0xb0] sm:$0xf]
  %v78 = vld [vmem:[%s0 + $0xb4] sm:$0xf]
  %v79 = vld [vmem:[%s0 + $0xb8] sm:$0xf]
  %v80 = vld [vmem:[%s0 + $0xbc] sm:$0xf]
  %v81 = vld [vmem:[%s2] sm:$0xff]
  %v82 = vld [vmem:[%s2 + $0x8] sm:$0xff]
  %v83 = vld [vmem:[%s2 + $0x10] sm:$0xff]
  %v84 = vld [vmem:[%s2 + $0x18] sm:$0xff]
  %v85 = vld [vmem:[%s2 + $0x20] sm:$0xff]
  %v86 = vld [vmem:[%s2 + $0x28] sm:$0xff]
  %v87 = vld [vmem:[%s2 + $0x30] sm:$0xff]
  %v88 = vld [vmem:[%s2 + $0x38] sm:$0xff]
  %90 = vset.pattern.permute.xlu0 0
  %91 = vperm.xlu0 %90, %v81
  %v92 = vpop.permute.xlu0 %91
  %95 = vset.pattern.permute.xlu0 0
  %96 = vperm.xlu0 %95, %v82
  %v97 = vpop.permute.xlu0 %96
  %100 = vset.pattern.permute.xlu0 0
  %101 = vperm.xlu0 %100, %v83
  %v102 = vpop.permute.xlu0 %101
  %105 = vset.pattern.permute.xlu0 0
  %106 = vperm.xlu0 %105, %v84
  %v107 = vpop.permute.xlu0 %106
  %110 = vset.pattern.permute.xlu0 0
  %111 = vperm.xlu0 %110, %v85
  %v112 = vpop.permute.xlu0 %111
  %115 = vset.pattern.permute.xlu0 0
  %116 = vperm.xlu0 %115, %v86
  %v117 = vpop.permute.xlu0 %116
  %120 = vset.pattern.permute.xlu0 0
  %121 = vperm.xlu0 %120, %v87
  %v122 = vpop.permute.xlu0 %121
  %125 = vset.pattern.permute.xlu0 0
  %126 = vperm.xlu0 %125, %v88
  %v127 = vpop.permute.xlu0 %126
  %v145 = vunpack.c.l.b16 %v17
  %v146 = vunpack.c.h.b16 %v17
  %v147 = vunpack.c.l.b16 %v18
  %v148 = vunpack.c.l.b16 %v19
  %v149 = vunpack.c.h.b16 %v19
  %v150 = vunpack.c.l.b16 %v20
  %v151 = vunpack.c.l.b16 %v21
  %v152 = vunpack.c.h.b16 %v21
  %v153 = vunpack.c.l.b16 %v22
  %v154 = vunpack.c.l.b16 %v23
  %v155 = vunpack.c.h.b16 %v23
  %v156 = vunpack.c.l.b16 %v24
  %v157 = vunpack.c.l.b16 %v25
  %v158 = vunpack.c.h.b16 %v25
  %v159 = vunpack.c.l.b16 %v26
  %v160 = vunpack.c.l.b16 %v27
  %v161 = vunpack.c.h.b16 %v27
  %v162 = vunpack.c.l.b16 %v28
  %v163 = vunpack.c.l.b16 %v29
  %v164 = vunpack.c.h.b16 %v29
  %v165 = vunpack.c.l.b16 %v30
  %v166 = vunpack.c.l.b16 %v31
  %v167 = vunpack.c.h.b16 %v31
  %v168 = vunpack.c.l.b16 %v32
  %v169 = vpack.c.b16 %v148, %v145
  %v170 = vpack.c.b16 %v149, %v146
  %v171 = vpack.c.b16 %v150, %v147
  %v172 = vpack.c.b16 %v154, %v151
  %v173 = vpack.c.b16 %v155, %v152
  %v174 = vpack.c.b16 %v156, %v153
  %v175 = vpack.c.b16 %v160, %v157
  %v176 = vpack.c.b16 %v161, %v158
  %v177 = vpack.c.b16 %v162, %v159
  %v178 = vpack.c.b16 %v166, %v163
  %v179 = vpack.c.b16 %v167, %v164
  %v180 = vpack.c.b16 %v168, %v165
  %v241 = vunpack.c.l.b16 %v33
  %v242 = vunpack.c.l.b16 %v34
  %v243 = vunpack.c.l.b16 %v35
  %v244 = vunpack.c.l.b16 %v36
  %v245 = vunpack.c.l.b16 %v37
  %v246 = vunpack.c.l.b16 %v38
  %v247 = vunpack.c.l.b16 %v39
  %v248 = vunpack.c.l.b16 %v40
  %v249 = vunpack.c.l.b16 %v41
  %v250 = vunpack.c.l.b16 %v42
  %v251 = vunpack.c.l.b16 %v43
  %v252 = vunpack.c.l.b16 %v44
  %v253 = vunpack.c.l.b16 %v45
  %v254 = vunpack.c.l.b16 %v46
  %v255 = vunpack.c.l.b16 %v47
  %v256 = vunpack.c.l.b16 %v48
  %v257 = vunpack.c.l.b16 %v49
  %v258 = vunpack.c.l.b16 %v50
  %v259 = vunpack.c.l.b16 %v51
  %v260 = vunpack.c.l.b16 %v52
  %v261 = vunpack.c.l.b16 %v53
  %v262 = vunpack.c.l.b16 %v54
  %v263 = vunpack.c.l.b16 %v55
  %v264 = vunpack.c.l.b16 %v56
  %v265 = vunpack.c.l.b16 %v57
  %v266 = vunpack.c.l.b16 %v58
  %v267 = vunpack.c.l.b16 %v59
  %v268 = vunpack.c.l.b16 %v60
  %v269 = vunpack.c.l.b16 %v61
  %v270 = vunpack.c.l.b16 %v62
  %v271 = vunpack.c.l.b16 %v63
  %v272 = vunpack.c.l.b16 %v64
  %v273 = vunpack.c.l.b16 %v65
  %v274 = vunpack.c.l.b16 %v66
  %v275 = vunpack.c.l.b16 %v67
  %v276 = vunpack.c.l.b16 %v68
  %v277 = vunpack.c.l.b16 %v69
  %v278 = vunpack.c.l.b16 %v70
  %v279 = vunpack.c.l.b16 %v71
  %v280 = vunpack.c.l.b16 %v72
  %v281 = vunpack.c.l.b16 %v73
  %v282 = vunpack.c.l.b16 %v74
  %v283 = vunpack.c.l.b16 %v75
  %v284 = vunpack.c.l.b16 %v76
  %v285 = vunpack.c.l.b16 %v77
  %v286 = vunpack.c.l.b16 %v78
  %v287 = vunpack.c.l.b16 %v79
  %v288 = vunpack.c.l.b16 %v80
  %v289 = vpack.c.b16 %v242, %v241
  %v290 = vpack.c.b16 %v244, %v243
  %v291 = vpack.c.b16 %v246, %v245
  %v292 = vpack.c.b16 %v248, %v247
  %v293 = vpack.c.b16 %v250, %v249
  %v294 = vpack.c.b16 %v252, %v251
  %v295 = vpack.c.b16 %v254, %v253
  %v296 = vpack.c.b16 %v256, %v255
  %v297 = vpack.c.b16 %v258, %v257
  %v298 = vpack.c.b16 %v260, %v259
  %v299 = vpack.c.b16 %v262, %v261
  %v300 = vpack.c.b16 %v264, %v263
  %v301 = vpack.c.b16 %v266, %v265
  %v302 = vpack.c.b16 %v268, %v267
  %v303 = vpack.c.b16 %v270, %v269
  %v304 = vpack.c.b16 %v272, %v271
  %v305 = vpack.c.b16 %v274, %v273
  %v306 = vpack.c.b16 %v276, %v275
  %v307 = vpack.c.b16 %v278, %v277
  %v308 = vpack.c.b16 %v280, %v279
  %v309 = vpack.c.b16 %v282, %v281
  %v310 = vpack.c.b16 %v284, %v283
  %v311 = vpack.c.b16 %v286, %v285
  %v312 = vpack.c.b16 %v288, %v287
  %337 = vmatpush.bf16.msra.mxu0 %v296
  %338 = vmatpush.bf16.msra.mxu0 %v295
  %339 = vmatpush.bf16.msra.mxu0 %v294
  %340 = vmatpush.bf16.msra.mxu0 %v293
  %341 = vmatpush.bf16.msra.mxu0 %v292
  %342 = vmatpush.bf16.msra.mxu0 %v291
  %343 = vmatpush.bf16.msra.mxu0 %v290
  %344 = vmatpush.bf16.msra.mxu0 %v289
  %345 = vmatmul.bf16.gmra.mxu0 %v169
  %v346 = vpop.f32.mrf.mxu0
  %v347 = vadd.f32 %v92, %v346
  %v348 = vpop.f32.mrf.mxu0
  %v349 = vadd.f32 %v97, %v348
  %350 = vmatmul.bf16.gmra.mxu0 %v172
  %v351 = vpop.f32.mrf.mxu0
  %v352 = vadd.f32 %v102, %v351
  %v353 = vpop.f32.mrf.mxu0
  %v354 = vadd.f32 %v107, %v353
  %355 = vmatmul.bf16.gmra.mxu0 %v175
  %v356 = vpop.f32.mrf.mxu0
  %v357 = vadd.f32 %v112, %v356
  %v358 = vpop.f32.mrf.mxu0
  %v359 = vadd.f32 %v117, %v358
  %360 = vmatmul.bf16.gmra.mxu0 %v178
  %v361 = vpop.f32.mrf.mxu0
  %v362 = vadd.f32 %v122, %v361
  %v363 = vpop.f32.mrf.mxu0
  %v364 = vadd.f32 %v127, %v363
  %365 = vdwg.mxu0
  %366 = vmatpush.bf16.msra.mxu0 %v304
  %367 = vmatpush.bf16.msra.mxu0 %v303
  %368 = vmatpush.bf16.msra.mxu0 %v302
  %369 = vmatpush.bf16.msra.mxu0 %v301
  %370 = vmatpush.bf16.msra.mxu0 %v300
  %371 = vmatpush.bf16.msra.mxu0 %v299
  %372 = vmatpush.bf16.msra.mxu0 %v298
  %373 = vmatpush.bf16.msra.mxu0 %v297
  %374 = vmatmul.bf16.gmra.mxu0 %v170
  %v375 = vpop.f32.mrf.mxu0
  %v376 = vadd.f32 %v347, %v375
  %v377 = vpop.f32.mrf.mxu0
  %v378 = vadd.f32 %v349, %v377
  %379 = vmatmul.bf16.gmra.mxu0 %v173
  %v380 = vpop.f32.mrf.mxu0
  %v381 = vadd.f32 %v352, %v380
  %v382 = vpop.f32.mrf.mxu0
  %v383 = vadd.f32 %v354, %v382
  %384 = vmatmul.bf16.gmra.mxu0 %v176
  %v385 = vpop.f32.mrf.mxu0
  %v386 = vadd.f32 %v357, %v385
  %v387 = vpop.f32.mrf.mxu0
  %v388 = vadd.f32 %v359, %v387
  %389 = vmatmul.bf16.gmra.mxu0 %v179
  %v390 = vpop.f32.mrf.mxu0
  %v391 = vadd.f32 %v362, %v390
  %v392 = vpop.f32.mrf.mxu0
  %v393 = vadd.f32 %v364, %v392
  %394 = vdwg.mxu0
  %395 = vmatpush.bf16.msra.mxu0 %v312
  %396 = vmatpush.bf16.msra.mxu0 %v311
  %397 = vmatpush.bf16.msra.mxu0 %v310
  %398 = vmatpush.bf16.msra.mxu0 %v309
  %399 = vmatpush.bf16.msra.mxu0 %v308
  %400 = vmatpush.bf16.msra.mxu0 %v307
  %401 = vmatpush.bf16.msra.mxu0 %v306
  %402 = vmatpush.bf16.msra.mxu0 %v305
  %403 = vmatmul.bf16.gmra.mxu0 %v171
  %v404 = vpop.f32.mrf.mxu0
  %v405 = vadd.f32 %v376, %v404
  %v406 = vpop.f32.mrf.mxu0
  %v407 = vadd.f32 %v378, %v406
  %408 = vmatmul.bf16.gmra.mxu0 %v174
  %v409 = vpop.f32.mrf.mxu0
  %v410 = vadd.f32 %v381, %v409
  %v411 = vpop.f32.mrf.mxu0
  %v412 = vadd.f32 %v383, %v411
  %413 = vmatmul.bf16.gmra.mxu0 %v177
  %v414 = vpop.f32.mrf.mxu0
  %v415 = vadd.f32 %v386, %v414
  %v416 = vpop.f32.mrf.mxu0
  %v417 = vadd.f32 %v388, %v416
  %418 = vmatmul.bf16.gmra.mxu0 %v180
  %v419 = vpop.f32.mrf.mxu0
  %v420 = vadd.f32 %v391, %v419
  %v421 = vpop.f32.mrf.mxu0
  %v422 = vadd.f32 %v393, %v421
  %423 = vdwg.mxu0
  %vm424 = vcmp.ge.f32.partialorder %v405, 0.0
  %vm425 = vcmp.ge.f32.partialorder %v407, 0.0
  %vm426 = vcmp.ge.f32.partialorder %v410, 0.0
  %vm427 = vcmp.ge.f32.partialorder %v412, 0.0
  %v428 = vmul.f32 %v405, 0.2
  %v429 = vmul.f32 %v407, 0.2
  %v430 = vmul.f32 %v410, 0.2
  %v431 = vmul.f32 %v412, 0.2
  %v432 = vsel %vm424, %v405, %v428
  %v433 = vsel %vm425, %v407, %v429
  %v434 = vsel %vm426, %v410, %v430
  %v435 = vsel %vm427, %v412, %v431
  %v436 = vmul.f32 %v415, 0.5
  %v437 = vmul.f32 %v417, 0.5
  %v438 = vmul.f32 %v420, 0.5
  %v439 = vmul.f32 %v422, 0.5
  %v440 = vtanh.pop %v436
  %v441 = vtanh.pop %v437
  %v442 = vtanh.pop %v438
  %v443 = vtanh.pop %v439
  %v444 = vadd.f32 %v440, 1.0
  %v445 = vadd.f32 %v441, 1.0
  %v446 = vadd.f32 %v442, 1.0
  %v447 = vadd.f32 %v443, 1.0
  %v448 = vmul.f32 %v444, 0.5
  %v449 = vmul.f32 %v445, 0.5
  %v450 = vmul.f32 %v446, 0.5
  %v451 = vmul.f32 %v447, 0.5
  %v452 = vmul.f32 %v432, %v448
  %v453 = vmul.f32 %v433, %v449
  %v454 = vmul.f32 %v434, %v450
  %v455 = vmul.f32 %v435, %v451
  %v456 = vpack.c.bf16 %v452, %v452
  %v457 = vpack.c.bf16 %v453, %v453
  %v458 = vpack.c.bf16 %v454, %v454
  %v459 = vpack.c.bf16 %v455, %v455
  %460 = vst [vmem:[%s3] sm:$0xf] %v456
  %461 = vst [vmem:[%s3 + $0x4] sm:$0xf] %v457
  %462 = vst [vmem:[%s3 + $0x8] sm:$0xf] %v458
  %463 = vst [vmem:[%s3 + $0xc] sm:$0xf] %v459
  %464 = vadd.xlane.f32.xlu0 %v452
  %v465 = vpop.xlane.xlu0 %464
  %466 = vadd.xlane.f32.xlu0 %v453
  %v467 = vpop.xlane.xlu0 %466
  %468 = vadd.xlane.f32.xlu0 %v454
  %v469 = vpop.xlane.xlu0 %468
  %470 = vadd.xlane.f32.xlu0 %v455
  %v471 = vpop.xlane.xlu0 %470
  %vm472 = vcmask 7168
  %473 = vst.msk [vmem:[%s4] sm:$0xff] %vm472, %v465
  %474 = vst.msk [vmem:[%s4 + $0x8] sm:$0xff] %vm472, %v467
  %475 = vst.msk [vmem:[%s4 + $0x10] sm:$0xff] %vm472, %v469
  %476 = vst.msk [vmem:[%s4 + $0x18] sm:$0xff] %vm472, %v471
  %v477 = vmul.f32 %v452, %v452
  %v478 = vmul.f32 %v453, %v453
  %v479 = vmul.f32 %v454, %v454
  %v480 = vmul.f32 %v455, %v455
  %481 = vadd.xlane.f32.xlu0 %v477
  %v482 = vpop.xlane.xlu0 %481
  %483 = vadd.xlane.f32.xlu0 %v478
  %v484 = vpop.xlane.xlu0 %483
  %485 = vadd.xlane.f32.xlu0 %v479
  %v486 = vpop.xlane.xlu0 %485
  %487 = vadd.xlane.f32.xlu0 %v480
  %v488 = vpop.xlane.xlu0 %487
  %489 = vst.msk [vmem:[%s5] sm:$0xff] %vm472, %v482
  %490 = vst.msk [vmem:[%s5 + $0x8] sm:$0xff] %vm472, %v484
  %491 = vst.msk [vmem:[%s5 + $0x10] sm:$0xff] %vm472, %v486
  %492 = vst.msk [vmem:[%s5 + $0x18] sm:$0xff] %vm472, %v488
  // Predicated region
  $region14: #{_lambda_.21} parent=0 // pred_check
    _
  $region15: #{_lambda_.21} parent=0 // pred_check_branch
    %494 = sbr.rel (0) target = $region17
  $region16: #{_lambda_.21} parent=0 // pred_region
    _
  $region17: #{_lambda_.21} parent=0 // pred_fallthru
    _
  // Predicated region
  $region18: #{_lambda_.21} parent=0 // pred_check
    _
  $region19: #{_lambda_.21} parent=0 // pred_check_branch
    %496 = sbr.rel (0) target = $region21
  $region20: #{_lambda_.21} parent=0 // pred_region
    _
  $region21: #{_lambda_.21} parent=0 // pred_fallthru
    _
  // Predicated region
  $region22: #{_lambda_.21} parent=0 // pred_check
    _
  $region23: #{_lambda_.21} parent=0 // pred_check_branch
    %498 = sbr.rel (0) target = $region25
  $region24: #{_lambda_.21} parent=0 // pred_region
    _
  $region25: #{_lambda_.21} parent=0 // pred_fallthru
    _
  // Predicated region
  $region26: #{_lambda_.21} parent=0 // pred_check
    _
  $region27: #{_lambda_.21} parent=0 // pred_check_branch
    %500 = sbr.rel (0) target = $region29
  $region28: #{_lambda_.21} parent=0 // pred_region
    _
  $region29: #{_lambda_.21} parent=0 // pred_fallthru
    _
  // Predicated region
  $region30: #{_lambda_.21} parent=0 // pred_check
    _
  $region31: #{_lambda_.21} parent=0 // pred_check_branch
    %502 = sbr.rel (0) target = $region33
  $region32: #{_lambda_.21} parent=0 // pred_region
    _
  $region33: #{_lambda_.21} parent=0 // pred_fallthru
    _
  // Predicated region
  $region34: #{_lambda_.21} parent=0 // pred_check
    _
  $region35: #{_lambda_.21} parent=0 // pred_check_branch
    %504 = sbr.rel (0) target = $region37
  $region36: #{_lambda_.21} parent=0 // pred_region
    _
  $region37: #{_lambda_.21} parent=0 // pred_fallthru
    _

// kernel: _lambda_.29
$region0: #{_lambda_.29}
  #allocation0 [shape = 'u32[]', space=smem, size = 0x4, offset = 0x4, fixed_abs, tag = 'smem constant byte address 0x4 - core index']
  #allocation1 [shape = 'u32[72,128]{1,0:T(1,128)}', space=vmem, size = 0x9000, scoped, tag = 'internal scratch']
  %s0 = inlined_call_operand.vmem [shape: bf16[384,512], index: 0, kind: input, shape index: {}]
  %s1 = inlined_call_operand.vmem [shape: bf16[32,384], index: 1, kind: input, shape index: {}]
  %s2 = inlined_call_operand.vmem [shape: f32[32,1], index: 2, kind: input, shape index: {}]
  %s3 = inlined_call_operand.vmem [shape: bf16[16,512], index: 3, kind: output, shape index: {0}]
  %s4 = inlined_call_operand.vmem [shape: f32[1,16,1], index: 4, kind: output, shape index: {1}]
  %s5 = inlined_call_operand.vmem [shape: f32[1,16,1], index: 5, kind: output, shape index: {2}]
  %6 = xla_tuple %s3, %s4, %s5
  %s7 = sld [smem:[#allocation0]]
  $region38: #{_lambda_.29} parent=0
    _
  %s9 = ssub.s32 1, %s7
  %s10 = scalar_select 0, %s9, %s7
  // Predicated region
  $region2: #{_lambda_.29} parent=0 // pred_check
    _
  $region3: #{_lambda_.29} parent=0 // pred_check_branch
    %12 = sbr.rel (0) target = $region5
  $region4: #{_lambda_.29} parent=0 // pred_region
    _
  $region5: #{_lambda_.29} parent=0 // pred_fallthru
    _
  // Predicated region
  $region6: #{_lambda_.29} parent=0 // pred_check
    _
  $region7: #{_lambda_.29} parent=0 // pred_check_branch
    %14 = sbr.rel (0) target = $region9
  $region8: #{_lambda_.29} parent=0 // pred_region
    _
  $region9: #{_lambda_.29} parent=0 // pred_fallthru
    _
  // Predicated region
  $region10: #{_lambda_.29} parent=0 // pred_check
    _
  $region11: #{_lambda_.29} parent=0 // pred_check_branch
    %16 = sbr.rel (0) target = $region13
  $region12: #{_lambda_.29} parent=0 // pred_region
    _
  $region13: #{_lambda_.29} parent=0 // pred_fallthru
    _
  %v17 = vld [vmem:[%s1] sm:$0xff]
  %v18 = vld [vmem:[%s1 + $0x8] sm:$0xf]
  %v19 = vld [vmem:[%s1 + $0xc] sm:$0xff]
  %v20 = vld [vmem:[%s1 + $0x14] sm:$0xf]
  %v21 = vld [vmem:[%s1 + $0x18] sm:$0xff]
  %v22 = vld [vmem:[%s1 + $0x20] sm:$0xf]
  %v23 = vld [vmem:[%s1 + $0x24] sm:$0xff]
  %v24 = vld [vmem:[%s1 + $0x2c] sm:$0xf]
  %v25 = vld [vmem:[%s0] sm:$0xff]
  %v26 = vld [vmem:[%s0 + $0x8] sm:$0xff]
  %v27 = vld [vmem:[%s0 + $0x10] sm:$0xff]
  %v28 = vld [vmem:[%s0 + $0x18] sm:$0xff]
  %v29 = vld [vmem:[%s0 + $0x20] sm:$0xff]
  %v30 = vld [vmem:[%s0 + $0x28] sm:$0xff]
  %v31 = vld [vmem:[%s0 + $0x30] sm:$0xff]
  %v32 = vld [vmem:[%s0 + $0x38] sm:$0xff]
  %v33 = vld [vmem:[%s0 + $0x40] sm:$0xff]
  %v34 = vld [vmem:[%s0 + $0x48] sm:$0xff]
  %v35 = vld [vmem:[%s0 + $0x50] sm:$0xff]
  %v36 = vld [vmem:[%s0 + $0x58] sm:$0xff]
  %v37 = vld [vmem:[%s0 + $0x60] sm:$0xff]
  %v38 = vld [vmem:[%s0 + $0x68] sm:$0xff]
  %v39 = vld [vmem:[%s0 + $0x70] sm:$0xff]
  %v40 = vld [vmem:[%s0 + $0x78] sm:$0xff]
  %v41 = vld [vmem:[%s0 + $0x80] sm:$0xff]
  %v42 = vld [vmem:[%s0 + $0x88] sm:$0xff]
  %v43 = vld [vmem:[%s0 + $0x90] sm:$0xff]
  %v44 = vld [vmem:[%s0 + $0x98] sm:$0xff]
  %v45 = vld [vmem:[%s0 + $0xa0] sm:$0xff]
  %v46 = vld [vmem:[%s0 + $0xa8] sm:$0xff]
  %v47 = vld [vmem:[%s0 + $0xb0] sm:$0xff]
  %v48 = vld [vmem:[%s0 + $0xb8] sm:$0xff]
  %v49 = vld [vmem:[%s0 + $0xc0] sm:$0xff]
  %v50 = vld [vmem:[%s0 + $0xc8] sm:$0xff]
  %v51 = vld [vmem:[%s0 + $0xd0] sm:$0xff]
  %v52 = vld [vmem:[%s0 + $0xd8] sm:$0xff]
  %v53 = vld [vmem:[%s0 + $0xe0] sm:$0xff]
  %v54 = vld [vmem:[%s0 + $0xe8] sm:$0xff]
  %v55 = vld [vmem:[%s0 + $0xf0] sm:$0xff]
  %v56 = vld [vmem:[%s0 + $0xf8] sm:$0xff]
  %v57 = vld [vmem:[%s0 + $0x100] sm:$0xff]
  %v58 = vld [vmem:[%s0 + $0x108] sm:$0xff]
  %v59 = vld [vmem:[%s0 + $0x110] sm:$0xff]
  %v60 = vld [vmem:[%s0 + $0x118] sm:$0xff]
  %v61 = vld [vmem:[%s0 + $0x120] sm:$0xff]
  %v62 = vld [vmem:[%s0 + $0x128] sm:$0xff]
  %v63 = vld [vmem:[%s0 + $0x130] sm:$0xff]
  %v64 = vld [vmem:[%s0 + $0x138] sm:$0xff]
  %v65 = vld [vmem:[%s0 + $0x140] sm:$0xff]
  %v66 = vld [vmem:[%s0 + $0x148] sm:$0xff]
  %v67 = vld [vmem:[%s0 + $0x150] sm:$0xff]
  %v68 = vld [vmem:[%s0 + $0x158] sm:$0xff]
  %v69 = vld [vmem:[%s0 + $0x160] sm:$0xff]
  %v70 = vld [vmem:[%s0 + $0x168] sm:$0xff]
  %v71 = vld [vmem:[%s0 + $0x170] sm:$0xff]
  %v72 = vld [vmem:[%s0 + $0x178] sm:$0xff]
  %v73 = vld [vmem:[%s0 + $0x180] sm:$0xff]
  %v74 = vld [vmem:[%s0 + $0x188] sm:$0xff]
  %v75 = vld [vmem:[%s0 + $0x190] sm:$0xff]
  %v76 = vld [vmem:[%s0 + $0x198] sm:$0xff]
  %v77 = vld [vmem:[%s0 + $0x1a0] sm:$0xff]
  %v78 = vld [vmem:[%s0 + $0x1a8] sm:$0xff]
  %v79 = vld [vmem:[%s0 + $0x1b0] sm:$0xff]
  %v80 = vld [vmem:[%s0 + $0x1b8] sm:$0xff]
  %v81 = vld [vmem:[%s0 + $0x1c0] sm:$0xff]
  %v82 = vld [vmem:[%s0 + $0x1c8] sm:$0xff]
  %v83 = vld [vmem:[%s0 + $0x1d0] sm:$0xff]
  %v84 = vld [vmem:[%s0 + $0x1d8] sm:$0xff]
  %v85 = vld [vmem:[%s0 + $0x1e0] sm:$0xff]
  %v86 = vld [vmem:[%s0 + $0x1e8] sm:$0xff]
  %v87 = vld [vmem:[%s0 + $0x1f0] sm:$0xff]
  %v88 = vld [vmem:[%s0 + $0x1f8] sm:$0xff]
  %v89 = vld [vmem:[%s0 + $0x200] sm:$0xff]
  %v90 = vld [vmem:[%s0 + $0x208] sm:$0xff]
  %v91 = vld [vmem:[%s0 + $0x210] sm:$0xff]
  %v92 = vld [vmem:[%s0 + $0x218] sm:$0xff]
  %v93 = vld [vmem:[%s0 + $0x220] sm:$0xff]
  %v94 = vld [vmem:[%s0 + $0x228] sm:$0xff]
  %v95 = vld [vmem:[%s0 + $0x230] sm:$0xff]
  %v96 = vld [vmem:[%s0 + $0x238] sm:$0xff]
  %v97 = vld [vmem:[%s0 + $0x240] sm:$0xff]
  %v98 = vld [vmem:[%s0 + $0x248] sm:$0xff]
  %v99 = vld [vmem:[%s0 + $0x250] sm:$0xff]
  %v100 = vld [vmem:[%s0 + $0x258] sm:$0xff]
  %v101 = vld [vmem:[%s0 + $0x260] sm:$0xff]
  %v102 = vld [vmem:[%s0 + $0x268] sm:$0xff]
  %v103 = vld [vmem:[%s0 + $0x270] sm:$0xff]
  %v104 = vld [vmem:[%s0 + $0x278] sm:$0xff]
  %v105 = vld [vmem:[%s0 + $0x280] sm:$0xff]
  %v106 = vld [vmem:[%s0 + $0x288] sm:$0xff]
  %v107 = vld [vmem:[%s0 + $0x290] sm:$0xff]
  %v108 = vld [vmem:[%s0 + $0x298] sm:$0xff]
  %v109 = vld [vmem:[%s0 + $0x2a0] sm:$0xff]
  %v110 = vld [vmem:[%s0 + $0x2a8] sm:$0xff]
  %v111 = vld [vmem:[%s0 + $0x2b0] sm:$0xff]
  %v112 = vld [vmem:[%s0 + $0x2b8] sm:$0xff]
  %v113 = vld [vmem:[%s0 + $0x2c0] sm:$0xff]
  %v114 = vld [vmem:[%s0 + $0x2c8] sm:$0xff]
  %v115 = vld [vmem:[%s0 + $0x2d0] sm:$0xff]
  %v116 = vld [vmem:[%s0 + $0x2d8] sm:$0xff]
  %v117 = vld [vmem:[%s0 + $0x2e0] sm:$0xff]
  %v118 = vld [vmem:[%s0 + $0x2e8] sm:$0xff]
  %v119 = vld [vmem:[%s0 + $0x2f0] sm:$0xff]
  %v120 = vld [vmem:[%s0 + $0x2f8] sm:$0xff]
  %v121 = vld [vmem:[%s2] sm:$0xff]
  %v122 = vld [vmem:[%s2 + $0x8] sm:$0xff]
  %v123 = vld [vmem:[%s2 + $0x10] sm:$0xff]
  %v124 = vld [vmem:[%s2 + $0x18] sm:$0xff]
  %126 = vset.pattern.permute.xlu0 0
  %127 = vperm.xlu0 %126, %v121
  %v128 = vpop.permute.xlu0 %127
  %131 = vset.pattern.permute.xlu0 0
  %132 = vperm.xlu0 %131, %v122
  %v133 = vpop.permute.xlu0 %132
  %136 = vset.pattern.permute.xlu0 0
  %137 = vperm.xlu0 %136, %v123
  %v138 = vpop.permute.xlu0 %137
  %141 = vset.pattern.permute.xlu0 0
  %142 = vperm.xlu0 %141, %v124
  %v143 = vpop.permute.xlu0 %142
  %v153 = vunpack.c.l.b16 %v17
  %v154 = vunpack.c.h.b16 %v17
  %v155 = vunpack.c.l.b16 %v18
  %v156 = vunpack.c.l.b16 %v19
  %v157 = vunpack.c.h.b16 %v19
  %v158 = vunpack.c.l.b16 %v20
  %v159 = vunpack.c.l.b16 %v21
  %v160 = vunpack.c.h.b16 %v21
  %v161 = vunpack.c.l.b16 %v22
  %v162 = vunpack.c.l.b16 %v23
  %v163 = vunpack.c.h.b16 %v23
  %v164 = vunpack.c.l.b16 %v24
  %v165 = vpack.c.b16 %v156, %v153
  %v166 = vpack.c.b16 %v157, %v154
  %v167 = vpack.c.b16 %v158, %v155
  %v168 = vpack.c.b16 %v162, %v159
  %v169 = vpack.c.b16 %v163, %v160
  %v170 = vpack.c.b16 %v164, %v161
  %v273 = vunpack.c.l.b16 %v25
  %v274 = vunpack.c.h.b16 %v25
  %v275 = vunpack.c.l.b16 %v26
  %v276 = vunpack.c.h.b16 %v26
  %v277 = vunpack.c.l.b16 %v27
  %v278 = vunpack.c.h.b16 %v27
  %v279 = vunpack.c.l.b16 %v28
  %v280 = vunpack.c.h.b16 %v28
  %v281 = vunpack.c.l.b16 %v29
  %v282 = vunpack.c.h.b16 %v29
  %v283 = vunpack.c.l.b16 %v30
  %v284 = vunpack.c.h.b16 %v30
  %v285 = vunpack.c.l.b16 %v31
  %v286 = vunpack.c.h.b16 %v31
  %v287 = vunpack.c.l.b16 %v32
  %v288 = vunpack.c.h.b16 %v32
  %v289 = vunpack.c.l.b16 %v33
  %v290 = vunpack.c.h.b16 %v33
  %v291 = vunpack.c.l.b16 %v34
  %v292 = vunpack.c.h.b16 %v34
  %v293 = vunpack.c.l.b16 %v35
  %v294 = vunpack.c.h.b16 %v35
  %v295 = vunpack.c.l.b16 %v36
  %v296 = vunpack.c.h.b16 %v36
  %v297 = vunpack.c.l.b16 %v37
  %v298 = vunpack.c.h.b16 %v37
  %v299 = vunpack.c.l.b16 %v38
  %v300 = vunpack.c.h.b16 %v38
  %v301 = vunpack.c.l.b16 %v39
  %v302 = vunpack.c.h.b16 %v39
  %v303 = vunpack.c.l.b16 %v40
  %v304 = vunpack.c.h.b16 %v40
  %v305 = vunpack.c.l.b16 %v41
  %v306 = vunpack.c.h.b16 %v41
  %v307 = vunpack.c.l.b16 %v42
  %v308 = vunpack.c.h.b16 %v42
  %v309 = vunpack.c.l.b16 %v43
  %v310 = vunpack.c.h.b16 %v43
  %v311 = vunpack.c.l.b16 %v44
  %v312 = vunpack.c.h.b16 %v44
  %v313 = vunpack.c.l.b16 %v45
  %v314 = vunpack.c.h.b16 %v45
  %v315 = vunpack.c.l.b16 %v46
  %v316 = vunpack.c.h.b16 %v46
  %v317 = vunpack.c.l.b16 %v47
  %v318 = vunpack.c.h.b16 %v47
  %v319 = vunpack.c.l.b16 %v48
  %v320 = vunpack.c.h.b16 %v48
  %v321 = vunpack.c.l.b16 %v49
  %v322 = vunpack.c.h.b16 %v49
  %v323 = vunpack.c.l.b16 %v50
  %v324 = vunpack.c.h.b16 %v50
  %v325 = vunpack.c.l.b16 %v51
  %v326 = vunpack.c.h.b16 %v51
  %v327 = vunpack.c.l.b16 %v52
  %v328 = vunpack.c.h.b16 %v52
  %v329 = vunpack.c.l.b16 %v53
  %v330 = vunpack.c.h.b16 %v53
  %v331 = vunpack.c.l.b16 %v54
  %v332 = vunpack.c.h.b16 %v54
  %v333 = vunpack.c.l.b16 %v55
  %v334 = vunpack.c.h.b16 %v55
  %v335 = vunpack.c.l.b16 %v56
  %v336 = vunpack.c.h.b16 %v56
  %v337 = vunpack.c.l.b16 %v57
  %v338 = vunpack.c.h.b16 %v57
  %v339 = vunpack.c.l.b16 %v58
  %v340 = vunpack.c.h.b16 %v58
  %v341 = vunpack.c.l.b16 %v59
  %v342 = vunpack.c.h.b16 %v59
  %v343 = vunpack.c.l.b16 %v60
  %v344 = vunpack.c.h.b16 %v60
  %v345 = vunpack.c.l.b16 %v61
  %v346 = vunpack.c.h.b16 %v61
  %v347 = vunpack.c.l.b16 %v62
  %v348 = vunpack.c.h.b16 %v62
  %v349 = vunpack.c.l.b16 %v63
  %v350 = vunpack.c.h.b16 %v63
  %v351 = vunpack.c.l.b16 %v64
  %v352 = vunpack.c.h.b16 %v64
  %v353 = vunpack.c.l.b16 %v65
  %v354 = vunpack.c.h.b16 %v65
  %v355 = vunpack.c.l.b16 %v66
  %v356 = vunpack.c.h.b16 %v66
  %v357 = vunpack.c.l.b16 %v67
  %v358 = vunpack.c.h.b16 %v67
  %v359 = vunpack.c.l.b16 %v68
  %v360 = vunpack.c.h.b16 %v68
  %v361 = vunpack.c.l.b16 %v69
  %v362 = vunpack.c.h.b16 %v69
  %v363 = vunpack.c.l.b16 %v70
  %v364 = vunpack.c.h.b16 %v70
  %v365 = vunpack.c.l.b16 %v71
  %v366 = vunpack.c.h.b16 %v71
  %v367 = vunpack.c.l.b16 %v72
  %v368 = vunpack.c.h.b16 %v72
  %v369 = vunpack.c.l.b16 %v73
  %v370 = vunpack.c.h.b16 %v73
  %v371 = vunpack.c.l.b16 %v74
  %v372 = vunpack.c.h.b16 %v74
  %v373 = vunpack.c.l.b16 %v75
  %v374 = vunpack.c.h.b16 %v75
  %v375 = vunpack.c.l.b16 %v76
  %v376 = vunpack.c.h.b16 %v76
  %v377 = vunpack.c.l.b16 %v77
  %v378 = vunpack.c.h.b16 %v77
  %v379 = vunpack.c.l.b16 %v78
  %v380 = vunpack.c.h.b16 %v78
  %v381 = vunpack.c.l.b16 %v79
  %v382 = vunpack.c.h.b16 %v79
  %v383 = vunpack.c.l.b16 %v80
  %v384 = vunpack.c.h.b16 %v80
  %v385 = vunpack.c.l.b16 %v81
  %v386 = vunpack.c.h.b16 %v81
  %v387 = vunpack.c.l.b16 %v82
  %v388 = vunpack.c.h.b16 %v82
  %v389 = vunpack.c.l.b16 %v83
  %v390 = vunpack.c.h.b16 %v83
  %v391 = vunpack.c.l.b16 %v84
  %v392 = vunpack.c.h.b16 %v84
  %v393 = vunpack.c.l.b16 %v85
  %v394 = vunpack.c.h.b16 %v85
  %v395 = vunpack.c.l.b16 %v86
  %v396 = vunpack.c.h.b16 %v86
  %v397 = vunpack.c.l.b16 %v87
  %v398 = vunpack.c.h.b16 %v87
  %v399 = vunpack.c.l.b16 %v88
  %v400 = vunpack.c.h.b16 %v88
  %v401 = vunpack.c.l.b16 %v89
  %v402 = vunpack.c.h.b16 %v89
  %v403 = vunpack.c.l.b16 %v90
  %v404 = vunpack.c.h.b16 %v90
  %v405 = vunpack.c.l.b16 %v91
  %v406 = vunpack.c.h.b16 %v91
  %v407 = vunpack.c.l.b16 %v92
  %v408 = vunpack.c.h.b16 %v92
  %v409 = vunpack.c.l.b16 %v93
  %v410 = vunpack.c.h.b16 %v93
  %v411 = vunpack.c.l.b16 %v94
  %v412 = vunpack.c.h.b16 %v94
  %v413 = vunpack.c.l.b16 %v95
  %v414 = vunpack.c.h.b16 %v95
  %v415 = vunpack.c.l.b16 %v96
  %v416 = vunpack.c.h.b16 %v96
  %v417 = vunpack.c.l.b16 %v97
  %v418 = vunpack.c.h.b16 %v97
  %v419 = vunpack.c.l.b16 %v98
  %v420 = vunpack.c.h.b16 %v98
  %v421 = vunpack.c.l.b16 %v99
  %v422 = vunpack.c.h.b16 %v99
  %v423 = vunpack.c.l.b16 %v100
  %v424 = vunpack.c.h.b16 %v100
  %v425 = vunpack.c.l.b16 %v101
  %v426 = vunpack.c.h.b16 %v101
  %v427 = vunpack.c.l.b16 %v102
  %v428 = vunpack.c.h.b16 %v102
  %v429 = vunpack.c.l.b16 %v103
  %v430 = vunpack.c.h.b16 %v103
  %v431 = vunpack.c.l.b16 %v104
  %v432 = vunpack.c.h.b16 %v104
  %v433 = vunpack.c.l.b16 %v105
  %v434 = vunpack.c.h.b16 %v105
  %v435 = vunpack.c.l.b16 %v106
  %v436 = vunpack.c.h.b16 %v106
  %v437 = vunpack.c.l.b16 %v107
  %v438 = vunpack.c.h.b16 %v107
  %v439 = vunpack.c.l.b16 %v108
  %v440 = vunpack.c.h.b16 %v108
  %v441 = vunpack.c.l.b16 %v109
  %v442 = vunpack.c.h.b16 %v109
  %v443 = vunpack.c.l.b16 %v110
  %v444 = vunpack.c.h.b16 %v110
  %v445 = vunpack.c.l.b16 %v111
  %v446 = vunpack.c.h.b16 %v111
  %v447 = vunpack.c.l.b16 %v112
  %v448 = vunpack.c.h.b16 %v112
  %v449 = vunpack.c.l.b16 %v113
  %v450 = vunpack.c.h.b16 %v113
  %v451 = vunpack.c.l.b16 %v114
  %v452 = vunpack.c.h.b16 %v114
  %v453 = vunpack.c.l.b16 %v115
  %v454 = vunpack.c.h.b16 %v115
  %v455 = vunpack.c.l.b16 %v116
  %v456 = vunpack.c.h.b16 %v116
  %v457 = vunpack.c.l.b16 %v117
  %v458 = vunpack.c.h.b16 %v117
  %v459 = vunpack.c.l.b16 %v118
  %v460 = vunpack.c.h.b16 %v118
  %v461 = vunpack.c.l.b16 %v119
  %v462 = vunpack.c.h.b16 %v119
  %v463 = vunpack.c.l.b16 %v120
  %v464 = vunpack.c.h.b16 %v120
  %v465 = vpack.c.b16 %v277, %v273
  %v466 = vpack.c.b16 %v278, %v274
  %v467 = vpack.c.b16 %v279, %v275
  %v468 = vpack.c.b16 %v280, %v276
  %v469 = vpack.c.b16 %v285, %v281
  %v470 = vpack.c.b16 %v286, %v282
  %v471 = vpack.c.b16 %v287, %v283
  %v472 = vpack.c.b16 %v288, %v284
  %v473 = vpack.c.b16 %v293, %v289
  %v474 = vpack.c.b16 %v294, %v290
  %v475 = vpack.c.b16 %v295, %v291
  %v476 = vpack.c.b16 %v296, %v292
  %v477 = vpack.c.b16 %v301, %v297
  %v478 = vpack.c.b16 %v302, %v298
  %v479 = vpack.c.b16 %v303, %v299
  %v480 = vpack.c.b16 %v304, %v300
  %v481 = vpack.c.b16 %v309, %v305
  %v482 = vpack.c.b16 %v310, %v306
  %v483 = vpack.c.b16 %v311, %v307
  %v484 = vpack.c.b16 %v312, %v308
  %v485 = vpack.c.b16 %v317, %v313
  %v486 = vpack.c.b16 %v318, %v314
  %v487 = vpack.c.b16 %v319, %v315
  %v488 = vpack.c.b16 %v320, %v316
  %v489 = vpack.c.b16 %v325, %v321
  %v490 = vpack.c.b16 %v326, %v322
  %v491 = vpack.c.b16 %v327, %v323
  %v492 = vpack.c.b16 %v328, %v324
  %v493 = vpack.c.b16 %v333, %v329
  %v494 = vpack.c.b16 %v334, %v330
  %v495 = vpack.c.b16 %v335, %v331
  %v496 = vpack.c.b16 %v336, %v332
  %v497 = vpack.c.b16 %v341, %v337
  %v498 = vpack.c.b16 %v342, %v338
  %v499 = vpack.c.b16 %v343, %v339
  %v500 = vpack.c.b16 %v344, %v340
  %v501 = vpack.c.b16 %v349, %v345
  %v502 = vpack.c.b16 %v350, %v346
  %v503 = vpack.c.b16 %v351, %v347
  %v504 = vpack.c.b16 %v352, %v348
  %v505 = vpack.c.b16 %v357, %v353
  %v506 = vpack.c.b16 %v358, %v354
  %v507 = vpack.c.b16 %v359, %v355
  %v508 = vpack.c.b16 %v360, %v356
  %v509 = vpack.c.b16 %v365, %v361
  %v510 = vpack.c.b16 %v366, %v362
  %v511 = vpack.c.b16 %v367, %v363
  %v512 = vpack.c.b16 %v368, %v364
  %v513 = vpack.c.b16 %v373, %v369
  %v514 = vpack.c.b16 %v374, %v370
  %v515 = vpack.c.b16 %v375, %v371
  %v516 = vpack.c.b16 %v376, %v372
  %v517 = vpack.c.b16 %v381, %v377
  %v518 = vpack.c.b16 %v382, %v378
  %v519 = vpack.c.b16 %v383, %v379
  %v520 = vpack.c.b16 %v384, %v380
  %v521 = vpack.c.b16 %v389, %v385
  %v522 = vpack.c.b16 %v390, %v386
  %v523 = vpack.c.b16 %v391, %v387
  %v524 = vpack.c.b16 %v392, %v388
  %v525 = vpack.c.b16 %v397, %v393
  %v526 = vpack.c.b16 %v398, %v394
  %v527 = vpack.c.b16 %v399, %v395
  %v528 = vpack.c.b16 %v400, %v396
  %v529 = vpack.c.b16 %v405, %v401
  %v530 = vpack.c.b16 %v406, %v402
  %v531 = vpack.c.b16 %v407, %v403
  %v532 = vpack.c.b16 %v408, %v404
  %v533 = vpack.c.b16 %v413, %v409
  %v534 = vpack.c.b16 %v414, %v410
  %v535 = vpack.c.b16 %v415, %v411
  %v536 = vpack.c.b16 %v416, %v412
  %v537 = vpack.c.b16 %v421, %v417
  %v538 = vpack.c.b16 %v422, %v418
  %v539 = vpack.c.b16 %v423, %v419
  %v540 = vpack.c.b16 %v424, %v420
  %v541 = vpack.c.b16 %v429, %v425
  %v542 = vpack.c.b16 %v430, %v426
  %v543 = vpack.c.b16 %v431, %v427
  %v544 = vpack.c.b16 %v432, %v428
  %v545 = vpack.c.b16 %v437, %v433
  %v546 = vpack.c.b16 %v438, %v434
  %v547 = vpack.c.b16 %v439, %v435
  %v548 = vpack.c.b16 %v440, %v436
  %v549 = vpack.c.b16 %v445, %v441
  %v550 = vpack.c.b16 %v446, %v442
  %v551 = vpack.c.b16 %v447, %v443
  %v552 = vpack.c.b16 %v448, %v444
  %v553 = vpack.c.b16 %v453, %v449
  %v554 = vpack.c.b16 %v454, %v450
  %v555 = vpack.c.b16 %v455, %v451
  %v556 = vpack.c.b16 %v456, %v452
  %v557 = vpack.c.b16 %v461, %v457
  %v558 = vpack.c.b16 %v462, %v458
  %v559 = vpack.c.b16 %v463, %v459
  %v560 = vpack.c.b16 %v464, %v460
  %657 = vmatpush.bf16.msra.mxu0 %v493
  %658 = vmatpush.bf16.msra.mxu0 %v489
  %659 = vmatpush.bf16.msra.mxu0 %v485
  %660 = vmatpush.bf16.msra.mxu0 %v481
  %661 = vmatpush.bf16.msra.mxu0 %v477
  %662 = vmatpush.bf16.msra.mxu0 %v473
  %663 = vmatpush.bf16.msra.mxu0 %v469
  %664 = vmatpush.bf16.msra.mxu0 %v465
  %665 = vmatmul.bf16.gmra.mxu0 %v165
  %v666 = vpop.f32.mrf.mxu0
  %v667 = vadd.f32 %v128, %v666
  %v668 = vpop.f32.mrf.mxu0
  %v669 = vadd.f32 %v133, %v668
  %670 = vmatmul.bf16.gmra.mxu0 %v168
  %v671 = vpop.f32.mrf.mxu0
  %v672 = vadd.f32 %v138, %v671
  %v673 = vpop.f32.mrf.mxu0
  %v674 = vadd.f32 %v143, %v673
  %675 = vdwg.mxu0
  %676 = vmatpush.bf16.msra.mxu0 %v525
  %677 = vmatpush.bf16.msra.mxu0 %v521
  %678 = vmatpush.bf16.msra.mxu0 %v517
  %679 = vmatpush.bf16.msra.mxu0 %v513
  %680 = vmatpush.bf16.msra.mxu0 %v509
  %681 = vmatpush.bf16.msra.mxu0 %v505
  %682 = vmatpush.bf16.msra.mxu0 %v501
  %683 = vmatpush.bf16.msra.mxu0 %v497
  %684 = vmatmul.bf16.gmra.mxu0 %v166
  %v685 = vpop.f32.mrf.mxu0
  %v686 = vadd.f32 %v667, %v685
  %v687 = vpop.f32.mrf.mxu0
  %v688 = vadd.f32 %v669, %v687
  %689 = vmatmul.bf16.gmra.mxu0 %v169
  %v690 = vpop.f32.mrf.mxu0
  %v691 = vadd.f32 %v672, %v690
  %v692 = vpop.f32.mrf.mxu0
  %v693 = vadd.f32 %v674, %v692
  %694 = vdwg.mxu0
  %695 = vmatpush.bf16.msra.mxu0 %v557
  %696 = vmatpush.bf16.msra.mxu0 %v553
  %697 = vmatpush.bf16.msra.mxu0 %v549
  %698 = vmatpush.bf16.msra.mxu0 %v545
  %699 = vmatpush.bf16.msra.mxu0 %v541
  %700 = vmatpush.bf16.msra.mxu0 %v537
  %701 = vmatpush.bf16.msra.mxu0 %v533
  %702 = vmatpush.bf16.msra.mxu0 %v529
  %703 = vmatmul.bf16.gmra.mxu0 %v167
  %v704 = vpop.f32.mrf.mxu0
  %v705 = vadd.f32 %v686, %v704
  %v706 = vpop.f32.mrf.mxu0
  %v707 = vadd.f32 %v688, %v706
  %708 = vmatmul.bf16.gmra.mxu0 %v170
  %v709 = vpop.f32.mrf.mxu0
  %v710 = vadd.f32 %v691, %v709
  %v711 = vpop.f32.mrf.mxu0
  %v712 = vadd.f32 %v693, %v711
  %713 = vdwg.mxu0
  %714 = vmatpush.bf16.msra.mxu0 %v494
  %715 = vmatpush.bf16.msra.mxu0 %v490
  %716 = vmatpush.bf16.msra.mxu0 %v486
  %717 = vmatpush.bf16.msra.mxu0 %v482
  %718 = vmatpush.bf16.msra.mxu0 %v478
  %719 = vmatpush.bf16.msra.mxu0 %v474
  %720 = vmatpush.bf16.msra.mxu0 %v470
  %721 = vmatpush.bf16.msra.mxu0 %v466
  %722 = vmatmul.bf16.gmra.mxu0 %v165
  %v723 = vpop.f32.mrf.mxu0
  %v724 = vadd.f32 %v128, %v723
  %v725 = vpop.f32.mrf.mxu0
  %v726 = vadd.f32 %v133, %v725
  %727 = vmatmul.bf16.gmra.mxu0 %v168
  %v728 = vpop.f32.mrf.mxu0
  %v729 = vadd.f32 %v138, %v728
  %v730 = vpop.f32.mrf.mxu0
  %v731 = vadd.f32 %v143, %v730
  %732 = vdwg.mxu0
  %733 = vmatpush.bf16.msra.mxu0 %v526
  %734 = vmatpush.bf16.msra.mxu0 %v522
  %735 = vmatpush.bf16.msra.mxu0 %v518
  %736 = vmatpush.bf16.msra.mxu0 %v514
  %737 = vmatpush.bf16.msra.mxu0 %v510
  %738 = vmatpush.bf16.msra.mxu0 %v506
  %739 = vmatpush.bf16.msra.mxu0 %v502
  %740 = vmatpush.bf16.msra.mxu0 %v498
  %741 = vmatmul.bf16.gmra.mxu0 %v166
  %v742 = vpop.f32.mrf.mxu0
  %v743 = vadd.f32 %v724, %v742
  %v744 = vpop.f32.mrf.mxu0
  %v745 = vadd.f32 %v726, %v744
  %746 = vmatmul.bf16.gmra.mxu0 %v169
  %v747 = vpop.f32.mrf.mxu0
  %v748 = vadd.f32 %v729, %v747
  %v749 = vpop.f32.mrf.mxu0
  %v750 = vadd.f32 %v731, %v749
  %751 = vdwg.mxu0
  %752 = vmatpush.bf16.msra.mxu0 %v558
  %753 = vmatpush.bf16.msra.mxu0 %v554
  %754 = vmatpush.bf16.msra.mxu0 %v550
  %755 = vmatpush.bf16.msra.mxu0 %v546
  %756 = vmatpush.bf16.msra.mxu0 %v542
  %757 = vmatpush.bf16.msra.mxu0 %v538
  %758 = vmatpush.bf16.msra.mxu0 %v534
  %759 = vmatpush.bf16.msra.mxu0 %v530
  %760 = vmatmul.bf16.gmra.mxu0 %v167
  %v761 = vpop.f32.mrf.mxu0
  %v762 = vadd.f32 %v743, %v761
  %v763 = vpop.f32.mrf.mxu0
  %v764 = vadd.f32 %v745, %v763
  %765 = vmatmul.bf16.gmra.mxu0 %v170
  %v766 = vpop.f32.mrf.mxu0
  %v767 = vadd.f32 %v748, %v766
  %v768 = vpop.f32.mrf.mxu0
  %v769 = vadd.f32 %v750, %v768
  %770 = vdwg.mxu0
  %771 = vmatpush.bf16.msra.mxu0 %v495
  %772 = vmatpush.bf16.msra.mxu0 %v491
  %773 = vmatpush.bf16.msra.mxu0 %v487
  %774 = vmatpush.bf16.msra.mxu0 %v483
  %775 = vmatpush.bf16.msra.mxu0 %v479
  %776 = vmatpush.bf16.msra.mxu0 %v475
  %777 = vmatpush.bf16.msra.mxu0 %v471
  %778 = vmatpush.bf16.msra.mxu0 %v467
  %779 = vmatmul.bf16.gmra.mxu0 %v165
  %v780 = vpop.f32.mrf.mxu0
  %v781 = vadd.f32 %v128, %v780
  %v782 = vpop.f32.mrf.mxu0
  %v783 = vadd.f32 %v133, %v782
  %784 = vmatmul.bf16.gmra.mxu0 %v168
  %v785 = vpop.f32.mrf.mxu0
  %v786 = vadd.f32 %v138, %v785
  %v787 = vpop.f32.mrf.mxu0
  %v788 = vadd.f32 %v143, %v787
  %789 = vdwg.mxu0
  %790 = vmatpush.bf16.msra.mxu0 %v527
  %791 = vmatpush.bf16.msra.mxu0 %v523
  %792 = vmatpush.bf16.msra.mxu0 %v519
  %793 = vmatpush.bf16.msra.mxu0 %v515
  %794 = vmatpush.bf16.msra.mxu0 %v511
  %795 = vmatpush.bf16.msra.mxu0 %v507
  %796 = vmatpush.bf16.msra.mxu0 %v503
  %797 = vmatpush.bf16.msra.mxu0 %v499
  %798 = vmatmul.bf16.gmra.mxu0 %v166
  %v799 = vpop.f32.mrf.mxu0
  %v800 = vadd.f32 %v781, %v799
  %v801 = vpop.f32.mrf.mxu0
  %v802 = vadd.f32 %v783, %v801
  %803 = vmatmul.bf16.gmra.mxu0 %v169
  %v804 = vpop.f32.mrf.mxu0
  %v805 = vadd.f32 %v786, %v804
  %v806 = vpop.f32.mrf.mxu0
  %v807 = vadd.f32 %v788, %v806
  %808 = vdwg.mxu0
  %809 = vmatpush.bf16.msra.mxu0 %v559
  %810 = vmatpush.bf16.msra.mxu0 %v555
  %811 = vmatpush.bf16.msra.mxu0 %v551
  %812 = vmatpush.bf16.msra.mxu0 %v547
  %813 = vmatpush.bf16.msra.mxu0 %v543
  %814 = vmatpush.bf16.msra.mxu0 %v539
  %815 = vmatpush.bf16.msra.mxu0 %v535
  %816 = vmatpush.bf16.msra.mxu0 %v531
  %817 = vmatmul.bf16.gmra.mxu0 %v167
  %v818 = vpop.f32.mrf.mxu0
  %v819 = vadd.f32 %v800, %v818
  %v820 = vpop.f32.mrf.mxu0
  %v821 = vadd.f32 %v802, %v820
  %822 = vmatmul.bf16.gmra.mxu0 %v170
  %v823 = vpop.f32.mrf.mxu0
  %v824 = vadd.f32 %v805, %v823
  %v825 = vpop.f32.mrf.mxu0
  %v826 = vadd.f32 %v807, %v825
  %827 = vdwg.mxu0
  %828 = vmatpush.bf16.msra.mxu0 %v496
  %829 = vmatpush.bf16.msra.mxu0 %v492
  %830 = vmatpush.bf16.msra.mxu0 %v488
  %831 = vmatpush.bf16.msra.mxu0 %v484
  %832 = vmatpush.bf16.msra.mxu0 %v480
  %833 = vmatpush.bf16.msra.mxu0 %v476
  %834 = vmatpush.bf16.msra.mxu0 %v472
  %835 = vmatpush.bf16.msra.mxu0 %v468
  %836 = vmatmul.bf16.gmra.mxu0 %v165
  %v837 = vpop.f32.mrf.mxu0
  %v838 = vadd.f32 %v128, %v837
  %v839 = vpop.f32.mrf.mxu0
  %v840 = vadd.f32 %v133, %v839
  %841 = vmatmul.bf16.gmra.mxu0 %v168
  %v842 = vpop.f32.mrf.mxu0
  %v843 = vadd.f32 %v138, %v842
  %v844 = vpop.f32.mrf.mxu0
  %v845 = vadd.f32 %v143, %v844
  %846 = vdwg.mxu0
  %847 = vmatpush.bf16.msra.mxu0 %v528
  %848 = vmatpush.bf16.msra.mxu0 %v524
  %849 = vmatpush.bf16.msra.mxu0 %v520
  %850 = vmatpush.bf16.msra.mxu0 %v516
  %851 = vmatpush.bf16.msra.mxu0 %v512
  %852 = vmatpush.bf16.msra.mxu0 %v508
  %853 = vmatpush.bf16.msra.mxu0 %v504
  %854 = vmatpush.bf16.msra.mxu0 %v500
  %855 = vmatmul.bf16.gmra.mxu0 %v166
  %v856 = vpop.f32.mrf.mxu0
  %v857 = vadd.f32 %v838, %v856
  %v858 = vpop.f32.mrf.mxu0
  %v859 = vadd.f32 %v840, %v858
  %860 = vmatmul.bf16.gmra.mxu0 %v169
  %v861 = vpop.f32.mrf.mxu0
  %v862 = vadd.f32 %v843, %v861
  %v863 = vpop.f32.mrf.mxu0
  %v864 = vadd.f32 %v845, %v863
  %865 = vdwg.mxu0
  %866 = vmatpush.bf16.msra.mxu0 %v560
  %867 = vmatpush.bf16.msra.mxu0 %v556
  %868 = vmatpush.bf16.msra.mxu0 %v552
  %869 = vmatpush.bf16.msra.mxu0 %v548
  %870 = vmatpush.bf16.msra.mxu0 %v544
  %871 = vmatpush.bf16.msra.mxu0 %v540
  %872 = vmatpush.bf16.msra.mxu0 %v536
  %873 = vmatpush.bf16.msra.mxu0 %v532
  %874 = vmatmul.bf16.gmra.mxu0 %v167
  %v875 = vpop.f32.mrf.mxu0
  %v876 = vadd.f32 %v857, %v875
  %v877 = vpop.f32.mrf.mxu0
  %v878 = vadd.f32 %v859, %v877
  %879 = vmatmul.bf16.gmra.mxu0 %v170
  %v880 = vpop.f32.mrf.mxu0
  %v881 = vadd.f32 %v862, %v880
  %v882 = vpop.f32.mrf.mxu0
  %v883 = vadd.f32 %v864, %v882
  %884 = vdwg.mxu0
  %vm885 = vcmp.ge.f32.partialorder %v705, 0.0
  %vm886 = vcmp.ge.f32.partialorder %v762, 0.0
  %vm887 = vcmp.ge.f32.partialorder %v819, 0.0
  %vm888 = vcmp.ge.f32.partialorder %v876, 0.0
  %vm889 = vcmp.ge.f32.partialorder %v707, 0.0
  %vm890 = vcmp.ge.f32.partialorder %v764, 0.0
  %vm891 = vcmp.ge.f32.partialorder %v821, 0.0
  %vm892 = vcmp.ge.f32.partialorder %v878, 0.0
  %v893 = vmul.f32 %v705, 0.2
  %v894 = vmul.f32 %v762, 0.2
  %v895 = vmul.f32 %v819, 0.2
  %v896 = vmul.f32 %v876, 0.2
  %v897 = vmul.f32 %v707, 0.2
  %v898 = vmul.f32 %v764, 0.2
  %v899 = vmul.f32 %v821, 0.2
  %v900 = vmul.f32 %v878, 0.2
  %v901 = vsel %vm885, %v705, %v893
  %v902 = vsel %vm886, %v762, %v894
  %v903 = vsel %vm887, %v819, %v895
  %v904 = vsel %vm888, %v876, %v896
  %v905 = vsel %vm889, %v707, %v897
  %v906 = vsel %vm890, %v764, %v898
  %v907 = vsel %vm891, %v821, %v899
  %v908 = vsel %vm892, %v878, %v900
  %v909 = vmul.f32 %v710, 0.5
  %v910 = vmul.f32 %v767, 0.5
  %v911 = vmul.f32 %v824, 0.5
  %v912 = vmul.f32 %v881, 0.5
  %v913 = vmul.f32 %v712, 0.5
  %v914 = vmul.f32 %v769, 0.5
  %v915 = vmul.f32 %v826, 0.5
  %v916 = vmul.f32 %v883, 0.5
  %v917 = vtanh.pop %v909
  %v918 = vtanh.pop %v910
  %v919 = vtanh.pop %v911
  %v920 = vtanh.pop %v912
  %v921 = vtanh.pop %v913
  %v922 = vtanh.pop %v914
  %v923 = vtanh.pop %v915
  %v924 = vtanh.pop %v916
  %v925 = vadd.f32 %v917, 1.0
  %v926 = vadd.f32 %v918, 1.0
  %v927 = vadd.f32 %v919, 1.0
  %v928 = vadd.f32 %v920, 1.0
  %v929 = vadd.f32 %v921, 1.0
  %v930 = vadd.f32 %v922, 1.0
  %v931 = vadd.f32 %v923, 1.0
  %v932 = vadd.f32 %v924, 1.0
  %v933 = vmul.f32 %v925, 0.5
  %v934 = vmul.f32 %v926, 0.5
  %v935 = vmul.f32 %v927, 0.5
  %v936 = vmul.f32 %v928, 0.5
  %v937 = vmul.f32 %v929, 0.5
  %v938 = vmul.f32 %v930, 0.5
  %v939 = vmul.f32 %v931, 0.5
  %v940 = vmul.f32 %v932, 0.5
  %v941 = vmul.f32 %v901, %v933
  %v942 = vmul.f32 %v902, %v934
  %v943 = vmul.f32 %v903, %v935
  %v944 = vmul.f32 %v904, %v936
  %v945 = vmul.f32 %v905, %v937
  %v946 = vmul.f32 %v906, %v938
  %v947 = vmul.f32 %v907, %v939
  %v948 = vmul.f32 %v908, %v940
  %v949 = vpack.c.bf16 %v942, %v941
  %v950 = vpack.c.bf16 %v944, %v943
  %v951 = vpack.c.bf16 %v946, %v945
  %v952 = vpack.c.bf16 %v948, %v947
  %953 = vst [vmem:[%s3] sm:$0xff] %v949
  %954 = vst [vmem:[%s3 + $0x8] sm:$0xff] %v950
  %955 = vst [vmem:[%s3 + $0x10] sm:$0xff] %v951
  %956 = vst [vmem:[%s3 + $0x18] sm:$0xff] %v952
  %v957 = vadd.f32 %v941, %v942
  %v958 = vadd.f32 %v957, %v943
  %v959 = vadd.f32 %v958, %v944
  %960 = vadd.xlane.f32.xlu0 %v959
  %v961 = vpop.xlane.xlu0 %960
  %v962 = vadd.f32 %v945, %v946
  %v963 = vadd.f32 %v962, %v947
  %v964 = vadd.f32 %v963, %v948
  %965 = vadd.xlane.f32.xlu0 %v964
  %v966 = vpop.xlane.xlu0 %965
  %vm967 = vcmask 7168
  %968 = vst.msk [vmem:[%s4] sm:$0xff] %vm967, %v961
  %969 = vst.msk [vmem:[%s4 + $0x8] sm:$0xff] %vm967, %v966
  %v970 = vmul.f32 %v941, %v941
  %v971 = vmul.f32 %v942, %v942
  %v972 = vmul.f32 %v943, %v943
  %v973 = vmul.f32 %v944, %v944
  %v974 = vmul.f32 %v945, %v945
  %v975 = vmul.f32 %v946, %v946
  %v976 = vmul.f32 %v947, %v947
  %v977 = vmul.f32 %v948, %v948
  %v978 = vadd.f32 %v970, %v971
  %v979 = vadd.f32 %v978, %v972
  %v980 = vadd.f32 %v979, %v973
  %981 = vadd.xlane.f32.xlu0 %v980
  %v982 = vpop.xlane.xlu0 %981
  %v983 = vadd.f32 %v974, %v975
  %v984 = vadd.f32 %v983, %v976
  %v985 = vadd.f32 %v984, %v977
  %986 = vadd.xlane.f32.xlu0 %v985
  %v987 = vpop.xlane.xlu0 %986
  %988 = vst.msk [vmem:[%s5] sm:$0xff] %vm967, %v982
  %989 = vst.msk [vmem:[%s5 + $0x8] sm:$0xff] %vm967, %v987
  // Predicated region
  $region14: #{_lambda_.29} parent=0 // pred_check
    _
  $region15: #{_lambda_.29} parent=0 // pred_check_branch
    %991 = sbr.rel (0) target = $region17
  $region16: #{_lambda_.29} parent=0 // pred_region
    _
  $region17: #{_lambda_.29} parent=0 // pred_fallthru
    _
  // Predicated region
  $region18: #{_lambda_.29} parent=0 // pred_check
    _
  $region19: #{_lambda_.29} parent=0 // pred_check_branch
    %993 = sbr.rel (0) target = $region21
  $region20: #{_lambda_.29} parent=0 // pred_region
    _
  $region21: #{_lambda_.29} parent=0 // pred_fallthru
    _
  // Predicated region
  $region22: #{_lambda_.29} parent=0 // pred_check
    _
  $region23: #{_lambda_.29} parent=0 // pred_check_branch
    %995 = sbr.rel (0) target = $region25
  $region24: #{_lambda_.29} parent=0 // pred_region
    _
  $region25: #{_lambda_.29} parent=0 // pred_fallthru
    _
  // Predicated region
  $region26: #{_lambda_.29} parent=0 // pred_check
    _
  $region27: #{_lambda_.29} parent=0 // pred_check_branch
    %997 = sbr.rel (0) target = $region29
  $region28: #{_lambda_.29} parent=0 // pred_region
    _
  $region29: #{_lambda_.29} parent=0 // pred_fallthru
    _
  // Predicated region
  $region30: #{_lambda_.29} parent=0 // pred_check
    _
  $region31: #{_lambda_.29} parent=0 // pred_check_branch
    %999 = sbr.rel (0) target = $region33
  $region32: #{_lambda_.29} parent=0 // pred_region
    _
  $region33: #{_lambda_.29} parent=0 // pred_fallthru
    _
  // Predicated region
  $region34: #{_lambda_.29} parent=0 // pred_check
    _
  $region35: #{_lambda_.29} parent=0 // pred_check_branch
    %1001 = sbr.rel (0) target = $region37
  $region36: #{_lambda_.29} parent=0 // pred_region
    _
  $region37: #{_lambda_.29} parent=0 // pred_fallthru
    _

// kernel: _lambda_.31
$region0: #{_lambda_.31}
  #allocation0 [shape = 'u32[]', space=smem, size = 0x4, offset = 0x4, fixed_abs, tag = 'smem constant byte address 0x4 - core index']
  #allocation1 [shape = 'u32[72,128]{1,0:T(1,128)}', space=vmem, size = 0x9000, scoped, tag = 'internal scratch']
  %s0 = inlined_call_operand.vmem [shape: bf16[256,2048], index: 0, kind: input, shape index: {}]
  %s1 = inlined_call_operand.vmem [shape: bf16[16,256], index: 1, kind: input, shape index: {}]
  %s2 = inlined_call_operand.vmem [shape: f32[16,1], index: 2, kind: input, shape index: {}]
  %s3 = inlined_call_operand.vmem [shape: bf16[8,2048], index: 3, kind: output, shape index: {0}]
  %s4 = inlined_call_operand.vmem [shape: f32[2,8,1], index: 4, kind: output, shape index: {1}]
  %s5 = inlined_call_operand.vmem [shape: f32[2,8,1], index: 5, kind: output, shape index: {2}]
  %6 = xla_tuple %s3, %s4, %s5
  %s7 = sld [smem:[#allocation0]]
  $region84: #{_lambda_.31} parent=0
    _
  %s9 = ssub.s32 1, %s7
  %s10 = scalar_select 0, %s9, %s7
  $region1: #{_lambda_.31} parent=0
    #allocation2 [shape = 'u8[1048576]{0}', space=vmem, size = 0x100000, scoped, tag = 'input window, operand 0']
    loop: start=0, step=1, limit=4
    $region2: #{_lambda_.31} parent=1 // loop_pre_header
      _
    $region3: #{_lambda_.31} parent=1 // loop_header
      %s12 = sphi 0, %s16
      %p13 = scmp.ge.s32.totalorder %s12, 4
      %s22 = sphi 0, %s24
      %s25 = sphi 0, %s22
      %s26 = sphi 0, %s25
      %s42 = sphi 0, %s26
      %s46 = sphi 0, %s46
      %s48 = sphi 0, %s46
      %s49 = sphi 0, %s48
      %s63 = sphi 0, %s49
      %s67 = sphi 0, %s67
      %s69 = sphi 0, %s67
      %s70 = sphi 0, %s69
      %s84 = sphi 0, %s70
      %s90 = sphi 0, %s92
      %s93 = sphi 0, %s90
      %s94 = sphi 0, %s93
      %s110 = sphi 0, %s94
      %s116 = sphi 0, %s118
      %s119 = sphi 0, %s116
      %s120 = sphi 0, %s119
      %s136 = sphi 0, %s120
      %s142 = sphi 0, %s144
      %s145 = sphi 0, %s142
      %s146 = sphi 0, %s145
      %s162 = sphi 0, %s146
    $region4: #{_lambda_.31} parent=1 // loop_header_branch
      %15 = sbr.rel (%p13) target = $region8
    $region5: #{_lambda_.31} parent=1 // loop_body
      %s17 = ssub.s32 %s12, 1
      %s18 = ssub.s32 %s12, 2
      %s19 = sadd.s32 %s12, 1
      %s20 = ssub.s32 %s12, %s19
      %p21 = scmp.eq.s32.totalorder %s20, 0
      %s23 = sadd.s32 %s22, 1
      %s24 = scalar_select %p21, %s22, %s23
      %p27 = pneg %p21
      %p28 = scmp.eq.s32.totalorder %s12, 1
      %p29 = por %p27, %p28
      %p30 = scmp.ne.s32.totalorder %s22, %s25
      %p31 = scmp.eq.s32.totalorder %s12, 0
      %p32 = por %p30, %p31
      %p33 = scmp.ne.s32.totalorder %s22, %s25
      %p34 = scmp.eq.s32.totalorder %s17, 1
      %p35 = por %p33, %p34
      %p36 = scmp.ne.s32.totalorder %s25, %s26
      %p37 = scmp.eq.s32.totalorder %s17, 0
      %p38 = por %p36, %p37
      %p39 = scmp.ne.s32.totalorder %s25, %s26
      %p40 = scmp.eq.s32.totalorder %s18, 1
      %p41 = por %p39, %p40
      %p43 = scmp.ne.s32.totalorder %s26, %s42
      %p44 = scmp.eq.s32.totalorder %s18, 0
      %p45 = por %p43, %p44
      %s47 = sadd.s32 %s46, 1
      %p50 = scmp.eq.s32.totalorder %s12, 1
      %p51 = scmp.ne.s32.totalorder %s46, %s48
      %p52 = scmp.eq.s32.totalorder %s12, 0
      %p53 = por %p51, %p52
      %p54 = scmp.ne.s32.totalorder %s46, %s48
      %p55 = scmp.eq.s32.totalorder %s17, 1
      %p56 = por %p54, %p55
      %p57 = scmp.ne.s32.totalorder %s48, %s49
      %p58 = scmp.eq.s32.totalorder %s17, 0
      %p59 = por %p57, %p58
      %p60 = scmp.ne.s32.totalorder %s48, %s49
      %p61 = scmp.eq.s32.totalorder %s18, 1
      %p62 = por %p60, %p61
      %p64 = scmp.ne.s32.totalorder %s49, %s63
      %p65 = scmp.eq.s32.totalorder %s18, 0
      %p66 = por %p64, %p65
      %s68 = sadd.s32 %s67, 1
      %p71 = scmp.eq.s32.totalorder %s12, 1
      %p72 = scmp.ne.s32.totalorder %s67, %s69
      %p73 = scmp.eq.s32.totalorder %s12, 0
      %p74 = por %p72, %p73
      %p75 = scmp.ne.s32.totalorder %s67, %s69
      %p76 = scmp.eq.s32.totalorder %s17, 1
      %p77 = por %p75, %p76
      %p78 = scmp.ne.s32.totalorder %s69, %s70
      %p79 = scmp.eq.s32.totalorder %s17, 0
      %p80 = por %p78, %p79
      %p81 = scmp.ne.s32.totalorder %s69, %s70
      %p82 = scmp.eq.s32.totalorder %s18, 1
      %p83 = por %p81, %p82
      %p85 = scmp.ne.s32.totalorder %s70, %s84
      %p86 = scmp.eq.s32.totalorder %s18, 0
      %p87 = por %p85, %p86
      %s88 = ssub.s32 %s12, %s19
      %p89 = scmp.eq.s32.totalorder %s88, 0
      %s91 = sadd.s32 %s90, 1
      %s92 = scalar_select %p89, %s90, %s91
      %p95 = pneg %p89
      %p96 = scmp.eq.s32.totalorder %s12, 1
      %p97 = por %p95, %p96
      %p98 = scmp.ne.s32.totalorder %s90, %s93
      %p99 = scmp.eq.s32.totalorder %s12, 0
      %p100 = por %p98, %p99
      %p101 = scmp.ne.s32.totalorder %s90, %s93
      %p102 = scmp.eq.s32.totalorder %s17, 1
      %p103 = por %p101, %p102
      %p104 = scmp.ne.s32.totalorder %s93, %s94
      %p105 = scmp.eq.s32.totalorder %s17, 0
      %p106 = por %p104, %p105
      %p107 = scmp.ne.s32.totalorder %s93, %s94
      %p108 = scmp.eq.s32.totalorder %s18, 1
      %p109 = por %p107, %p108
      %p111 = scmp.ne.s32.totalorder %s94, %s110
      %p112 = scmp.eq.s32.totalorder %s18, 0
      %p113 = por %p111, %p112
      %s114 = ssub.s32 %s12, %s19
      %p115 = scmp.eq.s32.totalorder %s114, 0
      %s117 = sadd.s32 %s116, 1
      %s118 = scalar_select %p115, %s116, %s117
      %p121 = pneg %p115
      %p122 = scmp.eq.s32.totalorder %s12, 1
      %p123 = por %p121, %p122
      %p124 = scmp.ne.s32.totalorder %s116, %s119
      %p125 = scmp.eq.s32.totalorder %s12, 0
      %p126 = por %p124, %p125
      %p127 = scmp.ne.s32.totalorder %s116, %s119
      %p128 = scmp.eq.s32.totalorder %s17, 1
      %p129 = por %p127, %p128
      %p130 = scmp.ne.s32.totalorder %s119, %s120
      %p131 = scmp.eq.s32.totalorder %s17, 0
      %p132 = por %p130, %p131
      %p133 = scmp.ne.s32.totalorder %s119, %s120
      %p134 = scmp.eq.s32.totalorder %s18, 1
      %p135 = por %p133, %p134
      %p137 = scmp.ne.s32.totalorder %s120, %s136
      %p138 = scmp.eq.s32.totalorder %s18, 0
      %p139 = por %p137, %p138
      %s140 = ssub.s32 %s12, %s19
      %p141 = scmp.eq.s32.totalorder %s140, 0
      %s143 = sadd.s32 %s142, 1
      %s144 = scalar_select %p141, %s142, %s143
      %p147 = pneg %p141
      %p148 = scmp.eq.s32.totalorder %s12, 1
      %p149 = por %p147, %p148
      %p150 = scmp.ne.s32.totalorder %s142, %s145
      %p151 = scmp.eq.s32.totalorder %s12, 0
      %p152 = por %p150, %p151
      %p153 = scmp.ne.s32.totalorder %s142, %s145
      %p154 = scmp.eq.s32.totalorder %s17, 1
      %p155 = por %p153, %p154
      %p156 = scmp.ne.s32.totalorder %s145, %s146
      %p157 = scmp.eq.s32.totalorder %s17, 0
      %p158 = por %p156, %p157
      %p159 = scmp.ne.s32.totalorder %s145, %s146
      %p160 = scmp.eq.s32.totalorder %s18, 1
      %p161 = por %p159, %p160
      %p163 = scmp.ne.s32.totalorder %s146, %s162
      %p164 = scmp.eq.s32.totalorder %s18, 0
      %p165 = por %p163, %p164
      %p166 = scmp.le.s32.totalorder 1, %s12
      %p167 = scmp.lt.s32.totalorder %s12, 3
      %p168 = pnand %p166, %p167
      %p169 = pneg %p168
      // Predicated region
      $region9: #{_lambda_.31} parent=5 // pred_check
        _
      $region10: #{_lambda_.31} parent=5 // pred_check_branch
        %171 = sbr.rel (%p168) target = $region12
      $region11: #{_lambda_.31} parent=5 // pred_region
        %s172 = ssub.s32 %s12, 1
        // Predicated region
        $region13: #{_lambda_.31} parent=11 // pred_check
          %p173 = pneg %p59
        $region14: #{_lambda_.31} parent=11 // pred_check_branch
          %175 = sbr.rel (%p173) target = $region16
        $region15: #{_lambda_.31} parent=11 // pred_region
          _
        $region16: #{_lambda_.31} parent=11 // pred_fallthru
          _
        // Predicated region
        $region17: #{_lambda_.31} parent=11 // pred_check
          %p176 = pneg %p80
        $region18: #{_lambda_.31} parent=11 // pred_check_branch
          %178 = sbr.rel (%p176) target = $region20
        $region19: #{_lambda_.31} parent=11 // pred_region
          _
        $region20: #{_lambda_.31} parent=11 // pred_fallthru
          _
      $region12: #{_lambda_.31} parent=5 // pred_fallthru
        _
      %p179 = scmp.lt.s32.totalorder %s12, 2
      // Predicated region
      $region21: #{_lambda_.31} parent=5 // pred_check
        %p180 = pneg %p179
      $region22: #{_lambda_.31} parent=5 // pred_check_branch
        %182 = sbr.rel (%p180) target = $region24
      $region23: #{_lambda_.31} parent=5 // pred_region
        // Predicated region
        $region25: #{_lambda_.31} parent=23 // pred_check
          %p183 = pneg %p32
        $region26: #{_lambda_.31} parent=23 // pred_check_branch
          %185 = sbr.rel (%p183) target = $region28
        $region27: #{_lambda_.31} parent=23 // pred_region
          %s186 = sand.u32 %s22, 1
          %s187 = sand.u32 %s22, 1
          %s188 = smul.addr %s187, 1024
          %s189 = scalar_lea.vmem [#allocation2], %s188
          %s190 = smul.u32 8, %s12
          %s191 = smul.addr %s190, 4
          %s192 = scalar_lea.vmem %s0, %s191
          // Predicated region
          $region29: #{_lambda_.31} parent=27 // pred_check
            _
          $region30: #{_lambda_.31} parent=27 // pred_check_branch
            %194 = sbr.rel (0) target = $region32
          $region31: #{_lambda_.31} parent=27 // pred_region
            // Predicated region
            $region33: #{_lambda_.31} parent=31 // pred_check
              _
            $region34: #{_lambda_.31} parent=31 // pred_check_branch
              %196 = sbr.rel (0) target = $region36
            $region35: #{_lambda_.31} parent=31 // pred_region
              loop: start=0, step=1, limit=1
              $region37: #{_lambda_.31} parent=35 // loop_pre_header
                _
              $region38: #{_lambda_.31} parent=35 // loop_header
                %s198 = sphi 0, %s202
                %p199 = scmp.ge.s32.totalorder %s198, 1
                %s203 = sphi %s192, %s192
                %s204 = sphi %s189, %s189
              $region39: #{_lambda_.31} parent=35 // loop_header_branch
                %201 = sbr.rel (%p199) target = $region43
              $region40: #{_lambda_.31} parent=35 // loop_body
                %v205 = vld [vmem:[%s203] sm:$0xff]
                %206 = vst [vmem:[%s204] sm:$0xff] %v205
                %v207 = vld [vmem:[%s203 + $0x8] sm:$0xff]
                %208 = vst [vmem:[%s204 + $0x8] sm:$0xff] %v207
                %v209 = vld [vmem:[%s203 + $0x10] sm:$0xff]
                %210 = vst [vmem:[%s204 + $0x10] sm:$0xff] %v209
                %v211 = vld [vmem:[%s203 + $0x18] sm:$0xff]
                %212 = vst [vmem:[%s204 + $0x18] sm:$0xff] %v211
                %v213 = vld [vmem:[%s203 + $0x40] sm:$0xff]
                %214 = vst [vmem:[%s204 + $0x20] sm:$0xff] %v213
                %v215 = vld [vmem:[%s203 + $0x48] sm:$0xff]
                %216 = vst [vmem:[%s204 + $0x28] sm:$0xff] %v215
                %v217 = vld [vmem:[%s203 + $0x50] sm:$0xff]
                %218 = vst [vmem:[%s204 + $0x30] sm:$0xff] %v217
                %v219 = vld [vmem:[%s203 + $0x58] sm:$0xff]
                %220 = vst [vmem:[%s204 + $0x38] sm:$0xff] %v219
                %v221 = vld [vmem:[%s203 + $0x80] sm:$0xff]
                %222 = vst [vmem:[%s204 + $0x40] sm:$0xff] %v221
                %v223 = vld [vmem:[%s203 + $0x88] sm:$0xff]
                %224 = vst [vmem:[%s204 + $0x48] sm:$0xff] %v223
                %v225 = vld [vmem:[%s203 + $0x90] sm:$0xff]
                %226 = vst [vmem:[%s204 + $0x50] sm:$0xff] %v225
                %v227 = vld [vmem:[%s203 + $0x98] sm:$0xff]
                %228 = vst [vmem:[%s204 + $0x58] sm:$0xff] %v227
                %v229 = vld [vmem:[%s203 + $0xc0] sm:$0xff]
                %230 = vst [vmem:[%s204 + $0x60] sm:$0xff] %v229
                %v231 = vld [vmem:[%s203 + $0xc8] sm:$0xff]
                %232 = vst [vmem:[%s204 + $0x68] sm:$0xff] %v231
                %v233 = vld [vmem:[%s203 + $0xd0] sm:$0xff]
                %234 = vst [vmem:[%s204 + $0x70] sm:$0xff] %v233
                %v235 = vld [vmem:[%s203 + $0xd8] sm:$0xff]
                %236 = vst [vmem:[%s204 + $0x78] sm:$0xff] %v235
                %v237 = vld [vmem:[%s203 + $0x100] sm:$0xff]
                %238 = vst [vmem:[%s204 + $0x80] sm:$0xff] %v237
                %v239 = vld [vmem:[%s203 + $0x108] sm:$0xff]
                %240 = vst [vmem:[%s204 + $0x88] sm:$0xff] %v239
                %v241 = vld [vmem:[%s203 + $0x110] sm:$0xff]
                %242 = vst [vmem:[%s204 + $0x90] sm:$0xff] %v241
                %v243 = vld [vmem:[%s203 + $0x118] sm:$0xff]
                %244 = vst [vmem:[%s204 + $0x98] sm:$0xff] %v243
                %v245 = vld [vmem:[%s203 + $0x140] sm:$0xff]
                %246 = vst [vmem:[%s204 + $0xa0] sm:$0xff] %v245
                %v247 = vld [vmem:[%s203 + $0x148] sm:$0xff]
                %248 = vst [vmem:[%s204 + $0xa8] sm:$0xff] %v247
                %v249 = vld [vmem:[%s203 + $0x150] sm:$0xff]
                %250 = vst [vmem:[%s204 + $0xb0] sm:$0xff] %v249
                %v251 = vld [vmem:[%s203 + $0x158] sm:$0xff]
                %252 = vst [vmem:[%s204 + $0xb8] sm:$0xff] %v251
                %v253 = vld [vmem:[%s203 + $0x180] sm:$0xff]
                %254 = vst [vmem:[%s204 + $0xc0] sm:$0xff] %v253
                %v255 = vld [vmem:[%s203 + $0x188] sm:$0xff]
                %256 = vst [vmem:[%s204 + $0xc8] sm:$0xff] %v255
                %v257 = vld [vmem:[%s203 + $0x190] sm:$0xff]
                %258 = vst [vmem:[%s204 + $0xd0] sm:$0xff] %v257
                %v259 = vld [vmem:[%s203 + $0x198] sm:$0xff]
                %260 = vst [vmem:[%s204 + $0xd8] sm:$0xff] %v259
                %v261 = vld [vmem:[%s203 + $0x1c0] sm:$0xff]
                %262 = vst [vmem:[%s204 + $0xe0] sm:$0xff] %v261
                %v263 = vld [vmem:[%s203 + $0x1c8] sm:$0xff]
                %264 = vst [vmem:[%s204 + $0xe8] sm:$0xff] %v263
                %v265 = vld [vmem:[%s203 + $0x1d0] sm:$0xff]
                %266 = vst [vmem:[%s204 + $0xf0] sm:$0xff] %v265
                %v267 = vld [vmem:[%s203 + $0x1d8] sm:$0xff]
                %268 = vst [vmem:[%s204 + $0xf8] sm:$0xff] %v267
                %v269 = vld [vmem:[%s203 + $0x200] sm:$0xff]
                %270 = vst [vmem:[%s204 + $0x100] sm:$0xff] %v269
                %v271 = vld [vmem:[%s203 + $0x208] sm:$0xff]
                %272 = vst [vmem:[%s204 + $0x108] sm:$0xff] %v271
                %v273 = vld [vmem:[%s203 + $0x210] sm:$0xff]
                %274 = vst [vmem:[%s204 + $0x110] sm:$0xff] %v273
                %v275 = vld [vmem:[%s203 + $0x218] sm:$0xff]
                %276 = vst [vmem:[%s204 + $0x118] sm:$0xff] %v275
                %v277 = vld [vmem:[%s203 + $0x240] sm:$0xff]
                %278 = vst [vmem:[%s204 + $0x120] sm:$0xff] %v277
                %v279 = vld [vmem:[%s203 + $0x248] sm:$0xff]
                %280 = vst [vmem:[%s204 + $0x128] sm:$0xff] %v279
                %v281 = vld [vmem:[%s203 + $0x250] sm:$0xff]
                %282 = vst [vmem:[%s204 + $0x130] sm:$0xff] %v281
                %v283 = vld [vmem:[%s203 + $0x258] sm:$0xff]
                %284 = vst [vmem:[%s204 + $0x138] sm:$0xff] %v283
                %v285 = vld [vmem:[%s203 + $0x280] sm:$0xff]
                %286 = vst [vmem:[%s204 + $0x140] sm:$0xff] %v285
                %v287 = vld [vmem:[%s203 + $0x288] sm:$0xff]
                %288 = vst [vmem:[%s204 + $0x148] sm:$0xff] %v287
                %v289 = vld [vmem:[%s203 + $0x290] sm:$0xff]
                %290 = vst [vmem:[%s204 + $0x150] sm:$0xff] %v289
                %v291 = vld [vmem:[%s203 + $0x298] sm:$0xff]
                %292 = vst [vmem:[%s204 + $0x158] sm:$0xff] %v291
                %v293 = vld [vmem:[%s203 + $0x2c0] sm:$0xff]
                %294 = vst [vmem:[%s204 + $0x160] sm:$0xff] %v293
                %v295 = vld [vmem:[%s203 + $0x2c8] sm:$0xff]
                %296 = vst [vmem:[%s204 + $0x168] sm:$0xff] %v295
                %v297 = vld [vmem:[%s203 + $0x2d0] sm:$0xff]
                %298 = vst [vmem:[%s204 + $0x170] sm:$0xff] %v297
                %v299 = vld [vmem:[%s203 + $0x2d8] sm:$0xff]
                %300 = vst [vmem:[%s204 + $0x178] sm:$0xff] %v299
                %v301 = vld [vmem:[%s203 + $0x300] sm:$0xff]
                %302 = vst [vmem:[%s204 + $0x180] sm:$0xff] %v301
                %v303 = vld [vmem:[%s203 + $0x308] sm:$0xff]
                %304 = vst [vmem:[%s204 + $0x188] sm:$0xff] %v303
                %v305 = vld [vmem:[%s203 + $0x310] sm:$0xff]
                %306 = vst [vmem:[%s204 + $0x190] sm:$0xff] %v305
                %v307 = vld [vmem:[%s203 + $0x318] sm:$0xff]
                %308 = vst [vmem:[%s204 + $0x198] sm:$0xff] %v307
                %v309 = vld [vmem:[%s203 + $0x340] sm:$0xff]
                %310 = vst [vmem:[%s204 + $0x1a0] sm:$0xff] %v309
                %v311 = vld [vmem:[%s203 + $0x348] sm:$0xff]
                %312 = vst [vmem:[%s204 + $0x1a8] sm:$0xff] %v311
                %v313 = vld [vmem:[%s203 + $0x350] sm:$0xff]
                %314 = vst [vmem:[%s204 + $0x1b0] sm:$0xff] %v313
                %v315 = vld [vmem:[%s203 + $0x358] sm:$0xff]
                %316 = vst [vmem:[%s204 + $0x1b8] sm:$0xff] %v315
                %v317 = vld [vmem:[%s203 + $0x380] sm:$0xff]
                %318 = vst [vmem:[%s204 + $0x1c0] sm:$0xff] %v317
                %v319 = vld [vmem:[%s203 + $0x388] sm:$0xff]
                %320 = vst [vmem:[%s204 + $0x1c8] sm:$0xff] %v319
                %v321 = vld [vmem:[%s203 + $0x390] sm:$0xff]
                %322 = vst [vmem:[%s204 + $0x1d0] sm:$0xff] %v321
                %v323 = vld [vmem:[%s203 + $0x398] sm:$0xff]
                %324 = vst [vmem:[%s204 + $0x1d8] sm:$0xff] %v323
                %v325 = vld [vmem:[%s203 + $0x3c0] sm:$0xff]
                %326 = vst [vmem:[%s204 + $0x1e0] sm:$0xff] %v325
                %v327 = vld [vmem:[%s203 + $0x3c8] sm:$0xff]
                %328 = vst [vmem:[%s204 + $0x1e8] sm:$0xff] %v327
                %v329 = vld [vmem:[%s203 + $0x3d0] sm:$0xff]
                %330 = vst [vmem:[%s204 + $0x1f0] sm:$0xff] %v329
                %v331 = vld [vmem:[%s203 + $0x3d8] sm:$0xff]
                %332 = vst [vmem:[%s204 + $0x1f8] sm:$0xff] %v331
                %v333 = vld [vmem:[%s203 + $0x400] sm:$0xff]
                %334 = vst [vmem:[%s204 + $0x200] sm:$0xff] %v333
                %v335 = vld [vmem:[%s203 + $0x408] sm:$0xff]
                %336 = vst [vmem:[%s204 + $0x208] sm:$0xff] %v335
                %v337 = vld [vmem:[%s203 + $0x410] sm:$0xff]
                %338 = vst [vmem:[%s204 + $0x210] sm:$0xff] %v337
                %v339 = vld [vmem:[%s203 + $0x418] sm:$0xff]
                %340 = vst [vmem:[%s204 + $0x218] sm:$0xff] %v339
                %v341 = vld [vmem:[%s203 + $0x440] sm:$0xff]
                %342 = vst [vmem:[%s204 + $0x220] sm:$0xff] %v341
                %v343 = vld [vmem:[%s203 + $0x448] sm:$0xff]
                %344 = vst [vmem:[%s204 + $0x228] sm:$0xff] %v343
                %v345 = vld [vmem:[%s203 + $0x450] sm:$0xff]
                %346 = vst [vmem:[%s204 + $0x230] sm:$0xff] %v345
                %v347 = vld [vmem:[%s203 + $0x458] sm:$0xff]
                %348 = vst [vmem:[%s204 + $0x238] sm:$0xff] %v347
                %v349 = vld [vmem:[%s203 + $0x480] sm:$0xff]
                %350 = vst [vmem:[%s204 + $0x240] sm:$0xff] %v349
                %v351 = vld [vmem:[%s203 + $0x488] sm:$0xff]
                %352 = vst [vmem:[%s204 + $0x248] sm:$0xff] %v351
                %v353 = vld [vmem:[%s203 + $0x490] sm:$0xff]
                %354 = vst [vmem:[%s204 + $0x250] sm:$0xff] %v353
                %v355 = vld [vmem:[%s203 + $0x498] sm:$0xff]
                %356 = vst [vmem:[%s204 + $0x258] sm:$0xff] %v355
                %v357 = vld [vmem:[%s203 + $0x4c0] sm:$0xff]
                %358 = vst [vmem:[%s204 + $0x260] sm:$0xff] %v357
                %v359 = vld [vmem:[%s203 + $0x4c8] sm:$0xff]
                %360 = vst [vmem:[%s204 + $0x268] sm:$0xff] %v359
                %v361 = vld [vmem:[%s203 + $0x4d0] sm:$0xff]
                %362 = vst [vmem:[%s204 + $0x270] sm:$0xff] %v361
                %v363 = vld [vmem:[%s203 + $0x4d8] sm:$0xff]
                %364 = vst [vmem:[%s204 + $0x278] sm:$0xff] %v363
                %v365 = vld [vmem:[%s203 + $0x500] sm:$0xff]
                %366 = vst [vmem:[%s204 + $0x280] sm:$0xff] %v365
                %v367 = vld [vmem:[%s203 + $0x508] sm:$0xff]
                %368 = vst [vmem:[%s204 + $0x288] sm:$0xff] %v367
                %v369 = vld [vmem:[%s203 + $0x510] sm:$0xff]
                %370 = vst [vmem:[%s204 + $0x290] sm:$0xff] %v369
                %v371 = vld [vmem:[%s203 + $0x518] sm:$0xff]
                %372 = vst [vmem:[%s204 + $0x298] sm:$0xff] %v371
                %v373 = vld [vmem:[%s203 + $0x540] sm:$0xff]
                %374 = vst [vmem:[%s204 + $0x2a0] sm:$0xff] %v373
                %v375 = vld [vmem:[%s203 + $0x548] sm:$0xff]
                %376 = vst [vmem:[%s204 + $0x2a8] sm:$0xff] %v375
                %v377 = vld [vmem:[%s203 + $0x550] sm:$0xff]
                %378 = vst [vmem:[%s204 + $0x2b0] sm:$0xff] %v377
                %v379 = vld [vmem:[%s203 + $0x558] sm:$0xff]
                %380 = vst [vmem:[%s204 + $0x2b8] sm:$0xff] %v379
                %v381 = vld [vmem:[%s203 + $0x580] sm:$0xff]
                %382 = vst [vmem:[%s204 + $0x2c0] sm:$0xff] %v381
                %v383 = vld [vmem:[%s203 + $0x588] sm:$0xff]
                %384 = vst [vmem:[%s204 + $0x2c8] sm:$0xff] %v383
                %v385 = vld [vmem:[%s203 + $0x590] sm:$0xff]
                %386 = vst [vmem:[%s204 + $0x2d0] sm:$0xff] %v385
                %v387 = vld [vmem:[%s203 + $0x598] sm:$0xff]
                %388 = vst [vmem:[%s204 + $0x2d8] sm:$0xff] %v387
                %v389 = vld [vmem:[%s203 + $0x5c0] sm:$0xff]
                %390 = vst [vmem:[%s204 + $0x2e0] sm:$0xff] %v389
                %v391 = vld [vmem:[%s203 + $0x5c8] sm:$0xff]
                %392 = vst [vmem:[%s204 + $0x2e8] sm:$0xff] %v391
                %v393 = vld [vmem:[%s203 + $0x5d0] sm:$0xff]
                %394 = vst [vmem:[%s204 + $0x2f0] sm:$0xff] %v393
                %v395 = vld [vmem:[%s203 + $0x5d8] sm:$0xff]
                %396 = vst [vmem:[%s204 + $0x2f8] sm:$0xff] %v395
                %v397 = vld [vmem:[%s203 + $0x600] sm:$0xff]
                %398 = vst [vmem:[%s204 + $0x300] sm:$0xff] %v397
                %v399 = vld [vmem:[%s203 + $0x608] sm:$0xff]
                %400 = vst [vmem:[%s204 + $0x308] sm:$0xff] %v399
                %v401 = vld [vmem:[%s203 + $0x610] sm:$0xff]
                %402 = vst [vmem:[%s204 + $0x310] sm:$0xff] %v401
                %v403 = vld [vmem:[%s203 + $0x618] sm:$0xff]
                %404 = vst [vmem:[%s204 + $0x318] sm:$0xff] %v403
                %v405 = vld [vmem:[%s203 + $0x640] sm:$0xff]
                %406 = vst [vmem:[%s204 + $0x320] sm:$0xff] %v405
                %v407 = vld [vmem:[%s203 + $0x648] sm:$0xff]
                %408 = vst [vmem:[%s204 + $0x328] sm:$0xff] %v407
                %v409 = vld [vmem:[%s203 + $0x650] sm:$0xff]
                %410 = vst [vmem:[%s204 + $0x330] sm:$0xff] %v409
                %v411 = vld [vmem:[%s203 + $0x658] sm:$0xff]
                %412 = vst [vmem:[%s204 + $0x338] sm:$0xff] %v411
                %v413 = vld [vmem:[%s203 + $0x680] sm:$0xff]
                %414 = vst [vmem:[%s204 + $0x340] sm:$0xff] %v413
                %v415 = vld [vmem:[%s203 + $0x688] sm:$0xff]
                %416 = vst [vmem:[%s204 + $0x348] sm:$0xff] %v415
                %v417 = vld [vmem:[%s203 + $0x690] sm:$0xff]
                %418 = vst [vmem:[%s204 + $0x350] sm:$0xff] %v417
                %v419 = vld [vmem:[%s203 + $0x698] sm:$0xff]
                %420 = vst [vmem:[%s204 + $0x358] sm:$0xff] %v419
                %v421 = vld [vmem:[%s203 + $0x6c0] sm:$0xff]
                %422 = vst [vmem:[%s204 + $0x360] sm:$0xff] %v421
                %v423 = vld [vmem:[%s203 + $0x6c8] sm:$0xff]
                %424 = vst [vmem:[%s204 + $0x368] sm:$0xff] %v423
                %v425 = vld [vmem:[%s203 + $0x6d0] sm:$0xff]
                %426 = vst [vmem:[%s204 + $0x370] sm:$0xff] %v425
                %v427 = vld [vmem:[%s203 + $0x6d8] sm:$0xff]
                %428 = vst [vmem:[%s204 + $0x378] sm:$0xff] %v427
                %v429 = vld [vmem:[%s203 + $0x700] sm:$0xff]
                %430 = vst [vmem:[%s204 + $0x380] sm:$0xff] %v429
                %v431 = vld [vmem:[%s203 + $0x708] sm:$0xff]
                %432 = vst [vmem:[%s204 + $0x388] sm:$0xff] %v431
                %v433 = vld [vmem:[%s203 + $0x710] sm:$0xff]
                %434 = vst [vmem:[%s204 + $0x390] sm:$0xff] %v433
                %v435 = vld [vmem:[%s203 + $0x718] sm:$0xff]
                %436 = vst [vmem:[%s204 + $0x398] sm:$0xff] %v435
                %v437 = vld [vmem:[%s203 + $0x740] sm:$0xff]
                %438 = vst [vmem:[%s204 + $0x3a0] sm:$0xff] %v437
                %v439 = vld [vmem:[%s203 + $0x748] sm:$0xff]
                %440 = vst [vmem:[%s204 + $0x3a8] sm:$0xff] %v439
                %v441 = vld [vmem:[%s203 + $0x750] sm:$0xff]
                %442 = vst [vmem:[%s204 + $0x3b0] sm:$0xff] %v441
                %v443 = vld [vmem:[%s203 + $0x758] sm:$0xff]
                %444 = vst [vmem:[%s204 + $0x3b8] sm:$0xff] %v443
                %v445 = vld [vmem:[%s203 + $0x780] sm:$0xff]
                %446 = vst [vmem:[%s204 + $0x3c0] sm:$0xff] %v445
                %v447 = vld [vmem:[%s203 + $0x788] sm:$0xff]
                %448 = vst [vmem:[%s204 + $0x3c8] sm:$0xff] %v447
                %v449 = vld [vmem:[%s203 + $0x790] sm:$0xff]
                %450 = vst [vmem:[%s204 + $0x3d0] sm:$0xff] %v449
                %v451 = vld [vmem:[%s203 + $0x798] sm:$0xff]
                %452 = vst [vmem:[%s204 + $0x3d8] sm:$0xff] %v451
                %v453 = vld [vmem:[%s203 + $0x7c0] sm:$0xff]
                %454 = vst [vmem:[%s204 + $0x3e0] sm:$0xff] %v453
                %v455 = vld [vmem:[%s203 + $0x7c8] sm:$0xff]
                %456 = vst [vmem:[%s204 + $0x3e8] sm:$0xff] %v455
                %v457 = vld [vmem:[%s203 + $0x7d0] sm:$0xff]
                %458 = vst [vmem:[%s204 + $0x3f0] sm:$0xff] %v457
                %v459 = vld [vmem:[%s203 + $0x7d8] sm:$0xff]
                %460 = vst [vmem:[%s204 + $0x3f8] sm:$0xff] %v459
              $region41: #{_lambda_.31} parent=35 // loop_footer
                %s202 = sadd.s32 1, %s198
              $region42: #{_lambda_.31} parent=35 // loop_footer_branch
                %197 = sbr.rel target = $region38
              $region43: #{_lambda_.31} parent=35 // loop_exit
                _
            $region36: #{_lambda_.31} parent=31 // pred_fallthru
              _
            // Predicated region
            $region44: #{_lambda_.31} parent=31 // pred_check
              _
            $region45: #{_lambda_.31} parent=31 // pred_check_branch
              %462 = sbr.rel target = $region47
            $region46: #{_lambda_.31} parent=31 // pred_region
              _
            $region47: #{_lambda_.31} parent=31 // pred_fallthru
              _
          $region32: #{_lambda_.31} parent=27 // pred_fallthru
            _
          %463 = vnop
        $region28: #{_lambda_.31} parent=23 // pred_fallthru
          _
      $region24: #{_lambda_.31} parent=5 // pred_fallthru
        _
      %p464 = scmp.le.s32.totalorder 1, %s12
      %p465 = scmp.lt.s32.totalorder %s12, 3
      %p466 = pnand %p464, %p465
      %p467 = pneg %p466
      // Predicated region
      $region48: #{_lambda_.31} parent=5 // pred_check
        _
      $region49: #{_lambda_.31} parent=5 // pred_check_branch
        %469 = sbr.rel (%p466) target = $region51
      $region50: #{_lambda_.31} parent=5 // pred_region
        %s470 = ssub.s32 %s12, 1
        %s471 = sand.u32 %s25, 1
        %s472 = sand.u32 %s25, 1
        %s473 = smul.addr %s472, 1024
        %s474 = scalar_lea.vmem [#allocation2], %s473
        // Predicated region
        $region52: #{_lambda_.31} parent=50 // pred_check
          %p475 = pneg %p38
        $region53: #{_lambda_.31} parent=50 // pred_check_branch
          %477 = sbr.rel (%p475) target = $region55
        $region54: #{_lambda_.31} parent=50 // pred_region
          _
        $region55: #{_lambda_.31} parent=50 // pred_fallthru
          _
        %s478 = sand.u32 %s25, 1
        %s479 = sand.u32 %s25, 1
        %s480 = smul.addr %s479, 1024
        %s481 = scalar_lea.vmem [#allocation2], %s480
        %p482 = pneg %p38
        %p483 = pneg %p35
        %p484 = pneg %p59
        %p485 = pneg %p56
        %p486 = pneg %p80
        %p487 = pneg %p77
        %p488 = pneg %p106
        %p489 = pneg %p103
        %s490 = smul.u32 8, %s17
        %p491 = scmp.lt.s32.totalorder %s490, 15
        %s492 = scalar_select %p491, %s490, 15
        %s493 = smul.addr %s492, 4
        %s494 = scalar_lea.vmem %s3, %s493
        %p495 = pneg %p132
        %p496 = pneg %p129
        %p497 = scmp.lt.s32.totalorder %s17, 1
        %s498 = scalar_select %p497, %s17, 1
        %s499 = smul.addr %s498, 8
        %s500 = scalar_lea.vmem %s4, %s499
        %p501 = pneg %p158
        %p502 = pneg %p155
        %p503 = scmp.lt.s32.totalorder %s17, 1
        %s504 = scalar_select %p503, %s17, 1
        %s505 = smul.addr %s504, 8
        %s506 = scalar_lea.vmem %s5, %s505
        %s507 = smul.u32 8, %s17
        %s508 = smul.u32 8, %s17
        %p509 = scmp.lt.s32.totalorder %s508, 15
        %s510 = scalar_select %p509, %s508, 15
        %s511 = smul.addr %s510, 4
        %s512 = scalar_lea.vmem %s3, %s511
        %s513 = smul.u32 8, %s17
        %p514 = scmp.lt.s32.totalorder %s17, 1
        %s515 = scalar_select %p514, %s17, 1
        %s516 = smul.addr %s515, 8
        %s517 = scalar_lea.vmem %s4, %s516
        %p518 = scmp.lt.s32.totalorder %s17, 1
        %s519 = scalar_select %p518, %s17, 1
        %s520 = smul.addr %s519, 8
        %s521 = scalar_lea.vmem %s5, %s520
        %v522 = vld [vmem:[%s1] sm:$0xff]
        %v523 = vld [vmem:[%s1 + $0x8] sm:$0xff]
        %v524 = vld [vmem:[%s474] sm:$0xff]
        %v525 = vld [vmem:[%s474 + $0x8] sm:$0xff]
        %v526 = vld [vmem:[%s474 + $0x10] sm:$0xff]
        %v527 = vld [vmem:[%s474 + $0x18] sm:$0xff]
        %v528 = vld [vmem:[%s474 + $0x20] sm:$0xff]
        %v529 = vld [vmem:[%s474 + $0x28] sm:$0xff]
        %v530 = vld [vmem:[%s474 + $0x30] sm:$0xff]
        %v531 = vld [vmem:[%s474 + $0x38] sm:$0xff]
        %v532 = vld [vmem:[%s474 + $0x40] sm:$0xff]
        %v533 = vld [vmem:[%s474 + $0x48] sm:$0xff]
        %v534 = vld [vmem:[%s474 + $0x50] sm:$0xff]
        %v535 = vld [vmem:[%s474 + $0x58] sm:$0xff]
        %v536 = vld [vmem:[%s474 + $0x60] sm:$0xff]
        %v537 = vld [vmem:[%s474 + $0x68] sm:$0xff]
        %v538 = vld [vmem:[%s474 + $0x70] sm:$0xff]
        %v539 = vld [vmem:[%s474 + $0x78] sm:$0xff]
        %v540 = vld [vmem:[%s474 + $0x80] sm:$0xff]
        %v541 = vld [vmem:[%s474 + $0x88] sm:$0xff]
        %v542 = vld [vmem:[%s474 + $0x90] sm:$0xff]
        %v543 = vld [vmem:[%s474 + $0x98] sm:$0xff]
        %v544 = vld [vmem:[%s474 + $0xa0] sm:$0xff]
        %v545 = vld [vmem:[%s474 + $0xa8] sm:$0xff]
        %v546 = vld [vmem:[%s474 + $0xb0] sm:$0xff]
        %v547 = vld [vmem:[%s474 + $0xb8] sm:$0xff]
        %v548 = vld [vmem:[%s474 + $0xc0] sm:$0xff]
        %v549 = vld [vmem:[%s474 + $0xc8] sm:$0xff]
        %v550 = vld [vmem:[%s474 + $0xd0] sm:$0xff]
        %v551 = vld [vmem:[%s474 + $0xd8] sm:$0xff]
        %v552 = vld [vmem:[%s474 + $0xe0] sm:$0xff]
        %v553 = vld [vmem:[%s474 + $0xe8] sm:$0xff]
        %v554 = vld [vmem:[%s474 + $0xf0] sm:$0xff]
        %v555 = vld [vmem:[%s474 + $0xf8] sm:$0xff]
        %v556 = vld [vmem:[%s474 + $0x100] sm:$0xff]
        %v557 = vld [vmem:[%s474 + $0x108] sm:$0xff]
        %v558 = vld [vmem:[%s474 + $0x110] sm:$0xff]
        %v559 = vld [vmem:[%s474 + $0x118] sm:$0xff]
        %v560 = vld [vmem:[%s474 + $0x120] sm:$0xff]
        %v561 = vld [vmem:[%s474 + $0x128] sm:$0xff]
        %v562 = vld [vmem:[%s474 + $0x130] sm:$0xff]
        %v563 = vld [vmem:[%s474 + $0x138] sm:$0xff]
        %v564 = vld [vmem:[%s474 + $0x140] sm:$0xff]
        %v565 = vld [vmem:[%s474 + $0x148] sm:$0xff]
        %v566 = vld [vmem:[%s474 + $0x150] sm:$0xff]
        %v567 = vld [vmem:[%s474 + $0x158] sm:$0xff]
        %v568 = vld [vmem:[%s474 + $0x160] sm:$0xff]
        %v569 = vld [vmem:[%s474 + $0x168] sm:$0xff]
        %v570 = vld [vmem:[%s474 + $0x170] sm:$0xff]
        %v571 = vld [vmem:[%s474 + $0x178] sm:$0xff]
        %v572 = vld [vmem:[%s474 + $0x180] sm:$0xff]
        %v573 = vld [vmem:[%s474 + $0x188] sm:$0xff]
        %v574 = vld [vmem:[%s474 + $0x190] sm:$0xff]
        %v575 = vld [vmem:[%s474 + $0x198] sm:$0xff]
        %v576 = vld [vmem:[%s474 + $0x1a0] sm:$0xff]
        %v577 = vld [vmem:[%s474 + $0x1a8] sm:$0xff]
        %v578 = vld [vmem:[%s474 + $0x1b0] sm:$0xff]
        %v579 = vld [vmem:[%s474 + $0x1b8] sm:$0xff]
        %v580 = vld [vmem:[%s474 + $0x1c0] sm:$0xff]
        %v581 = vld [vmem:[%s474 + $0x1c8] sm:$0xff]
        %v582 = vld [vmem:[%s474 + $0x1d0] sm:$0xff]
        %v583 = vld [vmem:[%s474 + $0x1d8] sm:$0xff]
        %v584 = vld [vmem:[%s474 + $0x1e0] sm:$0xff]
        %v585 = vld [vmem:[%s474 + $0x1e8] sm:$0xff]
        %v586 = vld [vmem:[%s474 + $0x1f0] sm:$0xff]
        %v587 = vld [vmem:[%s474 + $0x1f8] sm:$0xff]
        %v588 = vld [vmem:[%s474 + $0x200] sm:$0xff]
        %v589 = vld [vmem:[%s474 + $0x208] sm:$0xff]
        %v590 = vld [vmem:[%s474 + $0x210] sm:$0xff]
        %v591 = vld [vmem:[%s474 + $0x218] sm:$0xff]
        %v592 = vld [vmem:[%s474 + $0x220] sm:$0xff]
        %v593 = vld [vmem:[%s474 + $0x228] sm:$0xff]
        %v594 = vld [vmem:[%s474 + $0x230] sm:$0xff]
        %v595 = vld [vmem:[%s474 + $0x238] sm:$0xff]
        %v596 = vld [vmem:[%s474 + $0x240] sm:$0xff]
        %v597 = vld [vmem:[%s474 + $0x248] sm:$0xff]
        %v598 = vld [vmem:[%s474 + $0x250] sm:$0xff]
        %v599 = vld [vmem:[%s474 + $0x258] sm:$0xff]
        %v600 = vld [vmem:[%s474 + $0x260] sm:$0xff]
        %v601 = vld [vmem:[%s474 + $0x268] sm:$0xff]
        %v602 = vld [vmem:[%s474 + $0x270] sm:$0xff]
        %v603 = vld [vmem:[%s474 + $0x278] sm:$0xff]
        %v604 = vld [vmem:[%s474 + $0x280] sm:$0xff]
        %v605 = vld [vmem:[%s474 + $0x288] sm:$0xff]
        %v606 = vld [vmem:[%s474 + $0x290] sm:$0xff]
        %v607 = vld [vmem:[%s474 + $0x298] sm:$0xff]
        %v608 = vld [vmem:[%s474 + $0x2a0] sm:$0xff]
        %v609 = vld [vmem:[%s474 + $0x2a8] sm:$0xff]
        %v610 = vld [vmem:[%s474 + $0x2b0] sm:$0xff]
        %v611 = vld [vmem:[%s474 + $0x2b8] sm:$0xff]
        %v612 = vld [vmem:[%s474 + $0x2c0] sm:$0xff]
        %v613 = vld [vmem:[%s474 + $0x2c8] sm:$0xff]
        %v614 = vld [vmem:[%s474 + $0x2d0] sm:$0xff]
        %v615 = vld [vmem:[%s474 + $0x2d8] sm:$0xff]
        %v616 = vld [vmem:[%s474 + $0x2e0] sm:$0xff]
        %v617 = vld [vmem:[%s474 + $0x2e8] sm:$0xff]
        %v618 = vld [vmem:[%s474 + $0x2f0] sm:$0xff]
        %v619 = vld [vmem:[%s474 + $0x2f8] sm:$0xff]
        %v620 = vld [vmem:[%s474 + $0x300] sm:$0xff]
        %v621 = vld [vmem:[%s474 + $0x308] sm:$0xff]
        %v622 = vld [vmem:[%s474 + $0x310] sm:$0xff]
        %v623 = vld [vmem:[%s474 + $0x318] sm:$0xff]
        %v624 = vld [vmem:[%s474 + $0x320] sm:$0xff]
        %v625 = vld [vmem:[%s474 + $0x328] sm:$0xff]
        %v626 = vld [vmem:[%s474 + $0x330] sm:$0xff]
        %v627 = vld [vmem:[%s474 + $0x338] sm:$0xff]
        %v628 = vld [vmem:[%s474 + $0x340] sm:$0xff]
        %v629 = vld [vmem:[%s474 + $0x348] sm:$0xff]
        %v630 = vld [vmem:[%s474 + $0x350] sm:$0xff]
        %v631 = vld [vmem:[%s474 + $0x358] sm:$0xff]
        %v632 = vld [vmem:[%s474 + $0x360] sm:$0xff]
        %v633 = vld [vmem:[%s474 + $0x368] sm:$0xff]
        %v634 = vld [vmem:[%s474 + $0x370] sm:$0xff]
        %v635 = vld [vmem:[%s474 + $0x378] sm:$0xff]
        %v636 = vld [vmem:[%s474 + $0x380] sm:$0xff]
        %v637 = vld [vmem:[%s474 + $0x388] sm:$0xff]
        %v638 = vld [vmem:[%s474 + $0x390] sm:$0xff]
        %v639 = vld [vmem:[%s474 + $0x398] sm:$0xff]
        %v640 = vld [vmem:[%s474 + $0x3a0] sm:$0xff]
        %v641 = vld [vmem:[%s474 + $0x3a8] sm:$0xff]
        %v642 = vld [vmem:[%s474 + $0x3b0] sm:$0xff]
        %v643 = vld [vmem:[%s474 + $0x3b8] sm:$0xff]
        %v644 = vld [vmem:[%s474 + $0x3c0] sm:$0xff]
        %v645 = vld [vmem:[%s474 + $0x3c8] sm:$0xff]
        %v646 = vld [vmem:[%s474 + $0x3d0] sm:$0xff]
        %v647 = vld [vmem:[%s474 + $0x3d8] sm:$0xff]
        %v648 = vld [vmem:[%s474 + $0x3e0] sm:$0xff]
        %v649 = vld [vmem:[%s474 + $0x3e8] sm:$0xff]
        %v650 = vld [vmem:[%s474 + $0x3f0] sm:$0xff]
        %v651 = vld [vmem:[%s474 + $0x3f8] sm:$0xff]
        %v652 = vld [vmem:[%s2] sm:$0xff]
        %v653 = vld [vmem:[%s2 + $0x8] sm:$0xff]
        %655 = vset.pattern.permute.xlu0 0
        %656 = vperm.xlu0 %655, %v652
        %v657 = vpop.permute.xlu0 %656
        %660 = vset.pattern.permute.xlu0 0
        %661 = vperm.xlu0 %660, %v653
        %v662 = vpop.permute.xlu0 %661
        %v666 = vunpack.c.l.b16 %v522
        %v667 = vunpack.c.h.b16 %v522
        %v668 = vunpack.c.l.b16 %v523
        %v669 = vunpack.c.h.b16 %v523
        %v670 = vpack.c.b16 %v668, %v666
        %v671 = vpack.c.b16 %v669, %v667
        %v802 = vunpack.c.l.b16 %v524
        %v803 = vunpack.c.h.b16 %v524
        %v804 = vunpack.c.l.b16 %v525
        %v805 = vunpack.c.h.b16 %v525
        %v806 = vunpack.c.l.b16 %v526
        %v807 = vunpack.c.h.b16 %v526
        %v808 = vunpack.c.l.b16 %v527
        %v809 = vunpack.c.h.b16 %v527
        %v810 = vunpack.c.l.b16 %v528
        %v811 = vunpack.c.h.b16 %v528
        %v812 = vunpack.c.l.b16 %v529
        %v813 = vunpack.c.h.b16 %v529
        %v814 = vunpack.c.l.b16 %v530
        %v815 = vunpack.c.h.b16 %v530
        %v816 = vunpack.c.l.b16 %v531
        %v817 = vunpack.c.h.b16 %v531
        %v818 = vunpack.c.l.b16 %v532
        %v819 = vunpack.c.h.b16 %v532
        %v820 = vunpack.c.l.b16 %v533
        %v821 = vunpack.c.h.b16 %v533
        %v822 = vunpack.c.l.b16 %v534
        %v823 = vunpack.c.h.b16 %v534
        %v824 = vunpack.c.l.b16 %v535
        %v825 = vunpack.c.h.b16 %v535
        %v826 = vunpack.c.l.b16 %v536
        %v827 = vunpack.c.h.b16 %v536
        %v828 = vunpack.c.l.b16 %v537
        %v829 = vunpack.c.h.b16 %v537
        %v830 = vunpack.c.l.b16 %v538
        %v831 = vunpack.c.h.b16 %v538
        %v832 = vunpack.c.l.b16 %v539
        %v833 = vunpack.c.h.b16 %v539
        %v834 = vunpack.c.l.b16 %v540
        %v835 = vunpack.c.h.b16 %v540
        %v836 = vunpack.c.l.b16 %v541
        %v837 = vunpack.c.h.b16 %v541
        %v838 = vunpack.c.l.b16 %v542
        %v839 = vunpack.c.h.b16 %v542
        %v840 = vunpack.c.l.b16 %v543
        %v841 = vunpack.c.h.b16 %v543
        %v842 = vunpack.c.l.b16 %v544
        %v843 = vunpack.c.h.b16 %v544
        %v844 = vunpack.c.l.b16 %v545
        %v845 = vunpack.c.h.b16 %v545
        %v846 = vunpack.c.l.b16 %v546
        %v847 = vunpack.c.h.b16 %v546
        %v848 = vunpack.c.l.b16 %v547
        %v849 = vunpack.c.h.b16 %v547
        %v850 = vunpack.c.l.b16 %v548
        %v851 = vunpack.c.h.b16 %v548
        %v852 = vunpack.c.l.b16 %v549
        %v853 = vunpack.c.h.b16 %v549
        %v854 = vunpack.c.l.b16 %v550
        %v855 = vunpack.c.h.b16 %v550
        %v856 = vunpack.c.l.b16 %v551
        %v857 = vunpack.c.h.b16 %v551
        %v858 = vunpack.c.l.b16 %v552
        %v859 = vunpack.c.h.b16 %v552
        %v860 = vunpack.c.l.b16 %v553
        %v861 = vunpack.c.h.b16 %v553
        %v862 = vunpack.c.l.b16 %v554
        %v863 = vunpack.c.h.b16 %v554
        %v864 = vunpack.c.l.b16 %v555
        %v865 = vunpack.c.h.b16 %v555
        %v866 = vunpack.c.l.b16 %v556
        %v867 = vunpack.c.h.b16 %v556
        %v868 = vunpack.c.l.b16 %v557
        %v869 = vunpack.c.h.b16 %v557
        %v870 = vunpack.c.l.b16 %v558
        %v871 = vunpack.c.h.b16 %v558
        %v872 = vunpack.c.l.b16 %v559
        %v873 = vunpack.c.h.b16 %v559
        %v874 = vunpack.c.l.b16 %v560
        %v875 = vunpack.c.h.b16 %v560
        %v876 = vunpack.c.l.b16 %v561
        %v877 = vunpack.c.h.b16 %v561
        %v878 = vunpack.c.l.b16 %v562
        %v879 = vunpack.c.h.b16 %v562
        %v880 = vunpack.c.l.b16 %v563
        %v881 = vunpack.c.h.b16 %v563
        %v882 = vunpack.c.l.b16 %v564
        %v883 = vunpack.c.h.b16 %v564
        %v884 = vunpack.c.l.b16 %v565
        %v885 = vunpack.c.h.b16 %v565
        %v886 = vunpack.c.l.b16 %v566
        %v887 = vunpack.c.h.b16 %v566
        %v888 = vunpack.c.l.b16 %v567
        %v889 = vunpack.c.h.b16 %v567
        %v890 = vunpack.c.l.b16 %v568
        %v891 = vunpack.c.h.b16 %v568
        %v892 = vunpack.c.l.b16 %v569
        %v893 = vunpack.c.h.b16 %v569
        %v894 = vunpack.c.l.b16 %v570
        %v895 = vunpack.c.h.b16 %v570
        %v896 = vunpack.c.l.b16 %v571
        %v897 = vunpack.c.h.b16 %v571
        %v898 = vunpack.c.l.b16 %v572
        %v899 = vunpack.c.h.b16 %v572
        %v900 = vunpack.c.l.b16 %v573
        %v901 = vunpack.c.h.b16 %v573
        %v902 = vunpack.c.l.b16 %v574
        %v903 = vunpack.c.h.b16 %v574
        %v904 = vunpack.c.l.b16 %v575
        %v905 = vunpack.c.h.b16 %v575
        %v906 = vunpack.c.l.b16 %v576
        %v907 = vunpack.c.h.b16 %v576
        %v908 = vunpack.c.l.b16 %v577
        %v909 = vunpack.c.h.b16 %v577
        %v910 = vunpack.c.l.b16 %v578
        %v911 = vunpack.c.h.b16 %v578
        %v912 = vunpack.c.l.b16 %v579
        %v913 = vunpack.c.h.b16 %v579
        %v914 = vunpack.c.l.b16 %v580
        %v915 = vunpack.c.h.b16 %v580
        %v916 = vunpack.c.l.b16 %v581
        %v917 = vunpack.c.h.b16 %v581
        %v918 = vunpack.c.l.b16 %v582
        %v919 = vunpack.c.h.b16 %v582
        %v920 = vunpack.c.l.b16 %v583
        %v921 = vunpack.c.h.b16 %v583
        %v922 = vunpack.c.l.b16 %v584
        %v923 = vunpack.c.h.b16 %v584
        %v924 = vunpack.c.l.b16 %v585
        %v925 = vunpack.c.h.b16 %v585
        %v926 = vunpack.c.l.b16 %v586
        %v927 = vunpack.c.h.b16 %v586
        %v928 = vunpack.c.l.b16 %v587
        %v929 = vunpack.c.h.b16 %v587
        %v930 = vunpack.c.l.b16 %v588
        %v931 = vunpack.c.h.b16 %v588
        %v932 = vunpack.c.l.b16 %v589
        %v933 = vunpack.c.h.b16 %v589
        %v934 = vunpack.c.l.b16 %v590
        %v935 = vunpack.c.h.b16 %v590
        %v936 = vunpack.c.l.b16 %v591
        %v937 = vunpack.c.h.b16 %v591
        %v938 = vunpack.c.l.b16 %v592
        %v939 = vunpack.c.h.b16 %v592
        %v940 = vunpack.c.l.b16 %v593
        %v941 = vunpack.c.h.b16 %v593
        %v942 = vunpack.c.l.b16 %v594
        %v943 = vunpack.c.h.b16 %v594
        %v944 = vunpack.c.l.b16 %v595
        %v945 = vunpack.c.h.b16 %v595
        %v946 = vunpack.c.l.b16 %v596
        %v947 = vunpack.c.h.b16 %v596
        %v948 = vunpack.c.l.b16 %v597
        %v949 = vunpack.c.h.b16 %v597
        %v950 = vunpack.c.l.b16 %v598
        %v951 = vunpack.c.h.b16 %v598
        %v952 = vunpack.c.l.b16 %v599
        %v953 = vunpack.c.h.b16 %v599
        %v954 = vunpack.c.l.b16 %v600
        %v955 = vunpack.c.h.b16 %v600
        %v956 = vunpack.c.l.b16 %v601
        %v957 = vunpack.c.h.b16 %v601
        %v958 = vunpack.c.l.b16 %v602
        %v959 = vunpack.c.h.b16 %v602
        %v960 = vunpack.c.l.b16 %v603
        %v961 = vunpack.c.h.b16 %v603
        %v962 = vunpack.c.l.b16 %v604
        %v963 = vunpack.c.h.b16 %v604
        %v964 = vunpack.c.l.b16 %v605
        %v965 = vunpack.c.h.b16 %v605
        %v966 = vunpack.c.l.b16 %v606
        %v967 = vunpack.c.h.b16 %v606
        %v968 = vunpack.c.l.b16 %v607
        %v969 = vunpack.c.h.b16 %v607
        %v970 = vunpack.c.l.b16 %v608
        %v971 = vunpack.c.h.b16 %v608
        %v972 = vunpack.c.l.b16 %v609
        %v973 = vunpack.c.h.b16 %v609
        %v974 = vunpack.c.l.b16 %v610
        %v975 = vunpack.c.h.b16 %v610
        %v976 = vunpack.c.l.b16 %v611
        %v977 = vunpack.c.h.b16 %v611
        %v978 = vunpack.c.l.b16 %v612
        %v979 = vunpack.c.h.b16 %v612
        %v980 = vunpack.c.l.b16 %v613
        %v981 = vunpack.c.h.b16 %v613
        %v982 = vunpack.c.l.b16 %v614
        %v983 = vunpack.c.h.b16 %v614
        %v984 = vunpack.c.l.b16 %v615
        %v985 = vunpack.c.h.b16 %v615
        %v986 = vunpack.c.l.b16 %v616
        %v987 = vunpack.c.h.b16 %v616
        %v988 = vunpack.c.l.b16 %v617
        %v989 = vunpack.c.h.b16 %v617
        %v990 = vunpack.c.l.b16 %v618
        %v991 = vunpack.c.h.b16 %v618
        %v992 = vunpack.c.l.b16 %v619
        %v993 = vunpack.c.h.b16 %v619
        %v994 = vunpack.c.l.b16 %v620
        %v995 = vunpack.c.h.b16 %v620
        %v996 = vunpack.c.l.b16 %v621
        %v997 = vunpack.c.h.b16 %v621
        %v998 = vunpack.c.l.b16 %v622
        %v999 = vunpack.c.h.b16 %v622
        %v1000 = vunpack.c.l.b16 %v623
        %v1001 = vunpack.c.h.b16 %v623
        %v1002 = vunpack.c.l.b16 %v624
        %v1003 = vunpack.c.h.b16 %v624
        %v1004 = vunpack.c.l.b16 %v625
        %v1005 = vunpack.c.h.b16 %v625
        %v1006 = vunpack.c.l.b16 %v626
        %v1007 = vunpack.c.h.b16 %v626
        %v1008 = vunpack.c.l.b16 %v627
        %v1009 = vunpack.c.h.b16 %v627
        %v1010 = vunpack.c.l.b16 %v628
        %v1011 = vunpack.c.h.b16 %v628
        %v1012 = vunpack.c.l.b16 %v629
        %v1013 = vunpack.c.h.b16 %v629
        %v1014 = vunpack.c.l.b16 %v630
        %v1015 = vunpack.c.h.b16 %v630
        %v1016 = vunpack.c.l.b16 %v631
        %v1017 = vunpack.c.h.b16 %v631
        %v1018 = vunpack.c.l.b16 %v632
        %v1019 = vunpack.c.h.b16 %v632
        %v1020 = vunpack.c.l.b16 %v633
        %v1021 = vunpack.c.h.b16 %v633
        %v1022 = vunpack.c.l.b16 %v634
        %v1023 = vunpack.c.h.b16 %v634
        %v1024 = vunpack.c.l.b16 %v635
        %v1025 = vunpack.c.h.b16 %v635
        %v1026 = vunpack.c.l.b16 %v636
        %v1027 = vunpack.c.h.b16 %v636
        %v1028 = vunpack.c.l.b16 %v637
        %v1029 = vunpack.c.h.b16 %v637
        %v1030 = vunpack.c.l.b16 %v638
        %v1031 = vunpack.c.h.b16 %v638
        %v1032 = vunpack.c.l.b16 %v639
        %v1033 = vunpack.c.h.b16 %v639
        %v1034 = vunpack.c.l.b16 %v640
        %v1035 = vunpack.c.h.b16 %v640
        %v1036 = vunpack.c.l.b16 %v641
        %v1037 = vunpack.c.h.b16 %v641
        %v1038 = vunpack.c.l.b16 %v642
        %v1039 = vunpack.c.h.b16 %v642
        %v1040 = vunpack.c.l.b16 %v643
        %v1041 = vunpack.c.h.b16 %v643
        %v1042 = vunpack.c.l.b16 %v644
        %v1043 = vunpack.c.h.b16 %v644
        %v1044 = vunpack.c.l.b16 %v645
        %v1045 = vunpack.c.h.b16 %v645
        %v1046 = vunpack.c.l.b16 %v646
        %v1047 = vunpack.c.h.b16 %v646
        %v1048 = vunpack.c.l.b16 %v647
        %v1049 = vunpack.c.h.b16 %v647
        %v1050 = vunpack.c.l.b16 %v648
        %v1051 = vunpack.c.h.b16 %v648
        %v1052 = vunpack.c.l.b16 %v649
        %v1053 = vunpack.c.h.b16 %v649
        %v1054 = vunpack.c.l.b16 %v650
        %v1055 = vunpack.c.h.b16 %v650
        %v1056 = vunpack.c.l.b16 %v651
        %v1057 = vunpack.c.h.b16 %v651
        %v1058 = vpack.c.b16 %v810, %v802
        %v1059 = vpack.c.b16 %v811, %v803
        %v1060 = vpack.c.b16 %v812, %v804
        %v1061 = vpack.c.b16 %v813, %v805
        %v1062 = vpack.c.b16 %v814, %v806
        %v1063 = vpack.c.b16 %v815, %v807
        %v1064 = vpack.c.b16 %v816, %v808
        %v1065 = vpack.c.b16 %v817, %v809
        %v1066 = vpack.c.b16 %v826, %v818
        %v1067 = vpack.c.b16 %v827, %v819
        %v1068 = vpack.c.b16 %v828, %v820
        %v1069 = vpack.c.b16 %v829, %v821
        %v1070 = vpack.c.b16 %v830, %v822
        %v1071 = vpack.c.b16 %v831, %v823
        %v1072 = vpack.c.b16 %v832, %v824
        %v1073 = vpack.c.b16 %v833, %v825
        %v1074 = vpack.c.b16 %v842, %v834
        %v1075 = vpack.c.b16 %v843, %v835
        %v1076 = vpack.c.b16 %v844, %v836
        %v1077 = vpack.c.b16 %v845, %v837
        %v1078 = vpack.c.b16 %v846, %v838
        %v1079 = vpack.c.b16 %v847, %v839
        %v1080 = vpack.c.b16 %v848, %v840
        %v1081 = vpack.c.b16 %v849, %v841
        %v1082 = vpack.c.b16 %v858, %v850
        %v1083 = vpack.c.b16 %v859, %v851
        %v1084 = vpack.c.b16 %v860, %v852
        %v1085 = vpack.c.b16 %v861, %v853
        %v1086 = vpack.c.b16 %v862, %v854
        %v1087 = vpack.c.b16 %v863, %v855
        %v1088 = vpack.c.b16 %v864, %v856
        %v1089 = vpack.c.b16 %v865, %v857
        %v1090 = vpack.c.b16 %v874, %v866
        %v1091 = vpack.c.b16 %v875, %v867
        %v1092 = vpack.c.b16 %v876, %v868
        %v1093 = vpack.c.b16 %v877, %v869
        %v1094 = vpack.c.b16 %v878, %v870
        %v1095 = vpack.c.b16 %v879, %v871
        %v1096 = vpack.c.b16 %v880, %v872
        %v1097 = vpack.c.b16 %v881, %v873
        %v1098 = vpack.c.b16 %v890, %v882
        %v1099 = vpack.c.b16 %v891, %v883
        %v1100 = vpack.c.b16 %v892, %v884
        %v1101 = vpack.c.b16 %v893, %v885
        %v1102 = vpack.c.b16 %v894, %v886
        %v1103 = vpack.c.b16 %v895, %v887
        %v1104 = vpack.c.b16 %v896, %v888
        %v1105 = vpack.c.b16 %v897, %v889
        %v1106 = vpack.c.b16 %v906, %v898
        %v1107 = vpack.c.b16 %v907, %v899
        %v1108 = vpack.c.b16 %v908, %v900
        %v1109 = vpack.c.b16 %v909, %v901
        %v1110 = vpack.c.b16 %v910, %v902
        %v1111 = vpack.c.b16 %v911, %v903
        %v1112 = vpack.c.b16 %v912, %v904
        %v1113 = vpack.c.b16 %v913, %v905
        %v1114 = vpack.c.b16 %v922, %v914
        %v1115 = vpack.c.b16 %v923, %v915
        %v1116 = vpack.c.b16 %v924, %v916
        %v1117 = vpack.c.b16 %v925, %v917
        %v1118 = vpack.c.b16 %v926, %v918
        %v1119 = vpack.c.b16 %v927, %v919
        %v1120 = vpack.c.b16 %v928, %v920
        %v1121 = vpack.c.b16 %v929, %v921
        %v1122 = vpack.c.b16 %v938, %v930
        %v1123 = vpack.c.b16 %v939, %v931
        %v1124 = vpack.c.b16 %v940, %v932
        %v1125 = vpack.c.b16 %v941, %v933
        %v1126 = vpack.c.b16 %v942, %v934
        %v1127 = vpack.c.b16 %v943, %v935
        %v1128 = vpack.c.b16 %v944, %v936
        %v1129 = vpack.c.b16 %v945, %v937
        %v1130 = vpack.c.b16 %v954, %v946
        %v1131 = vpack.c.b16 %v955, %v947
        %v1132 = vpack.c.b16 %v956, %v948
        %v1133 = vpack.c.b16 %v957, %v949
        %v1134 = vpack.c.b16 %v958, %v950
        %v1135 = vpack.c.b16 %v959, %v951
        %v1136 = vpack.c.b16 %v960, %v952
        %v1137 = vpack.c.b16 %v961, %v953
        %v1138 = vpack.c.b16 %v970, %v962
        %v1139 = vpack.c.b16 %v971, %v963
        %v1140 = vpack.c.b16 %v972, %v964
        %v1141 = vpack.c.b16 %v973, %v965
        %v1142 = vpack.c.b16 %v974, %v966
        %v1143 = vpack.c.b16 %v975, %v967
        %v1144 = vpack.c.b16 %v976, %v968
        %v1145 = vpack.c.b16 %v977, %v969
        %v1146 = vpack.c.b16 %v986, %v978
        %v1147 = vpack.c.b16 %v987, %v979
        %v1148 = vpack.c.b16 %v988, %v980
        %v1149 = vpack.c.b16 %v989, %v981
        %v1150 = vpack.c.b16 %v990, %v982
        %v1151 = vpack.c.b16 %v991, %v983
        %v1152 = vpack.c.b16 %v992, %v984
        %v1153 = vpack.c.b16 %v993, %v985
        %v1154 = vpack.c.b16 %v1002, %v994
        %v1155 = vpack.c.b16 %v1003, %v995
        %v1156 = vpack.c.b16 %v1004, %v996
        %v1157 = vpack.c.b16 %v1005, %v997
        %v1158 = vpack.c.b16 %v1006, %v998
        %v1159 = vpack.c.b16 %v1007, %v999
        %v1160 = vpack.c.b16 %v1008, %v1000
        %v1161 = vpack.c.b16 %v1009, %v1001
        %v1162 = vpack.c.b16 %v1018, %v1010
        %v1163 = vpack.c.b16 %v1019, %v1011
        %v1164 = vpack.c.b16 %v1020, %v1012
        %v1165 = vpack.c.b16 %v1021, %v1013
        %v1166 = vpack.c.b16 %v1022, %v1014
        %v1167 = vpack.c.b16 %v1023, %v1015
        %v1168 = vpack.c.b16 %v1024, %v1016
        %v1169 = vpack.c.b16 %v1025, %v1017
        %v1170 = vpack.c.b16 %v1034, %v1026
        %v1171 = vpack.c.b16 %v1035, %v1027
        %v1172 = vpack.c.b16 %v1036, %v1028
        %v1173 = vpack.c.b16 %v1037, %v1029
        %v1174 = vpack.c.b16 %v1038, %v1030
        %v1175 = vpack.c.b16 %v1039, %v1031
        %v1176 = vpack.c.b16 %v1040, %v1032
        %v1177 = vpack.c.b16 %v1041, %v1033
        %v1178 = vpack.c.b16 %v1050, %v1042
        %v1179 = vpack.c.b16 %v1051, %v1043
        %v1180 = vpack.c.b16 %v1052, %v1044
        %v1181 = vpack.c.b16 %v1053, %v1045
        %v1182 = vpack.c.b16 %v1054, %v1046
        %v1183 = vpack.c.b16 %v1055, %v1047
        %v1184 = vpack.c.b16 %v1056, %v1048
        %v1185 = vpack.c.b16 %v1057, %v1049
        %1314 = vmatpush.bf16.msra.mxu0 %v1114
        %1315 = vmatpush.bf16.msra.mxu0 %v1106
        %1316 = vmatpush.bf16.msra.mxu0 %v1098
        %1317 = vmatpush.bf16.msra.mxu0 %v1090
        %1318 = vmatpush.bf16.msra.mxu0 %v1082
        %1319 = vmatpush.bf16.msra.mxu0 %v1074
        %1320 = vmatpush.bf16.msra.mxu0 %v1066
        %1321 = vmatpush.bf16.msra.mxu0 %v1058
        %1322 = vmatmul.bf16.gmra.mxu0 %v670
        %v1323 = vpop.f32.mrf.mxu0
        %v1324 = vadd.f32 %v657, %v1323
        %v1325 = vpop.f32.mrf.mxu0
        %v1326 = vadd.f32 %v662, %v1325
        %1327 = vdwg.mxu0
        %1328 = vmatpush.bf16.msra.mxu0 %v1178
        %1329 = vmatpush.bf16.msra.mxu0 %v1170
        %1330 = vmatpush.bf16.msra.mxu0 %v1162
        %1331 = vmatpush.bf16.msra.mxu0 %v1154
        %1332 = vmatpush.bf16.msra.mxu0 %v1146
        %1333 = vmatpush.bf16.msra.mxu0 %v1138
        %1334 = vmatpush.bf16.msra.mxu0 %v1130
        %1335 = vmatpush.bf16.msra.mxu0 %v1122
        %1336 = vmatmul.bf16.gmra.mxu0 %v671
        %v1337 = vpop.f32.mrf.mxu0
        %v1338 = vadd.f32 %v1324, %v1337
        %v1339 = vpop.f32.mrf.mxu0
        %v1340 = vadd.f32 %v1326, %v1339
        %1341 = vdwg.mxu0
        %1342 = vmatpush.bf16.msra.mxu0 %v1115
        %1343 = vmatpush.bf16.msra.mxu0 %v1107
        %1344 = vmatpush.bf16.msra.mxu0 %v1099
        %1345 = vmatpush.bf16.msra.mxu0 %v1091
        %1346 = vmatpush.bf16.msra.mxu0 %v1083
        %1347 = vmatpush.bf16.msra.mxu0 %v1075
        %1348 = vmatpush.bf16.msra.mxu0 %v1067
        %1349 = vmatpush.bf16.msra.mxu0 %v1059
        %1350 = vmatmul.bf16.gmra.mxu0 %v670
        %v1351 = vpop.f32.mrf.mxu0
        %v1352 = vadd.f32 %v657, %v1351
        %v1353 = vpop.f32.mrf.mxu0
        %v1354 = vadd.f32 %v662, %v1353
        %1355 = vdwg.mxu0
        %1356 = vmatpush.bf16.msra.mxu0 %v1179
        %1357 = vmatpush.bf16.msra.mxu0 %v1171
        %1358 = vmatpush.bf16.msra.mxu0 %v1163
        %1359 = vmatpush.bf16.msra.mxu0 %v1155
        %1360 = vmatpush.bf16.msra.mxu0 %v1147
        %1361 = vmatpush.bf16.msra.mxu0 %v1139
        %1362 = vmatpush.bf16.msra.mxu0 %v1131
        %1363 = vmatpush.bf16.msra.mxu0 %v1123
        %1364 = vmatmul.bf16.gmra.mxu0 %v671
        %v1365 = vpop.f32.mrf.mxu0
        %v1366 = vadd.f32 %v1352, %v1365
        %v1367 = vpop.f32.mrf.mxu0
        %v1368 = vadd.f32 %v1354, %v1367
        %1369 = vdwg.mxu0
        %1370 = vmatpush.bf16.msra.mxu0 %v1116
        %1371 = vmatpush.bf16.msra.mxu0 %v1108
        %1372 = vmatpush.bf16.msra.mxu0 %v1100
        %1373 = vmatpush.bf16.msra.mxu0 %v1092
        %1374 = vmatpush.bf16.msra.mxu0 %v1084
        %1375 = vmatpush.bf16.msra.mxu0 %v1076
        %1376 = vmatpush.bf16.msra.mxu0 %v1068
        %1377 = vmatpush.bf16.msra.mxu0 %v1060
        %1378 = vmatmul.bf16.gmra.mxu0 %v670
        %v1379 = vpop.f32.mrf.mxu0
        %v1380 = vadd.f32 %v657, %v1379
        %v1381 = vpop.f32.mrf.mxu0
        %v1382 = vadd.f32 %v662, %v1381
        %1383 = vdwg.mxu0
        %1384 = vmatpush.bf16.msra.mxu0 %v1180
        %1385 = vmatpush.bf16.msra.mxu0 %v1172
        %1386 = vmatpush.bf16.msra.mxu0 %v1164
        %1387 = vmatpush.bf16.msra.mxu0 %v1156
        %1388 = vmatpush.bf16.msra.mxu0 %v1148
        %1389 = vmatpush.bf16.msra.mxu0 %v1140
        %1390 = vmatpush.bf16.msra.mxu0 %v1132
        %1391 = vmatpush.bf16.msra.mxu0 %v1124
        %1392 = vmatmul.bf16.gmra.mxu0 %v671
        %v1393 = vpop.f32.mrf.mxu0
        %v1394 = vadd.f32 %v1380, %v1393
        %v1395 = vpop.f32.mrf.mxu0
        %v1396 = vadd.f32 %v1382, %v1395
        %1397 = vdwg.mxu0
        %1398 = vmatpush.bf16.msra.mxu0 %v1117
        %1399 = vmatpush.bf16.msra.mxu0 %v1109
        %1400 = vmatpush.bf16.msra.mxu0 %v1101
        %1401 = vmatpush.bf16.msra.mxu0 %v1093
        %1402 = vmatpush.bf16.msra.mxu0 %v1085
        %1403 = vmatpush.bf16.msra.mxu0 %v1077
        %1404 = vmatpush.bf16.msra.mxu0 %v1069
        %1405 = vmatpush.bf16.msra.mxu0 %v1061
        %1406 = vmatmul.bf16.gmra.mxu0 %v670
        %v1407 = vpop.f32.mrf.mxu0
        %v1408 = vadd.f32 %v657, %v1407
        %v1409 = vpop.f32.mrf.mxu0
        %v1410 = vadd.f32 %v662, %v1409
        %1411 = vdwg.mxu0
        %1412 = vmatpush.bf16.msra.mxu0 %v1181
        %1413 = vmatpush.bf16.msra.mxu0 %v1173
        %1414 = vmatpush.bf16.msra.mxu0 %v1165
        %1415 = vmatpush.bf16.msra.mxu0 %v1157
        %1416 = vmatpush.bf16.msra.mxu0 %v1149
        %1417 = vmatpush.bf16.msra.mxu0 %v1141
        %1418 = vmatpush.bf16.msra.mxu0 %v1133
        %1419 = vmatpush.bf16.msra.mxu0 %v1125
        %1420 = vmatmul.bf16.gmra.mxu0 %v671
        %v1421 = vpop.f32.mrf.mxu0
        %v1422 = vadd.f32 %v1408, %v1421
        %v1423 = vpop.f32.mrf.mxu0
        %v1424 = vadd.f32 %v1410, %v1423
        %1425 = vdwg.mxu0
        %1426 = vmatpush.bf16.msra.mxu0 %v1118
        %1427 = vmatpush.bf16.msra.mxu0 %v1110
        %1428 = vmatpush.bf16.msra.mxu0 %v1102
        %1429 = vmatpush.bf16.msra.mxu0 %v1094
        %1430 = vmatpush.bf16.msra.mxu0 %v1086
        %1431 = vmatpush.bf16.msra.mxu0 %v1078
        %1432 = vmatpush.bf16.msra.mxu0 %v1070
        %1433 = vmatpush.bf16.msra.mxu0 %v1062
        %1434 = vmatmul.bf16.gmra.mxu0 %v670
        %v1435 = vpop.f32.mrf.mxu0
        %v1436 = vadd.f32 %v657, %v1435
        %v1437 = vpop.f32.mrf.mxu0
        %v1438 = vadd.f32 %v662, %v1437
        %1439 = vdwg.mxu0
        %1440 = vmatpush.bf16.msra.mxu0 %v1182
        %1441 = vmatpush.bf16.msra.mxu0 %v1174
        %1442 = vmatpush.bf16.msra.mxu0 %v1166
        %1443 = vmatpush.bf16.msra.mxu0 %v1158
        %1444 = vmatpush.bf16.msra.mxu0 %v1150
        %1445 = vmatpush.bf16.msra.mxu0 %v1142
        %1446 = vmatpush.bf16.msra.mxu0 %v1134
        %1447 = vmatpush.bf16.msra.mxu0 %v1126
        %1448 = vmatmul.bf16.gmra.mxu0 %v671
        %v1449 = vpop.f32.mrf.mxu0
        %v1450 = vadd.f32 %v1436, %v1449
        %v1451 = vpop.f32.mrf.mxu0
        %v1452 = vadd.f32 %v1438, %v1451
        %1453 = vdwg.mxu0
        %1454 = vmatpush.bf16.msra.mxu0 %v1119
        %1455 = vmatpush.bf16.msra.mxu0 %v1111
        %1456 = vmatpush.bf16.msra.mxu0 %v1103
        %1457 = vmatpush.bf16.msra.mxu0 %v1095
        %1458 = vmatpush.bf16.msra.mxu0 %v1087
        %1459 = vmatpush.bf16.msra.mxu0 %v1079
        %1460 = vmatpush.bf16.msra.mxu0 %v1071
        %1461 = vmatpush.bf16.msra.mxu0 %v1063
        %1462 = vmatmul.bf16.gmra.mxu0 %v670
        %v1463 = vpop.f32.mrf.mxu0
        %v1464 = vadd.f32 %v657, %v1463
        %v1465 = vpop.f32.mrf.mxu0
        %v1466 = vadd.f32 %v662, %v1465
        %1467 = vdwg.mxu0
        %1468 = vmatpush.bf16.msra.mxu0 %v1183
        %1469 = vmatpush.bf16.msra.mxu0 %v1175
        %1470 = vmatpush.bf16.msra.mxu0 %v1167
        %1471 = vmatpush.bf16.msra.mxu0 %v1159
        %1472 = vmatpush.bf16.msra.mxu0 %v1151
        %1473 = vmatpush.bf16.msra.mxu0 %v1143
        %1474 = vmatpush.bf16.msra.mxu0 %v1135
        %1475 = vmatpush.bf16.msra.mxu0 %v1127
        %1476 = vmatmul.bf16.gmra.mxu0 %v671
        %v1477 = vpop.f32.mrf.mxu0
        %v1478 = vadd.f32 %v1464, %v1477
        %v1479 = vpop.f32.mrf.mxu0
        %v1480 = vadd.f32 %v1466, %v1479
        %1481 = vdwg.mxu0
        %1482 = vmatpush.bf16.msra.mxu0 %v1120
        %1483 = vmatpush.bf16.msra.mxu0 %v1112
        %1484 = vmatpush.bf16.msra.mxu0 %v1104
        %1485 = vmatpush.bf16.msra.mxu0 %v1096
        %1486 = vmatpush.bf16.msra.mxu0 %v1088
        %1487 = vmatpush.bf16.msra.mxu0 %v1080
        %1488 = vmatpush.bf16.msra.mxu0 %v1072
        %1489 = vmatpush.bf16.msra.mxu0 %v1064
        %1490 = vmatmul.bf16.gmra.mxu0 %v670
        %v1491 = vpop.f32.mrf.mxu0
        %v1492 = vadd.f32 %v657, %v1491
        %v1493 = vpop.f32.mrf.mxu0
        %v1494 = vadd.f32 %v662, %v1493
        %1495 = vdwg.mxu0
        %1496 = vmatpush.bf16.msra.mxu0 %v1184
        %1497 = vmatpush.bf16.msra.mxu0 %v1176
        %1498 = vmatpush.bf16.msra.mxu0 %v1168
        %1499 = vmatpush.bf16.msra.mxu0 %v1160
        %1500 = vmatpush.bf16.msra.mxu0 %v1152
        %1501 = vmatpush.bf16.msra.mxu0 %v1144
        %1502 = vmatpush.bf16.msra.mxu0 %v1136
        %1503 = vmatpush.bf16.msra.mxu0 %v1128
        %1504 = vmatmul.bf16.gmra.mxu0 %v671
        %v1505 = vpop.f32.mrf.mxu0
        %v1506 = vadd.f32 %v1492, %v1505
        %v1507 = vpop.f32.mrf.mxu0
        %v1508 = vadd.f32 %v1494, %v1507
        %1509 = vdwg.mxu0
        %1510 = vmatpush.bf16.msra.mxu0 %v1121
        %1511 = vmatpush.bf16.msra.mxu0 %v1113
        %1512 = vmatpush.bf16.msra.mxu0 %v1105
        %1513 = vmatpush.bf16.msra.mxu0 %v1097
        %1514 = vmatpush.bf16.msra.mxu0 %v1089
        %1515 = vmatpush.bf16.msra.mxu0 %v1081
        %1516 = vmatpush.bf16.msra.mxu0 %v1073
        %1517 = vmatpush.bf16.msra.mxu0 %v1065
        %1518 = vmatmul.bf16.gmra.mxu0 %v670
        %v1519 = vpop.f32.mrf.mxu0
        %v1520 = vadd.f32 %v657, %v1519
        %v1521 = vpop.f32.mrf.mxu0
        %v1522 = vadd.f32 %v662, %v1521
        %1523 = vdwg.mxu0
        %1524 = vmatpush.bf16.msra.mxu0 %v1185
        %1525 = vmatpush.bf16.msra.mxu0 %v1177
        %1526 = vmatpush.bf16.msra.mxu0 %v1169
        %1527 = vmatpush.bf16.msra.mxu0 %v1161
        %1528 = vmatpush.bf16.msra.mxu0 %v1153
        %1529 = vmatpush.bf16.msra.mxu0 %v1145
        %1530 = vmatpush.bf16.msra.mxu0 %v1137
        %1531 = vmatpush.bf16.msra.mxu0 %v1129
        %1532 = vmatmul.bf16.gmra.mxu0 %v671
        %v1533 = vpop.f32.mrf.mxu0
        %v1534 = vadd.f32 %v1520, %v1533
        %v1535 = vpop.f32.mrf.mxu0
        %v1536 = vadd.f32 %v1522, %v1535
        %1537 = vdwg.mxu0
        %vm1538 = vcmp.ge.f32.partialorder %v1338, 0.0
        %vm1539 = vcmp.ge.f32.partialorder %v1366, 0.0
        %vm1540 = vcmp.ge.f32.partialorder %v1394, 0.0
        %vm1541 = vcmp.ge.f32.partialorder %v1422, 0.0
        %vm1542 = vcmp.ge.f32.partialorder %v1450, 0.0
        %vm1543 = vcmp.ge.f32.partialorder %v1478, 0.0
        %vm1544 = vcmp.ge.f32.partialorder %v1506, 0.0
        %vm1545 = vcmp.ge.f32.partialorder %v1534, 0.0
        %v1546 = vmul.f32 %v1338, 0.2
        %v1547 = vmul.f32 %v1366, 0.2
        %v1548 = vmul.f32 %v1394, 0.2
        %v1549 = vmul.f32 %v1422, 0.2
        %v1550 = vmul.f32 %v1450, 0.2
        %v1551 = vmul.f32 %v1478, 0.2
        %v1552 = vmul.f32 %v1506, 0.2
        %v1553 = vmul.f32 %v1534, 0.2
        %v1554 = vsel %vm1538, %v1338, %v1546
        %v1555 = vsel %vm1539, %v1366, %v1547
        %v1556 = vsel %vm1540, %v1394, %v1548
        %v1557 = vsel %vm1541, %v1422, %v1549
        %v1558 = vsel %vm1542, %v1450, %v1550
        %v1559 = vsel %vm1543, %v1478, %v1551
        %v1560 = vsel %vm1544, %v1506, %v1552
        %v1561 = vsel %vm1545, %v1534, %v1553
        %v1562 = vmul.f32 %v1340, 0.5
        %v1563 = vmul.f32 %v1368, 0.5
        %v1564 = vmul.f32 %v1396, 0.5
        %v1565 = vmul.f32 %v1424, 0.5
        %v1566 = vmul.f32 %v1452, 0.5
        %v1567 = vmul.f32 %v1480, 0.5
        %v1568 = vmul.f32 %v1508, 0.5
        %v1569 = vmul.f32 %v1536, 0.5
        %v1570 = vtanh.pop %v1562
        %v1571 = vtanh.pop %v1563
        %v1572 = vtanh.pop %v1564
        %v1573 = vtanh.pop %v1565
        %v1574 = vtanh.pop %v1566
        %v1575 = vtanh.pop %v1567
        %v1576 = vtanh.pop %v1568
        %v1577 = vtanh.pop %v1569
        %v1578 = vadd.f32 %v1570, 1.0
        %v1579 = vadd.f32 %v1571, 1.0
        %v1580 = vadd.f32 %v1572, 1.0
        %v1581 = vadd.f32 %v1573, 1.0
        %v1582 = vadd.f32 %v1574, 1.0
        %v1583 = vadd.f32 %v1575, 1.0
        %v1584 = vadd.f32 %v1576, 1.0
        %v1585 = vadd.f32 %v1577, 1.0
        %v1586 = vmul.f32 %v1578, 0.5
        %v1587 = vmul.f32 %v1579, 0.5
        %v1588 = vmul.f32 %v1580, 0.5
        %v1589 = vmul.f32 %v1581, 0.5
        %v1590 = vmul.f32 %v1582, 0.5
        %v1591 = vmul.f32 %v1583, 0.5
        %v1592 = vmul.f32 %v1584, 0.5
        %v1593 = vmul.f32 %v1585, 0.5
        %v1594 = vmul.f32 %v1554, %v1586
        %v1595 = vmul.f32 %v1555, %v1587
        %v1596 = vmul.f32 %v1556, %v1588
        %v1597 = vmul.f32 %v1557, %v1589
        %v1598 = vmul.f32 %v1558, %v1590
        %v1599 = vmul.f32 %v1559, %v1591
        %v1600 = vmul.f32 %v1560, %v1592
        %v1601 = vmul.f32 %v1561, %v1593
        %v1602 = vpack.c.bf16 %v1595, %v1594
        %v1603 = vpack.c.bf16 %v1597, %v1596
        %v1604 = vpack.c.bf16 %v1599, %v1598
        %v1605 = vpack.c.bf16 %v1601, %v1600
        %1606 = vst [vmem:[%s512] sm:$0xff] %v1602
        %1607 = vst [vmem:[%s512 + $0x8] sm:$0xff] %v1603
        %1608 = vst [vmem:[%s512 + $0x10] sm:$0xff] %v1604
        %1609 = vst [vmem:[%s512 + $0x18] sm:$0xff] %v1605
        %v1610 = vadd.f32 %v1594, %v1595
        %v1611 = vadd.f32 %v1610, %v1596
        %v1612 = vadd.f32 %v1611, %v1597
        %v1613 = vadd.f32 %v1612, %v1598
        %v1614 = vadd.f32 %v1613, %v1599
        %v1615 = vadd.f32 %v1614, %v1600
        %v1616 = vadd.f32 %v1615, %v1601
        %1617 = vadd.xlane.f32.xlu0 %v1616
        %v1618 = vpop.xlane.xlu0 %1617
        %vm1619 = vcmask 7168
        %1620 = vst.msk [vmem:[%s517] sm:$0xff] %vm1619, %v1618
        %v1621 = vmul.f32 %v1594, %v1594
        %v1622 = vmul.f32 %v1595, %v1595
        %v1623 = vmul.f32 %v1596, %v1596
        %v1624 = vmul.f32 %v1597, %v1597
        %v1625 = vmul.f32 %v1598, %v1598
        %v1626 = vmul.f32 %v1599, %v1599
        %v1627 = vmul.f32 %v1600, %v1600
        %v1628 = vmul.f32 %v1601, %v1601
        %v1629 = vadd.f32 %v1621, %v1622
        %v1630 = vadd.f32 %v1629, %v1623
        %v1631 = vadd.f32 %v1630, %v1624
        %v1632 = vadd.f32 %v1631, %v1625
        %v1633 = vadd.f32 %v1632, %v1626
        %v1634 = vadd.f32 %v1633, %v1627
        %v1635 = vadd.f32 %v1634, %v1628
        %1636 = vadd.xlane.f32.xlu0 %v1635
        %v1637 = vpop.xlane.xlu0 %1636
        %1638 = vst.msk [vmem:[%s521] sm:$0xff] %vm1619, %v1637
        %s1639 = smul.u32 8, %s17
        %p1640 = scmp.lt.s32.totalorder %s1639, 15
        %s1641 = scalar_select %p1640, %s1639, 15
        %s1642 = smul.addr %s1641, 4
        %s1643 = scalar_lea.vmem %s3, %s1642
        %p1644 = scmp.lt.s32.totalorder %s17, 1
        %s1645 = scalar_select %p1644, %s17, 1
        %s1646 = smul.addr %s1645, 8
        %s1647 = scalar_lea.vmem %s4, %s1646
        %p1648 = scmp.lt.s32.totalorder %s17, 1
        %s1649 = scalar_select %p1648, %s17, 1
        %s1650 = smul.addr %s1649, 8
        %s1651 = scalar_lea.vmem %s5, %s1650
        // Predicated region
        $region56: #{_lambda_.31} parent=50 // pred_check
          %p1652 = pneg %p103
        $region57: #{_lambda_.31} parent=50 // pred_check_branch
          %1654 = sbr.rel (%p1652) target = $region59
        $region58: #{_lambda_.31} parent=50 // pred_region
          %s1655 = smul.u32 8, %s17
        $region59: #{_lambda_.31} parent=50 // pred_fallthru
          _
        // Predicated region
        $region60: #{_lambda_.31} parent=50 // pred_check
          %p1656 = pneg %p129
        $region61: #{_lambda_.31} parent=50 // pred_check_branch
          %1658 = sbr.rel (%p1656) target = $region63
        $region62: #{_lambda_.31} parent=50 // pred_region
          _
        $region63: #{_lambda_.31} parent=50 // pred_fallthru
          _
        // Predicated region
        $region64: #{_lambda_.31} parent=50 // pred_check
          %p1659 = pneg %p155
        $region65: #{_lambda_.31} parent=50 // pred_check_branch
          %1661 = sbr.rel (%p1659) target = $region67
        $region66: #{_lambda_.31} parent=50 // pred_region
          _
        $region67: #{_lambda_.31} parent=50 // pred_fallthru
          _
      $region51: #{_lambda_.31} parent=5 // pred_fallthru
        _
      %p1662 = scmp.le.s32.totalorder 2, %s12
      // Predicated region
      $region68: #{_lambda_.31} parent=5 // pred_check
        %p1663 = pneg %p1662
      $region69: #{_lambda_.31} parent=5 // pred_check_branch
        %1665 = sbr.rel (%p1663) target = $region71
      $region70: #{_lambda_.31} parent=5 // pred_region
        %s1666 = ssub.s32 %s12, 2
        // Predicated region
        $region72: #{_lambda_.31} parent=70 // pred_check
          %p1667 = pneg %p109
        $region73: #{_lambda_.31} parent=70 // pred_check_branch
          %1669 = sbr.rel (%p1667) target = $region75
        $region74: #{_lambda_.31} parent=70 // pred_region
          %s1670 = smul.u32 8, %s18
          %p1671 = scmp.lt.s32.totalorder %s1670, 15
          %s1672 = scalar_select %p1671, %s1670, 15
          %s1673 = smul.addr %s1672, 4
          %s1674 = scalar_lea.vmem %s3, %s1673
        $region75: #{_lambda_.31} parent=70 // pred_fallthru
          _
        // Predicated region
        $region76: #{_lambda_.31} parent=70 // pred_check
          %p1675 = pneg %p135
        $region77: #{_lambda_.31} parent=70 // pred_check_branch
          %1677 = sbr.rel (%p1675) target = $region79
        $region78: #{_lambda_.31} parent=70 // pred_region
          %p1678 = scmp.lt.s32.totalorder %s18, 1
          %s1679 = scalar_select %p1678, %s18, 1
          %s1680 = smul.addr %s1679, 8
          %s1681 = scalar_lea.vmem %s4, %s1680
        $region79: #{_lambda_.31} parent=70 // pred_fallthru
          _
        // Predicated region
        $region80: #{_lambda_.31} parent=70 // pred_check
          %p1682 = pneg %p161
        $region81: #{_lambda_.31} parent=70 // pred_check_branch
          %1684 = sbr.rel (%p1682) target = $region83
        $region82: #{_lambda_.31} parent=70 // pred_region
          %p1685 = scmp.lt.s32.totalorder %s18, 1
          %s1686 = scalar_select %p1685, %s18, 1
          %s1687 = smul.addr %s1686, 8
          %s1688 = scalar_lea.vmem %s5, %s1687
        $region83: #{_lambda_.31} parent=70 // pred_fallthru
          _
      $region71: #{_lambda_.31} parent=5 // pred_fallthru
        _
    $region6: #{_lambda_.31} parent=1 // loop_footer
      %s16 = sadd.s32 1, %s12
    $region7: #{_lambda_.31} parent=1 // loop_footer_branch
      %11 = sbr.rel target = $region3
    $region8: #{_lambda_.31} parent=1 // loop_exit
      _

// kernel: _lambda_.32
$region0: #{_lambda_.32}
  #allocation0 [shape = 'u32[]', space=smem, size = 0x4, offset = 0x4, fixed_abs, tag = 'smem constant byte address 0x4 - core index']
  #allocation1 [shape = 'u32[72,128]{1,0:T(1,128)}', space=vmem, size = 0x9000, scoped, tag = 'internal scratch']
  %s0 = inlined_call_operand.vmem [shape: bf16[128,2048], index: 0, kind: input, shape index: {}]
  %s1 = inlined_call_operand.vmem [shape: bf16[8,128], index: 1, kind: input, shape index: {}]
  %s2 = inlined_call_operand.vmem [shape: f32[8,1], index: 2, kind: input, shape index: {}]
  %s3 = inlined_call_operand.vmem [shape: bf16[4,2048], index: 3, kind: output, shape index: {0}]
  %s4 = inlined_call_operand.vmem [shape: f32[2,4,1], index: 4, kind: output, shape index: {1}]
  %s5 = inlined_call_operand.vmem [shape: f32[2,4,1], index: 5, kind: output, shape index: {2}]
  %6 = xla_tuple %s3, %s4, %s5
  %s7 = sld [smem:[#allocation0]]
  $region84: #{_lambda_.32} parent=0
    _
  %s9 = ssub.s32 1, %s7
  %s10 = scalar_select 0, %s9, %s7
  $region1: #{_lambda_.32} parent=0
    #allocation2 [shape = 'u8[524288]{0}', space=vmem, size = 0x80000, scoped, tag = 'input window, operand 0']
    loop: start=0, step=1, limit=4
    $region2: #{_lambda_.32} parent=1 // loop_pre_header
      _
    $region3: #{_lambda_.32} parent=1 // loop_header
      %s12 = sphi 0, %s16
      %p13 = scmp.ge.s32.totalorder %s12, 4
      %s22 = sphi 0, %s24
      %s25 = sphi 0, %s22
      %s26 = sphi 0, %s25
      %s42 = sphi 0, %s26
      %s46 = sphi 0, %s46
      %s48 = sphi 0, %s46
      %s49 = sphi 0, %s48
      %s63 = sphi 0, %s49
      %s67 = sphi 0, %s67
      %s69 = sphi 0, %s67
      %s70 = sphi 0, %s69
      %s84 = sphi 0, %s70
      %s90 = sphi 0, %s92
      %s93 = sphi 0, %s90
      %s94 = sphi 0, %s93
      %s110 = sphi 0, %s94
      %s116 = sphi 0, %s118
      %s119 = sphi 0, %s116
      %s120 = sphi 0, %s119
      %s136 = sphi 0, %s120
      %s142 = sphi 0, %s144
      %s145 = sphi 0, %s142
      %s146 = sphi 0, %s145
      %s162 = sphi 0, %s146
    $region4: #{_lambda_.32} parent=1 // loop_header_branch
      %15 = sbr.rel (%p13) target = $region8
    $region5: #{_lambda_.32} parent=1 // loop_body
      %s17 = ssub.s32 %s12, 1
      %s18 = ssub.s32 %s12, 2
      %s19 = sadd.s32 %s12, 1
      %s20 = ssub.s32 %s12, %s19
      %p21 = scmp.eq.s32.totalorder %s20, 0
      %s23 = sadd.s32 %s22, 1
      %s24 = scalar_select %p21, %s22, %s23
      %p27 = pneg %p21
      %p28 = scmp.eq.s32.totalorder %s12, 1
      %p29 = por %p27, %p28
      %p30 = scmp.ne.s32.totalorder %s22, %s25
      %p31 = scmp.eq.s32.totalorder %s12, 0
      %p32 = por %p30, %p31
      %p33 = scmp.ne.s32.totalorder %s22, %s25
      %p34 = scmp.eq.s32.totalorder %s17, 1
      %p35 = por %p33, %p34
      %p36 = scmp.ne.s32.totalorder %s25, %s26
      %p37 = scmp.eq.s32.totalorder %s17, 0
      %p38 = por %p36, %p37
      %p39 = scmp.ne.s32.totalorder %s25, %s26
      %p40 = scmp.eq.s32.totalorder %s18, 1
      %p41 = por %p39, %p40
      %p43 = scmp.ne.s32.totalorder %s26, %s42
      %p44 = scmp.eq.s32.totalorder %s18, 0
      %p45 = por %p43, %p44
      %s47 = sadd.s32 %s46, 1
      %p50 = scmp.eq.s32.totalorder %s12, 1
      %p51 = scmp.ne.s32.totalorder %s46, %s48
      %p52 = scmp.eq.s32.totalorder %s12, 0
      %p53 = por %p51, %p52
      %p54 = scmp.ne.s32.totalorder %s46, %s48
      %p55 = scmp.eq.s32.totalorder %s17, 1
      %p56 = por %p54, %p55
      %p57 = scmp.ne.s32.totalorder %s48, %s49
      %p58 = scmp.eq.s32.totalorder %s17, 0
      %p59 = por %p57, %p58
      %p60 = scmp.ne.s32.totalorder %s48, %s49
      %p61 = scmp.eq.s32.totalorder %s18, 1
      %p62 = por %p60, %p61
      %p64 = scmp.ne.s32.totalorder %s49, %s63
      %p65 = scmp.eq.s32.totalorder %s18, 0
      %p66 = por %p64, %p65
      %s68 = sadd.s32 %s67, 1
      %p71 = scmp.eq.s32.totalorder %s12, 1
      %p72 = scmp.ne.s32.totalorder %s67, %s69
      %p73 = scmp.eq.s32.totalorder %s12, 0
      %p74 = por %p72, %p73
      %p75 = scmp.ne.s32.totalorder %s67, %s69
      %p76 = scmp.eq.s32.totalorder %s17, 1
      %p77 = por %p75, %p76
      %p78 = scmp.ne.s32.totalorder %s69, %s70
      %p79 = scmp.eq.s32.totalorder %s17, 0
      %p80 = por %p78, %p79
      %p81 = scmp.ne.s32.totalorder %s69, %s70
      %p82 = scmp.eq.s32.totalorder %s18, 1
      %p83 = por %p81, %p82
      %p85 = scmp.ne.s32.totalorder %s70, %s84
      %p86 = scmp.eq.s32.totalorder %s18, 0
      %p87 = por %p85, %p86
      %s88 = ssub.s32 %s12, %s19
      %p89 = scmp.eq.s32.totalorder %s88, 0
      %s91 = sadd.s32 %s90, 1
      %s92 = scalar_select %p89, %s90, %s91
      %p95 = pneg %p89
      %p96 = scmp.eq.s32.totalorder %s12, 1
      %p97 = por %p95, %p96
      %p98 = scmp.ne.s32.totalorder %s90, %s93
      %p99 = scmp.eq.s32.totalorder %s12, 0
      %p100 = por %p98, %p99
      %p101 = scmp.ne.s32.totalorder %s90, %s93
      %p102 = scmp.eq.s32.totalorder %s17, 1
      %p103 = por %p101, %p102
      %p104 = scmp.ne.s32.totalorder %s93, %s94
      %p105 = scmp.eq.s32.totalorder %s17, 0
      %p106 = por %p104, %p105
      %p107 = scmp.ne.s32.totalorder %s93, %s94
      %p108 = scmp.eq.s32.totalorder %s18, 1
      %p109 = por %p107, %p108
      %p111 = scmp.ne.s32.totalorder %s94, %s110
      %p112 = scmp.eq.s32.totalorder %s18, 0
      %p113 = por %p111, %p112
      %s114 = ssub.s32 %s12, %s19
      %p115 = scmp.eq.s32.totalorder %s114, 0
      %s117 = sadd.s32 %s116, 1
      %s118 = scalar_select %p115, %s116, %s117
      %p121 = pneg %p115
      %p122 = scmp.eq.s32.totalorder %s12, 1
      %p123 = por %p121, %p122
      %p124 = scmp.ne.s32.totalorder %s116, %s119
      %p125 = scmp.eq.s32.totalorder %s12, 0
      %p126 = por %p124, %p125
      %p127 = scmp.ne.s32.totalorder %s116, %s119
      %p128 = scmp.eq.s32.totalorder %s17, 1
      %p129 = por %p127, %p128
      %p130 = scmp.ne.s32.totalorder %s119, %s120
      %p131 = scmp.eq.s32.totalorder %s17, 0
      %p132 = por %p130, %p131
      %p133 = scmp.ne.s32.totalorder %s119, %s120
      %p134 = scmp.eq.s32.totalorder %s18, 1
      %p135 = por %p133, %p134
      %p137 = scmp.ne.s32.totalorder %s120, %s136
      %p138 = scmp.eq.s32.totalorder %s18, 0
      %p139 = por %p137, %p138
      %s140 = ssub.s32 %s12, %s19
      %p141 = scmp.eq.s32.totalorder %s140, 0
      %s143 = sadd.s32 %s142, 1
      %s144 = scalar_select %p141, %s142, %s143
      %p147 = pneg %p141
      %p148 = scmp.eq.s32.totalorder %s12, 1
      %p149 = por %p147, %p148
      %p150 = scmp.ne.s32.totalorder %s142, %s145
      %p151 = scmp.eq.s32.totalorder %s12, 0
      %p152 = por %p150, %p151
      %p153 = scmp.ne.s32.totalorder %s142, %s145
      %p154 = scmp.eq.s32.totalorder %s17, 1
      %p155 = por %p153, %p154
      %p156 = scmp.ne.s32.totalorder %s145, %s146
      %p157 = scmp.eq.s32.totalorder %s17, 0
      %p158 = por %p156, %p157
      %p159 = scmp.ne.s32.totalorder %s145, %s146
      %p160 = scmp.eq.s32.totalorder %s18, 1
      %p161 = por %p159, %p160
      %p163 = scmp.ne.s32.totalorder %s146, %s162
      %p164 = scmp.eq.s32.totalorder %s18, 0
      %p165 = por %p163, %p164
      %p166 = scmp.le.s32.totalorder 1, %s12
      %p167 = scmp.lt.s32.totalorder %s12, 3
      %p168 = pnand %p166, %p167
      %p169 = pneg %p168
      // Predicated region
      $region9: #{_lambda_.32} parent=5 // pred_check
        _
      $region10: #{_lambda_.32} parent=5 // pred_check_branch
        %171 = sbr.rel (%p168) target = $region12
      $region11: #{_lambda_.32} parent=5 // pred_region
        %s172 = ssub.s32 %s12, 1
        // Predicated region
        $region13: #{_lambda_.32} parent=11 // pred_check
          %p173 = pneg %p59
        $region14: #{_lambda_.32} parent=11 // pred_check_branch
          %175 = sbr.rel (%p173) target = $region16
        $region15: #{_lambda_.32} parent=11 // pred_region
          _
        $region16: #{_lambda_.32} parent=11 // pred_fallthru
          _
        // Predicated region
        $region17: #{_lambda_.32} parent=11 // pred_check
          %p176 = pneg %p80
        $region18: #{_lambda_.32} parent=11 // pred_check_branch
          %178 = sbr.rel (%p176) target = $region20
        $region19: #{_lambda_.32} parent=11 // pred_region
          _
        $region20: #{_lambda_.32} parent=11 // pred_fallthru
          _
      $region12: #{_lambda_.32} parent=5 // pred_fallthru
        _
      %p179 = scmp.lt.s32.totalorder %s12, 2
      // Predicated region
      $region21: #{_lambda_.32} parent=5 // pred_check
        %p180 = pneg %p179
      $region22: #{_lambda_.32} parent=5 // pred_check_branch
        %182 = sbr.rel (%p180) target = $region24
      $region23: #{_lambda_.32} parent=5 // pred_region
        // Predicated region
        $region25: #{_lambda_.32} parent=23 // pred_check
          %p183 = pneg %p32
        $region26: #{_lambda_.32} parent=23 // pred_check_branch
          %185 = sbr.rel (%p183) target = $region28
        $region27: #{_lambda_.32} parent=23 // pred_region
          %s186 = sand.u32 %s22, 1
          %s187 = sand.u32 %s22, 1
          %s188 = smul.addr %s187, 512
          %s189 = scalar_lea.vmem [#allocation2], %s188
          %s190 = smul.u32 8, %s12
          %s191 = smul.addr %s190, 4
          %s192 = scalar_lea.vmem %s0, %s191
          // Predicated region
          $region29: #{_lambda_.32} parent=27 // pred_check
            _
          $region30: #{_lambda_.32} parent=27 // pred_check_branch
            %194 = sbr.rel (0) target = $region32
          $region31: #{_lambda_.32} parent=27 // pred_region
            // Predicated region
            $region33: #{_lambda_.32} parent=31 // pred_check
              _
            $region34: #{_lambda_.32} parent=31 // pred_check_branch
              %196 = sbr.rel (0) target = $region36
            $region35: #{_lambda_.32} parent=31 // pred_region
              loop: start=0, step=1, limit=1
              $region37: #{_lambda_.32} parent=35 // loop_pre_header
                _
              $region38: #{_lambda_.32} parent=35 // loop_header
                %s198 = sphi 0, %s202
                %p199 = scmp.ge.s32.totalorder %s198, 1
                %s203 = sphi %s192, %s192
                %s204 = sphi %s189, %s189
              $region39: #{_lambda_.32} parent=35 // loop_header_branch
                %201 = sbr.rel (%p199) target = $region43
              $region40: #{_lambda_.32} parent=35 // loop_body
                %v205 = vld [vmem:[%s203] sm:$0xff]
                %206 = vst [vmem:[%s204] sm:$0xff] %v205
                %v207 = vld [vmem:[%s203 + $0x8] sm:$0xff]
                %208 = vst [vmem:[%s204 + $0x8] sm:$0xff] %v207
                %v209 = vld [vmem:[%s203 + $0x10] sm:$0xff]
                %210 = vst [vmem:[%s204 + $0x10] sm:$0xff] %v209
                %v211 = vld [vmem:[%s203 + $0x18] sm:$0xff]
                %212 = vst [vmem:[%s204 + $0x18] sm:$0xff] %v211
                %v213 = vld [vmem:[%s203 + $0x40] sm:$0xff]
                %214 = vst [vmem:[%s204 + $0x20] sm:$0xff] %v213
                %v215 = vld [vmem:[%s203 + $0x48] sm:$0xff]
                %216 = vst [vmem:[%s204 + $0x28] sm:$0xff] %v215
                %v217 = vld [vmem:[%s203 + $0x50] sm:$0xff]
                %218 = vst [vmem:[%s204 + $0x30] sm:$0xff] %v217
                %v219 = vld [vmem:[%s203 + $0x58] sm:$0xff]
                %220 = vst [vmem:[%s204 + $0x38] sm:$0xff] %v219
                %v221 = vld [vmem:[%s203 + $0x80] sm:$0xff]
                %222 = vst [vmem:[%s204 + $0x40] sm:$0xff] %v221
                %v223 = vld [vmem:[%s203 + $0x88] sm:$0xff]
                %224 = vst [vmem:[%s204 + $0x48] sm:$0xff] %v223
                %v225 = vld [vmem:[%s203 + $0x90] sm:$0xff]
                %226 = vst [vmem:[%s204 + $0x50] sm:$0xff] %v225
                %v227 = vld [vmem:[%s203 + $0x98] sm:$0xff]
                %228 = vst [vmem:[%s204 + $0x58] sm:$0xff] %v227
                %v229 = vld [vmem:[%s203 + $0xc0] sm:$0xff]
                %230 = vst [vmem:[%s204 + $0x60] sm:$0xff] %v229
                %v231 = vld [vmem:[%s203 + $0xc8] sm:$0xff]
                %232 = vst [vmem:[%s204 + $0x68] sm:$0xff] %v231
                %v233 = vld [vmem:[%s203 + $0xd0] sm:$0xff]
                %234 = vst [vmem:[%s204 + $0x70] sm:$0xff] %v233
                %v235 = vld [vmem:[%s203 + $0xd8] sm:$0xff]
                %236 = vst [vmem:[%s204 + $0x78] sm:$0xff] %v235
                %v237 = vld [vmem:[%s203 + $0x100] sm:$0xff]
                %238 = vst [vmem:[%s204 + $0x80] sm:$0xff] %v237
                %v239 = vld [vmem:[%s203 + $0x108] sm:$0xff]
                %240 = vst [vmem:[%s204 + $0x88] sm:$0xff] %v239
                %v241 = vld [vmem:[%s203 + $0x110] sm:$0xff]
                %242 = vst [vmem:[%s204 + $0x90] sm:$0xff] %v241
                %v243 = vld [vmem:[%s203 + $0x118] sm:$0xff]
                %244 = vst [vmem:[%s204 + $0x98] sm:$0xff] %v243
                %v245 = vld [vmem:[%s203 + $0x140] sm:$0xff]
                %246 = vst [vmem:[%s204 + $0xa0] sm:$0xff] %v245
                %v247 = vld [vmem:[%s203 + $0x148] sm:$0xff]
                %248 = vst [vmem:[%s204 + $0xa8] sm:$0xff] %v247
                %v249 = vld [vmem:[%s203 + $0x150] sm:$0xff]
                %250 = vst [vmem:[%s204 + $0xb0] sm:$0xff] %v249
                %v251 = vld [vmem:[%s203 + $0x158] sm:$0xff]
                %252 = vst [vmem:[%s204 + $0xb8] sm:$0xff] %v251
                %v253 = vld [vmem:[%s203 + $0x180] sm:$0xff]
                %254 = vst [vmem:[%s204 + $0xc0] sm:$0xff] %v253
                %v255 = vld [vmem:[%s203 + $0x188] sm:$0xff]
                %256 = vst [vmem:[%s204 + $0xc8] sm:$0xff] %v255
                %v257 = vld [vmem:[%s203 + $0x190] sm:$0xff]
                %258 = vst [vmem:[%s204 + $0xd0] sm:$0xff] %v257
                %v259 = vld [vmem:[%s203 + $0x198] sm:$0xff]
                %260 = vst [vmem:[%s204 + $0xd8] sm:$0xff] %v259
                %v261 = vld [vmem:[%s203 + $0x1c0] sm:$0xff]
                %262 = vst [vmem:[%s204 + $0xe0] sm:$0xff] %v261
                %v263 = vld [vmem:[%s203 + $0x1c8] sm:$0xff]
                %264 = vst [vmem:[%s204 + $0xe8] sm:$0xff] %v263
                %v265 = vld [vmem:[%s203 + $0x1d0] sm:$0xff]
                %266 = vst [vmem:[%s204 + $0xf0] sm:$0xff] %v265
                %v267 = vld [vmem:[%s203 + $0x1d8] sm:$0xff]
                %268 = vst [vmem:[%s204 + $0xf8] sm:$0xff] %v267
                %v269 = vld [vmem:[%s203 + $0x200] sm:$0xff]
                %270 = vst [vmem:[%s204 + $0x100] sm:$0xff] %v269
                %v271 = vld [vmem:[%s203 + $0x208] sm:$0xff]
                %272 = vst [vmem:[%s204 + $0x108] sm:$0xff] %v271
                %v273 = vld [vmem:[%s203 + $0x210] sm:$0xff]
                %274 = vst [vmem:[%s204 + $0x110] sm:$0xff] %v273
                %v275 = vld [vmem:[%s203 + $0x218] sm:$0xff]
                %276 = vst [vmem:[%s204 + $0x118] sm:$0xff] %v275
                %v277 = vld [vmem:[%s203 + $0x240] sm:$0xff]
                %278 = vst [vmem:[%s204 + $0x120] sm:$0xff] %v277
                %v279 = vld [vmem:[%s203 + $0x248] sm:$0xff]
                %280 = vst [vmem:[%s204 + $0x128] sm:$0xff] %v279
                %v281 = vld [vmem:[%s203 + $0x250] sm:$0xff]
                %282 = vst [vmem:[%s204 + $0x130] sm:$0xff] %v281
                %v283 = vld [vmem:[%s203 + $0x258] sm:$0xff]
                %284 = vst [vmem:[%s204 + $0x138] sm:$0xff] %v283
                %v285 = vld [vmem:[%s203 + $0x280] sm:$0xff]
                %286 = vst [vmem:[%s204 + $0x140] sm:$0xff] %v285
                %v287 = vld [vmem:[%s203 + $0x288] sm:$0xff]
                %288 = vst [vmem:[%s204 + $0x148] sm:$0xff] %v287
                %v289 = vld [vmem:[%s203 + $0x290] sm:$0xff]
                %290 = vst [vmem:[%s204 + $0x150] sm:$0xff] %v289
                %v291 = vld [vmem:[%s203 + $0x298] sm:$0xff]
                %292 = vst [vmem:[%s204 + $0x158] sm:$0xff] %v291
                %v293 = vld [vmem:[%s203 + $0x2c0] sm:$0xff]
                %294 = vst [vmem:[%s204 + $0x160] sm:$0xff] %v293
                %v295 = vld [vmem:[%s203 + $0x2c8] sm:$0xff]
                %296 = vst [vmem:[%s204 + $0x168] sm:$0xff] %v295
                %v297 = vld [vmem:[%s203 + $0x2d0] sm:$0xff]
                %298 = vst [vmem:[%s204 + $0x170] sm:$0xff] %v297
                %v299 = vld [vmem:[%s203 + $0x2d8] sm:$0xff]
                %300 = vst [vmem:[%s204 + $0x178] sm:$0xff] %v299
                %v301 = vld [vmem:[%s203 + $0x300] sm:$0xff]
                %302 = vst [vmem:[%s204 + $0x180] sm:$0xff] %v301
                %v303 = vld [vmem:[%s203 + $0x308] sm:$0xff]
                %304 = vst [vmem:[%s204 + $0x188] sm:$0xff] %v303
                %v305 = vld [vmem:[%s203 + $0x310] sm:$0xff]
                %306 = vst [vmem:[%s204 + $0x190] sm:$0xff] %v305
                %v307 = vld [vmem:[%s203 + $0x318] sm:$0xff]
                %308 = vst [vmem:[%s204 + $0x198] sm:$0xff] %v307
                %v309 = vld [vmem:[%s203 + $0x340] sm:$0xff]
                %310 = vst [vmem:[%s204 + $0x1a0] sm:$0xff] %v309
                %v311 = vld [vmem:[%s203 + $0x348] sm:$0xff]
                %312 = vst [vmem:[%s204 + $0x1a8] sm:$0xff] %v311
                %v313 = vld [vmem:[%s203 + $0x350] sm:$0xff]
                %314 = vst [vmem:[%s204 + $0x1b0] sm:$0xff] %v313
                %v315 = vld [vmem:[%s203 + $0x358] sm:$0xff]
                %316 = vst [vmem:[%s204 + $0x1b8] sm:$0xff] %v315
                %v317 = vld [vmem:[%s203 + $0x380] sm:$0xff]
                %318 = vst [vmem:[%s204 + $0x1c0] sm:$0xff] %v317
                %v319 = vld [vmem:[%s203 + $0x388] sm:$0xff]
                %320 = vst [vmem:[%s204 + $0x1c8] sm:$0xff] %v319
                %v321 = vld [vmem:[%s203 + $0x390] sm:$0xff]
                %322 = vst [vmem:[%s204 + $0x1d0] sm:$0xff] %v321
                %v323 = vld [vmem:[%s203 + $0x398] sm:$0xff]
                %324 = vst [vmem:[%s204 + $0x1d8] sm:$0xff] %v323
                %v325 = vld [vmem:[%s203 + $0x3c0] sm:$0xff]
                %326 = vst [vmem:[%s204 + $0x1e0] sm:$0xff] %v325
                %v327 = vld [vmem:[%s203 + $0x3c8] sm:$0xff]
                %328 = vst [vmem:[%s204 + $0x1e8] sm:$0xff] %v327
                %v329 = vld [vmem:[%s203 + $0x3d0] sm:$0xff]
                %330 = vst [vmem:[%s204 + $0x1f0] sm:$0xff] %v329
                %v331 = vld [vmem:[%s203 + $0x3d8] sm:$0xff]
                %332 = vst [vmem:[%s204 + $0x1f8] sm:$0xff] %v331
              $region41: #{_lambda_.32} parent=35 // loop_footer
                %s202 = sadd.s32 1, %s198
              $region42: #{_lambda_.32} parent=35 // loop_footer_branch
                %197 = sbr.rel target = $region38
              $region43: #{_lambda_.32} parent=35 // loop_exit
                _
            $region36: #{_lambda_.32} parent=31 // pred_fallthru
              _
            // Predicated region
            $region44: #{_lambda_.32} parent=31 // pred_check
              _
            $region45: #{_lambda_.32} parent=31 // pred_check_branch
              %334 = sbr.rel target = $region47
            $region46: #{_lambda_.32} parent=31 // pred_region
              _
            $region47: #{_lambda_.32} parent=31 // pred_fallthru
              _
          $region32: #{_lambda_.32} parent=27 // pred_fallthru
            _
          %335 = vnop
        $region28: #{_lambda_.32} parent=23 // pred_fallthru
          _
      $region24: #{_lambda_.32} parent=5 // pred_fallthru
        _
      %p336 = scmp.le.s32.totalorder 1, %s12
      %p337 = scmp.lt.s32.totalorder %s12, 3
      %p338 = pnand %p336, %p337
      %p339 = pneg %p338
      // Predicated region
      $region48: #{_lambda_.32} parent=5 // pred_check
        _
      $region49: #{_lambda_.32} parent=5 // pred_check_branch
        %341 = sbr.rel (%p338) target = $region51
      $region50: #{_lambda_.32} parent=5 // pred_region
        %s342 = ssub.s32 %s12, 1
        %s343 = sand.u32 %s25, 1
        %s344 = sand.u32 %s25, 1
        %s345 = smul.addr %s344, 512
        %s346 = scalar_lea.vmem [#allocation2], %s345
        // Predicated region
        $region52: #{_lambda_.32} parent=50 // pred_check
          %p347 = pneg %p38
        $region53: #{_lambda_.32} parent=50 // pred_check_branch
          %349 = sbr.rel (%p347) target = $region55
        $region54: #{_lambda_.32} parent=50 // pred_region
          _
        $region55: #{_lambda_.32} parent=50 // pred_fallthru
          _
        %s350 = sand.u32 %s25, 1
        %s351 = sand.u32 %s25, 1
        %s352 = smul.addr %s351, 512
        %s353 = scalar_lea.vmem [#allocation2], %s352
        %p354 = pneg %p38
        %p355 = pneg %p35
        %p356 = pneg %p59
        %p357 = pneg %p56
        %p358 = pneg %p80
        %p359 = pneg %p77
        %p360 = pneg %p106
        %p361 = pneg %p103
        %s362 = smul.u32 8, %s17
        %p363 = scmp.lt.s32.totalorder %s362, 15
        %s364 = scalar_select %p363, %s362, 15
        %s365 = smul.addr %s364, 2
        %s366 = scalar_lea.vmem %s3, %s365
        %p367 = pneg %p132
        %p368 = pneg %p129
        %p369 = scmp.lt.s32.totalorder %s17, 1
        %s370 = scalar_select %p369, %s17, 1
        %s371 = smul.addr %s370, 4
        %s372 = scalar_lea.vmem %s4, %s371
        %p373 = pneg %p158
        %p374 = pneg %p155
        %p375 = scmp.lt.s32.totalorder %s17, 1
        %s376 = scalar_select %p375, %s17, 1
        %s377 = smul.addr %s376, 4
        %s378 = scalar_lea.vmem %s5, %s377
        %s379 = smul.u32 8, %s17
        %s380 = smul.u32 8, %s17
        %p381 = scmp.lt.s32.totalorder %s380, 15
        %s382 = scalar_select %p381, %s380, 15
        %s383 = smul.addr %s382, 2
        %s384 = scalar_lea.vmem %s3, %s383
        %s385 = smul.u32 8, %s17
        %p386 = scmp.lt.s32.totalorder %s17, 1
        %s387 = scalar_select %p386, %s17, 1
        %s388 = smul.addr %s387, 4
        %s389 = scalar_lea.vmem %s4, %s388
        %p390 = scmp.lt.s32.totalorder %s17, 1
        %s391 = scalar_select %p390, %s17, 1
        %s392 = smul.addr %s391, 4
        %s393 = scalar_lea.vmem %s5, %s392
        %v394 = vld [vmem:[%s1] sm:$0xf]
        %v395 = vld [vmem:[%s346] sm:$0xff]
        %v396 = vld [vmem:[%s346 + $0x8] sm:$0xff]
        %v397 = vld [vmem:[%s346 + $0x10] sm:$0xff]
        %v398 = vld [vmem:[%s346 + $0x18] sm:$0xff]
        %v399 = vld [vmem:[%s346 + $0x20] sm:$0xff]
        %v400 = vld [vmem:[%s346 + $0x28] sm:$0xff]
        %v401 = vld [vmem:[%s346 + $0x30] sm:$0xff]
        %v402 = vld [vmem:[%s346 + $0x38] sm:$0xff]
        %v403 = vld [vmem:[%s346 + $0x40] sm:$0xff]
        %v404 = vld [vmem:[%s346 + $0x48] sm:$0xff]
        %v405 = vld [vmem:[%s346 + $0x50] sm:$0xff]
        %v406 = vld [vmem:[%s346 + $0x58] sm:$0xff]
        %v407 = vld [vmem:[%s346 + $0x60] sm:$0xff]
        %v408 = vld [vmem:[%s346 + $0x68] sm:$0xff]
        %v409 = vld [vmem:[%s346 + $0x70] sm:$0xff]
        %v410 = vld [vmem:[%s346 + $0x78] sm:$0xff]
        %v411 = vld [vmem:[%s346 + $0x80] sm:$0xff]
        %v412 = vld [vmem:[%s346 + $0x88] sm:$0xff]
        %v413 = vld [vmem:[%s346 + $0x90] sm:$0xff]
        %v414 = vld [vmem:[%s346 + $0x98] sm:$0xff]
        %v415 = vld [vmem:[%s346 + $0xa0] sm:$0xff]
        %v416 = vld [vmem:[%s346 + $0xa8] sm:$0xff]
        %v417 = vld [vmem:[%s346 + $0xb0] sm:$0xff]
        %v418 = vld [vmem:[%s346 + $0xb8] sm:$0xff]
        %v419 = vld [vmem:[%s346 + $0xc0] sm:$0xff]
        %v420 = vld [vmem:[%s346 + $0xc8] sm:$0xff]
        %v421 = vld [vmem:[%s346 + $0xd0] sm:$0xff]
        %v422 = vld [vmem:[%s346 + $0xd8] sm:$0xff]
        %v423 = vld [vmem:[%s346 + $0xe0] sm:$0xff]
        %v424 = vld [vmem:[%s346 + $0xe8] sm:$0xff]
        %v425 = vld [vmem:[%s346 + $0xf0] sm:$0xff]
        %v426 = vld [vmem:[%s346 + $0xf8] sm:$0xff]
        %v427 = vld [vmem:[%s346 + $0x100] sm:$0xff]
        %v428 = vld [vmem:[%s346 + $0x108] sm:$0xff]
        %v429 = vld [vmem:[%s346 + $0x110] sm:$0xff]
        %v430 = vld [vmem:[%s346 + $0x118] sm:$0xff]
        %v431 = vld [vmem:[%s346 + $0x120] sm:$0xff]
        %v432 = vld [vmem:[%s346 + $0x128] sm:$0xff]
        %v433 = vld [vmem:[%s346 + $0x130] sm:$0xff]
        %v434 = vld [vmem:[%s346 + $0x138] sm:$0xff]
        %v435 = vld [vmem:[%s346 + $0x140] sm:$0xff]
        %v436 = vld [vmem:[%s346 + $0x148] sm:$0xff]
        %v437 = vld [vmem:[%s346 + $0x150] sm:$0xff]
        %v438 = vld [vmem:[%s346 + $0x158] sm:$0xff]
        %v439 = vld [vmem:[%s346 + $0x160] sm:$0xff]
        %v440 = vld [vmem:[%s346 + $0x168] sm:$0xff]
        %v441 = vld [vmem:[%s346 + $0x170] sm:$0xff]
        %v442 = vld [vmem:[%s346 + $0x178] sm:$0xff]
        %v443 = vld [vmem:[%s346 + $0x180] sm:$0xff]
        %v444 = vld [vmem:[%s346 + $0x188] sm:$0xff]
        %v445 = vld [vmem:[%s346 + $0x190] sm:$0xff]
        %v446 = vld [vmem:[%s346 + $0x198] sm:$0xff]
        %v447 = vld [vmem:[%s346 + $0x1a0] sm:$0xff]
        %v448 = vld [vmem:[%s346 + $0x1a8] sm:$0xff]
        %v449 = vld [vmem:[%s346 + $0x1b0] sm:$0xff]
        %v450 = vld [vmem:[%s346 + $0x1b8] sm:$0xff]
        %v451 = vld [vmem:[%s346 + $0x1c0] sm:$0xff]
        %v452 = vld [vmem:[%s346 + $0x1c8] sm:$0xff]
        %v453 = vld [vmem:[%s346 + $0x1d0] sm:$0xff]
        %v454 = vld [vmem:[%s346 + $0x1d8] sm:$0xff]
        %v455 = vld [vmem:[%s346 + $0x1e0] sm:$0xff]
        %v456 = vld [vmem:[%s346 + $0x1e8] sm:$0xff]
        %v457 = vld [vmem:[%s346 + $0x1f0] sm:$0xff]
        %v458 = vld [vmem:[%s346 + $0x1f8] sm:$0xff]
        %v459 = vld [vmem:[%s2] sm:$0xff]
        %461 = vset.pattern.permute.xlu0 0
        %462 = vperm.xlu0 %461, %v459
        %v463 = vpop.permute.xlu0 %462
        %v529 = vunpack.c.l.b16 %v395
        %v530 = vunpack.c.h.b16 %v395
        %v531 = vunpack.c.l.b16 %v396
        %v532 = vunpack.c.h.b16 %v396
        %v533 = vunpack.c.l.b16 %v397
        %v534 = vunpack.c.h.b16 %v397
        %v535 = vunpack.c.l.b16 %v398
        %v536 = vunpack.c.h.b16 %v398
        %v537 = vunpack.c.l.b16 %v399
        %v538 = vunpack.c.h.b16 %v399
        %v539 = vunpack.c.l.b16 %v400
        %v540 = vunpack.c.h.b16 %v400
        %v541 = vunpack.c.l.b16 %v401
        %v542 = vunpack.c.h.b16 %v401
        %v543 = vunpack.c.l.b16 %v402
        %v544 = vunpack.c.h.b16 %v402
        %v545 = vunpack.c.l.b16 %v403
        %v546 = vunpack.c.h.b16 %v403
        %v547 = vunpack.c.l.b16 %v404
        %v548 = vunpack.c.h.b16 %v404
        %v549 = vunpack.c.l.b16 %v405
        %v550 = vunpack.c.h.b16 %v405
        %v551 = vunpack.c.l.b16 %v406
        %v552 = vunpack.c.h.b16 %v406
        %v553 = vunpack.c.l.b16 %v407
        %v554 = vunpack.c.h.b16 %v407
        %v555 = vunpack.c.l.b16 %v408
        %v556 = vunpack.c.h.b16 %v408
        %v557 = vunpack.c.l.b16 %v409
        %v558 = vunpack.c.h.b16 %v409
        %v559 = vunpack.c.l.b16 %v410
        %v560 = vunpack.c.h.b16 %v410
        %v561 = vunpack.c.l.b16 %v411
        %v562 = vunpack.c.h.b16 %v411
        %v563 = vunpack.c.l.b16 %v412
        %v564 = vunpack.c.h.b16 %v412
        %v565 = vunpack.c.l.b16 %v413
        %v566 = vunpack.c.h.b16 %v413
        %v567 = vunpack.c.l.b16 %v414
        %v568 = vunpack.c.h.b16 %v414
        %v569 = vunpack.c.l.b16 %v415
        %v570 = vunpack.c.h.b16 %v415
        %v571 = vunpack.c.l.b16 %v416
        %v572 = vunpack.c.h.b16 %v416
        %v573 = vunpack.c.l.b16 %v417
        %v574 = vunpack.c.h.b16 %v417
        %v575 = vunpack.c.l.b16 %v418
        %v576 = vunpack.c.h.b16 %v418
        %v577 = vunpack.c.l.b16 %v419
        %v578 = vunpack.c.h.b16 %v419
        %v579 = vunpack.c.l.b16 %v420
        %v580 = vunpack.c.h.b16 %v420
        %v581 = vunpack.c.l.b16 %v421
        %v582 = vunpack.c.h.b16 %v421
        %v583 = vunpack.c.l.b16 %v422
        %v584 = vunpack.c.h.b16 %v422
        %v585 = vunpack.c.l.b16 %v423
        %v586 = vunpack.c.h.b16 %v423
        %v587 = vunpack.c.l.b16 %v424
        %v588 = vunpack.c.h.b16 %v424
        %v589 = vunpack.c.l.b16 %v425
        %v590 = vunpack.c.h.b16 %v425
        %v591 = vunpack.c.l.b16 %v426
        %v592 = vunpack.c.h.b16 %v426
        %v593 = vunpack.c.l.b16 %v427
        %v594 = vunpack.c.h.b16 %v427
        %v595 = vunpack.c.l.b16 %v428
        %v596 = vunpack.c.h.b16 %v428
        %v597 = vunpack.c.l.b16 %v429
        %v598 = vunpack.c.h.b16 %v429
        %v599 = vunpack.c.l.b16 %v430
        %v600 = vunpack.c.h.b16 %v430
        %v601 = vunpack.c.l.b16 %v431
        %v602 = vunpack.c.h.b16 %v431
        %v603 = vunpack.c.l.b16 %v432
        %v604 = vunpack.c.h.b16 %v432
        %v605 = vunpack.c.l.b16 %v433
        %v606 = vunpack.c.h.b16 %v433
        %v607 = vunpack.c.l.b16 %v434
        %v608 = vunpack.c.h.b16 %v434
        %v609 = vunpack.c.l.b16 %v435
        %v610 = vunpack.c.h.b16 %v435
        %v611 = vunpack.c.l.b16 %v436
        %v612 = vunpack.c.h.b16 %v436
        %v613 = vunpack.c.l.b16 %v437
        %v614 = vunpack.c.h.b16 %v437
        %v615 = vunpack.c.l.b16 %v438
        %v616 = vunpack.c.h.b16 %v438
        %v617 = vunpack.c.l.b16 %v439
        %v618 = vunpack.c.h.b16 %v439
        %v619 = vunpack.c.l.b16 %v440
        %v620 = vunpack.c.h.b16 %v440
        %v621 = vunpack.c.l.b16 %v441
        %v622 = vunpack.c.h.b16 %v441
        %v623 = vunpack.c.l.b16 %v442
        %v624 = vunpack.c.h.b16 %v442
        %v625 = vunpack.c.l.b16 %v443
        %v626 = vunpack.c.h.b16 %v443
        %v627 = vunpack.c.l.b16 %v444
        %v628 = vunpack.c.h.b16 %v444
        %v629 = vunpack.c.l.b16 %v445
        %v630 = vunpack.c.h.b16 %v445
        %v631 = vunpack.c.l.b16 %v446
        %v632 = vunpack.c.h.b16 %v446
        %v633 = vunpack.c.l.b16 %v447
        %v634 = vunpack.c.h.b16 %v447
        %v635 = vunpack.c.l.b16 %v448
        %v636 = vunpack.c.h.b16 %v448
        %v637 = vunpack.c.l.b16 %v449
        %v638 = vunpack.c.h.b16 %v449
        %v639 = vunpack.c.l.b16 %v450
        %v640 = vunpack.c.h.b16 %v450
        %v641 = vunpack.c.l.b16 %v451
        %v642 = vunpack.c.h.b16 %v451
        %v643 = vunpack.c.l.b16 %v452
        %v644 = vunpack.c.h.b16 %v452
        %v645 = vunpack.c.l.b16 %v453
        %v646 = vunpack.c.h.b16 %v453
        %v647 = vunpack.c.l.b16 %v454
        %v648 = vunpack.c.h.b16 %v454
        %v649 = vunpack.c.l.b16 %v455
        %v650 = vunpack.c.h.b16 %v455
        %v651 = vunpack.c.l.b16 %v456
        %v652 = vunpack.c.h.b16 %v456
        %v653 = vunpack.c.l.b16 %v457
        %v654 = vunpack.c.h.b16 %v457
        %v655 = vunpack.c.l.b16 %v458
        %v656 = vunpack.c.h.b16 %v458
        %v657 = vpack.c.b16 %v537, %v529
        %v658 = vpack.c.b16 %v538, %v530
        %v659 = vpack.c.b16 %v539, %v531
        %v660 = vpack.c.b16 %v540, %v532
        %v661 = vpack.c.b16 %v541, %v533
        %v662 = vpack.c.b16 %v542, %v534
        %v663 = vpack.c.b16 %v543, %v535
        %v664 = vpack.c.b16 %v544, %v536
        %v665 = vpack.c.b16 %v553, %v545
        %v666 = vpack.c.b16 %v554, %v546
        %v667 = vpack.c.b16 %v555, %v547
        %v668 = vpack.c.b16 %v556, %v548
        %v669 = vpack.c.b16 %v557, %v549
        %v670 = vpack.c.b16 %v558, %v550
        %v671 = vpack.c.b16 %v559, %v551
        %v672 = vpack.c.b16 %v560, %v552
        %v673 = vpack.c.b16 %v569, %v561
        %v674 = vpack.c.b16 %v570, %v562
        %v675 = vpack.c.b16 %v571, %v563
        %v676 = vpack.c.b16 %v572, %v564
        %v677 = vpack.c.b16 %v573, %v565
        %v678 = vpack.c.b16 %v574, %v566
        %v679 = vpack.c.b16 %v575, %v567
        %v680 = vpack.c.b16 %v576, %v568
        %v681 = vpack.c.b16 %v585, %v577
        %v682 = vpack.c.b16 %v586, %v578
        %v683 = vpack.c.b16 %v587, %v579
        %v684 = vpack.c.b16 %v588, %v580
        %v685 = vpack.c.b16 %v589, %v581
        %v686 = vpack.c.b16 %v590, %v582
        %v687 = vpack.c.b16 %v591, %v583
        %v688 = vpack.c.b16 %v592, %v584
        %v689 = vpack.c.b16 %v601, %v593
        %v690 = vpack.c.b16 %v602, %v594
        %v691 = vpack.c.b16 %v603, %v595
        %v692 = vpack.c.b16 %v604, %v596
        %v693 = vpack.c.b16 %v605, %v597
        %v694 = vpack.c.b16 %v606, %v598
        %v695 = vpack.c.b16 %v607, %v599
        %v696 = vpack.c.b16 %v608, %v600
        %v697 = vpack.c.b16 %v617, %v609
        %v698 = vpack.c.b16 %v618, %v610
        %v699 = vpack.c.b16 %v619, %v611
        %v700 = vpack.c.b16 %v620, %v612
        %v701 = vpack.c.b16 %v621, %v613
        %v702 = vpack.c.b16 %v622, %v614
        %v703 = vpack.c.b16 %v623, %v615
        %v704 = vpack.c.b16 %v624, %v616
        %v705 = vpack.c.b16 %v633, %v625
        %v706 = vpack.c.b16 %v634, %v626
        %v707 = vpack.c.b16 %v635, %v627
        %v708 = vpack.c.b16 %v636, %v628
        %v709 = vpack.c.b16 %v637, %v629
        %v710 = vpack.c.b16 %v638, %v630
        %v711 = vpack.c.b16 %v639, %v631
        %v712 = vpack.c.b16 %v640, %v632
        %v713 = vpack.c.b16 %v649, %v641
        %v714 = vpack.c.b16 %v650, %v642
        %v715 = vpack.c.b16 %v651, %v643
        %v716 = vpack.c.b16 %v652, %v644
        %v717 = vpack.c.b16 %v653, %v645
        %v718 = vpack.c.b16 %v654, %v646
        %v719 = vpack.c.b16 %v655, %v647
        %v720 = vpack.c.b16 %v656, %v648
        %785 = vmatpush.bf16.msra.mxu0 %v713
        %786 = vmatpush.bf16.msra.mxu0 %v705
        %787 = vmatpush.bf16.msra.mxu0 %v697
        %788 = vmatpush.bf16.msra.mxu0 %v689
        %789 = vmatpush.bf16.msra.mxu0 %v681
        %790 = vmatpush.bf16.msra.mxu0 %v673
        %791 = vmatpush.bf16.msra.mxu0 %v665
        %792 = vmatpush.bf16.msra.mxu0 %v657
        %793 = vmatmul.bf16.gmra.mxu0 %v394
        %v794 = vpop.f32.mrf.mxu0
        %v795 = vadd.f32 %v463, %v794
        %v796 = vpop.f32.mrf.mxu0
        %797 = vdwg.mxu0
        %798 = vmatpush.bf16.msra.mxu0 %v714
        %799 = vmatpush.bf16.msra.mxu0 %v706
        %800 = vmatpush.bf16.msra.mxu0 %v698
        %801 = vmatpush.bf16.msra.mxu0 %v690
        %802 = vmatpush.bf16.msra.mxu0 %v682
        %803 = vmatpush.bf16.msra.mxu0 %v674
        %804 = vmatpush.bf16.msra.mxu0 %v666
        %805 = vmatpush.bf16.msra.mxu0 %v658
        %806 = vmatmul.bf16.gmra.mxu0 %v394
        %v807 = vpop.f32.mrf.mxu0
        %v808 = vadd.f32 %v463, %v807
        %v809 = vpop.f32.mrf.mxu0
        %810 = vdwg.mxu0
        %811 = vmatpush.bf16.msra.mxu0 %v715
        %812 = vmatpush.bf16.msra.mxu0 %v707
        %813 = vmatpush.bf16.msra.mxu0 %v699
        %814 = vmatpush.bf16.msra.mxu0 %v691
        %815 = vmatpush.bf16.msra.mxu0 %v683
        %816 = vmatpush.bf16.msra.mxu0 %v675
        %817 = vmatpush.bf16.msra.mxu0 %v667
        %818 = vmatpush.bf16.msra.mxu0 %v659
        %819 = vmatmul.bf16.gmra.mxu0 %v394
        %v820 = vpop.f32.mrf.mxu0
        %v821 = vadd.f32 %v463, %v820
        %v822 = vpop.f32.mrf.mxu0
        %823 = vdwg.mxu0
        %824 = vmatpush.bf16.msra.mxu0 %v716
        %825 = vmatpush.bf16.msra.mxu0 %v708
        %826 = vmatpush.bf16.msra.mxu0 %v700
        %827 = vmatpush.bf16.msra.mxu0 %v692
        %828 = vmatpush.bf16.msra.mxu0 %v684
        %829 = vmatpush.bf16.msra.mxu0 %v676
        %830 = vmatpush.bf16.msra.mxu0 %v668
        %831 = vmatpush.bf16.msra.mxu0 %v660
        %832 = vmatmul.bf16.gmra.mxu0 %v394
        %v833 = vpop.f32.mrf.mxu0
        %v834 = vadd.f32 %v463, %v833
        %v835 = vpop.f32.mrf.mxu0
        %836 = vdwg.mxu0
        %837 = vmatpush.bf16.msra.mxu0 %v717
        %838 = vmatpush.bf16.msra.mxu0 %v709
        %839 = vmatpush.bf16.msra.mxu0 %v701
        %840 = vmatpush.bf16.msra.mxu0 %v693
        %841 = vmatpush.bf16.msra.mxu0 %v685
        %842 = vmatpush.bf16.msra.mxu0 %v677
        %843 = vmatpush.bf16.msra.mxu0 %v669
        %844 = vmatpush.bf16.msra.mxu0 %v661
        %845 = vmatmul.bf16.gmra.mxu0 %v394
        %v846 = vpop.f32.mrf.mxu0
        %v847 = vadd.f32 %v463, %v846
        %v848 = vpop.f32.mrf.mxu0
        %849 = vdwg.mxu0
        %850 = vmatpush.bf16.msra.mxu0 %v718
        %851 = vmatpush.bf16.msra.mxu0 %v710
        %852 = vmatpush.bf16.msra.mxu0 %v702
        %853 = vmatpush.bf16.msra.mxu0 %v694
        %854 = vmatpush.bf16.msra.mxu0 %v686
        %855 = vmatpush.bf16.msra.mxu0 %v678
        %856 = vmatpush.bf16.msra.mxu0 %v670
        %857 = vmatpush.bf16.msra.mxu0 %v662
        %858 = vmatmul.bf16.gmra.mxu0 %v394
        %v859 = vpop.f32.mrf.mxu0
        %v860 = vadd.f32 %v463, %v859
        %v861 = vpop.f32.mrf.mxu0
        %862 = vdwg.mxu0
        %863 = vmatpush.bf16.msra.mxu0 %v719
        %864 = vmatpush.bf16.msra.mxu0 %v711
        %865 = vmatpush.bf16.msra.mxu0 %v703
        %866 = vmatpush.bf16.msra.mxu0 %v695
        %867 = vmatpush.bf16.msra.mxu0 %v687
        %868 = vmatpush.bf16.msra.mxu0 %v679
        %869 = vmatpush.bf16.msra.mxu0 %v671
        %870 = vmatpush.bf16.msra.mxu0 %v663
        %871 = vmatmul.bf16.gmra.mxu0 %v394
        %v872 = vpop.f32.mrf.mxu0
        %v873 = vadd.f32 %v463, %v872
        %v874 = vpop.f32.mrf.mxu0
        %875 = vdwg.mxu0
        %876 = vmatpush.bf16.msra.mxu0 %v720
        %877 = vmatpush.bf16.msra.mxu0 %v712
        %878 = vmatpush.bf16.msra.mxu0 %v704
        %879 = vmatpush.bf16.msra.mxu0 %v696
        %880 = vmatpush.bf16.msra.mxu0 %v688
        %881 = vmatpush.bf16.msra.mxu0 %v680
        %882 = vmatpush.bf16.msra.mxu0 %v672
        %883 = vmatpush.bf16.msra.mxu0 %v664
        %884 = vmatmul.bf16.gmra.mxu0 %v394
        %v885 = vpop.f32.mrf.mxu0
        %v886 = vadd.f32 %v463, %v885
        %v887 = vpop.f32.mrf.mxu0
        %888 = vdwg.mxu0
        %vm889 = vcmp.ge.f32.partialorder %v795, 0.0
        %vm890 = vcmp.ge.f32.partialorder %v808, 0.0
        %vm891 = vcmp.ge.f32.partialorder %v821, 0.0
        %vm892 = vcmp.ge.f32.partialorder %v834, 0.0
        %vm893 = vcmp.ge.f32.partialorder %v847, 0.0
        %vm894 = vcmp.ge.f32.partialorder %v860, 0.0
        %vm895 = vcmp.ge.f32.partialorder %v873, 0.0
        %vm896 = vcmp.ge.f32.partialorder %v886, 0.0
        %v897 = vmul.f32 %v795, 0.2
        %v898 = vmul.f32 %v808, 0.2
        %v899 = vmul.f32 %v821, 0.2
        %v900 = vmul.f32 %v834, 0.2
        %v901 = vmul.f32 %v847, 0.2
        %v902 = vmul.f32 %v860, 0.2
        %v903 = vmul.f32 %v873, 0.2
        %v904 = vmul.f32 %v886, 0.2
        %v905 = vsel %vm889, %v795, %v897
        %v906 = vsel %vm890, %v808, %v898
        %v907 = vsel %vm891, %v821, %v899
        %v908 = vsel %vm892, %v834, %v900
        %v909 = vsel %vm893, %v847, %v901
        %v910 = vsel %vm894, %v860, %v902
        %v911 = vsel %vm895, %v873, %v903
        %v912 = vsel %vm896, %v886, %v904
        %v913 = vmul.f32 %v795, 0.5
        %v914 = vmul.f32 %v808, 0.5
        %v915 = vmul.f32 %v821, 0.5
        %v916 = vmul.f32 %v834, 0.5
        %v917 = vmul.f32 %v847, 0.5
        %v918 = vmul.f32 %v860, 0.5
        %v919 = vmul.f32 %v873, 0.5
        %v920 = vmul.f32 %v886, 0.5
        %v921 = vtanh.pop %v913
        %v922 = vtanh.pop %v914
        %v923 = vtanh.pop %v915
        %v924 = vtanh.pop %v916
        %v925 = vtanh.pop %v917
        %v926 = vtanh.pop %v918
        %v927 = vtanh.pop %v919
        %v928 = vtanh.pop %v920
        %v929 = vadd.f32 %v921, 1.0
        %v930 = vadd.f32 %v922, 1.0
        %v931 = vadd.f32 %v923, 1.0
        %v932 = vadd.f32 %v924, 1.0
        %v933 = vadd.f32 %v925, 1.0
        %v934 = vadd.f32 %v926, 1.0
        %v935 = vadd.f32 %v927, 1.0
        %v936 = vadd.f32 %v928, 1.0
        %v937 = vmul.f32 %v929, 0.5
        %v938 = vmul.f32 %v930, 0.5
        %v939 = vmul.f32 %v931, 0.5
        %v940 = vmul.f32 %v932, 0.5
        %v941 = vmul.f32 %v933, 0.5
        %v942 = vmul.f32 %v934, 0.5
        %v943 = vmul.f32 %v935, 0.5
        %v944 = vmul.f32 %v936, 0.5
        %v953 = vrot.slane %v937, 4
        %v954 = vrot.slane %v938, 4
        %v955 = vrot.slane %v939, 4
        %v956 = vrot.slane %v940, 4
        %v957 = vrot.slane %v941, 4
        %v958 = vrot.slane %v942, 4
        %v959 = vrot.slane %v943, 4
        %v960 = vrot.slane %v944, 4
        %v969 = vmul.f32 %v905, %v953
        %v970 = vmul.f32 %v906, %v954
        %v971 = vmul.f32 %v907, %v955
        %v972 = vmul.f32 %v908, %v956
        %v973 = vmul.f32 %v909, %v957
        %v974 = vmul.f32 %v910, %v958
        %v975 = vmul.f32 %v911, %v959
        %v976 = vmul.f32 %v912, %v960
        %v977 = vpack.c.bf16 %v970, %v969
        %v978 = vpack.c.bf16 %v972, %v971
        %v979 = vpack.c.bf16 %v974, %v973
        %v980 = vpack.c.bf16 %v976, %v975
        %v985 = vrot.slane %v977, 2
        %v986 = vrot.slane %v978, 4
        %v987 = vrot.slane %v978, 6
        %v988 = vrot.slane %v979, 2
        %v989 = vrot.slane %v980, 4
        %v990 = vrot.slane %v980, 6
        %vm991 = vcmask 1041408
        %v994 = vsel %vm991, %v977, %v985
        %vm995 = vcmask 1045508
        %v998 = vsel %vm995, %v986, %v987
        %vm999 = vcmask 1043456
        %v1000 = vsel %vm999, %v994, %v998
        %v1003 = vsel %vm991, %v979, %v988
        %v1006 = vsel %vm995, %v989, %v990
        %v1007 = vsel %vm999, %v1003, %v1006
        %1010 = vst [vmem:[%s384] sm:$0xff] %v1000
        %1011 = vst [vmem:[%s384 + $0x8] sm:$0xff] %v1007
        %v1012 = vsel %vm999, %v969, 0.0
        %v1013 = vsel %vm999, %v970, 0.0
        %v1014 = vadd.f32 %v1012, %v1013
        %v1015 = vsel %vm999, %v971, 0.0
        %v1016 = vadd.f32 %v1014, %v1015
        %v1017 = vsel %vm999, %v972, 0.0
        %v1018 = vadd.f32 %v1016, %v1017
        %v1019 = vsel %vm999, %v973, 0.0
        %v1020 = vadd.f32 %v1018, %v1019
        %v1021 = vsel %vm999, %v974, 0.0
        %v1022 = vadd.f32 %v1020, %v1021
        %v1023 = vsel %vm999, %v975, 0.0
        %v1024 = vadd.f32 %v1022, %v1023
        %v1025 = vsel %vm999, %v976, 0.0
        %v1026 = vadd.f32 %v1024, %v1025
        %1027 = vadd.xlane.f32.xlu0 %v1026
        %v1028 = vpop.xlane.xlu0 %1027
        %vm1029 = vcmask 3072
        %1030 = vst.msk [vmem:[%s389] sm:$0xf] %vm1029, %v1028
        %v1031 = vmul.f32 %v969, %v969
        %v1032 = vmul.f32 %v970, %v970
        %v1033 = vmul.f32 %v971, %v971
        %v1034 = vmul.f32 %v972, %v972
        %v1035 = vmul.f32 %v973, %v973
        %v1036 = vmul.f32 %v974, %v974
        %v1037 = vmul.f32 %v975, %v975
        %v1038 = vmul.f32 %v976, %v976
        %v1039 = vsel %vm999, %v1031, 0.0
        %v1040 = vsel %vm999, %v1032, 0.0
        %v1041 = vadd.f32 %v1039, %v1040
        %v1042 = vsel %vm999, %v1033, 0.0
        %v1043 = vadd.f32 %v1041, %v1042
        %v1044 = vsel %vm999, %v1034, 0.0
        %v1045 = vadd.f32 %v1043, %v1044
        %v1046 = vsel %vm999, %v1035, 0.0
        %v1047 = vadd.f32 %v1045, %v1046
        %v1048 = vsel %vm999, %v1036, 0.0
        %v1049 = vadd.f32 %v1047, %v1048
        %v1050 = vsel %vm999, %v1037, 0.0
        %v1051 = vadd.f32 %v1049, %v1050
        %v1052 = vsel %vm999, %v1038, 0.0
        %v1053 = vadd.f32 %v1051, %v1052
        %1054 = vadd.xlane.f32.xlu0 %v1053
        %v1055 = vpop.xlane.xlu0 %1054
        %1056 = vst.msk [vmem:[%s393] sm:$0xf] %vm1029, %v1055
        %s1057 = smul.u32 8, %s17
        %p1058 = scmp.lt.s32.totalorder %s1057, 15
        %s1059 = scalar_select %p1058, %s1057, 15
        %s1060 = smul.addr %s1059, 2
        %s1061 = scalar_lea.vmem %s3, %s1060
        %p1062 = scmp.lt.s32.totalorder %s17, 1
        %s1063 = scalar_select %p1062, %s17, 1
        %s1064 = smul.addr %s1063, 4
        %s1065 = scalar_lea.vmem %s4, %s1064
        %p1066 = scmp.lt.s32.totalorder %s17, 1
        %s1067 = scalar_select %p1066, %s17, 1
        %s1068 = smul.addr %s1067, 4
        %s1069 = scalar_lea.vmem %s5, %s1068
        // Predicated region
        $region56: #{_lambda_.32} parent=50 // pred_check
          %p1070 = pneg %p103
        $region57: #{_lambda_.32} parent=50 // pred_check_branch
          %1072 = sbr.rel (%p1070) target = $region59
        $region58: #{_lambda_.32} parent=50 // pred_region
          %s1073 = smul.u32 8, %s17
        $region59: #{_lambda_.32} parent=50 // pred_fallthru
          _
        // Predicated region
        $region60: #{_lambda_.32} parent=50 // pred_check
          %p1074 = pneg %p129
        $region61: #{_lambda_.32} parent=50 // pred_check_branch
          %1076 = sbr.rel (%p1074) target = $region63
        $region62: #{_lambda_.32} parent=50 // pred_region
          _
        $region63: #{_lambda_.32} parent=50 // pred_fallthru
          _
        // Predicated region
        $region64: #{_lambda_.32} parent=50 // pred_check
          %p1077 = pneg %p155
        $region65: #{_lambda_.32} parent=50 // pred_check_branch
          %1079 = sbr.rel (%p1077) target = $region67
        $region66: #{_lambda_.32} parent=50 // pred_region
          _
        $region67: #{_lambda_.32} parent=50 // pred_fallthru
          _
      $region51: #{_lambda_.32} parent=5 // pred_fallthru
        _
      %p1080 = scmp.le.s32.totalorder 2, %s12
      // Predicated region
      $region68: #{_lambda_.32} parent=5 // pred_check
        %p1081 = pneg %p1080
      $region69: #{_lambda_.32} parent=5 // pred_check_branch
        %1083 = sbr.rel (%p1081) target = $region71
      $region70: #{_lambda_.32} parent=5 // pred_region
        %s1084 = ssub.s32 %s12, 2
        // Predicated region
        $region72: #{_lambda_.32} parent=70 // pred_check
          %p1085 = pneg %p109
        $region73: #{_lambda_.32} parent=70 // pred_check_branch
          %1087 = sbr.rel (%p1085) target = $region75
        $region74: #{_lambda_.32} parent=70 // pred_region
          %s1088 = smul.u32 8, %s18
          %p1089 = scmp.lt.s32.totalorder %s1088, 15
          %s1090 = scalar_select %p1089, %s1088, 15
          %s1091 = smul.addr %s1090, 2
          %s1092 = scalar_lea.vmem %s3, %s1091
        $region75: #{_lambda_.32} parent=70 // pred_fallthru
          _
        // Predicated region
        $region76: #{_lambda_.32} parent=70 // pred_check
          %p1093 = pneg %p135
        $region77: #{_lambda_.32} parent=70 // pred_check_branch
          %1095 = sbr.rel (%p1093) target = $region79
        $region78: #{_lambda_.32} parent=70 // pred_region
          %p1096 = scmp.lt.s32.totalorder %s18, 1
          %s1097 = scalar_select %p1096, %s18, 1
          %s1098 = smul.addr %s1097, 4
          %s1099 = scalar_lea.vmem %s4, %s1098
        $region79: #{_lambda_.32} parent=70 // pred_fallthru
          _
        // Predicated region
        $region80: #{_lambda_.32} parent=70 // pred_check
          %p1100 = pneg %p161
        $region81: #{_lambda_.32} parent=70 // pred_check_branch
          %1102 = sbr.rel (%p1100) target = $region83
        $region82: #{_lambda_.32} parent=70 // pred_region
          %p1103 = scmp.lt.s32.totalorder %s18, 1
          %s1104 = scalar_select %p1103, %s18, 1
          %s1105 = smul.addr %s1104, 4
          %s1106 = scalar_lea.vmem %s5, %s1105
        $region83: #{_lambda_.32} parent=70 // pred_fallthru
          _
      $region71: #{_lambda_.32} parent=5 // pred_fallthru
        _
    $region6: #{_lambda_.32} parent=1 // loop_footer
      %s16 = sadd.s32 1, %s12
    $region7: #{_lambda_.32} parent=1 // loop_footer_branch
      %11 = sbr.rel target = $region3
    $region8: #{_lambda_.32} parent=1 // loop_exit
      _

// kernel: _lambda_.33
$region0: #{_lambda_.33}
  #allocation0 [shape = 'u32[]', space=smem, size = 0x4, offset = 0x4, fixed_abs, tag = 'smem constant byte address 0x4 - core index']
  #allocation1 [shape = 'u32[72,128]{1,0:T(1,128)}', space=vmem, size = 0x9000, scoped, tag = 'internal scratch']
  %s0 = inlined_call_operand.vmem [shape: bf16[128,2048], index: 0, kind: input, shape index: {}]
  %s1 = inlined_call_operand.vmem [shape: bf16[2,128], index: 1, kind: input, shape index: {}]
  %s2 = inlined_call_operand.vmem [shape: f32[2,1], index: 2, kind: input, shape index: {}]
  %s3 = inlined_call_operand.vmem [shape: bf16[1,2048], index: 3, kind: output, shape index: {0}]
  %s4 = inlined_call_operand.vmem [shape: f32[2,1,1], index: 4, kind: output, shape index: {1}]
  %s5 = inlined_call_operand.vmem [shape: f32[2,1,1], index: 5, kind: output, shape index: {2}]
  %6 = xla_tuple %s3, %s4, %s5
  %s7 = sld [smem:[#allocation0]]
  $region84: #{_lambda_.33} parent=0
    _
  %s9 = ssub.s32 1, %s7
  %s10 = scalar_select 0, %s9, %s7
  $region1: #{_lambda_.33} parent=0
    #allocation2 [shape = 'u8[524288]{0}', space=vmem, size = 0x80000, scoped, tag = 'input window, operand 0']
    loop: start=0, step=1, limit=4
    $region2: #{_lambda_.33} parent=1 // loop_pre_header
      _
    $region3: #{_lambda_.33} parent=1 // loop_header
      %s12 = sphi 0, %s16
      %p13 = scmp.ge.s32.totalorder %s12, 4
      %s22 = sphi 0, %s24
      %s25 = sphi 0, %s22
      %s26 = sphi 0, %s25
      %s42 = sphi 0, %s26
      %s46 = sphi 0, %s46
      %s48 = sphi 0, %s46
      %s49 = sphi 0, %s48
      %s63 = sphi 0, %s49
      %s67 = sphi 0, %s67
      %s69 = sphi 0, %s67
      %s70 = sphi 0, %s69
      %s84 = sphi 0, %s70
      %s90 = sphi 0, %s92
      %s93 = sphi 0, %s90
      %s94 = sphi 0, %s93
      %s110 = sphi 0, %s94
      %s116 = sphi 0, %s118
      %s119 = sphi 0, %s116
      %s120 = sphi 0, %s119
      %s136 = sphi 0, %s120
      %s142 = sphi 0, %s144
      %s145 = sphi 0, %s142
      %s146 = sphi 0, %s145
      %s162 = sphi 0, %s146
    $region4: #{_lambda_.33} parent=1 // loop_header_branch
      %15 = sbr.rel (%p13) target = $region8
    $region5: #{_lambda_.33} parent=1 // loop_body
      %s17 = ssub.s32 %s12, 1
      %s18 = ssub.s32 %s12, 2
      %s19 = sadd.s32 %s12, 1
      %s20 = ssub.s32 %s12, %s19
      %p21 = scmp.eq.s32.totalorder %s20, 0
      %s23 = sadd.s32 %s22, 1
      %s24 = scalar_select %p21, %s22, %s23
      %p27 = pneg %p21
      %p28 = scmp.eq.s32.totalorder %s12, 1
      %p29 = por %p27, %p28
      %p30 = scmp.ne.s32.totalorder %s22, %s25
      %p31 = scmp.eq.s32.totalorder %s12, 0
      %p32 = por %p30, %p31
      %p33 = scmp.ne.s32.totalorder %s22, %s25
      %p34 = scmp.eq.s32.totalorder %s17, 1
      %p35 = por %p33, %p34
      %p36 = scmp.ne.s32.totalorder %s25, %s26
      %p37 = scmp.eq.s32.totalorder %s17, 0
      %p38 = por %p36, %p37
      %p39 = scmp.ne.s32.totalorder %s25, %s26
      %p40 = scmp.eq.s32.totalorder %s18, 1
      %p41 = por %p39, %p40
      %p43 = scmp.ne.s32.totalorder %s26, %s42
      %p44 = scmp.eq.s32.totalorder %s18, 0
      %p45 = por %p43, %p44
      %s47 = sadd.s32 %s46, 1
      %p50 = scmp.eq.s32.totalorder %s12, 1
      %p51 = scmp.ne.s32.totalorder %s46, %s48
      %p52 = scmp.eq.s32.totalorder %s12, 0
      %p53 = por %p51, %p52
      %p54 = scmp.ne.s32.totalorder %s46, %s48
      %p55 = scmp.eq.s32.totalorder %s17, 1
      %p56 = por %p54, %p55
      %p57 = scmp.ne.s32.totalorder %s48, %s49
      %p58 = scmp.eq.s32.totalorder %s17, 0
      %p59 = por %p57, %p58
      %p60 = scmp.ne.s32.totalorder %s48, %s49
      %p61 = scmp.eq.s32.totalorder %s18, 1
      %p62 = por %p60, %p61
      %p64 = scmp.ne.s32.totalorder %s49, %s63
      %p65 = scmp.eq.s32.totalorder %s18, 0
      %p66 = por %p64, %p65
      %s68 = sadd.s32 %s67, 1
      %p71 = scmp.eq.s32.totalorder %s12, 1
      %p72 = scmp.ne.s32.totalorder %s67, %s69
      %p73 = scmp.eq.s32.totalorder %s12, 0
      %p74 = por %p72, %p73
      %p75 = scmp.ne.s32.totalorder %s67, %s69
      %p76 = scmp.eq.s32.totalorder %s17, 1
      %p77 = por %p75, %p76
      %p78 = scmp.ne.s32.totalorder %s69, %s70
      %p79 = scmp.eq.s32.totalorder %s17, 0
      %p80 = por %p78, %p79
      %p81 = scmp.ne.s32.totalorder %s69, %s70
      %p82 = scmp.eq.s32.totalorder %s18, 1
      %p83 = por %p81, %p82
      %p85 = scmp.ne.s32.totalorder %s70, %s84
      %p86 = scmp.eq.s32.totalorder %s18, 0
      %p87 = por %p85, %p86
      %s88 = ssub.s32 %s12, %s19
      %p89 = scmp.eq.s32.totalorder %s88, 0
      %s91 = sadd.s32 %s90, 1
      %s92 = scalar_select %p89, %s90, %s91
      %p95 = pneg %p89
      %p96 = scmp.eq.s32.totalorder %s12, 1
      %p97 = por %p95, %p96
      %p98 = scmp.ne.s32.totalorder %s90, %s93
      %p99 = scmp.eq.s32.totalorder %s12, 0
      %p100 = por %p98, %p99
      %p101 = scmp.ne.s32.totalorder %s90, %s93
      %p102 = scmp.eq.s32.totalorder %s17, 1
      %p103 = por %p101, %p102
      %p104 = scmp.ne.s32.totalorder %s93, %s94
      %p105 = scmp.eq.s32.totalorder %s17, 0
      %p106 = por %p104, %p105
      %p107 = scmp.ne.s32.totalorder %s93, %s94
      %p108 = scmp.eq.s32.totalorder %s18, 1
      %p109 = por %p107, %p108
      %p111 = scmp.ne.s32.totalorder %s94, %s110
      %p112 = scmp.eq.s32.totalorder %s18, 0
      %p113 = por %p111, %p112
      %s114 = ssub.s32 %s12, %s19
      %p115 = scmp.eq.s32.totalorder %s114, 0
      %s117 = sadd.s32 %s116, 1
      %s118 = scalar_select %p115, %s116, %s117
      %p121 = pneg %p115
      %p122 = scmp.eq.s32.totalorder %s12, 1
      %p123 = por %p121, %p122
      %p124 = scmp.ne.s32.totalorder %s116, %s119
      %p125 = scmp.eq.s32.totalorder %s12, 0
      %p126 = por %p124, %p125
      %p127 = scmp.ne.s32.totalorder %s116, %s119
      %p128 = scmp.eq.s32.totalorder %s17, 1
      %p129 = por %p127, %p128
      %p130 = scmp.ne.s32.totalorder %s119, %s120
      %p131 = scmp.eq.s32.totalorder %s17, 0
      %p132 = por %p130, %p131
      %p133 = scmp.ne.s32.totalorder %s119, %s120
      %p134 = scmp.eq.s32.totalorder %s18, 1
      %p135 = por %p133, %p134
      %p137 = scmp.ne.s32.totalorder %s120, %s136
      %p138 = scmp.eq.s32.totalorder %s18, 0
      %p139 = por %p137, %p138
      %s140 = ssub.s32 %s12, %s19
      %p141 = scmp.eq.s32.totalorder %s140, 0
      %s143 = sadd.s32 %s142, 1
      %s144 = scalar_select %p141, %s142, %s143
      %p147 = pneg %p141
      %p148 = scmp.eq.s32.totalorder %s12, 1
      %p149 = por %p147, %p148
      %p150 = scmp.ne.s32.totalorder %s142, %s145
      %p151 = scmp.eq.s32.totalorder %s12, 0
      %p152 = por %p150, %p151
      %p153 = scmp.ne.s32.totalorder %s142, %s145
      %p154 = scmp.eq.s32.totalorder %s17, 1
      %p155 = por %p153, %p154
      %p156 = scmp.ne.s32.totalorder %s145, %s146
      %p157 = scmp.eq.s32.totalorder %s17, 0
      %p158 = por %p156, %p157
      %p159 = scmp.ne.s32.totalorder %s145, %s146
      %p160 = scmp.eq.s32.totalorder %s18, 1
      %p161 = por %p159, %p160
      %p163 = scmp.ne.s32.totalorder %s146, %s162
      %p164 = scmp.eq.s32.totalorder %s18, 0
      %p165 = por %p163, %p164
      %p166 = scmp.le.s32.totalorder 1, %s12
      %p167 = scmp.lt.s32.totalorder %s12, 3
      %p168 = pnand %p166, %p167
      %p169 = pneg %p168
      // Predicated region
      $region9: #{_lambda_.33} parent=5 // pred_check
        _
      $region10: #{_lambda_.33} parent=5 // pred_check_branch
        %171 = sbr.rel (%p168) target = $region12
      $region11: #{_lambda_.33} parent=5 // pred_region
        %s172 = ssub.s32 %s12, 1
        // Predicated region
        $region13: #{_lambda_.33} parent=11 // pred_check
          %p173 = pneg %p59
        $region14: #{_lambda_.33} parent=11 // pred_check_branch
          %175 = sbr.rel (%p173) target = $region16
        $region15: #{_lambda_.33} parent=11 // pred_region
          _
        $region16: #{_lambda_.33} parent=11 // pred_fallthru
          _
        // Predicated region
        $region17: #{_lambda_.33} parent=11 // pred_check
          %p176 = pneg %p80
        $region18: #{_lambda_.33} parent=11 // pred_check_branch
          %178 = sbr.rel (%p176) target = $region20
        $region19: #{_lambda_.33} parent=11 // pred_region
          _
        $region20: #{_lambda_.33} parent=11 // pred_fallthru
          _
      $region12: #{_lambda_.33} parent=5 // pred_fallthru
        _
      %p179 = scmp.lt.s32.totalorder %s12, 2
      // Predicated region
      $region21: #{_lambda_.33} parent=5 // pred_check
        %p180 = pneg %p179
      $region22: #{_lambda_.33} parent=5 // pred_check_branch
        %182 = sbr.rel (%p180) target = $region24
      $region23: #{_lambda_.33} parent=5 // pred_region
        // Predicated region
        $region25: #{_lambda_.33} parent=23 // pred_check
          %p183 = pneg %p32
        $region26: #{_lambda_.33} parent=23 // pred_check_branch
          %185 = sbr.rel (%p183) target = $region28
        $region27: #{_lambda_.33} parent=23 // pred_region
          %s186 = sand.u32 %s22, 1
          %s187 = sand.u32 %s22, 1
          %s188 = smul.addr %s187, 512
          %s189 = scalar_lea.vmem [#allocation2], %s188
          %s190 = smul.u32 8, %s12
          %s191 = smul.addr %s190, 4
          %s192 = scalar_lea.vmem %s0, %s191
          // Predicated region
          $region29: #{_lambda_.33} parent=27 // pred_check
            _
          $region30: #{_lambda_.33} parent=27 // pred_check_branch
            %194 = sbr.rel (0) target = $region32
          $region31: #{_lambda_.33} parent=27 // pred_region
            // Predicated region
            $region33: #{_lambda_.33} parent=31 // pred_check
              _
            $region34: #{_lambda_.33} parent=31 // pred_check_branch
              %196 = sbr.rel (0) target = $region36
            $region35: #{_lambda_.33} parent=31 // pred_region
              loop: start=0, step=1, limit=1
              $region37: #{_lambda_.33} parent=35 // loop_pre_header
                _
              $region38: #{_lambda_.33} parent=35 // loop_header
                %s198 = sphi 0, %s202
                %p199 = scmp.ge.s32.totalorder %s198, 1
                %s203 = sphi %s192, %s192
                %s204 = sphi %s189, %s189
              $region39: #{_lambda_.33} parent=35 // loop_header_branch
                %201 = sbr.rel (%p199) target = $region43
              $region40: #{_lambda_.33} parent=35 // loop_body
                %v205 = vld [vmem:[%s203] sm:$0xff]
                %206 = vst [vmem:[%s204] sm:$0xff] %v205
                %v207 = vld [vmem:[%s203 + $0x8] sm:$0xff]
                %208 = vst [vmem:[%s204 + $0x8] sm:$0xff] %v207
                %v209 = vld [vmem:[%s203 + $0x10] sm:$0xff]
                %210 = vst [vmem:[%s204 + $0x10] sm:$0xff] %v209
                %v211 = vld [vmem:[%s203 + $0x18] sm:$0xff]
                %212 = vst [vmem:[%s204 + $0x18] sm:$0xff] %v211
                %v213 = vld [vmem:[%s203 + $0x40] sm:$0xff]
                %214 = vst [vmem:[%s204 + $0x20] sm:$0xff] %v213
                %v215 = vld [vmem:[%s203 + $0x48] sm:$0xff]
                %216 = vst [vmem:[%s204 + $0x28] sm:$0xff] %v215
                %v217 = vld [vmem:[%s203 + $0x50] sm:$0xff]
                %218 = vst [vmem:[%s204 + $0x30] sm:$0xff] %v217
                %v219 = vld [vmem:[%s203 + $0x58] sm:$0xff]
                %220 = vst [vmem:[%s204 + $0x38] sm:$0xff] %v219
                %v221 = vld [vmem:[%s203 + $0x80] sm:$0xff]
                %222 = vst [vmem:[%s204 + $0x40] sm:$0xff] %v221
                %v223 = vld [vmem:[%s203 + $0x88] sm:$0xff]
                %224 = vst [vmem:[%s204 + $0x48] sm:$0xff] %v223
                %v225 = vld [vmem:[%s203 + $0x90] sm:$0xff]
                %226 = vst [vmem:[%s204 + $0x50] sm:$0xff] %v225
                %v227 = vld [vmem:[%s203 + $0x98] sm:$0xff]
                %228 = vst [vmem:[%s204 + $0x58] sm:$0xff] %v227
                %v229 = vld [vmem:[%s203 + $0xc0] sm:$0xff]
                %230 = vst [vmem:[%s204 + $0x60] sm:$0xff] %v229
                %v231 = vld [vmem:[%s203 + $0xc8] sm:$0xff]
                %232 = vst [vmem:[%s204 + $0x68] sm:$0xff] %v231
                %v233 = vld [vmem:[%s203 + $0xd0] sm:$0xff]
                %234 = vst [vmem:[%s204 + $0x70] sm:$0xff] %v233
                %v235 = vld [vmem:[%s203 + $0xd8] sm:$0xff]
                %236 = vst [vmem:[%s204 + $0x78] sm:$0xff] %v235
                %v237 = vld [vmem:[%s203 + $0x100] sm:$0xff]
                %238 = vst [vmem:[%s204 + $0x80] sm:$0xff] %v237
                %v239 = vld [vmem:[%s203 + $0x108] sm:$0xff]
                %240 = vst [vmem:[%s204 + $0x88] sm:$0xff] %v239
                %v241 = vld [vmem:[%s203 + $0x110] sm:$0xff]
                %242 = vst [vmem:[%s204 + $0x90] sm:$0xff] %v241
                %v243 = vld [vmem:[%s203 + $0x118] sm:$0xff]
                %244 = vst [vmem:[%s204 + $0x98] sm:$0xff] %v243
                %v245 = vld [vmem:[%s203 + $0x140] sm:$0xff]
                %246 = vst [vmem:[%s204 + $0xa0] sm:$0xff] %v245
                %v247 = vld [vmem:[%s203 + $0x148] sm:$0xff]
                %248 = vst [vmem:[%s204 + $0xa8] sm:$0xff] %v247
                %v249 = vld [vmem:[%s203 + $0x150] sm:$0xff]
                %250 = vst [vmem:[%s204 + $0xb0] sm:$0xff] %v249
                %v251 = vld [vmem:[%s203 + $0x158] sm:$0xff]
                %252 = vst [vmem:[%s204 + $0xb8] sm:$0xff] %v251
                %v253 = vld [vmem:[%s203 + $0x180] sm:$0xff]
                %254 = vst [vmem:[%s204 + $0xc0] sm:$0xff] %v253
                %v255 = vld [vmem:[%s203 + $0x188] sm:$0xff]
                %256 = vst [vmem:[%s204 + $0xc8] sm:$0xff] %v255
                %v257 = vld [vmem:[%s203 + $0x190] sm:$0xff]
                %258 = vst [vmem:[%s204 + $0xd0] sm:$0xff] %v257
                %v259 = vld [vmem:[%s203 + $0x198] sm:$0xff]
                %260 = vst [vmem:[%s204 + $0xd8] sm:$0xff] %v259
                %v261 = vld [vmem:[%s203 + $0x1c0] sm:$0xff]
                %262 = vst [vmem:[%s204 + $0xe0] sm:$0xff] %v261
                %v263 = vld [vmem:[%s203 + $0x1c8] sm:$0xff]
                %264 = vst [vmem:[%s204 + $0xe8] sm:$0xff] %v263
                %v265 = vld [vmem:[%s203 + $0x1d0] sm:$0xff]
                %266 = vst [vmem:[%s204 + $0xf0] sm:$0xff] %v265
                %v267 = vld [vmem:[%s203 + $0x1d8] sm:$0xff]
                %268 = vst [vmem:[%s204 + $0xf8] sm:$0xff] %v267
                %v269 = vld [vmem:[%s203 + $0x200] sm:$0xff]
                %270 = vst [vmem:[%s204 + $0x100] sm:$0xff] %v269
                %v271 = vld [vmem:[%s203 + $0x208] sm:$0xff]
                %272 = vst [vmem:[%s204 + $0x108] sm:$0xff] %v271
                %v273 = vld [vmem:[%s203 + $0x210] sm:$0xff]
                %274 = vst [vmem:[%s204 + $0x110] sm:$0xff] %v273
                %v275 = vld [vmem:[%s203 + $0x218] sm:$0xff]
                %276 = vst [vmem:[%s204 + $0x118] sm:$0xff] %v275
                %v277 = vld [vmem:[%s203 + $0x240] sm:$0xff]
                %278 = vst [vmem:[%s204 + $0x120] sm:$0xff] %v277
                %v279 = vld [vmem:[%s203 + $0x248] sm:$0xff]
                %280 = vst [vmem:[%s204 + $0x128] sm:$0xff] %v279
                %v281 = vld [vmem:[%s203 + $0x250] sm:$0xff]
                %282 = vst [vmem:[%s204 + $0x130] sm:$0xff] %v281
                %v283 = vld [vmem:[%s203 + $0x258] sm:$0xff]
                %284 = vst [vmem:[%s204 + $0x138] sm:$0xff] %v283
                %v285 = vld [vmem:[%s203 + $0x280] sm:$0xff]
                %286 = vst [vmem:[%s204 + $0x140] sm:$0xff] %v285
                %v287 = vld [vmem:[%s203 + $0x288] sm:$0xff]
                %288 = vst [vmem:[%s204 + $0x148] sm:$0xff] %v287
                %v289 = vld [vmem:[%s203 + $0x290] sm:$0xff]
                %290 = vst [vmem:[%s204 + $0x150] sm:$0xff] %v289
                %v291 = vld [vmem:[%s203 + $0x298] sm:$0xff]
                %292 = vst [vmem:[%s204 + $0x158] sm:$0xff] %v291
                %v293 = vld [vmem:[%s203 + $0x2c0] sm:$0xff]
                %294 = vst [vmem:[%s204 + $0x160] sm:$0xff] %v293
                %v295 = vld [vmem:[%s203 + $0x2c8] sm:$0xff]
                %296 = vst [vmem:[%s204 + $0x168] sm:$0xff] %v295
                %v297 = vld [vmem:[%s203 + $0x2d0] sm:$0xff]
                %298 = vst [vmem:[%s204 + $0x170] sm:$0xff] %v297
                %v299 = vld [vmem:[%s203 + $0x2d8] sm:$0xff]
                %300 = vst [vmem:[%s204 + $0x178] sm:$0xff] %v299
                %v301 = vld [vmem:[%s203 + $0x300] sm:$0xff]
                %302 = vst [vmem:[%s204 + $0x180] sm:$0xff] %v301
                %v303 = vld [vmem:[%s203 + $0x308] sm:$0xff]
                %304 = vst [vmem:[%s204 + $0x188] sm:$0xff] %v303
                %v305 = vld [vmem:[%s203 + $0x310] sm:$0xff]
                %306 = vst [vmem:[%s204 + $0x190] sm:$0xff] %v305
                %v307 = vld [vmem:[%s203 + $0x318] sm:$0xff]
                %308 = vst [vmem:[%s204 + $0x198] sm:$0xff] %v307
                %v309 = vld [vmem:[%s203 + $0x340] sm:$0xff]
                %310 = vst [vmem:[%s204 + $0x1a0] sm:$0xff] %v309
                %v311 = vld [vmem:[%s203 + $0x348] sm:$0xff]
                %312 = vst [vmem:[%s204 + $0x1a8] sm:$0xff] %v311
                %v313 = vld [vmem:[%s203 + $0x350] sm:$0xff]
                %314 = vst [vmem:[%s204 + $0x1b0] sm:$0xff] %v313
                %v315 = vld [vmem:[%s203 + $0x358] sm:$0xff]
                %316 = vst [vmem:[%s204 + $0x1b8] sm:$0xff] %v315
                %v317 = vld [vmem:[%s203 + $0x380] sm:$0xff]
                %318 = vst [vmem:[%s204 + $0x1c0] sm:$0xff] %v317
                %v319 = vld [vmem:[%s203 + $0x388] sm:$0xff]
                %320 = vst [vmem:[%s204 + $0x1c8] sm:$0xff] %v319
                %v321 = vld [vmem:[%s203 + $0x390] sm:$0xff]
                %322 = vst [vmem:[%s204 + $0x1d0] sm:$0xff] %v321
                %v323 = vld [vmem:[%s203 + $0x398] sm:$0xff]
                %324 = vst [vmem:[%s204 + $0x1d8] sm:$0xff] %v323
                %v325 = vld [vmem:[%s203 + $0x3c0] sm:$0xff]
                %326 = vst [vmem:[%s204 + $0x1e0] sm:$0xff] %v325
                %v327 = vld [vmem:[%s203 + $0x3c8] sm:$0xff]
                %328 = vst [vmem:[%s204 + $0x1e8] sm:$0xff] %v327
                %v329 = vld [vmem:[%s203 + $0x3d0] sm:$0xff]
                %330 = vst [vmem:[%s204 + $0x1f0] sm:$0xff] %v329
                %v331 = vld [vmem:[%s203 + $0x3d8] sm:$0xff]
                %332 = vst [vmem:[%s204 + $0x1f8] sm:$0xff] %v331
              $region41: #{_lambda_.33} parent=35 // loop_footer
                %s202 = sadd.s32 1, %s198
              $region42: #{_lambda_.33} parent=35 // loop_footer_branch
                %197 = sbr.rel target = $region38
              $region43: #{_lambda_.33} parent=35 // loop_exit
                _
            $region36: #{_lambda_.33} parent=31 // pred_fallthru
              _
            // Predicated region
            $region44: #{_lambda_.33} parent=31 // pred_check
              _
            $region45: #{_lambda_.33} parent=31 // pred_check_branch
              %334 = sbr.rel target = $region47
            $region46: #{_lambda_.33} parent=31 // pred_region
              _
            $region47: #{_lambda_.33} parent=31 // pred_fallthru
              _
          $region32: #{_lambda_.33} parent=27 // pred_fallthru
            _
          %335 = vnop
        $region28: #{_lambda_.33} parent=23 // pred_fallthru
          _
      $region24: #{_lambda_.33} parent=5 // pred_fallthru
        _
      %p336 = scmp.le.s32.totalorder 1, %s12
      %p337 = scmp.lt.s32.totalorder %s12, 3
      %p338 = pnand %p336, %p337
      %p339 = pneg %p338
      // Predicated region
      $region48: #{_lambda_.33} parent=5 // pred_check
        _
      $region49: #{_lambda_.33} parent=5 // pred_check_branch
        %341 = sbr.rel (%p338) target = $region51
      $region50: #{_lambda_.33} parent=5 // pred_region
        %s342 = ssub.s32 %s12, 1
        %s343 = sand.u32 %s25, 1
        %s344 = sand.u32 %s25, 1
        %s345 = smul.addr %s344, 512
        %s346 = scalar_lea.vmem [#allocation2], %s345
        // Predicated region
        $region52: #{_lambda_.33} parent=50 // pred_check
          %p347 = pneg %p38
        $region53: #{_lambda_.33} parent=50 // pred_check_branch
          %349 = sbr.rel (%p347) target = $region55
        $region54: #{_lambda_.33} parent=50 // pred_region
          _
        $region55: #{_lambda_.33} parent=50 // pred_fallthru
          _
        %s350 = sand.u32 %s25, 1
        %s351 = sand.u32 %s25, 1
        %s352 = smul.addr %s351, 512
        %s353 = scalar_lea.vmem [#allocation2], %s352
        %p354 = pneg %p38
        %p355 = pneg %p35
        %p356 = pneg %p59
        %p357 = pneg %p56
        %p358 = pneg %p80
        %p359 = pneg %p77
        %p360 = pneg %p106
        %p361 = pneg %p103
        %s362 = smul.u32 8, %s17
        %p363 = scmp.lt.s32.totalorder %s362, 15
        %s364 = scalar_select %p363, %s362, 15
        %s365 = scalar_lea.vmem %s3, %s364
        %p366 = pneg %p132
        %p367 = pneg %p129
        %p368 = scmp.lt.s32.totalorder %s17, 1
        %s369 = scalar_select %p368, %s17, 1
        %s370 = scalar_lea.vmem %s4, %s369
        %p371 = pneg %p158
        %p372 = pneg %p155
        %p373 = scmp.lt.s32.totalorder %s17, 1
        %s374 = scalar_select %p373, %s17, 1
        %s375 = scalar_lea.vmem %s5, %s374
        %s376 = smul.u32 8, %s17
        %s377 = smul.u32 8, %s17
        %p378 = scmp.lt.s32.totalorder %s377, 15
        %s379 = scalar_select %p378, %s377, 15
        %s380 = scalar_lea.vmem %s3, %s379
        %s381 = smul.u32 8, %s17
        %p382 = scmp.lt.s32.totalorder %s17, 1
        %s383 = scalar_select %p382, %s17, 1
        %s384 = scalar_lea.vmem %s4, %s383
        %p385 = scmp.lt.s32.totalorder %s17, 1
        %s386 = scalar_select %p385, %s17, 1
        %s387 = scalar_lea.vmem %s5, %s386
        %v388 = vld [vmem:[%s1] sm:$0x1]
        %v389 = vld [vmem:[%s346] sm:$0xff]
        %v390 = vld [vmem:[%s346 + $0x8] sm:$0xff]
        %v391 = vld [vmem:[%s346 + $0x10] sm:$0xff]
        %v392 = vld [vmem:[%s346 + $0x18] sm:$0xff]
        %v393 = vld [vmem:[%s346 + $0x20] sm:$0xff]
        %v394 = vld [vmem:[%s346 + $0x28] sm:$0xff]
        %v395 = vld [vmem:[%s346 + $0x30] sm:$0xff]
        %v396 = vld [vmem:[%s346 + $0x38] sm:$0xff]
        %v397 = vld [vmem:[%s346 + $0x40] sm:$0xff]
        %v398 = vld [vmem:[%s346 + $0x48] sm:$0xff]
        %v399 = vld [vmem:[%s346 + $0x50] sm:$0xff]
        %v400 = vld [vmem:[%s346 + $0x58] sm:$0xff]
        %v401 = vld [vmem:[%s346 + $0x60] sm:$0xff]
        %v402 = vld [vmem:[%s346 + $0x68] sm:$0xff]
        %v403 = vld [vmem:[%s346 + $0x70] sm:$0xff]
        %v404 = vld [vmem:[%s346 + $0x78] sm:$0xff]
        %v405 = vld [vmem:[%s346 + $0x80] sm:$0xff]
        %v406 = vld [vmem:[%s346 + $0x88] sm:$0xff]
        %v407 = vld [vmem:[%s346 + $0x90] sm:$0xff]
        %v408 = vld [vmem:[%s346 + $0x98] sm:$0xff]
        %v409 = vld [vmem:[%s346 + $0xa0] sm:$0xff]
        %v410 = vld [vmem:[%s346 + $0xa8] sm:$0xff]
        %v411 = vld [vmem:[%s346 + $0xb0] sm:$0xff]
        %v412 = vld [vmem:[%s346 + $0xb8] sm:$0xff]
        %v413 = vld [vmem:[%s346 + $0xc0] sm:$0xff]
        %v414 = vld [vmem:[%s346 + $0xc8] sm:$0xff]
        %v415 = vld [vmem:[%s346 + $0xd0] sm:$0xff]
        %v416 = vld [vmem:[%s346 + $0xd8] sm:$0xff]
        %v417 = vld [vmem:[%s346 + $0xe0] sm:$0xff]
        %v418 = vld [vmem:[%s346 + $0xe8] sm:$0xff]
        %v419 = vld [vmem:[%s346 + $0xf0] sm:$0xff]
        %v420 = vld [vmem:[%s346 + $0xf8] sm:$0xff]
        %v421 = vld [vmem:[%s346 + $0x100] sm:$0xff]
        %v422 = vld [vmem:[%s346 + $0x108] sm:$0xff]
        %v423 = vld [vmem:[%s346 + $0x110] sm:$0xff]
        %v424 = vld [vmem:[%s346 + $0x118] sm:$0xff]
        %v425 = vld [vmem:[%s346 + $0x120] sm:$0xff]
        %v426 = vld [vmem:[%s346 + $0x128] sm:$0xff]
        %v427 = vld [vmem:[%s346 + $0x130] sm:$0xff]
        %v428 = vld [vmem:[%s346 + $0x138] sm:$0xff]
        %v429 = vld [vmem:[%s346 + $0x140] sm:$0xff]
        %v430 = vld [vmem:[%s346 + $0x148] sm:$0xff]
        %v431 = vld [vmem:[%s346 + $0x150] sm:$0xff]
        %v432 = vld [vmem:[%s346 + $0x158] sm:$0xff]
        %v433 = vld [vmem:[%s346 + $0x160] sm:$0xff]
        %v434 = vld [vmem:[%s346 + $0x168] sm:$0xff]
        %v435 = vld [vmem:[%s346 + $0x170] sm:$0xff]
        %v436 = vld [vmem:[%s346 + $0x178] sm:$0xff]
        %v437 = vld [vmem:[%s346 + $0x180] sm:$0xff]
        %v438 = vld [vmem:[%s346 + $0x188] sm:$0xff]
        %v439 = vld [vmem:[%s346 + $0x190] sm:$0xff]
        %v440 = vld [vmem:[%s346 + $0x198] sm:$0xff]
        %v441 = vld [vmem:[%s346 + $0x1a0] sm:$0xff]
        %v442 = vld [vmem:[%s346 + $0x1a8] sm:$0xff]
        %v443 = vld [vmem:[%s346 + $0x1b0] sm:$0xff]
        %v444 = vld [vmem:[%s346 + $0x1b8] sm:$0xff]
        %v445 = vld [vmem:[%s346 + $0x1c0] sm:$0xff]
        %v446 = vld [vmem:[%s346 + $0x1c8] sm:$0xff]
        %v447 = vld [vmem:[%s346 + $0x1d0] sm:$0xff]
        %v448 = vld [vmem:[%s346 + $0x1d8] sm:$0xff]
        %v449 = vld [vmem:[%s346 + $0x1e0] sm:$0xff]
        %v450 = vld [vmem:[%s346 + $0x1e8] sm:$0xff]
        %v451 = vld [vmem:[%s346 + $0x1f0] sm:$0xff]
        %v452 = vld [vmem:[%s346 + $0x1f8] sm:$0xff]
        %v453 = vld [vmem:[%s2] sm:$0x3]
        %455 = vset.pattern.permute.xlu0 0
        %456 = vperm.xlu0 %455, %v453
        %v457 = vpop.permute.xlu0 %456
        %v523 = vunpack.c.l.b16 %v389
        %v524 = vunpack.c.h.b16 %v389
        %v525 = vunpack.c.l.b16 %v390
        %v526 = vunpack.c.h.b16 %v390
        %v527 = vunpack.c.l.b16 %v391
        %v528 = vunpack.c.h.b16 %v391
        %v529 = vunpack.c.l.b16 %v392
        %v530 = vunpack.c.h.b16 %v392
        %v531 = vunpack.c.l.b16 %v393
        %v532 = vunpack.c.h.b16 %v393
        %v533 = vunpack.c.l.b16 %v394
        %v534 = vunpack.c.h.b16 %v394
        %v535 = vunpack.c.l.b16 %v395
        %v536 = vunpack.c.h.b16 %v395
        %v537 = vunpack.c.l.b16 %v396
        %v538 = vunpack.c.h.b16 %v396
        %v539 = vunpack.c.l.b16 %v397
        %v540 = vunpack.c.h.b16 %v397
        %v541 = vunpack.c.l.b16 %v398
        %v542 = vunpack.c.h.b16 %v398
        %v543 = vunpack.c.l.b16 %v399
        %v544 = vunpack.c.h.b16 %v399
        %v545 = vunpack.c.l.b16 %v400
        %v546 = vunpack.c.h.b16 %v400
        %v547 = vunpack.c.l.b16 %v401
        %v548 = vunpack.c.h.b16 %v401
        %v549 = vunpack.c.l.b16 %v402
        %v550 = vunpack.c.h.b16 %v402
        %v551 = vunpack.c.l.b16 %v403
        %v552 = vunpack.c.h.b16 %v403
        %v553 = vunpack.c.l.b16 %v404
        %v554 = vunpack.c.h.b16 %v404
        %v555 = vunpack.c.l.b16 %v405
        %v556 = vunpack.c.h.b16 %v405
        %v557 = vunpack.c.l.b16 %v406
        %v558 = vunpack.c.h.b16 %v406
        %v559 = vunpack.c.l.b16 %v407
        %v560 = vunpack.c.h.b16 %v407
        %v561 = vunpack.c.l.b16 %v408
        %v562 = vunpack.c.h.b16 %v408
        %v563 = vunpack.c.l.b16 %v409
        %v564 = vunpack.c.h.b16 %v409
        %v565 = vunpack.c.l.b16 %v410
        %v566 = vunpack.c.h.b16 %v410
        %v567 = vunpack.c.l.b16 %v411
        %v568 = vunpack.c.h.b16 %v411
        %v569 = vunpack.c.l.b16 %v412
        %v570 = vunpack.c.h.b16 %v412
        %v571 = vunpack.c.l.b16 %v413
        %v572 = vunpack.c.h.b16 %v413
        %v573 = vunpack.c.l.b16 %v414
        %v574 = vunpack.c.h.b16 %v414
        %v575 = vunpack.c.l.b16 %v415
        %v576 = vunpack.c.h.b16 %v415
        %v577 = vunpack.c.l.b16 %v416
        %v578 = vunpack.c.h.b16 %v416
        %v579 = vunpack.c.l.b16 %v417
        %v580 = vunpack.c.h.b16 %v417
        %v581 = vunpack.c.l.b16 %v418
        %v582 = vunpack.c.h.b16 %v418
        %v583 = vunpack.c.l.b16 %v419
        %v584 = vunpack.c.h.b16 %v419
        %v585 = vunpack.c.l.b16 %v420
        %v586 = vunpack.c.h.b16 %v420
        %v587 = vunpack.c.l.b16 %v421
        %v588 = vunpack.c.h.b16 %v421
        %v589 = vunpack.c.l.b16 %v422
        %v590 = vunpack.c.h.b16 %v422
        %v591 = vunpack.c.l.b16 %v423
        %v592 = vunpack.c.h.b16 %v423
        %v593 = vunpack.c.l.b16 %v424
        %v594 = vunpack.c.h.b16 %v424
        %v595 = vunpack.c.l.b16 %v425
        %v596 = vunpack.c.h.b16 %v425
        %v597 = vunpack.c.l.b16 %v426
        %v598 = vunpack.c.h.b16 %v426
        %v599 = vunpack.c.l.b16 %v427
        %v600 = vunpack.c.h.b16 %v427
        %v601 = vunpack.c.l.b16 %v428
        %v602 = vunpack.c.h.b16 %v428
        %v603 = vunpack.c.l.b16 %v429
        %v604 = vunpack.c.h.b16 %v429
        %v605 = vunpack.c.l.b16 %v430
        %v606 = vunpack.c.h.b16 %v430
        %v607 = vunpack.c.l.b16 %v431
        %v608 = vunpack.c.h.b16 %v431
        %v609 = vunpack.c.l.b16 %v432
        %v610 = vunpack.c.h.b16 %v432
        %v611 = vunpack.c.l.b16 %v433
        %v612 = vunpack.c.h.b16 %v433
        %v613 = vunpack.c.l.b16 %v434
        %v614 = vunpack.c.h.b16 %v434
        %v615 = vunpack.c.l.b16 %v435
        %v616 = vunpack.c.h.b16 %v435
        %v617 = vunpack.c.l.b16 %v436
        %v618 = vunpack.c.h.b16 %v436
        %v619 = vunpack.c.l.b16 %v437
        %v620 = vunpack.c.h.b16 %v437
        %v621 = vunpack.c.l.b16 %v438
        %v622 = vunpack.c.h.b16 %v438
        %v623 = vunpack.c.l.b16 %v439
        %v624 = vunpack.c.h.b16 %v439
        %v625 = vunpack.c.l.b16 %v440
        %v626 = vunpack.c.h.b16 %v440
        %v627 = vunpack.c.l.b16 %v441
        %v628 = vunpack.c.h.b16 %v441
        %v629 = vunpack.c.l.b16 %v442
        %v630 = vunpack.c.h.b16 %v442
        %v631 = vunpack.c.l.b16 %v443
        %v632 = vunpack.c.h.b16 %v443
        %v633 = vunpack.c.l.b16 %v444
        %v634 = vunpack.c.h.b16 %v444
        %v635 = vunpack.c.l.b16 %v445
        %v636 = vunpack.c.h.b16 %v445
        %v637 = vunpack.c.l.b16 %v446
        %v638 = vunpack.c.h.b16 %v446
        %v639 = vunpack.c.l.b16 %v447
        %v640 = vunpack.c.h.b16 %v447
        %v641 = vunpack.c.l.b16 %v448
        %v642 = vunpack.c.h.b16 %v448
        %v643 = vunpack.c.l.b16 %v449
        %v644 = vunpack.c.h.b16 %v449
        %v645 = vunpack.c.l.b16 %v450
        %v646 = vunpack.c.h.b16 %v450
        %v647 = vunpack.c.l.b16 %v451
        %v648 = vunpack.c.h.b16 %v451
        %v649 = vunpack.c.l.b16 %v452
        %v650 = vunpack.c.h.b16 %v452
        %v651 = vpack.c.b16 %v531, %v523
        %v652 = vpack.c.b16 %v532, %v524
        %v653 = vpack.c.b16 %v533, %v525
        %v654 = vpack.c.b16 %v534, %v526
        %v655 = vpack.c.b16 %v535, %v527
        %v656 = vpack.c.b16 %v536, %v528
        %v657 = vpack.c.b16 %v537, %v529
        %v658 = vpack.c.b16 %v538, %v530
        %v659 = vpack.c.b16 %v547, %v539
        %v660 = vpack.c.b16 %v548, %v540
        %v661 = vpack.c.b16 %v549, %v541
        %v662 = vpack.c.b16 %v550, %v542
        %v663 = vpack.c.b16 %v551, %v543
        %v664 = vpack.c.b16 %v552, %v544
        %v665 = vpack.c.b16 %v553, %v545
        %v666 = vpack.c.b16 %v554, %v546
        %v667 = vpack.c.b16 %v563, %v555
        %v668 = vpack.c.b16 %v564, %v556
        %v669 = vpack.c.b16 %v565, %v557
        %v670 = vpack.c.b16 %v566, %v558
        %v671 = vpack.c.b16 %v567, %v559
        %v672 = vpack.c.b16 %v568, %v560
        %v673 = vpack.c.b16 %v569, %v561
        %v674 = vpack.c.b16 %v570, %v562
        %v675 = vpack.c.b16 %v579, %v571
        %v676 = vpack.c.b16 %v580, %v572
        %v677 = vpack.c.b16 %v581, %v573
        %v678 = vpack.c.b16 %v582, %v574
        %v679 = vpack.c.b16 %v583, %v575
        %v680 = vpack.c.b16 %v584, %v576
        %v681 = vpack.c.b16 %v585, %v577
        %v682 = vpack.c.b16 %v586, %v578
        %v683 = vpack.c.b16 %v595, %v587
        %v684 = vpack.c.b16 %v596, %v588
        %v685 = vpack.c.b16 %v597, %v589
        %v686 = vpack.c.b16 %v598, %v590
        %v687 = vpack.c.b16 %v599, %v591
        %v688 = vpack.c.b16 %v600, %v592
        %v689 = vpack.c.b16 %v601, %v593
        %v690 = vpack.c.b16 %v602, %v594
        %v691 = vpack.c.b16 %v611, %v603
        %v692 = vpack.c.b16 %v612, %v604
        %v693 = vpack.c.b16 %v613, %v605
        %v694 = vpack.c.b16 %v614, %v606
        %v695 = vpack.c.b16 %v615, %v607
        %v696 = vpack.c.b16 %v616, %v608
        %v697 = vpack.c.b16 %v617, %v609
        %v698 = vpack.c.b16 %v618, %v610
        %v699 = vpack.c.b16 %v627, %v619
        %v700 = vpack.c.b16 %v628, %v620
        %v701 = vpack.c.b16 %v629, %v621
        %v702 = vpack.c.b16 %v630, %v622
        %v703 = vpack.c.b16 %v631, %v623
        %v704 = vpack.c.b16 %v632, %v624
        %v705 = vpack.c.b16 %v633, %v625
        %v706 = vpack.c.b16 %v634, %v626
        %v707 = vpack.c.b16 %v643, %v635
        %v708 = vpack.c.b16 %v644, %v636
        %v709 = vpack.c.b16 %v645, %v637
        %v710 = vpack.c.b16 %v646, %v638
        %v711 = vpack.c.b16 %v647, %v639
        %v712 = vpack.c.b16 %v648, %v640
        %v713 = vpack.c.b16 %v649, %v641
        %v714 = vpack.c.b16 %v650, %v642
        %779 = vmatpush.bf16.msra.mxu0 %v707
        %780 = vmatpush.bf16.msra.mxu0 %v699
        %781 = vmatpush.bf16.msra.mxu0 %v691
        %782 = vmatpush.bf16.msra.mxu0 %v683
        %783 = vmatpush.bf16.msra.mxu0 %v675
        %784 = vmatpush.bf16.msra.mxu0 %v667
        %785 = vmatpush.bf16.msra.mxu0 %v659
        %786 = vmatpush.bf16.msra.mxu0 %v651
        %787 = vmatmul.bf16.gmra.mxu0 %v388
        %v788 = vpop.f32.mrf.mxu0
        %v789 = vadd.f32 %v457, %v788
        %v790 = vpop.f32.mrf.mxu0
        %791 = vdwg.mxu0
        %792 = vmatpush.bf16.msra.mxu0 %v708
        %793 = vmatpush.bf16.msra.mxu0 %v700
        %794 = vmatpush.bf16.msra.mxu0 %v692
        %795 = vmatpush.bf16.msra.mxu0 %v684
        %796 = vmatpush.bf16.msra.mxu0 %v676
        %797 = vmatpush.bf16.msra.mxu0 %v668
        %798 = vmatpush.bf16.msra.mxu0 %v660
        %799 = vmatpush.bf16.msra.mxu0 %v652
        %800 = vmatmul.bf16.gmra.mxu0 %v388
        %v801 = vpop.f32.mrf.mxu0
        %v802 = vadd.f32 %v457, %v801
        %v803 = vpop.f32.mrf.mxu0
        %804 = vdwg.mxu0
        %805 = vmatpush.bf16.msra.mxu0 %v709
        %806 = vmatpush.bf16.msra.mxu0 %v701
        %807 = vmatpush.bf16.msra.mxu0 %v693
        %808 = vmatpush.bf16.msra.mxu0 %v685
        %809 = vmatpush.bf16.msra.mxu0 %v677
        %810 = vmatpush.bf16.msra.mxu0 %v669
        %811 = vmatpush.bf16.msra.mxu0 %v661
        %812 = vmatpush.bf16.msra.mxu0 %v653
        %813 = vmatmul.bf16.gmra.mxu0 %v388
        %v814 = vpop.f32.mrf.mxu0
        %v815 = vadd.f32 %v457, %v814
        %v816 = vpop.f32.mrf.mxu0
        %817 = vdwg.mxu0
        %818 = vmatpush.bf16.msra.mxu0 %v710
        %819 = vmatpush.bf16.msra.mxu0 %v702
        %820 = vmatpush.bf16.msra.mxu0 %v694
        %821 = vmatpush.bf16.msra.mxu0 %v686
        %822 = vmatpush.bf16.msra.mxu0 %v678
        %823 = vmatpush.bf16.msra.mxu0 %v670
        %824 = vmatpush.bf16.msra.mxu0 %v662
        %825 = vmatpush.bf16.msra.mxu0 %v654
        %826 = vmatmul.bf16.gmra.mxu0 %v388
        %v827 = vpop.f32.mrf.mxu0
        %v828 = vadd.f32 %v457, %v827
        %v829 = vpop.f32.mrf.mxu0
        %830 = vdwg.mxu0
        %831 = vmatpush.bf16.msra.mxu0 %v711
        %832 = vmatpush.bf16.msra.mxu0 %v703
        %833 = vmatpush.bf16.msra.mxu0 %v695
        %834 = vmatpush.bf16.msra.mxu0 %v687
        %835 = vmatpush.bf16.msra.mxu0 %v679
        %836 = vmatpush.bf16.msra.mxu0 %v671
        %837 = vmatpush.bf16.msra.mxu0 %v663
        %838 = vmatpush.bf16.msra.mxu0 %v655
        %839 = vmatmul.bf16.gmra.mxu0 %v388
        %v840 = vpop.f32.mrf.mxu0
        %v841 = vadd.f32 %v457, %v840
        %v842 = vpop.f32.mrf.mxu0
        %843 = vdwg.mxu0
        %844 = vmatpush.bf16.msra.mxu0 %v712
        %845 = vmatpush.bf16.msra.mxu0 %v704
        %846 = vmatpush.bf16.msra.mxu0 %v696
        %847 = vmatpush.bf16.msra.mxu0 %v688
        %848 = vmatpush.bf16.msra.mxu0 %v680
        %849 = vmatpush.bf16.msra.mxu0 %v672
        %850 = vmatpush.bf16.msra.mxu0 %v664
        %851 = vmatpush.bf16.msra.mxu0 %v656
        %852 = vmatmul.bf16.gmra.mxu0 %v388
        %v853 = vpop.f32.mrf.mxu0
        %v854 = vadd.f32 %v457, %v853
        %v855 = vpop.f32.mrf.mxu0
        %856 = vdwg.mxu0
        %857 = vmatpush.bf16.msra.mxu0 %v713
        %858 = vmatpush.bf16.msra.mxu0 %v705
        %859 = vmatpush.bf16.msra.mxu0 %v697
        %860 = vmatpush.bf16.msra.mxu0 %v689
        %861 = vmatpush.bf16.msra.mxu0 %v681
        %862 = vmatpush.bf16.msra.mxu0 %v673
        %863 = vmatpush.bf16.msra.mxu0 %v665
        %864 = vmatpush.bf16.msra.mxu0 %v657
        %865 = vmatmul.bf16.gmra.mxu0 %v388
        %v866 = vpop.f32.mrf.mxu0
        %v867 = vadd.f32 %v457, %v866
        %v868 = vpop.f32.mrf.mxu0
        %869 = vdwg.mxu0
        %870 = vmatpush.bf16.msra.mxu0 %v714
        %871 = vmatpush.bf16.msra.mxu0 %v706
        %872 = vmatpush.bf16.msra.mxu0 %v698
        %873 = vmatpush.bf16.msra.mxu0 %v690
        %874 = vmatpush.bf16.msra.mxu0 %v682
        %875 = vmatpush.bf16.msra.mxu0 %v674
        %876 = vmatpush.bf16.msra.mxu0 %v666
        %877 = vmatpush.bf16.msra.mxu0 %v658
        %878 = vmatmul.bf16.gmra.mxu0 %v388
        %v879 = vpop.f32.mrf.mxu0
        %v880 = vadd.f32 %v457, %v879
        %v881 = vpop.f32.mrf.mxu0
        %882 = vdwg.mxu0
        %v883 = vmul.f32 %v789, 0.5
        %v884 = vmul.f32 %v802, 0.5
        %v885 = vmul.f32 %v815, 0.5
        %v886 = vmul.f32 %v828, 0.5
        %v887 = vmul.f32 %v841, 0.5
        %v888 = vmul.f32 %v854, 0.5
        %v889 = vmul.f32 %v867, 0.5
        %v890 = vmul.f32 %v880, 0.5
        %v891 = vtanh.pop %v883
        %v892 = vtanh.pop %v884
        %v893 = vtanh.pop %v885
        %v894 = vtanh.pop %v886
        %v895 = vtanh.pop %v887
        %v896 = vtanh.pop %v888
        %v897 = vtanh.pop %v889
        %v898 = vtanh.pop %v890
        %v899 = vadd.f32 %v891, 1.0
        %v900 = vadd.f32 %v892, 1.0
        %v901 = vadd.f32 %v893, 1.0
        %v902 = vadd.f32 %v894, 1.0
        %v903 = vadd.f32 %v895, 1.0
        %v904 = vadd.f32 %v896, 1.0
        %v905 = vadd.f32 %v897, 1.0
        %v906 = vadd.f32 %v898, 1.0
        %v907 = vmul.f32 %v899, 0.5
        %v908 = vmul.f32 %v900, 0.5
        %v909 = vmul.f32 %v901, 0.5
        %v910 = vmul.f32 %v902, 0.5
        %v911 = vmul.f32 %v903, 0.5
        %v912 = vmul.f32 %v904, 0.5
        %v913 = vmul.f32 %v905, 0.5
        %v914 = vmul.f32 %v906, 0.5
        %v923 = vrot.slane %v907, 1
        %v924 = vrot.slane %v908, 1
        %v925 = vrot.slane %v909, 1
        %v926 = vrot.slane %v910, 1
        %v927 = vrot.slane %v911, 1
        %v928 = vrot.slane %v912, 1
        %v929 = vrot.slane %v913, 1
        %v930 = vrot.slane %v914, 1
        %v939 = vmul.f32 %v789, %v923
        %v940 = vmul.f32 %v802, %v924
        %v941 = vmul.f32 %v815, %v925
        %v942 = vmul.f32 %v828, %v926
        %v943 = vmul.f32 %v841, %v927
        %v944 = vmul.f32 %v854, %v928
        %v945 = vmul.f32 %v867, %v929
        %v946 = vmul.f32 %v880, %v930
        %v947 = vpack.c.bf16 %v940, %v939
        %v948 = vpack.c.bf16 %v942, %v941
        %v949 = vpack.c.bf16 %v944, %v943
        %v950 = vpack.c.bf16 %v946, %v945
        %v955 = vrot.slane %v947, 3
        %v956 = vrot.slane %v948, 6
        %v957 = vrot.slane %v948, 1
        %v958 = vrot.slane %v949, 4
        %v959 = vrot.slane %v949, 7
        %v960 = vrot.slane %v950, 2
        %v961 = vrot.slane %v950, 5
        %vm962 = vcmask 1040384
        %v965 = vsel %vm962, %v947, %v955
        %vm966 = vcmask 1042434
        %v969 = vsel %vm966, %v956, %v957
        %vm970 = vcmask 1041408
        %v971 = vsel %vm970, %v965, %v969
        %vm972 = vcmask 1044484
        %v975 = vsel %vm972, %v958, %v959
        %vm976 = vcmask 1046534
        %v979 = vsel %vm976, %v960, %v961
        %vm980 = vcmask 1045508
        %v981 = vsel %vm980, %v975, %v979
        %vm982 = vcmask 1043456
        %v983 = vsel %vm982, %v971, %v981
        %vm985 = vcmask 1040384
        %vm986 = vsmask.f32 256
        %vm987 = vmand %vm985, %vm986
        %vm988 = vcmask 1041409
        %vm989 = vsmask.f32 1280
        %vm990 = vmand %vm988, %vm989
        %vm991 = vmor %vm990, %vm987
        %vm992 = vcmask 1042434
        %vm993 = vsmask.f32 2304
        %vm994 = vmand %vm992, %vm993
        %vm995 = vmor %vm994, %vm991
        %vm996 = vcmask 1043459
        %vm997 = vsmask.f32 3328
        %vm998 = vmand %vm996, %vm997
        %vm999 = vmor %vm998, %vm995
        %vm1000 = vcmask 1044484
        %vm1001 = vsmask.f32 4352
        %vm1002 = vmand %vm1000, %vm1001
        %vm1003 = vmor %vm1002, %vm999
        %vm1004 = vcmask 1045509
        %vm1005 = vsmask.f32 5376
        %vm1006 = vmand %vm1004, %vm1005
        %vm1007 = vmor %vm1006, %vm1003
        %vm1008 = vcmask 1046534
        %vm1009 = vsmask.f32 6400
        %vm1010 = vmand %vm1008, %vm1009
        %vm1011 = vmor %vm1010, %vm1007
        %vm1012 = vcmask 1047559
        %vm1013 = vsmask.f32 7424
        %vm1014 = vmand %vm1012, %vm1013
        %vm1015 = vmor %vm1014, %vm1011
        %v1016 = vld [vmem:[%s380] sm:$0xff]
        %v1017 = vsel %vm1015, %v983, %v1016
        %1018 = vst [vmem:[%s380] sm:$0xff] %v1017
        %v1019 = vsel %vm962, %v939, 0.0
        %v1020 = vsel %vm962, %v940, 0.0
        %v1021 = vadd.f32 %v1019, %v1020
        %v1022 = vsel %vm962, %v941, 0.0
        %v1023 = vadd.f32 %v1021, %v1022
        %v1024 = vsel %vm962, %v942, 0.0
        %v1025 = vadd.f32 %v1023, %v1024
        %v1026 = vsel %vm962, %v943, 0.0
        %v1027 = vadd.f32 %v1025, %v1026
        %v1028 = vsel %vm962, %v944, 0.0
        %v1029 = vadd.f32 %v1027, %v1028
        %v1030 = vsel %vm962, %v945, 0.0
        %v1031 = vadd.f32 %v1029, %v1030
        %v1032 = vsel %vm962, %v946, 0.0
        %v1033 = vadd.f32 %v1031, %v1032
        %1034 = vadd.xlane.f32.xlu0 %v1033
        %v1035 = vpop.xlane.xlu0 %1034
        %vm1036 = vcmask 0
        %1037 = vst.msk [vmem:[%s384] sm:$0x1] %vm1036, %v1035
        %v1038 = vmul.f32 %v939, %v939
        %v1039 = vmul.f32 %v940, %v940
        %v1040 = vmul.f32 %v941, %v941
        %v1041 = vmul.f32 %v942, %v942
        %v1042 = vmul.f32 %v943, %v943
        %v1043 = vmul.f32 %v944, %v944
        %v1044 = vmul.f32 %v945, %v945
        %v1045 = vmul.f32 %v946, %v946
        %v1046 = vsel %vm962, %v1038, 0.0
        %v1047 = vsel %vm962, %v1039, 0.0
        %v1048 = vadd.f32 %v1046, %v1047
        %v1049 = vsel %vm962, %v1040, 0.0
        %v1050 = vadd.f32 %v1048, %v1049
        %v1051 = vsel %vm962, %v1041, 0.0
        %v1052 = vadd.f32 %v1050, %v1051
        %v1053 = vsel %vm962, %v1042, 0.0
        %v1054 = vadd.f32 %v1052, %v1053
        %v1055 = vsel %vm962, %v1043, 0.0
        %v1056 = vadd.f32 %v1054, %v1055
        %v1057 = vsel %vm962, %v1044, 0.0
        %v1058 = vadd.f32 %v1056, %v1057
        %v1059 = vsel %vm962, %v1045, 0.0
        %v1060 = vadd.f32 %v1058, %v1059
        %1061 = vadd.xlane.f32.xlu0 %v1060
        %v1062 = vpop.xlane.xlu0 %1061
        %1063 = vst.msk [vmem:[%s387] sm:$0x1] %vm1036, %v1062
        %s1064 = smul.u32 8, %s17
        %p1065 = scmp.lt.s32.totalorder %s1064, 15
        %s1066 = scalar_select %p1065, %s1064, 15
        %s1067 = scalar_lea.vmem %s3, %s1066
        %p1068 = scmp.lt.s32.totalorder %s17, 1
        %s1069 = scalar_select %p1068, %s17, 1
        %s1070 = scalar_lea.vmem %s4, %s1069
        %p1071 = scmp.lt.s32.totalorder %s17, 1
        %s1072 = scalar_select %p1071, %s17, 1
        %s1073 = scalar_lea.vmem %s5, %s1072
        // Predicated region
        $region56: #{_lambda_.33} parent=50 // pred_check
          %p1074 = pneg %p103
        $region57: #{_lambda_.33} parent=50 // pred_check_branch
          %1076 = sbr.rel (%p1074) target = $region59
        $region58: #{_lambda_.33} parent=50 // pred_region
          %s1077 = smul.u32 8, %s17
        $region59: #{_lambda_.33} parent=50 // pred_fallthru
          _
        // Predicated region
        $region60: #{_lambda_.33} parent=50 // pred_check
          %p1078 = pneg %p129
        $region61: #{_lambda_.33} parent=50 // pred_check_branch
          %1080 = sbr.rel (%p1078) target = $region63
        $region62: #{_lambda_.33} parent=50 // pred_region
          _
        $region63: #{_lambda_.33} parent=50 // pred_fallthru
          _
        // Predicated region
        $region64: #{_lambda_.33} parent=50 // pred_check
          %p1081 = pneg %p155
        $region65: #{_lambda_.33} parent=50 // pred_check_branch
          %1083 = sbr.rel (%p1081) target = $region67
        $region66: #{_lambda_.33} parent=50 // pred_region
          _
        $region67: #{_lambda_.33} parent=50 // pred_fallthru
          _
      $region51: #{_lambda_.33} parent=5 // pred_fallthru
        _
      %p1084 = scmp.le.s32.totalorder 2, %s12
      // Predicated region
      $region68: #{_lambda_.33} parent=5 // pred_check
        %p1085 = pneg %p1084
      $region69: #{_lambda_.33} parent=5 // pred_check_branch
        %1087 = sbr.rel (%p1085) target = $region71
      $region70: #{_lambda_.33} parent=5 // pred_region
        %s1088 = ssub.s32 %s12, 2
        // Predicated region
        $region72: #{_lambda_.33} parent=70 // pred_check
          %p1089 = pneg %p109
        $region73: #{_lambda_.33} parent=70 // pred_check_branch
          %1091 = sbr.rel (%p1089) target = $region75
        $region74: #{_lambda_.33} parent=70 // pred_region
          %s1092 = smul.u32 8, %s18
          %p1093 = scmp.lt.s32.totalorder %s1092, 15
          %s1094 = scalar_select %p1093, %s1092, 15
          %s1095 = scalar_lea.vmem %s3, %s1094
        $region75: #{_lambda_.33} parent=70 // pred_fallthru
          _
        // Predicated region
        $region76: #{_lambda_.33} parent=70 // pred_check
          %p1096 = pneg %p135
        $region77: #{_lambda_.33} parent=70 // pred_check_branch
          %1098 = sbr.rel (%p1096) target = $region79
        $region78: #{_lambda_.33} parent=70 // pred_region
          %p1099 = scmp.lt.s32.totalorder %s18, 1
          %s1100 = scalar_select %p1099, %s18, 1
          %s1101 = scalar_lea.vmem %s4, %s1100
        $region79: #{_lambda_.33} parent=70 // pred_fallthru
          _
        // Predicated region
        $region80: #{_lambda_.33} parent=70 // pred_check
          %p1102 = pneg %p161
        $region81: #{_lambda_.33} parent=70 // pred_check_branch
          %1104 = sbr.rel (%p1102) target = $region83
        $region82: #{_lambda_.33} parent=70 // pred_region
          %p1105 = scmp.lt.s32.totalorder %s18, 1
          %s1106 = scalar_select %p1105, %s18, 1
          %s1107 = scalar_lea.vmem %s5, %s1106
        $region83: #{_lambda_.33} parent=70 // pred_fallthru
          _
      $region71: #{_lambda_.33} parent=5 // pred_fallthru
        _
    $region6: #{_lambda_.33} parent=1 // loop_footer
      %s16 = sadd.s32 1, %s12
    $region7: #{_lambda_.33} parent=1 // loop_footer_branch
      %11 = sbr.rel target = $region3
    $region8: #{_lambda_.33} parent=1 // loop_exit
      _

</llo_original>
